<compile_context>
chip_gen: v7x
topology: tpu7x:2x2x1
jax: 0.10.0
libtpu: 0.0.40
codegen_flags: <defaults>
</compile_context>

<pallas_src>
import functools

import jax
import jax.numpy as jnp
import numpy as np
from jax import lax
from jax.experimental import pallas as pl
from jax.experimental.pallas import tpu as pltpu


# ----------------------------------------------------------------------------
# In-kernel helpers (values + VMEM scratch refs), layout (C, H, W) / (C, H*W)
# ----------------------------------------------------------------------------
def _conv_same_im2col(t_chw, w_flat, bias, pad_ref, patch_ref, *, K):
    """KxK 'same' conv (stride 1, zero pad K//2) as ONE im2col matmul + bias + ReLU.

    t_chw:     (C, H, W) value (f32)
    w_flat:    (Cout, K*K*C) value, contraction ordered (kh, kw, ci)
    bias:      (Cout, 1) value
    pad_ref:   VMEM scratch (C, H+K-1, W+K-1) for in-kernel zero padding
    patch_ref: VMEM scratch (K*K*C, H*W) im2col patch matrix
    returns:   (Cout, H*W) f32
    """
    C, H, W = t_chw.shape
    p = K // 2
    # zero padding in VMEM (rewritten every grid step -> safe under "parallel")
    pad_ref[...] = jnp.zeros(pad_ref.shape, pad_ref.dtype)
    pad_ref[:, p:p + H, p:p + W] = t_chw
    # patch matrix: K*K shifted views stacked along the contraction (sublane) axis
    idx = 0
    for kh in range(K):
        for kw in range(K):
            patch_ref[idx * C:(idx + 1) * C, :] = (
                pad_ref[:, kh:kh + H, kw:kw + W].reshape(C, H * W))
            idx += 1
    y = jnp.dot(w_flat, patch_ref[...],
                preferred_element_type=jnp.float32) + bias
    return jnp.maximum(y, 0.0)


def _maxpool3x3_same(x_chw, xpad_ref):
    """3x3 max pool, stride 1, pad 1 (-inf padding), separable (vertical, horizontal)."""
    C, H, W = x_chw.shape
    xpad_ref[...] = jnp.full(xpad_ref.shape, -jnp.inf, xpad_ref.dtype)
    xpad_ref[:, 1:1 + H, 1:1 + W] = x_chw
    col = jnp.maximum(jnp.maximum(xpad_ref[:, 0:H, :], xpad_ref[:, 1:1 + H, :]),
                      xpad_ref[:, 2:2 + H, :])                  # (C, H, W+2)
    return jnp.maximum(jnp.maximum(col[:, :, 0:W], col[:, :, 1:1 + W]),
                       col[:, :, 2:2 + W])                      # (C, H, W)


# ----------------------------------------------------------------------------
# Fused Inception kernel (one batch image per grid step)
# ----------------------------------------------------------------------------
def _inception_kernel(x_ref,
                      w1x1_ref, b1x1_ref,
                      w2b_ref, b2b_ref,
                      w3b_ref, b3b_ref,
                      w4_ref, b4_ref,
                      o_ref,
                      xpad_ref, pad3_ref, patch3_ref, pad5_ref, patch5_ref,
                      *, H, W, c1, r2, r3):
    HW = H * W
    xf = x_ref[0]                                  # (Cin, H*W) — spatial on lanes
    cin = xf.shape[0]

    # ---- branches 1, 2-reduce, 3-reduce: ONE fused 1x1 matmul + ReLU --------
    t = jnp.maximum(
        jnp.dot(w1x1_ref[...], xf, preferred_element_type=jnp.float32)
        + b1x1_ref[...], 0.0)                      # (c1 + r2 + r3, HW)
    y1 = t[0:c1, :]
    t2 = t[c1:c1 + r2, :].reshape(r2, H, W)
    t3 = t[c1 + r2:c1 + r2 + r3, :].reshape(r3, H, W)

    # ---- branch 2: 3x3 conv (pad 1) + ReLU -----------------------------------
    y2 = _conv_same_im2col(t2, w2b_ref[...], b2b_ref[...],
                           pad3_ref, patch3_ref, K=3)          # (c3, HW)

    # ---- branch 3: 5x5 conv (pad 2) + ReLU -----------------------------------
    y3 = _conv_same_im2col(t3, w3b_ref[...], b3b_ref[...],
                           pad5_ref, patch5_ref, K=5)          # (c5, HW)

    # ---- branch 4: 3x3 max pool (s1, p1) -> 1x1 conv + ReLU ------------------
    pooled = _maxpool3x3_same(xf.reshape(cin, H, W), xpad_ref)  # (Cin, H, W)
    y4 = jnp.maximum(
        jnp.dot(w4_ref[...], pooled.reshape(cin, HW),
                preferred_element_type=jnp.float32) + b4_ref[...], 0.0)

    # ---- fused concat: each branch writes its sublane-aligned channel slice --
    c3, c5, cp = y2.shape[0], y3.shape[0], y4.shape[0]
    o0, o1, o2 = c1, c1 + c3, c1 + c3 + c5
    o_ref[0, 0:o0, :] = y1.astype(o_ref.dtype)
    o_ref[0, o0:o1, :] = y2.astype(o_ref.dtype)
    o_ref[0, o1:o2, :] = y3.astype(o_ref.dtype)
    o_ref[0, o2:o2 + cp, :] = y4.astype(o_ref.dtype)


# ----------------------------------------------------------------------------
# Parameter init / prep (PyTorch Conv2d OIHW layout)
# ----------------------------------------------------------------------------
def init_inception_params(key, in_channels, ch1x1, ch3x3_reduce, ch3x3,
                          ch5x5_reduce, ch5x5, pool_proj):
    keys = jax.random.split(key, 12)

    def conv(kw, kb, cout, cin, k):
        w = 0.1 * jax.random.normal(kw, (cout, cin, k, k), jnp.float32)
        b = 0.1 * jax.random.normal(kb, (cout,), jnp.float32)
        return w, b

    p = {}
    p["b1"] = conv(keys[0], keys[1], ch1x1, in_channels, 1)
    p["b2a"] = conv(keys[2], keys[3], ch3x3_reduce, in_channels, 1)
    p["b2b"] = conv(keys[4], keys[5], ch3x3, ch3x3_reduce, 3)
    p["b3a"] = conv(keys[6], keys[7], ch5x5_reduce, in_channels, 1)
    p["b3b"] = conv(keys[8], keys[9], ch5x5, ch5x5_reduce, 5)
    p["b4"] = conv(keys[10], keys[11], pool_proj, in_channels, 1)
    return p


def _prep_1x1(w, b):
    # (Cout, Cin, 1, 1) -> (Cout, Cin); bias -> (Cout, 1)
    return (w[:, :, 0, 0].astype(jnp.float32),
            b.reshape(-1, 1).astype(jnp.float32))


def _prep_kxk(w, b, K):
    # (Cout, Cin, K, K) -> (Cout, K*K*Cin), contraction ordered (kh, kw, ci)
    cout, cin = w.shape[0], w.shape[1]
    wf = jnp.transpose(w, (0, 2, 3, 1)).reshape(cout, K * K * cin)
    return wf.astype(jnp.float32), b.reshape(-1, 1).astype(jnp.float32)


# ----------------------------------------------------------------------------
# Public forward (NCHW in, NCHW out) — single fused pallas_call, no transposes
# ----------------------------------------------------------------------------
def inception_forward(x_nchw, params):
    N, Cin, H, W = x_nchw.shape
    HW = H * W
    # NCHW -> (N, C, H*W) is a free, layout-preserving reshape (no transpose).
    x = x_nchw.reshape(N, Cin, HW).astype(jnp.float32)

    w1, b1 = _prep_1x1(*params["b1"])
    w2a, b2a = _prep_1x1(*params["b2a"])
    w2b, b2b = _prep_kxk(*params["b2b"], 3)
    w3a, b3a = _prep_1x1(*params["b3a"])
    w3b, b3b = _prep_kxk(*params["b3b"], 5)
    w4, b4 = _prep_1x1(*params["b4"])

    c1, r2, c3 = w1.shape[0], w2a.shape[0], w2b.shape[0]
    r3, c5, cp = w3a.shape[0], w3b.shape[0], w4.shape[0]
    ctot = c1 + c3 + c5 + cp

    # Fuse the three 1x1 convs that read x directly into one weight matrix.
    w1x1 = jnp.concatenate([w1, w2a, w3a], axis=0)          # (c1+r2+r3, Cin)
    b1x1 = jnp.concatenate([b1, b2a, b3a], axis=0)          # (c1+r2+r3, 1)

    def full_spec(a):
        return pl.BlockSpec(a.shape, lambda n: (0,) * a.ndim)

    flops = 2 * N * HW * (Cin * (c1 + r2 + r3)
                          + 9 * r2 * c3 + 25 * r3 * c5
                          + Cin * cp)
    param_bytes = sum(4 * a.size for a in
                      (w1x1, b1x1, w2b, b2b, w3b, b3b, w4, b4))
    bytes_accessed = 4 * x.size + param_bytes + 4 * N * HW * ctot

    kernel = functools.partial(_inception_kernel, H=H, W=W, c1=c1, r2=r2, r3=r3)

    out = pl.pallas_call(
        kernel,
        out_shape=jax.ShapeDtypeStruct((N, ctot, HW), jnp.float32),
        grid_spec=pltpu.PrefetchScalarGridSpec(
            num_scalar_prefetch=0,
            grid=(N,),
            in_specs=[
                pl.BlockSpec((1, Cin, HW), lambda n: (n, 0, 0)),
                full_spec(w1x1), full_spec(b1x1),
                full_spec(w2b), full_spec(b2b),
                full_spec(w3b), full_spec(b3b),
                full_spec(w4), full_spec(b4),
            ],
            out_specs=pl.BlockSpec((1, ctot, HW), lambda n: (n, 0, 0)),
            scratch_shapes=[
                pltpu.VMEM((Cin, H + 2, W + 2), jnp.float32),   # maxpool pad
                pltpu.VMEM((r2, H + 2, W + 2), jnp.float32),    # 3x3 pad
                pltpu.VMEM((9 * r2, HW), jnp.float32),          # 3x3 im2col
                pltpu.VMEM((r3, H + 4, W + 4), jnp.float32),    # 5x5 pad
                pltpu.VMEM((25 * r3, HW), jnp.float32),         # 5x5 im2col
            ],
        ),
        compiler_params=pltpu.CompilerParams(
            dimension_semantics=("parallel",),          # 2 TCs on v7x
            vmem_limit_bytes=32 * 1024 * 1024),
        cost_estimate=pl.CostEstimate(flops=flops, transcendentals=0,
                                      bytes_accessed=bytes_accessed),
    )(x, w1x1, b1x1, w2b, b2b, w3b, b3b, w4, b4)

    # (N, Ctot, H*W) -> NCHW is again a free reshape (no transpose).
    return out.reshape(N, ctot, H, W)


# ----------------------------------------------------------------------------
# Pure-JAX reference (lax conv) for correctness check
# ----------------------------------------------------------------------------
def _ref_conv_relu(x_nchw, w, b, pad):
    y = lax.conv_general_dilated(
        x_nchw, w, window_strides=(1, 1),
        padding=[(pad, pad), (pad, pad)],
        dimension_numbers=("NCHW", "OIHW", "NCHW"))
    y = y + b.reshape(1, -1, 1, 1)
    return jnp.maximum(y, 0.0)


def _ref_inception(x_nchw, p):
    x1 = _ref_conv_relu(x_nchw, *p["b1"], 0)
    x2 = _ref_conv_relu(x_nchw, *p["b2a"], 0)
    x2 = _ref_conv_relu(x2, *p["b2b"], 1)
    x3 = _ref_conv_relu(x_nchw, *p["b3a"], 0)
    x3 = _ref_conv_relu(x3, *p["b3b"], 2)
    x4 = lax.reduce_window(x_nchw, -jnp.inf, lax.max,
                           (1, 1, 3, 3), (1, 1, 1, 1),
                           [(0, 0), (0, 0), (1, 1), (1, 1)])
    x4 = _ref_conv_relu(x4, *p["b4"], 0)
    return jnp.concatenate([x1, x2, x3, x4], axis=1)


# ----------------------------------------------------------------------------
if __name__ == "__main__":
    key = jax.random.PRNGKey(0)
    k_x, k_p = jax.random.split(key)

    # Small shapes consistent with the module: N=2, C_in=4, H=W=16.
    N, Cin, H, W = 2, 4, 16, 16
    ch1x1, ch3x3_red, ch3x3 = 8, 4, 8
    ch5x5_red, ch5x5, pool_proj = 4, 8, 8

    x = jax.random.normal(k_x, (N, Cin, H, W), jnp.float32)
    params = init_inception_params(k_p, Cin, ch1x1, ch3x3_red, ch3x3,
                                   ch5x5_red, ch5x5, pool_proj)

    out = jax.block_until_ready(inception_forward(x, params))
    assert out.shape == (N, ch1x1 + ch3x3 + ch5x5 + pool_proj, H, W), out.shape

    ref = jax.block_until_ready(_ref_inception(x, params))
    np.testing.assert_allclose(np.asarray(out), np.asarray(ref),
                               rtol=1e-3, atol=1e-3)

    print("KERNEL_OK")
</pallas_src>

<mosaic_0001>
module attributes {stable_mosaic.version = 11 : i64} {
  func.func @_inception_kernel(%arg0: i32, %arg1: memref<1x4x256xf32, #tpu.memory_space<vmem>>, %arg2: memref<16x4xf32, #tpu.memory_space<vmem>>, %arg3: memref<16x1xf32, #tpu.memory_space<vmem>>, %arg4: memref<8x36xf32, #tpu.memory_space<vmem>>, %arg5: memref<8x1xf32, #tpu.memory_space<vmem>>, %arg6: memref<8x100xf32, #tpu.memory_space<vmem>>, %arg7: memref<8x1xf32, #tpu.memory_space<vmem>>, %arg8: memref<8x4xf32, #tpu.memory_space<vmem>>, %arg9: memref<8x1xf32, #tpu.memory_space<vmem>>, %arg10: memref<1x32x256xf32, #tpu.memory_space<vmem>>, %arg11: memref<4x18x18xf32, #tpu.memory_space<vmem>>, %arg12: memref<4x18x18xf32, #tpu.memory_space<vmem>>, %arg13: memref<36x256xf32, #tpu.memory_space<vmem>>, %arg14: memref<4x20x20xf32, #tpu.memory_space<vmem>>, %arg15: memref<100x256xf32, #tpu.memory_space<vmem>>) attributes {dimension_semantics = [#tpu.dimension_semantics<parallel>], iteration_bounds = array<i64: 2>, scalar_prefetch = 0 : i64, scratch_operands = 5 : i64, tpu.core_type = #tpu.core_type<tc>, window_params = [{transform_indices = @transform_0, window_bounds = array<i64: 1, 4, 256>}, {pipeline_mode = #tpu.pipeline_mode<synchronous>, transform_indices = @transform_1, window_bounds = array<i64: 16, 4>}, {pipeline_mode = #tpu.pipeline_mode<synchronous>, transform_indices = @transform_2, window_bounds = array<i64: 16, 1>}, {pipeline_mode = #tpu.pipeline_mode<synchronous>, transform_indices = @transform_3, window_bounds = array<i64: 8, 36>}, {pipeline_mode = #tpu.pipeline_mode<synchronous>, transform_indices = @transform_4, window_bounds = array<i64: 8, 1>}, {pipeline_mode = #tpu.pipeline_mode<synchronous>, transform_indices = @transform_5, window_bounds = array<i64: 8, 100>}, {pipeline_mode = #tpu.pipeline_mode<synchronous>, transform_indices = @transform_6, window_bounds = array<i64: 8, 1>}, {pipeline_mode = #tpu.pipeline_mode<synchronous>, transform_indices = @transform_7, window_bounds = array<i64: 8, 4>}, {pipeline_mode = #tpu.pipeline_mode<synchronous>, transform_indices = @transform_8, window_bounds = array<i64: 8, 1>}, {transform_indices = @transform_9, window_bounds = array<i64: 1, 32, 256>}]} {
    %c0 = arith.constant 0 : index
    %c0_0 = arith.constant 0 : index
    %c0_1 = arith.constant 0 : index
    %0 = vector.load %arg1[%c0, %c0_0, %c0_1] : memref<1x4x256xf32, #tpu.memory_space<vmem>>, vector<1x4x256xf32>
    %1 = vector.shape_cast %0 : vector<1x4x256xf32> to vector<4x256xf32>
    %c0_2 = arith.constant 0 : index
    %c0_3 = arith.constant 0 : index
    %2 = vector.load %arg2[%c0_2, %c0_3] : memref<16x4xf32, #tpu.memory_space<vmem>>, vector<16x4xf32>
    %cst = arith.constant dense<0.000000e+00> : vector<16x256xf32>
    %3 = tpu.matmul %2, %1, %cst {dimension_numbers = #tpu.dot_dimension_numbers<[1], [0], [0], [1], [0, 0, 1, 1], [], []>} : vector<16x4xf32>, vector<4x256xf32>, vector<16x256xf32> -> vector<16x256xf32>
    %c0_4 = arith.constant 0 : index
    %c0_5 = arith.constant 0 : index
    %4 = vector.load %arg3[%c0_4, %c0_5] : memref<16x1xf32, #tpu.memory_space<vmem>>, vector<16x1xf32>
    %5 = vector.broadcast %4 : vector<16x1xf32> to vector<16x256xf32>
    %6 = arith.addf %3, %5 : vector<16x256xf32>
    %cst_6 = arith.constant 0.000000e+00 : f32
    %7 = vector.broadcast %cst_6 : f32 to vector<16x256xf32>
    %8 = arith.maximumf %6, %7 : vector<16x256xf32>
    %9 = vector.extract_strided_slice %8 {offsets = [0, 0], sizes = [8, 256], strides = [1, 1]} : vector<16x256xf32> to vector<8x256xf32>
    %10 = vector.extract_strided_slice %8 {offsets = [8, 0], sizes = [4, 256], strides = [1, 1]} : vector<16x256xf32> to vector<4x256xf32>
    %11 = vector.shape_cast %10 : vector<4x256xf32> to vector<4x16x16xf32>
    %12 = vector.extract_strided_slice %8 {offsets = [12, 0], sizes = [4, 256], strides = [1, 1]} : vector<16x256xf32> to vector<4x256xf32>
    %13 = vector.shape_cast %12 : vector<4x256xf32> to vector<4x16x16xf32>
    %c0_7 = arith.constant 0 : index
    %c0_8 = arith.constant 0 : index
    %14 = vector.load %arg4[%c0_7, %c0_8] : memref<8x36xf32, #tpu.memory_space<vmem>>, vector<8x36xf32>
    %c0_9 = arith.constant 0 : index
    %c0_10 = arith.constant 0 : index
    %15 = vector.load %arg5[%c0_9, %c0_10] : memref<8x1xf32, #tpu.memory_space<vmem>>, vector<8x1xf32>
    %cst_11 = arith.constant 0.000000e+00 : f32
    %16 = vector.broadcast %cst_11 : f32 to vector<4x18x18xf32>
    %c0_12 = arith.constant 0 : index
    %c0_13 = arith.constant 0 : index
    %c0_14 = arith.constant 0 : index
    %17 = vector.load %arg12[%c0_12, %c0_13, %c0_14] : memref<4x18x18xf32, #tpu.memory_space<vmem>>, vector<4x18x18xf32>
    tpu.vector_store %arg12[%c0_12, %c0_13, %c0_14], %16 {strides = array<i32>} : memref<4x18x18xf32, #tpu.memory_space<vmem>>, vector<4x18x18xf32>,
    %c0_15 = arith.constant 0 : index
    %c1 = arith.constant 1 : index
    %c1_16 = arith.constant 1 : index
    %18 = vector.load %arg12[%c0_15, %c1, %c1_16] : memref<4x18x18xf32, #tpu.memory_space<vmem>>, vector<4x16x16xf32>
    tpu.vector_store %arg12[%c0_15, %c1, %c1_16], %11 {strides = array<i32>} : memref<4x18x18xf32, #tpu.memory_space<vmem>>, vector<4x16x16xf32>,
    %c0_17 = arith.constant 0 : index
    %c0_18 = arith.constant 0 : index
    %c0_19 = arith.constant 0 : index
    %19 = vector.load %arg12[%c0_17, %c0_18, %c0_19] : memref<4x18x18xf32, #tpu.memory_space<vmem>>, vector<4x16x16xf32>
    %20 = vector.shape_cast %19 : vector<4x16x16xf32> to vector<4x256xf32>
    %c0_20 = arith.constant 0 : index
    %c0_21 = arith.constant 0 : index
    %21 = vector.load %arg13[%c0_20, %c0_21] : memref<36x256xf32, #tpu.memory_space<vmem>>, vector<4x256xf32>
    tpu.vector_store %arg13[%c0_20, %c0_21], %20 {strides = array<i32>} : memref<36x256xf32, #tpu.memory_space<vmem>>, vector<4x256xf32>,
    %c0_22 = arith.constant 0 : index
    %c0_23 = arith.constant 0 : index
    %c1_24 = arith.constant 1 : index
    %22 = vector.load %arg12[%c0_22, %c0_23, %c1_24] : memref<4x18x18xf32, #tpu.memory_space<vmem>>, vector<4x16x16xf32>
    %23 = vector.shape_cast %22 : vector<4x16x16xf32> to vector<4x256xf32>
    %c4 = arith.constant 4 : index
    %c0_25 = arith.constant 0 : index
    %24 = vector.load %arg13[%c4, %c0_25] : memref<36x256xf32, #tpu.memory_space<vmem>>, vector<4x256xf32>
    tpu.vector_store %arg13[%c4, %c0_25], %23 {strides = array<i32>} : memref<36x256xf32, #tpu.memory_space<vmem>>, vector<4x256xf32>,
    %c0_26 = arith.constant 0 : index
    %c0_27 = arith.constant 0 : index
    %c2 = arith.constant 2 : index
    %25 = vector.load %arg12[%c0_26, %c0_27, %c2] : memref<4x18x18xf32, #tpu.memory_space<vmem>>, vector<4x16x16xf32>
    %26 = vector.shape_cast %25 : vector<4x16x16xf32> to vector<4x256xf32>
    %c8 = arith.constant 8 : index
    %c0_28 = arith.constant 0 : index
    %27 = vector.load %arg13[%c8, %c0_28] : memref<36x256xf32, #tpu.memory_space<vmem>>, vector<4x256xf32>
    tpu.vector_store %arg13[%c8, %c0_28], %26 {strides = array<i32>} : memref<36x256xf32, #tpu.memory_space<vmem>>, vector<4x256xf32>,
    %c0_29 = arith.constant 0 : index
    %c1_30 = arith.constant 1 : index
    %c0_31 = arith.constant 0 : index
    %28 = vector.load %arg12[%c0_29, %c1_30, %c0_31] : memref<4x18x18xf32, #tpu.memory_space<vmem>>, vector<4x16x16xf32>
    %29 = vector.shape_cast %28 : vector<4x16x16xf32> to vector<4x256xf32>
    %c12 = arith.constant 12 : index
    %c0_32 = arith.constant 0 : index
    %30 = vector.load %arg13[%c12, %c0_32] : memref<36x256xf32, #tpu.memory_space<vmem>>, vector<4x256xf32>
    tpu.vector_store %arg13[%c12, %c0_32], %29 {strides = array<i32>} : memref<36x256xf32, #tpu.memory_space<vmem>>, vector<4x256xf32>,
    %c0_33 = arith.constant 0 : index
    %c1_34 = arith.constant 1 : index
    %c1_35 = arith.constant 1 : index
    %31 = vector.load %arg12[%c0_33, %c1_34, %c1_35] : memref<4x18x18xf32, #tpu.memory_space<vmem>>, vector<4x16x16xf32>
    %32 = vector.shape_cast %31 : vector<4x16x16xf32> to vector<4x256xf32>
    %c16 = arith.constant 16 : index
    %c0_36 = arith.constant 0 : index
    %33 = vector.load %arg13[%c16, %c0_36] : memref<36x256xf32, #tpu.memory_space<vmem>>, vector<4x256xf32>
    tpu.vector_store %arg13[%c16, %c0_36], %32 {strides = array<i32>} : memref<36x256xf32, #tpu.memory_space<vmem>>, vector<4x256xf32>,
    %c0_37 = arith.constant 0 : index
    %c1_38 = arith.constant 1 : index
    %c2_39 = arith.constant 2 : index
    %34 = vector.load %arg12[%c0_37, %c1_38, %c2_39] : memref<4x18x18xf32, #tpu.memory_space<vmem>>, vector<4x16x16xf32>
    %35 = vector.shape_cast %34 : vector<4x16x16xf32> to vector<4x256xf32>
    %c20 = arith.constant 20 : index
    %c0_40 = arith.constant 0 : index
    %36 = vector.load %arg13[%c20, %c0_40] : memref<36x256xf32, #tpu.memory_space<vmem>>, vector<4x256xf32>
    tpu.vector_store %arg13[%c20, %c0_40], %35 {strides = array<i32>} : memref<36x256xf32, #tpu.memory_space<vmem>>, vector<4x256xf32>,
    %c0_41 = arith.constant 0 : index
    %c2_42 = arith.constant 2 : index
    %c0_43 = arith.constant 0 : index
    %37 = vector.load %arg12[%c0_41, %c2_42, %c0_43] : memref<4x18x18xf32, #tpu.memory_space<vmem>>, vector<4x16x16xf32>
    %38 = vector.shape_cast %37 : vector<4x16x16xf32> to vector<4x256xf32>
    %c24 = arith.constant 24 : index
    %c0_44 = arith.constant 0 : index
    %39 = vector.load %arg13[%c24, %c0_44] : memref<36x256xf32, #tpu.memory_space<vmem>>, vector<4x256xf32>
    tpu.vector_store %arg13[%c24, %c0_44], %38 {strides = array<i32>} : memref<36x256xf32, #tpu.memory_space<vmem>>, vector<4x256xf32>,
    %c0_45 = arith.constant 0 : index
    %c2_46 = arith.constant 2 : index
    %c1_47 = arith.constant 1 : index
    %40 = vector.load %arg12[%c0_45, %c2_46, %c1_47] : memref<4x18x18xf32, #tpu.memory_space<vmem>>, vector<4x16x16xf32>
    %41 = vector.shape_cast %40 : vector<4x16x16xf32> to vector<4x256xf32>
    %c28 = arith.constant 28 : index
    %c0_48 = arith.constant 0 : index
    %42 = vector.load %arg13[%c28, %c0_48] : memref<36x256xf32, #tpu.memory_space<vmem>>, vector<4x256xf32>
    tpu.vector_store %arg13[%c28, %c0_48], %41 {strides = array<i32>} : memref<36x256xf32, #tpu.memory_space<vmem>>, vector<4x256xf32>,
    %c0_49 = arith.constant 0 : index
    %c2_50 = arith.constant 2 : index
    %c2_51 = arith.constant 2 : index
    %43 = vector.load %arg12[%c0_49, %c2_50, %c2_51] : memref<4x18x18xf32, #tpu.memory_space<vmem>>, vector<4x16x16xf32>
    %44 = vector.shape_cast %43 : vector<4x16x16xf32> to vector<4x256xf32>
    %c32 = arith.constant 32 : index
    %c0_52 = arith.constant 0 : index
    %45 = vector.load %arg13[%c32, %c0_52] : memref<36x256xf32, #tpu.memory_space<vmem>>, vector<4x256xf32>
    tpu.vector_store %arg13[%c32, %c0_52], %44 {strides = array<i32>} : memref<36x256xf32, #tpu.memory_space<vmem>>, vector<4x256xf32>,
    %c0_53 = arith.constant 0 : index
    %c0_54 = arith.constant 0 : index
    %46 = vector.load %arg13[%c0_53, %c0_54] : memref<36x256xf32, #tpu.memory_space<vmem>>, vector<36x256xf32>
    %cst_55 = arith.constant dense<0.000000e+00> : vector<8x256xf32>
    %47 = tpu.matmul %14, %46, %cst_55 {dimension_numbers = #tpu.dot_dimension_numbers<[1], [0], [0], [1], [0, 0, 1, 1], [], []>} : vector<8x36xf32>, vector<36x256xf32>, vector<8x256xf32> -> vector<8x256xf32>
    %48 = vector.broadcast %15 : vector<8x1xf32> to vector<8x256xf32>
    %49 = arith.addf %47, %48 : vector<8x256xf32>
    %cst_56 = arith.constant 0.000000e+00 : f32
    %50 = vector.broadcast %cst_56 : f32 to vector<8x256xf32>
    %51 = arith.maximumf %49, %50 : vector<8x256xf32>
    %c0_57 = arith.constant 0 : index
    %c0_58 = arith.constant 0 : index
    %52 = vector.load %arg6[%c0_57, %c0_58] : memref<8x100xf32, #tpu.memory_space<vmem>>, vector<8x100xf32>
    %c0_59 = arith.constant 0 : index
    %c0_60 = arith.constant 0 : index
    %53 = vector.load %arg7[%c0_59, %c0_60] : memref<8x1xf32, #tpu.memory_space<vmem>>, vector<8x1xf32>
    %cst_61 = arith.constant 0.000000e+00 : f32
    %54 = vector.broadcast %cst_61 : f32 to vector<4x20x20xf32>
    %c0_62 = arith.constant 0 : index
    %c0_63 = arith.constant 0 : index
    %c0_64 = arith.constant 0 : index
    %55 = vector.load %arg14[%c0_62, %c0_63, %c0_64] : memref<4x20x20xf32, #tpu.memory_space<vmem>>, vector<4x20x20xf32>
    tpu.vector_store %arg14[%c0_62, %c0_63, %c0_64], %54 {strides = array<i32>} : memref<4x20x20xf32, #tpu.memory_space<vmem>>, vector<4x20x20xf32>,
    %c0_65 = arith.constant 0 : index
    %c2_66 = arith.constant 2 : index
    %c2_67 = arith.constant 2 : index
    %56 = vector.load %arg14[%c0_65, %c2_66, %c2_67] : memref<4x20x20xf32, #tpu.memory_space<vmem>>, vector<4x16x16xf32>
    tpu.vector_store %arg14[%c0_65, %c2_66, %c2_67], %13 {strides = array<i32>} : memref<4x20x20xf32, #tpu.memory_space<vmem>>, vector<4x16x16xf32>,
    %c0_68 = arith.constant 0 : index
    %c0_69 = arith.constant 0 : index
    %c0_70 = arith.constant 0 : index
    %57 = vector.load %arg14[%c0_68, %c0_69, %c0_70] : memref<4x20x20xf32, #tpu.memory_space<vmem>>, vector<4x16x16xf32>
    %58 = vector.shape_cast %57 : vector<4x16x16xf32> to vector<4x256xf32>
    %c0_71 = arith.constant 0 : index
    %c0_72 = arith.constant 0 : index
    %59 = vector.load %arg15[%c0_71, %c0_72] : memref<100x256xf32, #tpu.memory_space<vmem>>, vector<4x256xf32>
    tpu.vector_store %arg15[%c0_71, %c0_72], %58 {strides = array<i32>} : memref<100x256xf32, #tpu.memory_space<vmem>>, vector<4x256xf32>,
    %c0_73 = arith.constant 0 : index
    %c0_74 = arith.constant 0 : index
    %c1_75 = arith.constant 1 : index
    %60 = vector.load %arg14[%c0_73, %c0_74, %c1_75] : memref<4x20x20xf32, #tpu.memory_space<vmem>>, vector<4x16x16xf32>
    %61 = vector.shape_cast %60 : vector<4x16x16xf32> to vector<4x256xf32>
    %c4_76 = arith.constant 4 : index
    %c0_77 = arith.constant 0 : index
    %62 = vector.load %arg15[%c4_76, %c0_77] : memref<100x256xf32, #tpu.memory_space<vmem>>, vector<4x256xf32>
    tpu.vector_store %arg15[%c4_76, %c0_77], %61 {strides = array<i32>} : memref<100x256xf32, #tpu.memory_space<vmem>>, vector<4x256xf32>,
    %c0_78 = arith.constant 0 : index
    %c0_79 = arith.constant 0 : index
    %c2_80 = arith.constant 2 : index
    %63 = vector.load %arg14[%c0_78, %c0_79, %c2_80] : memref<4x20x20xf32, #tpu.memory_space<vmem>>, vector<4x16x16xf32>
    %64 = vector.shape_cast %63 : vector<4x16x16xf32> to vector<4x256xf32>
    %c8_81 = arith.constant 8 : index
    %c0_82 = arith.constant 0 : index
    %65 = vector.load %arg15[%c8_81, %c0_82] : memref<100x256xf32, #tpu.memory_space<vmem>>, vector<4x256xf32>
    tpu.vector_store %arg15[%c8_81, %c0_82], %64 {strides = array<i32>} : memref<100x256xf32, #tpu.memory_space<vmem>>, vector<4x256xf32>,
    %c0_83 = arith.constant 0 : index
    %c0_84 = arith.constant 0 : index
    %c3 = arith.constant 3 : index
    %66 = vector.load %arg14[%c0_83, %c0_84, %c3] : memref<4x20x20xf32, #tpu.memory_space<vmem>>, vector<4x16x16xf32>
    %67 = vector.shape_cast %66 : vector<4x16x16xf32> to vector<4x256xf32>
    %c12_85 = arith.constant 12 : index
    %c0_86 = arith.constant 0 : index
    %68 = vector.load %arg15[%c12_85, %c0_86] : memref<100x256xf32, #tpu.memory_space<vmem>>, vector<4x256xf32>
    tpu.vector_store %arg15[%c12_85, %c0_86], %67 {strides = array<i32>} : memref<100x256xf32, #tpu.memory_space<vmem>>, vector<4x256xf32>,
    %c0_87 = arith.constant 0 : index
    %c0_88 = arith.constant 0 : index
    %c4_89 = arith.constant 4 : index
    %69 = vector.load %arg14[%c0_87, %c0_88, %c4_89] : memref<4x20x20xf32, #tpu.memory_space<vmem>>, vector<4x16x16xf32>
    %70 = vector.shape_cast %69 : vector<4x16x16xf32> to vector<4x256xf32>
    %c16_90 = arith.constant 16 : index
    %c0_91 = arith.constant 0 : index
    %71 = vector.load %arg15[%c16_90, %c0_91] : memref<100x256xf32, #tpu.memory_space<vmem>>, vector<4x256xf32>
    tpu.vector_store %arg15[%c16_90, %c0_91], %70 {strides = array<i32>} : memref<100x256xf32, #tpu.memory_space<vmem>>, vector<4x256xf32>,
    %c0_92 = arith.constant 0 : index
    %c1_93 = arith.constant 1 : index
    %c0_94 = arith.constant 0 : index
    %72 = vector.load %arg14[%c0_92, %c1_93, %c0_94] : memref<4x20x20xf32, #tpu.memory_space<vmem>>, vector<4x16x16xf32>
    %73 = vector.shape_cast %72 : vector<4x16x16xf32> to vector<4x256xf32>
    %c20_95 = arith.constant 20 : index
    %c0_96 = arith.constant 0 : index
    %74 = vector.load %arg15[%c20_95, %c0_96] : memref<100x256xf32, #tpu.memory_space<vmem>>, vector<4x256xf32>
    tpu.vector_store %arg15[%c20_95, %c0_96], %73 {strides = array<i32>} : memref<100x256xf32, #tpu.memory_space<vmem>>, vector<4x256xf32>,
    %c0_97 = arith.constant 0 : index
    %c1_98 = arith.constant 1 : index
    %c1_99 = arith.constant 1 : index
    %75 = vector.load %arg14[%c0_97, %c1_98, %c1_99] : memref<4x20x20xf32, #tpu.memory_space<vmem>>, vector<4x16x16xf32>
    %76 = vector.shape_cast %75 : vector<4x16x16xf32> to vector<4x256xf32>
    %c24_100 = arith.constant 24 : index
    %c0_101 = arith.constant 0 : index
    %77 = vector.load %arg15[%c24_100, %c0_101] : memref<100x256xf32, #tpu.memory_space<vmem>>, vector<4x256xf32>
    tpu.vector_store %arg15[%c24_100, %c0_101], %76 {strides = array<i32>} : memref<100x256xf32, #tpu.memory_space<vmem>>, vector<4x256xf32>,
    %c0_102 = arith.constant 0 : index
    %c1_103 = arith.constant 1 : index
    %c2_104 = arith.constant 2 : index
    %78 = vector.load %arg14[%c0_102, %c1_103, %c2_104] : memref<4x20x20xf32, #tpu.memory_space<vmem>>, vector<4x16x16xf32>
    %79 = vector.shape_cast %78 : vector<4x16x16xf32> to vector<4x256xf32>
    %c28_105 = arith.constant 28 : index
    %c0_106 = arith.constant 0 : index
    %80 = vector.load %arg15[%c28_105, %c0_106] : memref<100x256xf32, #tpu.memory_space<vmem>>, vector<4x256xf32>
    tpu.vector_store %arg15[%c28_105, %c0_106], %79 {strides = array<i32>} : memref<100x256xf32, #tpu.memory_space<vmem>>, vector<4x256xf32>,
    %c0_107 = arith.constant 0 : index
    %c1_108 = arith.constant 1 : index
    %c3_109 = arith.constant 3 : index
    %81 = vector.load %arg14[%c0_107, %c1_108, %c3_109] : memref<4x20x20xf32, #tpu.memory_space<vmem>>, vector<4x16x16xf32>
    %82 = vector.shape_cast %81 : vector<4x16x16xf32> to vector<4x256xf32>
    %c32_110 = arith.constant 32 : index
    %c0_111 = arith.constant 0 : index
    %83 = vector.load %arg15[%c32_110, %c0_111] : memref<100x256xf32, #tpu.memory_space<vmem>>, vector<4x256xf32>
    tpu.vector_store %arg15[%c32_110, %c0_111], %82 {strides = array<i32>} : memref<100x256xf32, #tpu.memory_space<vmem>>, vector<4x256xf32>,
    %c0_112 = arith.constant 0 : index
    %c1_113 = arith.constant 1 : index
    %c4_114 = arith.constant 4 : index
    %84 = vector.load %arg14[%c0_112, %c1_113, %c4_114] : memref<4x20x20xf32, #tpu.memory_space<vmem>>, vector<4x16x16xf32>
    %85 = vector.shape_cast %84 : vector<4x16x16xf32> to vector<4x256xf32>
    %c36 = arith.constant 36 : index
    %c0_115 = arith.constant 0 : index
    %86 = vector.load %arg15[%c36, %c0_115] : memref<100x256xf32, #tpu.memory_space<vmem>>, vector<4x256xf32>
    tpu.vector_store %arg15[%c36, %c0_115], %85 {strides = array<i32>} : memref<100x256xf32, #tpu.memory_space<vmem>>, vector<4x256xf32>,
    %c0_116 = arith.constant 0 : index
    %c2_117 = arith.constant 2 : index
    %c0_118 = arith.constant 0 : index
    %87 = vector.load %arg14[%c0_116, %c2_117, %c0_118] : memref<4x20x20xf32, #tpu.memory_space<vmem>>, vector<4x16x16xf32>
    %88 = vector.shape_cast %87 : vector<4x16x16xf32> to vector<4x256xf32>
    %c40 = arith.constant 40 : index
    %c0_119 = arith.constant 0 : index
    %89 = vector.load %arg15[%c40, %c0_119] : memref<100x256xf32, #tpu.memory_space<vmem>>, vector<4x256xf32>
    tpu.vector_store %arg15[%c40, %c0_119], %88 {strides = array<i32>} : memref<100x256xf32, #tpu.memory_space<vmem>>, vector<4x256xf32>,
    %c0_120 = arith.constant 0 : index
    %c2_121 = arith.constant 2 : index
    %c1_122 = arith.constant 1 : index
    %90 = vector.load %arg14[%c0_120, %c2_121, %c1_122] : memref<4x20x20xf32, #tpu.memory_space<vmem>>, vector<4x16x16xf32>
    %91 = vector.shape_cast %90 : vector<4x16x16xf32> to vector<4x256xf32>
    %c44 = arith.constant 44 : index
    %c0_123 = arith.constant 0 : index
    %92 = vector.load %arg15[%c44, %c0_123] : memref<100x256xf32, #tpu.memory_space<vmem>>, vector<4x256xf32>
    tpu.vector_store %arg15[%c44, %c0_123], %91 {strides = array<i32>} : memref<100x256xf32, #tpu.memory_space<vmem>>, vector<4x256xf32>,
    %c0_124 = arith.constant 0 : index
    %c2_125 = arith.constant 2 : index
    %c2_126 = arith.constant 2 : index
    %93 = vector.load %arg14[%c0_124, %c2_125, %c2_126] : memref<4x20x20xf32, #tpu.memory_space<vmem>>, vector<4x16x16xf32>
    %94 = vector.shape_cast %93 : vector<4x16x16xf32> to vector<4x256xf32>
    %c48 = arith.constant 48 : index
    %c0_127 = arith.constant 0 : index
    %95 = vector.load %arg15[%c48, %c0_127] : memref<100x256xf32, #tpu.memory_space<vmem>>, vector<4x256xf32>
    tpu.vector_store %arg15[%c48, %c0_127], %94 {strides = array<i32>} : memref<100x256xf32, #tpu.memory_space<vmem>>, vector<4x256xf32>,
    %c0_128 = arith.constant 0 : index
    %c2_129 = arith.constant 2 : index
    %c3_130 = arith.constant 3 : index
    %96 = vector.load %arg14[%c0_128, %c2_129, %c3_130] : memref<4x20x20xf32, #tpu.memory_space<vmem>>, vector<4x16x16xf32>
    %97 = vector.shape_cast %96 : vector<4x16x16xf32> to vector<4x256xf32>
    %c52 = arith.constant 52 : index
    %c0_131 = arith.constant 0 : index
    %98 = vector.load %arg15[%c52, %c0_131] : memref<100x256xf32, #tpu.memory_space<vmem>>, vector<4x256xf32>
    tpu.vector_store %arg15[%c52, %c0_131], %97 {strides = array<i32>} : memref<100x256xf32, #tpu.memory_space<vmem>>, vector<4x256xf32>,
    %c0_132 = arith.constant 0 : index
    %c2_133 = arith.constant 2 : index
    %c4_134 = arith.constant 4 : index
    %99 = vector.load %arg14[%c0_132, %c2_133, %c4_134] : memref<4x20x20xf32, #tpu.memory_space<vmem>>, vector<4x16x16xf32>
    %100 = vector.shape_cast %99 : vector<4x16x16xf32> to vector<4x256xf32>
    %c56 = arith.constant 56 : index
    %c0_135 = arith.constant 0 : index
    %101 = vector.load %arg15[%c56, %c0_135] : memref<100x256xf32, #tpu.memory_space<vmem>>, vector<4x256xf32>
    tpu.vector_store %arg15[%c56, %c0_135], %100 {strides = array<i32>} : memref<100x256xf32, #tpu.memory_space<vmem>>, vector<4x256xf32>,
    %c0_136 = arith.constant 0 : index
    %c3_137 = arith.constant 3 : index
    %c0_138 = arith.constant 0 : index
    %102 = vector.load %arg14[%c0_136, %c3_137, %c0_138] : memref<4x20x20xf32, #tpu.memory_space<vmem>>, vector<4x16x16xf32>
    %103 = vector.shape_cast %102 : vector<4x16x16xf32> to vector<4x256xf32>
    %c60 = arith.constant 60 : index
    %c0_139 = arith.constant 0 : index
    %104 = vector.load %arg15[%c60, %c0_139] : memref<100x256xf32, #tpu.memory_space<vmem>>, vector<4x256xf32>
    tpu.vector_store %arg15[%c60, %c0_139], %103 {strides = array<i32>} : memref<100x256xf32, #tpu.memory_space<vmem>>, vector<4x256xf32>,
    %c0_140 = arith.constant 0 : index
    %c3_141 = arith.constant 3 : index
    %c1_142 = arith.constant 1 : index
    %105 = vector.load %arg14[%c0_140, %c3_141, %c1_142] : memref<4x20x20xf32, #tpu.memory_space<vmem>>, vector<4x16x16xf32>
    %106 = vector.shape_cast %105 : vector<4x16x16xf32> to vector<4x256xf32>
    %c64 = arith.constant 64 : index
    %c0_143 = arith.constant 0 : index
    %107 = vector.load %arg15[%c64, %c0_143] : memref<100x256xf32, #tpu.memory_space<vmem>>, vector<4x256xf32>
    tpu.vector_store %arg15[%c64, %c0_143], %106 {strides = array<i32>} : memref<100x256xf32, #tpu.memory_space<vmem>>, vector<4x256xf32>,
    %c0_144 = arith.constant 0 : index
    %c3_145 = arith.constant 3 : index
    %c2_146 = arith.constant 2 : index
    %108 = vector.load %arg14[%c0_144, %c3_145, %c2_146] : memref<4x20x20xf32, #tpu.memory_space<vmem>>, vector<4x16x16xf32>
    %109 = vector.shape_cast %108 : vector<4x16x16xf32> to vector<4x256xf32>
    %c68 = arith.constant 68 : index
    %c0_147 = arith.constant 0 : index
    %110 = vector.load %arg15[%c68, %c0_147] : memref<100x256xf32, #tpu.memory_space<vmem>>, vector<4x256xf32>
    tpu.vector_store %arg15[%c68, %c0_147], %109 {strides = array<i32>} : memref<100x256xf32, #tpu.memory_space<vmem>>, vector<4x256xf32>,
    %c0_148 = arith.constant 0 : index
    %c3_149 = arith.constant 3 : index
    %c3_150 = arith.constant 3 : index
    %111 = vector.load %arg14[%c0_148, %c3_149, %c3_150] : memref<4x20x20xf32, #tpu.memory_space<vmem>>, vector<4x16x16xf32>
    %112 = vector.shape_cast %111 : vector<4x16x16xf32> to vector<4x256xf32>
    %c72 = arith.constant 72 : index
    %c0_151 = arith.constant 0 : index
    %113 = vector.load %arg15[%c72, %c0_151] : memref<100x256xf32, #tpu.memory_space<vmem>>, vector<4x256xf32>
    tpu.vector_store %arg15[%c72, %c0_151], %112 {strides = array<i32>} : memref<100x256xf32, #tpu.memory_space<vmem>>, vector<4x256xf32>,
    %c0_152 = arith.constant 0 : index
    %c3_153 = arith.constant 3 : index
    %c4_154 = arith.constant 4 : index
    %114 = vector.load %arg14[%c0_152, %c3_153, %c4_154] : memref<4x20x20xf32, #tpu.memory_space<vmem>>, vector<4x16x16xf32>
    %115 = vector.shape_cast %114 : vector<4x16x16xf32> to vector<4x256xf32>
    %c76 = arith.constant 76 : index
    %c0_155 = arith.constant 0 : index
    %116 = vector.load %arg15[%c76, %c0_155] : memref<100x256xf32, #tpu.memory_space<vmem>>, vector<4x256xf32>
    tpu.vector_store %arg15[%c76, %c0_155], %115 {strides = array<i32>} : memref<100x256xf32, #tpu.memory_space<vmem>>, vector<4x256xf32>,
    %c0_156 = arith.constant 0 : index
    %c4_157 = arith.constant 4 : index
    %c0_158 = arith.constant 0 : index
    %117 = vector.load %arg14[%c0_156, %c4_157, %c0_158] : memref<4x20x20xf32, #tpu.memory_space<vmem>>, vector<4x16x16xf32>
    %118 = vector.shape_cast %117 : vector<4x16x16xf32> to vector<4x256xf32>
    %c80 = arith.constant 80 : index
    %c0_159 = arith.constant 0 : index
    %119 = vector.load %arg15[%c80, %c0_159] : memref<100x256xf32, #tpu.memory_space<vmem>>, vector<4x256xf32>
    tpu.vector_store %arg15[%c80, %c0_159], %118 {strides = array<i32>} : memref<100x256xf32, #tpu.memory_space<vmem>>, vector<4x256xf32>,
    %c0_160 = arith.constant 0 : index
    %c4_161 = arith.constant 4 : index
    %c1_162 = arith.constant 1 : index
    %120 = vector.load %arg14[%c0_160, %c4_161, %c1_162] : memref<4x20x20xf32, #tpu.memory_space<vmem>>, vector<4x16x16xf32>
    %121 = vector.shape_cast %120 : vector<4x16x16xf32> to vector<4x256xf32>
    %c84 = arith.constant 84 : index
    %c0_163 = arith.constant 0 : index
    %122 = vector.load %arg15[%c84, %c0_163] : memref<100x256xf32, #tpu.memory_space<vmem>>, vector<4x256xf32>
    tpu.vector_store %arg15[%c84, %c0_163], %121 {strides = array<i32>} : memref<100x256xf32, #tpu.memory_space<vmem>>, vector<4x256xf32>,
    %c0_164 = arith.constant 0 : index
    %c4_165 = arith.constant 4 : index
    %c2_166 = arith.constant 2 : index
    %123 = vector.load %arg14[%c0_164, %c4_165, %c2_166] : memref<4x20x20xf32, #tpu.memory_space<vmem>>, vector<4x16x16xf32>
    %124 = vector.shape_cast %123 : vector<4x16x16xf32> to vector<4x256xf32>
    %c88 = arith.constant 88 : index
    %c0_167 = arith.constant 0 : index
    %125 = vector.load %arg15[%c88, %c0_167] : memref<100x256xf32, #tpu.memory_space<vmem>>, vector<4x256xf32>
    tpu.vector_store %arg15[%c88, %c0_167], %124 {strides = array<i32>} : memref<100x256xf32, #tpu.memory_space<vmem>>, vector<4x256xf32>,
    %c0_168 = arith.constant 0 : index
    %c4_169 = arith.constant 4 : index
    %c3_170 = arith.constant 3 : index
    %126 = vector.load %arg14[%c0_168, %c4_169, %c3_170] : memref<4x20x20xf32, #tpu.memory_space<vmem>>, vector<4x16x16xf32>
    %127 = vector.shape_cast %126 : vector<4x16x16xf32> to vector<4x256xf32>
    %c92 = arith.constant 92 : index
    %c0_171 = arith.constant 0 : index
    %128 = vector.load %arg15[%c92, %c0_171] : memref<100x256xf32, #tpu.memory_space<vmem>>, vector<4x256xf32>
    tpu.vector_store %arg15[%c92, %c0_171], %127 {strides = array<i32>} : memref<100x256xf32, #tpu.memory_space<vmem>>, vector<4x256xf32>,
    %c0_172 = arith.constant 0 : index
    %c4_173 = arith.constant 4 : index
    %c4_174 = arith.constant 4 : index
    %129 = vector.load %arg14[%c0_172, %c4_173, %c4_174] : memref<4x20x20xf32, #tpu.memory_space<vmem>>, vector<4x16x16xf32>
    %130 = vector.shape_cast %129 : vector<4x16x16xf32> to vector<4x256xf32>
    %c96 = arith.constant 96 : index
    %c0_175 = arith.constant 0 : index
    %131 = vector.load %arg15[%c96, %c0_175] : memref<100x256xf32, #tpu.memory_space<vmem>>, vector<4x256xf32>
    tpu.vector_store %arg15[%c96, %c0_175], %130 {strides = array<i32>} : memref<100x256xf32, #tpu.memory_space<vmem>>, vector<4x256xf32>,
    %c0_176 = arith.constant 0 : index
    %c0_177 = arith.constant 0 : index
    %132 = vector.load %arg15[%c0_176, %c0_177] : memref<100x256xf32, #tpu.memory_space<vmem>>, vector<100x256xf32>
    %cst_178 = arith.constant dense<0.000000e+00> : vector<8x256xf32>
    %133 = tpu.matmul %52, %132, %cst_178 {dimension_numbers = #tpu.dot_dimension_numbers<[1], [0], [0], [1], [0, 0, 1, 1], [], []>} : vector<8x100xf32>, vector<100x256xf32>, vector<8x256xf32> -> vector<8x256xf32>
    %134 = vector.broadcast %53 : vector<8x1xf32> to vector<8x256xf32>
    %135 = arith.addf %133, %134 : vector<8x256xf32>
    %cst_179 = arith.constant 0.000000e+00 : f32
    %136 = vector.broadcast %cst_179 : f32 to vector<8x256xf32>
    %137 = arith.maximumf %135, %136 : vector<8x256xf32>
    %138 = vector.shape_cast %1 : vector<4x256xf32> to vector<4x16x16xf32>
    %cst_180 = arith.constant 0xFF800000 : f32
    %139 = vector.broadcast %cst_180 : f32 to vector<4x18x18xf32>
    %c0_181 = arith.constant 0 : index
    %c0_182 = arith.constant 0 : index
    %c0_183 = arith.constant 0 : index
    %140 = vector.load %arg11[%c0_181, %c0_182, %c0_183] : memref<4x18x18xf32, #tpu.memory_space<vmem>>, vector<4x18x18xf32>
    tpu.vector_store %arg11[%c0_181, %c0_182, %c0_183], %139 {strides = array<i32>} : memref<4x18x18xf32, #tpu.memory_space<vmem>>, vector<4x18x18xf32>,
    %c0_184 = arith.constant 0 : index
    %c1_185 = arith.constant 1 : index
    %c1_186 = arith.constant 1 : index
    %141 = vector.load %arg11[%c0_184, %c1_185, %c1_186] : memref<4x18x18xf32, #tpu.memory_space<vmem>>, vector<4x16x16xf32>
    tpu.vector_store %arg11[%c0_184, %c1_185, %c1_186], %138 {strides = array<i32>} : memref<4x18x18xf32, #tpu.memory_space<vmem>>, vector<4x16x16xf32>,
    %c0_187 = arith.constant 0 : index
    %c0_188 = arith.constant 0 : index
    %c0_189 = arith.constant 0 : index
    %142 = vector.load %arg11[%c0_187, %c0_188, %c0_189] : memref<4x18x18xf32, #tpu.memory_space<vmem>>, vector<4x16x18xf32>
    %c0_190 = arith.constant 0 : index
    %c1_191 = arith.constant 1 : index
    %c0_192 = arith.constant 0 : index
    %143 = vector.load %arg11[%c0_190, %c1_191, %c0_192] : memref<4x18x18xf32, #tpu.memory_space<vmem>>, vector<4x16x18xf32>
    %144 = arith.maximumf %142, %143 : vector<4x16x18xf32>
    %c0_193 = arith.constant 0 : index
    %c2_194 = arith.constant 2 : index
    %c0_195 = arith.constant 0 : index
    %145 = vector.load %arg11[%c0_193, %c2_194, %c0_195] : memref<4x18x18xf32, #tpu.memory_space<vmem>>, vector<4x16x18xf32>
    %146 = arith.maximumf %144, %145 : vector<4x16x18xf32>
    %147 = vector.extract_strided_slice %146 {offsets = [0, 0, 0], sizes = [4, 16, 16], strides = [1, 1, 1]} : vector<4x16x18xf32> to vector<4x16x16xf32>
    %148 = vector.extract_strided_slice %146 {offsets = [0, 0, 1], sizes = [4, 16, 16], strides = [1, 1, 1]} : vector<4x16x18xf32> to vector<4x16x16xf32>
    %149 = arith.maximumf %147, %148 : vector<4x16x16xf32>
    %150 = vector.extract_strided_slice %146 {offsets = [0, 0, 2], sizes = [4, 16, 16], strides = [1, 1, 1]} : vector<4x16x18xf32> to vector<4x16x16xf32>
    %151 = arith.maximumf %149, %150 : vector<4x16x16xf32>
    %c0_196 = arith.constant 0 : index
    %c0_197 = arith.constant 0 : index
    %152 = vector.load %arg8[%c0_196, %c0_197] : memref<8x4xf32, #tpu.memory_space<vmem>>, vector<8x4xf32>
    %153 = vector.shape_cast %151 : vector<4x16x16xf32> to vector<4x256xf32>
    %cst_198 = arith.constant dense<0.000000e+00> : vector<8x256xf32>
    %154 = tpu.matmul %152, %153, %cst_198 {dimension_numbers = #tpu.dot_dimension_numbers<[1], [0], [0], [1], [0, 0, 1, 1], [], []>} : vector<8x4xf32>, vector<4x256xf32>, vector<8x256xf32> -> vector<8x256xf32>
    %c0_199 = arith.constant 0 : index
    %c0_200 = arith.constant 0 : index
    %155 = vector.load %arg9[%c0_199, %c0_200] : memref<8x1xf32, #tpu.memory_space<vmem>>, vector<8x1xf32>
    %156 = vector.broadcast %155 : vector<8x1xf32> to vector<8x256xf32>
    %157 = arith.addf %154, %156 : vector<8x256xf32>
    %cst_201 = arith.constant 0.000000e+00 : f32
    %158 = vector.broadcast %cst_201 : f32 to vector<8x256xf32>
    %159 = arith.maximumf %157, %158 : vector<8x256xf32>
    %c0_202 = arith.constant 0 : index
    %c0_203 = arith.constant 0 : index
    %c0_204 = arith.constant 0 : index
    %160 = vector.load %arg10[%c0_202, %c0_203, %c0_204] : memref<1x32x256xf32, #tpu.memory_space<vmem>>, vector<1x8x256xf32>
    %161 = vector.shape_cast %160 : vector<1x8x256xf32> to vector<8x256xf32>
    %162 = vector.shape_cast %9 : vector<8x256xf32> to vector<1x8x256xf32>
    tpu.vector_store %arg10[%c0_202, %c0_203, %c0_204], %162 {strides = array<i32>} : memref<1x32x256xf32, #tpu.memory_space<vmem>>, vector<1x8x256xf32>,
    %c0_205 = arith.constant 0 : index
    %c8_206 = arith.constant 8 : index
    %c0_207 = arith.constant 0 : index
    %163 = vector.load %arg10[%c0_205, %c8_206, %c0_207] : memref<1x32x256xf32, #tpu.memory_space<vmem>>, vector<1x8x256xf32>
    %164 = vector.shape_cast %163 : vector<1x8x256xf32> to vector<8x256xf32>
    %165 = vector.shape_cast %51 : vector<8x256xf32> to vector<1x8x256xf32>
    tpu.vector_store %arg10[%c0_205, %c8_206, %c0_207], %165 {strides = array<i32>} : memref<1x32x256xf32, #tpu.memory_space<vmem>>, vector<1x8x256xf32>,
    %c0_208 = arith.constant 0 : index
    %c16_209 = arith.constant 16 : index
    %c0_210 = arith.constant 0 : index
    %166 = vector.load %arg10[%c0_208, %c16_209, %c0_210] : memref<1x32x256xf32, #tpu.memory_space<vmem>>, vector<1x8x256xf32>
    %167 = vector.shape_cast %166 : vector<1x8x256xf32> to vector<8x256xf32>
    %168 = vector.shape_cast %137 : vector<8x256xf32> to vector<1x8x256xf32>
    tpu.vector_store %arg10[%c0_208, %c16_209, %c0_210], %168 {strides = array<i32>} : memref<1x32x256xf32, #tpu.memory_space<vmem>>, vector<1x8x256xf32>,
    %c0_211 = arith.constant 0 : index
    %c24_212 = arith.constant 24 : index
    %c0_213 = arith.constant 0 : index
    %169 = vector.load %arg10[%c0_211, %c24_212, %c0_213] : memref<1x32x256xf32, #tpu.memory_space<vmem>>, vector<1x8x256xf32>
    %170 = vector.shape_cast %169 : vector<1x8x256xf32> to vector<8x256xf32>
    %171 = vector.shape_cast %159 : vector<8x256xf32> to vector<1x8x256xf32>
    tpu.vector_store %arg10[%c0_211, %c24_212, %c0_213], %171 {strides = array<i32>} : memref<1x32x256xf32, #tpu.memory_space<vmem>>, vector<1x8x256xf32>,
    return
  }
  func.func @transform_0(%arg0: i32) -> (i32, i32, i32) {
    %c0_i32 = arith.constant 0 : i32
    %c0_i32_0 = arith.constant 0 : i32
    %c0_i32_1 = arith.constant 0 : i32
    return %arg0, %c0_i32, %c0_i32_0 : i32, i32, i32
  }
  func.func @transform_1(%arg0: i32) -> (i32, i32) {
    %c0_i32 = arith.constant 0 : i32
    %c0_i32_0 = arith.constant 0 : i32
    %c0_i32_1 = arith.constant 0 : i32
    return %c0_i32, %c0_i32_0 : i32, i32
  }
  func.func @transform_2(%arg0: i32) -> (i32, i32) {
    %c0_i32 = arith.constant 0 : i32
    %c0_i32_0 = arith.constant 0 : i32
    %c0_i32_1 = arith.constant 0 : i32
    return %c0_i32, %c0_i32_0 : i32, i32
  }
  func.func @transform_3(%arg0: i32) -> (i32, i32) {
    %c0_i32 = arith.constant 0 : i32
    %c0_i32_0 = arith.constant 0 : i32
    %c0_i32_1 = arith.constant 0 : i32
    return %c0_i32, %c0_i32_0 : i32, i32
  }
  func.func @transform_4(%arg0: i32) -> (i32, i32) {
    %c0_i32 = arith.constant 0 : i32
    %c0_i32_0 = arith.constant 0 : i32
    %c0_i32_1 = arith.constant 0 : i32
    return %c0_i32, %c0_i32_0 : i32, i32
  }
  func.func @transform_5(%arg0: i32) -> (i32, i32) {
    %c0_i32 = arith.constant 0 : i32
    %c0_i32_0 = arith.constant 0 : i32
    %c0_i32_1 = arith.constant 0 : i32
    return %c0_i32, %c0_i32_0 : i32, i32
  }
  func.func @transform_6(%arg0: i32) -> (i32, i32) {
    %c0_i32 = arith.constant 0 : i32
    %c0_i32_0 = arith.constant 0 : i32
    %c0_i32_1 = arith.constant 0 : i32
    return %c0_i32, %c0_i32_0 : i32, i32
  }
  func.func @transform_7(%arg0: i32) -> (i32, i32) {
    %c0_i32 = arith.constant 0 : i32
    %c0_i32_0 = arith.constant 0 : i32
    %c0_i32_1 = arith.constant 0 : i32
    return %c0_i32, %c0_i32_0 : i32, i32
  }
  func.func @transform_8(%arg0: i32) -> (i32, i32) {
    %c0_i32 = arith.constant 0 : i32
    %c0_i32_0 = arith.constant 0 : i32
    %c0_i32_1 = arith.constant 0 : i32
    return %c0_i32, %c0_i32_0 : i32, i32
  }
  func.func @transform_9(%arg0: i32) -> (i32, i32, i32) {
    %c0_i32 = arith.constant 0 : i32
    %c0_i32_0 = arith.constant 0 : i32
    %c0_i32_1 = arith.constant 0 : i32
    return %arg0, %c0_i32, %c0_i32_0 : i32, i32, i32
  }
}

</mosaic_0001>

<llo_original>
// kernel: tpu_custom_call.1
$region0: #{tpu_custom_call.1}
  #allocation0 [shape = 'u32[]', space=smem, size = 0x4, offset = 0x4, fixed_abs, tag = 'smem constant byte address 0x4 - core index']
  #allocation1 [shape = 'u32[144,128]{1,0:T(1,128)}', space=vmem, size = 0x12000, scoped, tag = 'internal scratch']
  #allocation2 [shape = 'f32[4,18,18]{2,1,0:T(8,128)}', space=vmem, size = 0xc000, scoped, tag = 'scratch operand']
  #allocation3 [shape = 'f32[4,18,18]{2,1,0:T(8,128)}', space=vmem, size = 0xc000, scoped, tag = 'scratch operand']
  #allocation4 [shape = 'f32[36,256]{1,0:T(8,128)}', space=vmem, size = 0xa000, scoped, tag = 'scratch operand']
  #allocation5 [shape = 'f32[4,20,20]{2,1,0:T(8,128)}', space=vmem, size = 0xc000, scoped, tag = 'scratch operand']
  #allocation6 [shape = 'f32[100,256]{1,0:T(8,128)}', space=vmem, size = 0x1a000, scoped, tag = 'scratch operand']
  %s0 = inlined_call_operand.vmem [shape: f32[2,4,256], index: 0, kind: input, shape index: {}]
  %s1 = inlined_call_operand.vmem [shape: f32[16,4], index: 1, kind: input, shape index: {}]
  %s2 = inlined_call_operand.vmem [shape: f32[16,1], index: 2, kind: input, shape index: {}]
  %s3 = inlined_call_operand.vmem [shape: f32[8,36], index: 3, kind: input, shape index: {}]
  %s4 = inlined_call_operand.vmem [shape: f32[8,1], index: 4, kind: input, shape index: {}]
  %s5 = inlined_call_operand.vmem [shape: f32[8,100], index: 5, kind: input, shape index: {}]
  %s6 = inlined_call_operand.vmem [shape: f32[8,1], index: 6, kind: input, shape index: {}]
  %s7 = inlined_call_operand.vmem [shape: f32[8,4], index: 7, kind: input, shape index: {}]
  %s8 = inlined_call_operand.vmem [shape: f32[8,1], index: 8, kind: input, shape index: {}]
  %s9 = inlined_call_operand.hbm [shape: f32[2,32,256], index: 9, kind: output, shape index: {}]
  %s10 = sld [smem:[#allocation0]]
  $region69: #{tpu_custom_call.1} parent=0
    _
  %s12 = ssub.s32 1, %s10
  %s13 = scalar_select 0, %s12, %s10
  $region1: #{tpu_custom_call.1} parent=0
    #allocation7 [shape = 'u8[65536]{0}', space=vmem, size = 0x10000, scoped, tag = 'output window, operand 0']
    #allocation8 [shape = 's32[2]{0}', space=sflag, size = 0x8, scoped, tag = 'scoped memory for tpu_custom_call.1']
    %14 = vsyncpa [#allocation8], 0
    %s15 = scalar_lea.sflag [#allocation8], 1
    %16 = vsyncpa %s15, 0
    loop: start=0, step=1, limit=4
    $region2: #{tpu_custom_call.1} parent=1 // loop_pre_header
      _
    $region3: #{tpu_custom_call.1} parent=1 // loop_header
      %s18 = sphi 0, %s22
      %p19 = scmp.ge.s32.totalorder %s18, 4
      %s28 = sphi 0, %s30
      %s31 = sphi 0, %s28
      %s32 = sphi 0, %s31
      %s48 = sphi 0, %s32
      %s52 = sphi 0, %s52
      %s54 = sphi 0, %s52
      %s55 = sphi 0, %s54
      %s69 = sphi 0, %s55
      %s73 = sphi 0, %s73
      %s75 = sphi 0, %s73
      %s76 = sphi 0, %s75
      %s90 = sphi 0, %s76
      %s94 = sphi 0, %s94
      %s96 = sphi 0, %s94
      %s97 = sphi 0, %s96
      %s111 = sphi 0, %s97
      %s115 = sphi 0, %s115
      %s117 = sphi 0, %s115
      %s118 = sphi 0, %s117
      %s132 = sphi 0, %s118
      %s136 = sphi 0, %s136
      %s138 = sphi 0, %s136
      %s139 = sphi 0, %s138
      %s153 = sphi 0, %s139
      %s157 = sphi 0, %s157
      %s159 = sphi 0, %s157
      %s160 = sphi 0, %s159
      %s174 = sphi 0, %s160
      %s178 = sphi 0, %s178
      %s180 = sphi 0, %s178
      %s181 = sphi 0, %s180
      %s195 = sphi 0, %s181
      %s199 = sphi 0, %s199
      %s201 = sphi 0, %s199
      %s202 = sphi 0, %s201
      %s216 = sphi 0, %s202
      %s222 = sphi 0, %s224
      %s225 = sphi 0, %s222
      %s226 = sphi 0, %s225
      %s242 = sphi 0, %s226
    $region4: #{tpu_custom_call.1} parent=1 // loop_header_branch
      %21 = sbr.rel (%p19) target = $region8
    $region5: #{tpu_custom_call.1} parent=1 // loop_body
      %s23 = ssub.s32 %s18, 1
      %s24 = ssub.s32 %s18, 2
      %s25 = sadd.s32 %s18, 1
      %s26 = ssub.s32 %s18, %s25
      %p27 = scmp.eq.s32.totalorder %s26, 0
      %s29 = sadd.s32 %s28, 1
      %s30 = scalar_select %p27, %s28, %s29
      %p33 = pneg %p27
      %p34 = scmp.eq.s32.totalorder %s18, 1
      %p35 = por %p33, %p34
      %p36 = scmp.ne.s32.totalorder %s28, %s31
      %p37 = scmp.eq.s32.totalorder %s18, 0
      %p38 = por %p36, %p37
      %p39 = scmp.ne.s32.totalorder %s28, %s31
      %p40 = scmp.eq.s32.totalorder %s23, 1
      %p41 = por %p39, %p40
      %p42 = scmp.ne.s32.totalorder %s31, %s32
      %p43 = scmp.eq.s32.totalorder %s23, 0
      %p44 = por %p42, %p43
      %p45 = scmp.ne.s32.totalorder %s31, %s32
      %p46 = scmp.eq.s32.totalorder %s24, 1
      %p47 = por %p45, %p46
      %p49 = scmp.ne.s32.totalorder %s32, %s48
      %p50 = scmp.eq.s32.totalorder %s24, 0
      %p51 = por %p49, %p50
      %s53 = sadd.s32 %s52, 1
      %p56 = scmp.eq.s32.totalorder %s18, 1
      %p57 = scmp.ne.s32.totalorder %s52, %s54
      %p58 = scmp.eq.s32.totalorder %s18, 0
      %p59 = por %p57, %p58
      %p60 = scmp.ne.s32.totalorder %s52, %s54
      %p61 = scmp.eq.s32.totalorder %s23, 1
      %p62 = por %p60, %p61
      %p63 = scmp.ne.s32.totalorder %s54, %s55
      %p64 = scmp.eq.s32.totalorder %s23, 0
      %p65 = por %p63, %p64
      %p66 = scmp.ne.s32.totalorder %s54, %s55
      %p67 = scmp.eq.s32.totalorder %s24, 1
      %p68 = por %p66, %p67
      %p70 = scmp.ne.s32.totalorder %s55, %s69
      %p71 = scmp.eq.s32.totalorder %s24, 0
      %p72 = por %p70, %p71
      %s74 = sadd.s32 %s73, 1
      %p77 = scmp.eq.s32.totalorder %s18, 1
      %p78 = scmp.ne.s32.totalorder %s73, %s75
      %p79 = scmp.eq.s32.totalorder %s18, 0
      %p80 = por %p78, %p79
      %p81 = scmp.ne.s32.totalorder %s73, %s75
      %p82 = scmp.eq.s32.totalorder %s23, 1
      %p83 = por %p81, %p82
      %p84 = scmp.ne.s32.totalorder %s75, %s76
      %p85 = scmp.eq.s32.totalorder %s23, 0
      %p86 = por %p84, %p85
      %p87 = scmp.ne.s32.totalorder %s75, %s76
      %p88 = scmp.eq.s32.totalorder %s24, 1
      %p89 = por %p87, %p88
      %p91 = scmp.ne.s32.totalorder %s76, %s90
      %p92 = scmp.eq.s32.totalorder %s24, 0
      %p93 = por %p91, %p92
      %s95 = sadd.s32 %s94, 1
      %p98 = scmp.eq.s32.totalorder %s18, 1
      %p99 = scmp.ne.s32.totalorder %s94, %s96
      %p100 = scmp.eq.s32.totalorder %s18, 0
      %p101 = por %p99, %p100
      %p102 = scmp.ne.s32.totalorder %s94, %s96
      %p103 = scmp.eq.s32.totalorder %s23, 1
      %p104 = por %p102, %p103
      %p105 = scmp.ne.s32.totalorder %s96, %s97
      %p106 = scmp.eq.s32.totalorder %s23, 0
      %p107 = por %p105, %p106
      %p108 = scmp.ne.s32.totalorder %s96, %s97
      %p109 = scmp.eq.s32.totalorder %s24, 1
      %p110 = por %p108, %p109
      %p112 = scmp.ne.s32.totalorder %s97, %s111
      %p113 = scmp.eq.s32.totalorder %s24, 0
      %p114 = por %p112, %p113
      %s116 = sadd.s32 %s115, 1
      %p119 = scmp.eq.s32.totalorder %s18, 1
      %p120 = scmp.ne.s32.totalorder %s115, %s117
      %p121 = scmp.eq.s32.totalorder %s18, 0
      %p122 = por %p120, %p121
      %p123 = scmp.ne.s32.totalorder %s115, %s117
      %p124 = scmp.eq.s32.totalorder %s23, 1
      %p125 = por %p123, %p124
      %p126 = scmp.ne.s32.totalorder %s117, %s118
      %p127 = scmp.eq.s32.totalorder %s23, 0
      %p128 = por %p126, %p127
      %p129 = scmp.ne.s32.totalorder %s117, %s118
      %p130 = scmp.eq.s32.totalorder %s24, 1
      %p131 = por %p129, %p130
      %p133 = scmp.ne.s32.totalorder %s118, %s132
      %p134 = scmp.eq.s32.totalorder %s24, 0
      %p135 = por %p133, %p134
      %s137 = sadd.s32 %s136, 1
      %p140 = scmp.eq.s32.totalorder %s18, 1
      %p141 = scmp.ne.s32.totalorder %s136, %s138
      %p142 = scmp.eq.s32.totalorder %s18, 0
      %p143 = por %p141, %p142
      %p144 = scmp.ne.s32.totalorder %s136, %s138
      %p145 = scmp.eq.s32.totalorder %s23, 1
      %p146 = por %p144, %p145
      %p147 = scmp.ne.s32.totalorder %s138, %s139
      %p148 = scmp.eq.s32.totalorder %s23, 0
      %p149 = por %p147, %p148
      %p150 = scmp.ne.s32.totalorder %s138, %s139
      %p151 = scmp.eq.s32.totalorder %s24, 1
      %p152 = por %p150, %p151
      %p154 = scmp.ne.s32.totalorder %s139, %s153
      %p155 = scmp.eq.s32.totalorder %s24, 0
      %p156 = por %p154, %p155
      %s158 = sadd.s32 %s157, 1
      %p161 = scmp.eq.s32.totalorder %s18, 1
      %p162 = scmp.ne.s32.totalorder %s157, %s159
      %p163 = scmp.eq.s32.totalorder %s18, 0
      %p164 = por %p162, %p163
      %p165 = scmp.ne.s32.totalorder %s157, %s159
      %p166 = scmp.eq.s32.totalorder %s23, 1
      %p167 = por %p165, %p166
      %p168 = scmp.ne.s32.totalorder %s159, %s160
      %p169 = scmp.eq.s32.totalorder %s23, 0
      %p170 = por %p168, %p169
      %p171 = scmp.ne.s32.totalorder %s159, %s160
      %p172 = scmp.eq.s32.totalorder %s24, 1
      %p173 = por %p171, %p172
      %p175 = scmp.ne.s32.totalorder %s160, %s174
      %p176 = scmp.eq.s32.totalorder %s24, 0
      %p177 = por %p175, %p176
      %s179 = sadd.s32 %s178, 1
      %p182 = scmp.eq.s32.totalorder %s18, 1
      %p183 = scmp.ne.s32.totalorder %s178, %s180
      %p184 = scmp.eq.s32.totalorder %s18, 0
      %p185 = por %p183, %p184
      %p186 = scmp.ne.s32.totalorder %s178, %s180
      %p187 = scmp.eq.s32.totalorder %s23, 1
      %p188 = por %p186, %p187
      %p189 = scmp.ne.s32.totalorder %s180, %s181
      %p190 = scmp.eq.s32.totalorder %s23, 0
      %p191 = por %p189, %p190
      %p192 = scmp.ne.s32.totalorder %s180, %s181
      %p193 = scmp.eq.s32.totalorder %s24, 1
      %p194 = por %p192, %p193
      %p196 = scmp.ne.s32.totalorder %s181, %s195
      %p197 = scmp.eq.s32.totalorder %s24, 0
      %p198 = por %p196, %p197
      %s200 = sadd.s32 %s199, 1
      %p203 = scmp.eq.s32.totalorder %s18, 1
      %p204 = scmp.ne.s32.totalorder %s199, %s201
      %p205 = scmp.eq.s32.totalorder %s18, 0
      %p206 = por %p204, %p205
      %p207 = scmp.ne.s32.totalorder %s199, %s201
      %p208 = scmp.eq.s32.totalorder %s23, 1
      %p209 = por %p207, %p208
      %p210 = scmp.ne.s32.totalorder %s201, %s202
      %p211 = scmp.eq.s32.totalorder %s23, 0
      %p212 = por %p210, %p211
      %p213 = scmp.ne.s32.totalorder %s201, %s202
      %p214 = scmp.eq.s32.totalorder %s24, 1
      %p215 = por %p213, %p214
      %p217 = scmp.ne.s32.totalorder %s202, %s216
      %p218 = scmp.eq.s32.totalorder %s24, 0
      %p219 = por %p217, %p218
      %s220 = ssub.s32 %s18, %s25
      %p221 = scmp.eq.s32.totalorder %s220, 0
      %s223 = sadd.s32 %s222, 1
      %s224 = scalar_select %p221, %s222, %s223
      %p227 = pneg %p221
      %p228 = scmp.eq.s32.totalorder %s18, 1
      %p229 = por %p227, %p228
      %p230 = scmp.ne.s32.totalorder %s222, %s225
      %p231 = scmp.eq.s32.totalorder %s18, 0
      %p232 = por %p230, %p231
      %p233 = scmp.ne.s32.totalorder %s222, %s225
      %p234 = scmp.eq.s32.totalorder %s23, 1
      %p235 = por %p233, %p234
      %p236 = scmp.ne.s32.totalorder %s225, %s226
      %p237 = scmp.eq.s32.totalorder %s23, 0
      %p238 = por %p236, %p237
      %p239 = scmp.ne.s32.totalorder %s225, %s226
      %p240 = scmp.eq.s32.totalorder %s24, 1
      %p241 = por %p239, %p240
      %p243 = scmp.ne.s32.totalorder %s226, %s242
      %p244 = scmp.eq.s32.totalorder %s24, 0
      %p245 = por %p243, %p244
      %p246 = scmp.le.s32.totalorder 1, %s18
      %p247 = scmp.lt.s32.totalorder %s18, 3
      %p248 = pnand %p246, %p247
      %p249 = pneg %p248
      // Predicated region
      $region9: #{tpu_custom_call.1} parent=5 // pred_check
        _
      $region10: #{tpu_custom_call.1} parent=5 // pred_check_branch
        %251 = sbr.rel (%p248) target = $region12
      $region11: #{tpu_custom_call.1} parent=5 // pred_region
        %s252 = ssub.s32 %s18, 1
        // Predicated region
        $region13: #{tpu_custom_call.1} parent=11 // pred_check
          %p253 = pneg %p65
        $region14: #{tpu_custom_call.1} parent=11 // pred_check_branch
          %255 = sbr.rel (%p253) target = $region16
        $region15: #{tpu_custom_call.1} parent=11 // pred_region
          _
        $region16: #{tpu_custom_call.1} parent=11 // pred_fallthru
          _
        // Predicated region
        $region17: #{tpu_custom_call.1} parent=11 // pred_check
          %p256 = pneg %p86
        $region18: #{tpu_custom_call.1} parent=11 // pred_check_branch
          %258 = sbr.rel (%p256) target = $region20
        $region19: #{tpu_custom_call.1} parent=11 // pred_region
          _
        $region20: #{tpu_custom_call.1} parent=11 // pred_fallthru
          _
        // Predicated region
        $region21: #{tpu_custom_call.1} parent=11 // pred_check
          %p259 = pneg %p107
        $region22: #{tpu_custom_call.1} parent=11 // pred_check_branch
          %261 = sbr.rel (%p259) target = $region24
        $region23: #{tpu_custom_call.1} parent=11 // pred_region
          _
        $region24: #{tpu_custom_call.1} parent=11 // pred_fallthru
          _
        // Predicated region
        $region25: #{tpu_custom_call.1} parent=11 // pred_check
          %p262 = pneg %p128
        $region26: #{tpu_custom_call.1} parent=11 // pred_check_branch
          %264 = sbr.rel (%p262) target = $region28
        $region27: #{tpu_custom_call.1} parent=11 // pred_region
          _
        $region28: #{tpu_custom_call.1} parent=11 // pred_fallthru
          _
        // Predicated region
        $region29: #{tpu_custom_call.1} parent=11 // pred_check
          %p265 = pneg %p149
        $region30: #{tpu_custom_call.1} parent=11 // pred_check_branch
          %267 = sbr.rel (%p265) target = $region32
        $region31: #{tpu_custom_call.1} parent=11 // pred_region
          _
        $region32: #{tpu_custom_call.1} parent=11 // pred_fallthru
          _
        // Predicated region
        $region33: #{tpu_custom_call.1} parent=11 // pred_check
          %p268 = pneg %p170
        $region34: #{tpu_custom_call.1} parent=11 // pred_check_branch
          %270 = sbr.rel (%p268) target = $region36
        $region35: #{tpu_custom_call.1} parent=11 // pred_region
          _
        $region36: #{tpu_custom_call.1} parent=11 // pred_fallthru
          _
        // Predicated region
        $region37: #{tpu_custom_call.1} parent=11 // pred_check
          %p271 = pneg %p191
        $region38: #{tpu_custom_call.1} parent=11 // pred_check_branch
          %273 = sbr.rel (%p271) target = $region40
        $region39: #{tpu_custom_call.1} parent=11 // pred_region
          _
        $region40: #{tpu_custom_call.1} parent=11 // pred_fallthru
          _
        // Predicated region
        $region41: #{tpu_custom_call.1} parent=11 // pred_check
          %p274 = pneg %p212
        $region42: #{tpu_custom_call.1} parent=11 // pred_check_branch
          %276 = sbr.rel (%p274) target = $region44
        $region43: #{tpu_custom_call.1} parent=11 // pred_region
          _
        $region44: #{tpu_custom_call.1} parent=11 // pred_fallthru
          _
      $region12: #{tpu_custom_call.1} parent=5 // pred_fallthru
        _
      %p277 = scmp.lt.s32.totalorder %s18, 2
      // Predicated region
      $region45: #{tpu_custom_call.1} parent=5 // pred_check
        %p278 = pneg %p277
      $region46: #{tpu_custom_call.1} parent=5 // pred_check_branch
        %280 = sbr.rel (%p278) target = $region48
      $region47: #{tpu_custom_call.1} parent=5 // pred_region
        // Predicated region
        $region49: #{tpu_custom_call.1} parent=47 // pred_check
          %p281 = pneg %p38
        $region50: #{tpu_custom_call.1} parent=47 // pred_check_branch
          %283 = sbr.rel (%p281) target = $region52
        $region51: #{tpu_custom_call.1} parent=47 // pred_region
          %p284 = scmp.lt.s32.totalorder %s18, 1
          %s285 = scalar_select %p284, %s18, 1
          %s286 = smul.addr %s285, 2
          %s287 = smul.addr %s286, 4
          %s288 = scalar_lea.vmem %s0, %s287
        $region52: #{tpu_custom_call.1} parent=47 // pred_fallthru
          _
      $region48: #{tpu_custom_call.1} parent=5 // pred_fallthru
        _
      %p289 = scmp.le.s32.totalorder 1, %s18
      %p290 = scmp.lt.s32.totalorder %s18, 3
      %p291 = pnand %p289, %p290
      %p292 = pneg %p291
      // Predicated region
      $region53: #{tpu_custom_call.1} parent=5 // pred_check
        _
      $region54: #{tpu_custom_call.1} parent=5 // pred_check_branch
        %294 = sbr.rel (%p291) target = $region56
      $region55: #{tpu_custom_call.1} parent=5 // pred_region
        %s295 = ssub.s32 %s18, 1
        %p296 = scmp.lt.s32.totalorder %s23, 1
        %s297 = scalar_select %p296, %s23, 1
        %s298 = smul.addr %s297, 2
        %s299 = smul.addr %s298, 4
        %s300 = scalar_lea.vmem %s0, %s299
        %p301 = pneg %p44
        %p302 = pneg %p41
        %p303 = pneg %p65
        %p304 = pneg %p62
        %p305 = pneg %p86
        %p306 = pneg %p83
        %p307 = pneg %p107
        %p308 = pneg %p104
        %p309 = pneg %p128
        %p310 = pneg %p125
        %p311 = pneg %p149
        %p312 = pneg %p146
        %p313 = pneg %p170
        %p314 = pneg %p167
        %p315 = pneg %p191
        %p316 = pneg %p188
        %p317 = pneg %p212
        %p318 = pneg %p209
        %p319 = pneg %p238
        %p320 = pneg %p235
        %s321 = sand.u32 %s225, 1
        %s322 = scalar_lea.sflag [#allocation8], %s321
        %s323 = sand.u32 %s225, 1
        %s324 = smul.addr %s323, 64
        %s325 = scalar_lea.vmem [#allocation7], %s324
        %p326 = scmp.lt.s32.totalorder %s23, 1
        %s327 = scalar_select %p326, %s23, 1
        %s328 = smul.addr %s327, 2
        %s329 = smul.addr %s328, 4
        %s330 = scalar_lea.vmem %s0, %s329
        %v331 = vld [vmem:[%s330] sm:$0xff]
        %v332 = vld [vmem:[%s1] sm:$0xff]
        %v333 = vld [vmem:[%s1 + $0x8] sm:$0xff]
        %v334 = vld [vmem:[%s2] sm:$0xff]
        %v335 = vld [vmem:[%s2 + $0x8] sm:$0xff]
        %337 = vset.pattern.permute.xlu0 0
        %338 = vperm.xlu0 %337, %v334
        %v339 = vpop.permute.xlu0 %338
        %342 = vset.pattern.permute.xlu0 0
        %343 = vperm.xlu0 %342, %v335
        %v344 = vpop.permute.xlu0 %343
        %v347 = vcombine.high %v331, %v331
        %vm348 = vcmask 31744
        %v350 = vsel %vm348, %v332, 0
        %v353 = vsel %vm348, %v333, 0
        %vm355 = vcmask 1043456
        %v356 = vsel %vm355, %v331, 0
        %v358 = vsel %vm355, %v347, 0
        %360 = vmatprep.subr.mxu0 %v358
        %361 = vmatpush1.msra.mxu0 %v356
        %362 = vmatprep.subr.mxu0 0.0
        %363 = vmatpush1.msra.mxu0 0.0
        %364 = vmatprep.subr.mxu0 0.0
        %365 = vmatpush1.msra.mxu0 0.0
        %366 = vmatprep.subr.mxu0 0.0
        %367 = vmatpush1.msra.mxu0 0.0
        %368 = vmatprep.subr.mxu0 0.0
        %369 = vmatpush1.msra.mxu0 0.0
        %370 = vmatprep.subr.mxu0 0.0
        %371 = vmatpush1.msra.mxu0 0.0
        %372 = vmatprep.subr.mxu0 0.0
        %373 = vmatpush1.msra.mxu0 0.0
        %374 = vmatprep.subr.mxu0 0.0
        %375 = vmatpush1.msra.mxu0 0.0
        %376 = vmatprep.subr.mxu0 0.0
        %377 = vmatpush1.msra.mxu0 0.0
        %378 = vmatprep.subr.mxu0 0.0
        %379 = vmatpush1.msra.mxu0 0.0
        %380 = vmatprep.subr.mxu0 0.0
        %381 = vmatpush1.msra.mxu0 0.0
        %382 = vmatprep.subr.mxu0 0.0
        %383 = vmatpush1.msra.mxu0 0.0
        %384 = vmatprep.subr.mxu0 0.0
        %385 = vmatpush1.msra.mxu0 0.0
        %386 = vmatprep.subr.mxu0 0.0
        %387 = vmatpush1.msra.mxu0 0.0
        %388 = vmatprep.subr.mxu0 0.0
        %389 = vmatpush1.msra.mxu0 0.0
        %390 = vmatprep.subr.mxu0 0.0
        %391 = vmatpush1.msra.mxu0 0.0
        %392 = vmatprep.subr.mxu0 0.0
        %393 = vmatpush1.msra.mxu0 0.0
        %394 = vmatprep.subr.mxu0 0.0
        %395 = vmatpush1.msra.mxu0 0.0
        %396 = vmatprep.subr.mxu0 0.0
        %397 = vmatpush1.msra.mxu0 0.0
        %398 = vmatprep.subr.mxu0 0.0
        %399 = vmatpush1.msra.mxu0 0.0
        %400 = vmatprep.subr.mxu0 0.0
        %401 = vmatpush1.msra.mxu0 0.0
        %402 = vmatprep.subr.mxu0 0.0
        %403 = vmatpush1.msra.mxu0 0.0
        %404 = vmatprep.subr.mxu0 0.0
        %405 = vmatpush1.msra.mxu0 0.0
        %406 = vmatprep.subr.mxu0 0.0
        %407 = vmatpush1.msra.mxu0 0.0
        %408 = vmatprep.subr.mxu0 0.0
        %409 = vmatpush1.msra.mxu0 0.0
        %410 = vmatprep.subr.mxu0 0.0
        %411 = vmatpush1.msra.mxu0 0.0
        %412 = vmatprep.subr.mxu0 0.0
        %413 = vmatpush1.msra.mxu0 0.0
        %414 = vmatprep.subr.mxu0 0.0
        %415 = vmatpush1.msra.mxu0 0.0
        %416 = vmatprep.subr.mxu0 0.0
        %417 = vmatpush1.msra.mxu0 0.0
        %418 = vmatprep.subr.mxu0 0.0
        %419 = vmatpush1.msra.mxu0 0.0
        %420 = vmatprep.subr.mxu0 0.0
        %421 = vmatpush1.msra.mxu0 0.0
        %422 = vmatprep.subr.mxu0 0.0
        %423 = vmatpush1.msra.mxu0 0.0
        %424 = vmatprep.mubr.f32.mxu0 0.0
        %425 = vmatmul.mubr.f32.gmra.mrb[0].mxu0 %v350
        %v426 = vpop.f32.mrb[0].mxu0
        %v427 = vadd.f32 %v339, %v426
        %v428 = vpop.f32.mrb[0].mxu0
        %v429 = vadd.f32 %v339, %v428
        %430 = vmatprep.mubr.f32.mxu0 0.0
        %431 = vmatmul.mubr.f32.gmra.mrb[0].mxu0 %v353
        %v432 = vpop.f32.mrb[0].mxu0
        %v433 = vadd.f32 %v344, %v432
        %v434 = vpop.f32.mrb[0].mxu0
        %v435 = vadd.f32 %v344, %v434
        %436 = vdwg.mxu0
        %v437 = vmax.f32 %v427, 0.0
        %v438 = vmax.f32 %v429, 0.0
        %v439 = vmax.f32 %v433, 0.0
        %v440 = vmax.f32 %v435, 0.0
        %442 = vrot.lane.b32.xlu0 %v439, 112
        %v443 = vpop.permute.xlu0 %442
        %445 = vrot.lane.b32.xlu0 %v439, 96
        %v446 = vpop.permute.xlu0 %445
        %448 = vrot.lane.b32.xlu0 %v439, 80
        %v449 = vpop.permute.xlu0 %448
        %451 = vrot.lane.b32.xlu0 %v439, 64
        %v452 = vpop.permute.xlu0 %451
        %454 = vrot.lane.b32.xlu0 %v439, 48
        %v455 = vpop.permute.xlu0 %454
        %457 = vrot.lane.b32.xlu0 %v439, 32
        %v458 = vpop.permute.xlu0 %457
        %460 = vrot.lane.b32.xlu0 %v439, 16
        %v461 = vpop.permute.xlu0 %460
        %464 = vrot.lane.b32.xlu0 %v440, 112
        %v465 = vpop.permute.xlu0 %464
        %467 = vrot.lane.b32.xlu0 %v440, 96
        %v468 = vpop.permute.xlu0 %467
        %470 = vrot.lane.b32.xlu0 %v440, 80
        %v471 = vpop.permute.xlu0 %470
        %473 = vrot.lane.b32.xlu0 %v440, 64
        %v474 = vpop.permute.xlu0 %473
        %476 = vrot.lane.b32.xlu0 %v440, 48
        %v477 = vpop.permute.xlu0 %476
        %479 = vrot.lane.b32.xlu0 %v440, 32
        %v480 = vpop.permute.xlu0 %479
        %482 = vrot.lane.b32.xlu0 %v440, 16
        %v483 = vpop.permute.xlu0 %482
        %v485 = vcombine.low %v439, %v446
        %v487 = vunpack.c.l.s4 1983009808
        %v488 = vunpack.c.0.s8 %v487
        %v489 = vlaneseq
        %v490 = vshrl.u32 %v489, 7
        %v491 = vsub.s32 %v488, %v490
        %v492 = vrot.slane %v485, %v491
        %v493 = vcombine.low %v443, %v449
        %v495 = vunpack.c.l.s4 1983009808
        %v496 = vunpack.c.0.s8 %v495
        %v497 = vlaneseq
        %v498 = vshrl.u32 %v497, 7
        %v499 = vsub.s32 %v496, %v498
        %v500 = vrot.slane %v493, %v499
        %v501 = vcombine.low %v452, %v458
        %v503 = vunpack.c.l.s4 1983009808
        %v504 = vunpack.c.0.s8 %v503
        %v505 = vlaneseq
        %v506 = vshrl.u32 %v505, 7
        %v507 = vsub.s32 %v504, %v506
        %v508 = vrot.slane %v501, %v507
        %v509 = vcombine.low %v455, %v461
        %v511 = vunpack.c.l.s4 1983009808
        %v512 = vunpack.c.0.s8 %v511
        %v513 = vlaneseq
        %v514 = vshrl.u32 %v513, 7
        %v515 = vsub.s32 %v512, %v514
        %v516 = vrot.slane %v509, %v515
        %v517 = vcombine.low %v492, %v500
        %v518 = vcombine.high %v492, %v500
        %v520 = vunpack.c.l.s4 1934713408
        %v521 = vunpack.c.0.s8 %v520
        %v522 = vlaneseq
        %v523 = vshrl.u32 %v522, 7
        %v524 = vsub.s32 %v521, %v523
        %v525 = vrot.slane %v517, %v524
        %v527 = vunpack.c.l.s4 1934713408
        %v528 = vunpack.c.0.s8 %v527
        %v529 = vlaneseq
        %v530 = vshrl.u32 %v529, 7
        %v531 = vsub.s32 %v528, %v530
        %v532 = vrot.slane %v518, %v531
        %v533 = vcombine.low %v508, %v516
        %v534 = vcombine.high %v508, %v516
        %v536 = vunpack.c.l.s4 1934713408
        %v537 = vunpack.c.0.s8 %v536
        %v538 = vlaneseq
        %v539 = vshrl.u32 %v538, 7
        %v540 = vsub.s32 %v537, %v539
        %v541 = vrot.slane %v533, %v540
        %v543 = vunpack.c.l.s4 1934713408
        %v544 = vunpack.c.0.s8 %v543
        %v545 = vlaneseq
        %v546 = vshrl.u32 %v545, 7
        %v547 = vsub.s32 %v544, %v546
        %v548 = vrot.slane %v534, %v547
        %v549 = vcombine.low %v525, %v541
        %v550 = vcombine.high %v525, %v541
        %v551 = vcombine.low %v532, %v548
        %v552 = vcombine.high %v532, %v548
        %v553 = vcombine.low %v440, %v468
        %v555 = vunpack.c.l.s4 1983009808
        %v556 = vunpack.c.0.s8 %v555
        %v557 = vlaneseq
        %v558 = vshrl.u32 %v557, 7
        %v559 = vsub.s32 %v556, %v558
        %v560 = vrot.slane %v553, %v559
        %v561 = vcombine.low %v465, %v471
        %v563 = vunpack.c.l.s4 1983009808
        %v564 = vunpack.c.0.s8 %v563
        %v565 = vlaneseq
        %v566 = vshrl.u32 %v565, 7
        %v567 = vsub.s32 %v564, %v566
        %v568 = vrot.slane %v561, %v567
        %v569 = vcombine.low %v474, %v480
        %v571 = vunpack.c.l.s4 1983009808
        %v572 = vunpack.c.0.s8 %v571
        %v573 = vlaneseq
        %v574 = vshrl.u32 %v573, 7
        %v575 = vsub.s32 %v572, %v574
        %v576 = vrot.slane %v569, %v575
        %v577 = vcombine.low %v477, %v483
        %v579 = vunpack.c.l.s4 1983009808
        %v580 = vunpack.c.0.s8 %v579
        %v581 = vlaneseq
        %v582 = vshrl.u32 %v581, 7
        %v583 = vsub.s32 %v580, %v582
        %v584 = vrot.slane %v577, %v583
        %v585 = vcombine.low %v560, %v568
        %v586 = vcombine.high %v560, %v568
        %v588 = vunpack.c.l.s4 1934713408
        %v589 = vunpack.c.0.s8 %v588
        %v590 = vlaneseq
        %v591 = vshrl.u32 %v590, 7
        %v592 = vsub.s32 %v589, %v591
        %v593 = vrot.slane %v585, %v592
        %v595 = vunpack.c.l.s4 1934713408
        %v596 = vunpack.c.0.s8 %v595
        %v597 = vlaneseq
        %v598 = vshrl.u32 %v597, 7
        %v599 = vsub.s32 %v596, %v598
        %v600 = vrot.slane %v586, %v599
        %v601 = vcombine.low %v576, %v584
        %v602 = vcombine.high %v576, %v584
        %v604 = vunpack.c.l.s4 1934713408
        %v605 = vunpack.c.0.s8 %v604
        %v606 = vlaneseq
        %v607 = vshrl.u32 %v606, 7
        %v608 = vsub.s32 %v605, %v607
        %v609 = vrot.slane %v601, %v608
        %v611 = vunpack.c.l.s4 1934713408
        %v612 = vunpack.c.0.s8 %v611
        %v613 = vlaneseq
        %v614 = vshrl.u32 %v613, 7
        %v615 = vsub.s32 %v612, %v614
        %v616 = vrot.slane %v602, %v615
        %v617 = vcombine.low %v593, %v609
        %v618 = vcombine.high %v593, %v609
        %v619 = vcombine.low %v600, %v616
        %v620 = vcombine.high %v600, %v616
        %v621 = vrot.slane %v439, 4
        %v622 = vrot.slane %v443, 4
        %v623 = vrot.slane %v446, 4
        %v624 = vrot.slane %v449, 4
        %v625 = vrot.slane %v452, 4
        %v626 = vrot.slane %v455, 4
        %v627 = vrot.slane %v458, 4
        %v628 = vrot.slane %v461, 4
        %v629 = vrot.slane %v440, 4
        %v630 = vrot.slane %v465, 4
        %v631 = vrot.slane %v468, 4
        %v632 = vrot.slane %v471, 4
        %v633 = vrot.slane %v474, 4
        %v634 = vrot.slane %v477, 4
        %v635 = vrot.slane %v480, 4
        %v636 = vrot.slane %v483, 4
        %v653 = vcombine.low %v621, %v623
        %v655 = vunpack.c.l.s4 1983009808
        %v656 = vunpack.c.0.s8 %v655
        %v657 = vlaneseq
        %v658 = vshrl.u32 %v657, 7
        %v659 = vsub.s32 %v656, %v658
        %v660 = vrot.slane %v653, %v659
        %v661 = vcombine.low %v622, %v624
        %v663 = vunpack.c.l.s4 1983009808
        %v664 = vunpack.c.0.s8 %v663
        %v665 = vlaneseq
        %v666 = vshrl.u32 %v665, 7
        %v667 = vsub.s32 %v664, %v666
        %v668 = vrot.slane %v661, %v667
        %v669 = vcombine.low %v625, %v627
        %v671 = vunpack.c.l.s4 1983009808
        %v672 = vunpack.c.0.s8 %v671
        %v673 = vlaneseq
        %v674 = vshrl.u32 %v673, 7
        %v675 = vsub.s32 %v672, %v674
        %v676 = vrot.slane %v669, %v675
        %v677 = vcombine.low %v626, %v628
        %v679 = vunpack.c.l.s4 1983009808
        %v680 = vunpack.c.0.s8 %v679
        %v681 = vlaneseq
        %v682 = vshrl.u32 %v681, 7
        %v683 = vsub.s32 %v680, %v682
        %v684 = vrot.slane %v677, %v683
        %v685 = vcombine.low %v660, %v668
        %v686 = vcombine.high %v660, %v668
        %v688 = vunpack.c.l.s4 1934713408
        %v689 = vunpack.c.0.s8 %v688
        %v690 = vlaneseq
        %v691 = vshrl.u32 %v690, 7
        %v692 = vsub.s32 %v689, %v691
        %v693 = vrot.slane %v685, %v692
        %v695 = vunpack.c.l.s4 1934713408
        %v696 = vunpack.c.0.s8 %v695
        %v697 = vlaneseq
        %v698 = vshrl.u32 %v697, 7
        %v699 = vsub.s32 %v696, %v698
        %v700 = vrot.slane %v686, %v699
        %v701 = vcombine.low %v676, %v684
        %v702 = vcombine.high %v676, %v684
        %v704 = vunpack.c.l.s4 1934713408
        %v705 = vunpack.c.0.s8 %v704
        %v706 = vlaneseq
        %v707 = vshrl.u32 %v706, 7
        %v708 = vsub.s32 %v705, %v707
        %v709 = vrot.slane %v701, %v708
        %v711 = vunpack.c.l.s4 1934713408
        %v712 = vunpack.c.0.s8 %v711
        %v713 = vlaneseq
        %v714 = vshrl.u32 %v713, 7
        %v715 = vsub.s32 %v712, %v714
        %v716 = vrot.slane %v702, %v715
        %v717 = vcombine.low %v693, %v709
        %v718 = vcombine.high %v693, %v709
        %v719 = vcombine.low %v700, %v716
        %v720 = vcombine.high %v700, %v716
        %v721 = vcombine.low %v629, %v631
        %v723 = vunpack.c.l.s4 1983009808
        %v724 = vunpack.c.0.s8 %v723
        %v725 = vlaneseq
        %v726 = vshrl.u32 %v725, 7
        %v727 = vsub.s32 %v724, %v726
        %v728 = vrot.slane %v721, %v727
        %v729 = vcombine.low %v630, %v632
        %v731 = vunpack.c.l.s4 1983009808
        %v732 = vunpack.c.0.s8 %v731
        %v733 = vlaneseq
        %v734 = vshrl.u32 %v733, 7
        %v735 = vsub.s32 %v732, %v734
        %v736 = vrot.slane %v729, %v735
        %v737 = vcombine.low %v633, %v635
        %v739 = vunpack.c.l.s4 1983009808
        %v740 = vunpack.c.0.s8 %v739
        %v741 = vlaneseq
        %v742 = vshrl.u32 %v741, 7
        %v743 = vsub.s32 %v740, %v742
        %v744 = vrot.slane %v737, %v743
        %v745 = vcombine.low %v634, %v636
        %v747 = vunpack.c.l.s4 1983009808
        %v748 = vunpack.c.0.s8 %v747
        %v749 = vlaneseq
        %v750 = vshrl.u32 %v749, 7
        %v751 = vsub.s32 %v748, %v750
        %v752 = vrot.slane %v745, %v751
        %v753 = vcombine.low %v728, %v736
        %v754 = vcombine.high %v728, %v736
        %v756 = vunpack.c.l.s4 1934713408
        %v757 = vunpack.c.0.s8 %v756
        %v758 = vlaneseq
        %v759 = vshrl.u32 %v758, 7
        %v760 = vsub.s32 %v757, %v759
        %v761 = vrot.slane %v753, %v760
        %v763 = vunpack.c.l.s4 1934713408
        %v764 = vunpack.c.0.s8 %v763
        %v765 = vlaneseq
        %v766 = vshrl.u32 %v765, 7
        %v767 = vsub.s32 %v764, %v766
        %v768 = vrot.slane %v754, %v767
        %v769 = vcombine.low %v744, %v752
        %v770 = vcombine.high %v744, %v752
        %v772 = vunpack.c.l.s4 1934713408
        %v773 = vunpack.c.0.s8 %v772
        %v774 = vlaneseq
        %v775 = vshrl.u32 %v774, 7
        %v776 = vsub.s32 %v773, %v775
        %v777 = vrot.slane %v769, %v776
        %v779 = vunpack.c.l.s4 1934713408
        %v780 = vunpack.c.0.s8 %v779
        %v781 = vlaneseq
        %v782 = vshrl.u32 %v781, 7
        %v783 = vsub.s32 %v780, %v782
        %v784 = vrot.slane %v770, %v783
        %v785 = vcombine.low %v761, %v777
        %v786 = vcombine.high %v761, %v777
        %v787 = vcombine.low %v768, %v784
        %v788 = vcombine.high %v768, %v784
        %v789 = vld [vmem:[%s3] sm:$0xff]
        %v790 = vld [vmem:[%s4] sm:$0xff]
        %vm791 = vcmask 146432
        %792 = vst.msk [vmem:[#allocation3] sm:$0xff] %vm791, 0.0
        %793 = vst.msk [vmem:[#allocation3 + $0x8] sm:$0xff] %vm791, 0.0
        %vm794 = vcmask 140288
        %795 = vst.msk [vmem:[#allocation3 + $0x10] sm:$0x3] %vm794, 0.0
        %796 = vst.msk [vmem:[#allocation3 + $0x18] sm:$0xff] %vm791, 0.0
        %797 = vst.msk [vmem:[#allocation3 + $0x20] sm:$0xff] %vm791, 0.0
        %798 = vst.msk [vmem:[#allocation3 + $0x28] sm:$0x3] %vm794, 0.0
        %799 = vst.msk [vmem:[#allocation3 + $0x30] sm:$0xff] %vm791, 0.0
        %800 = vst.msk [vmem:[#allocation3 + $0x38] sm:$0xff] %vm791, 0.0
        %801 = vst.msk [vmem:[#allocation3 + $0x40] sm:$0x3] %vm794, 0.0
        %802 = vst.msk [vmem:[#allocation3 + $0x48] sm:$0xff] %vm791, 0.0
        %803 = vst.msk [vmem:[#allocation3 + $0x50] sm:$0xff] %vm791, 0.0
        %804 = vst.msk [vmem:[#allocation3 + $0x58] sm:$0x3] %vm794, 0.0
        %813 = vrot.lane.b32.xlu0 %v549, 1
        %v814 = vpop.permute.xlu0 %813
        %815 = vrot.lane.b32.xlu0 %v617, 1
        %v816 = vpop.permute.xlu0 %815
        %817 = vrot.lane.b32.xlu0 %v550, 1
        %v818 = vpop.permute.xlu0 %817
        %819 = vrot.lane.b32.xlu0 %v618, 1
        %v820 = vpop.permute.xlu0 %819
        %821 = vrot.lane.b32.xlu0 %v551, 1
        %v822 = vpop.permute.xlu0 %821
        %823 = vrot.lane.b32.xlu0 %v619, 1
        %v824 = vpop.permute.xlu0 %823
        %825 = vrot.lane.b32.xlu0 %v552, 1
        %v826 = vpop.permute.xlu0 %825
        %827 = vrot.lane.b32.xlu0 %v620, 1
        %v828 = vpop.permute.xlu0 %827
        %vm837 = vcmask 138248
        %838 = vst.msk [vmem:[#allocation3 + $0x1] sm:$0xff] %vm837, %v814
        %839 = vst.msk [vmem:[#allocation3 + $0x9] sm:$0xff] %vm837, %v816
        %840 = vst.msk [vmem:[#allocation3 + $0x19] sm:$0xff] %vm837, %v818
        %841 = vst.msk [vmem:[#allocation3 + $0x21] sm:$0xff] %vm837, %v820
        %842 = vst.msk [vmem:[#allocation3 + $0x31] sm:$0xff] %vm837, %v822
        %843 = vst.msk [vmem:[#allocation3 + $0x39] sm:$0xff] %vm837, %v824
        %844 = vst.msk [vmem:[#allocation3 + $0x49] sm:$0xff] %vm837, %v826
        %845 = vst.msk [vmem:[#allocation3 + $0x51] sm:$0xff] %vm837, %v828
        %v846 = vld [vmem:[#allocation3] sm:$0xff]
        %v847 = vld [vmem:[#allocation3 + $0x8] sm:$0xff]
        %v848 = vld [vmem:[#allocation3 + $0x18] sm:$0xff]
        %v849 = vld [vmem:[#allocation3 + $0x20] sm:$0xff]
        %v850 = vld [vmem:[#allocation3 + $0x30] sm:$0xff]
        %v851 = vld [vmem:[#allocation3 + $0x38] sm:$0xff]
        %v852 = vld [vmem:[#allocation3 + $0x48] sm:$0xff]
        %v853 = vld [vmem:[#allocation3 + $0x50] sm:$0xff]
        %v854 = vcombine.low %v846, %v850
        %v855 = vcombine.high %v846, %v850
        %v857 = vunpack.c.l.s4 1983009808
        %v858 = vunpack.c.0.s8 %v857
        %v859 = vlaneseq
        %v860 = vshrl.u32 %v859, 7
        %v861 = vsub.s32 %v858, %v860
        %v862 = vrot.slane %v854, %v861
        %v864 = vunpack.c.l.s4 1983009808
        %v865 = vunpack.c.0.s8 %v864
        %v866 = vlaneseq
        %v867 = vshrl.u32 %v866, 7
        %v868 = vsub.s32 %v865, %v867
        %v869 = vrot.slane %v855, %v868
        %v870 = vcombine.low %v848, %v852
        %v871 = vcombine.high %v848, %v852
        %v873 = vunpack.c.l.s4 1983009808
        %v874 = vunpack.c.0.s8 %v873
        %v875 = vlaneseq
        %v876 = vshrl.u32 %v875, 7
        %v877 = vsub.s32 %v874, %v876
        %v878 = vrot.slane %v870, %v877
        %v880 = vunpack.c.l.s4 1983009808
        %v881 = vunpack.c.0.s8 %v880
        %v882 = vlaneseq
        %v883 = vshrl.u32 %v882, 7
        %v884 = vsub.s32 %v881, %v883
        %v885 = vrot.slane %v871, %v884
        %v886 = vcombine.low %v862, %v878
        %v887 = vcombine.high %v862, %v878
        %v889 = vunpack.c.l.s4 1934713408
        %v890 = vunpack.c.0.s8 %v889
        %v891 = vlaneseq
        %v892 = vshrl.u32 %v891, 7
        %v893 = vsub.s32 %v890, %v892
        %v894 = vrot.slane %v886, %v893
        %v896 = vunpack.c.l.s4 1934713408
        %v897 = vunpack.c.0.s8 %v896
        %v898 = vlaneseq
        %v899 = vshrl.u32 %v898, 7
        %v900 = vsub.s32 %v897, %v899
        %v901 = vrot.slane %v887, %v900
        %v902 = vcombine.low %v869, %v885
        %v903 = vcombine.high %v869, %v885
        %v905 = vunpack.c.l.s4 1934713408
        %v906 = vunpack.c.0.s8 %v905
        %v907 = vlaneseq
        %v908 = vshrl.u32 %v907, 7
        %v909 = vsub.s32 %v906, %v908
        %v910 = vrot.slane %v902, %v909
        %v912 = vunpack.c.l.s4 1934713408
        %v913 = vunpack.c.0.s8 %v912
        %v914 = vlaneseq
        %v915 = vshrl.u32 %v914, 7
        %v916 = vsub.s32 %v913, %v915
        %v917 = vrot.slane %v903, %v916
        %v918 = vcombine.high %v894, 0.0
        %v919 = vcombine.high %v901, 0.0
        %v920 = vcombine.high %v910, 0.0
        %v921 = vcombine.high %v917, 0.0
        %v922 = vcombine.low %v847, %v851
        %v923 = vcombine.high %v847, %v851
        %v925 = vunpack.c.l.s4 1983009808
        %v926 = vunpack.c.0.s8 %v925
        %v927 = vlaneseq
        %v928 = vshrl.u32 %v927, 7
        %v929 = vsub.s32 %v926, %v928
        %v930 = vrot.slane %v922, %v929
        %v932 = vunpack.c.l.s4 1983009808
        %v933 = vunpack.c.0.s8 %v932
        %v934 = vlaneseq
        %v935 = vshrl.u32 %v934, 7
        %v936 = vsub.s32 %v933, %v935
        %v937 = vrot.slane %v923, %v936
        %v938 = vcombine.low %v849, %v853
        %v939 = vcombine.high %v849, %v853
        %v941 = vunpack.c.l.s4 1983009808
        %v942 = vunpack.c.0.s8 %v941
        %v943 = vlaneseq
        %v944 = vshrl.u32 %v943, 7
        %v945 = vsub.s32 %v942, %v944
        %v946 = vrot.slane %v938, %v945
        %v948 = vunpack.c.l.s4 1983009808
        %v949 = vunpack.c.0.s8 %v948
        %v950 = vlaneseq
        %v951 = vshrl.u32 %v950, 7
        %v952 = vsub.s32 %v949, %v951
        %v953 = vrot.slane %v939, %v952
        %v954 = vcombine.low %v930, %v946
        %v955 = vcombine.high %v930, %v946
        %v957 = vunpack.c.l.s4 1934713408
        %v958 = vunpack.c.0.s8 %v957
        %v959 = vlaneseq
        %v960 = vshrl.u32 %v959, 7
        %v961 = vsub.s32 %v958, %v960
        %v962 = vrot.slane %v954, %v961
        %v964 = vunpack.c.l.s4 1934713408
        %v965 = vunpack.c.0.s8 %v964
        %v966 = vlaneseq
        %v967 = vshrl.u32 %v966, 7
        %v968 = vsub.s32 %v965, %v967
        %v969 = vrot.slane %v955, %v968
        %v970 = vcombine.low %v937, %v953
        %v971 = vcombine.high %v937, %v953
        %v973 = vunpack.c.l.s4 1934713408
        %v974 = vunpack.c.0.s8 %v973
        %v975 = vlaneseq
        %v976 = vshrl.u32 %v975, 7
        %v977 = vsub.s32 %v974, %v976
        %v978 = vrot.slane %v970, %v977
        %v980 = vunpack.c.l.s4 1934713408
        %v981 = vunpack.c.0.s8 %v980
        %v982 = vlaneseq
        %v983 = vshrl.u32 %v982, 7
        %v984 = vsub.s32 %v981, %v983
        %v985 = vrot.slane %v971, %v984
        %v986 = vcombine.high %v962, 0.0
        %v987 = vcombine.high %v969, 0.0
        %v988 = vcombine.high %v978, 0.0
        %v989 = vcombine.high %v985, 0.0
        %991 = vrot.lane.b32.xlu0 %v918, 16
        %v992 = vpop.permute.xlu0 %991
        %995 = vrot.lane.b32.xlu0 %v901, 32
        %v996 = vpop.permute.xlu0 %995
        %999 = vrot.lane.b32.xlu0 %v919, 48
        %v1000 = vpop.permute.xlu0 %999
        %1003 = vrot.lane.b32.xlu0 %v910, 64
        %v1004 = vpop.permute.xlu0 %1003
        %1007 = vrot.lane.b32.xlu0 %v920, 80
        %v1008 = vpop.permute.xlu0 %1007
        %1011 = vrot.lane.b32.xlu0 %v917, 96
        %v1012 = vpop.permute.xlu0 %1011
        %1015 = vrot.lane.b32.xlu0 %v921, 112
        %v1016 = vpop.permute.xlu0 %1015
        %1019 = vrot.lane.b32.xlu0 %v986, 16
        %v1020 = vpop.permute.xlu0 %1019
        %1023 = vrot.lane.b32.xlu0 %v969, 32
        %v1024 = vpop.permute.xlu0 %1023
        %1027 = vrot.lane.b32.xlu0 %v987, 48
        %v1028 = vpop.permute.xlu0 %1027
        %1031 = vrot.lane.b32.xlu0 %v978, 64
        %v1032 = vpop.permute.xlu0 %1031
        %1035 = vrot.lane.b32.xlu0 %v988, 80
        %v1036 = vpop.permute.xlu0 %1035
        %1039 = vrot.lane.b32.xlu0 %v985, 96
        %v1040 = vpop.permute.xlu0 %1039
        %1043 = vrot.lane.b32.xlu0 %v989, 112
        %v1044 = vpop.permute.xlu0 %1043
        %vm1046 = vcmask 130048
        %v1047 = vsel %vm1046, %v894, %v992
        %vm1048 = vcmask 261120
        %v1049 = vsel %vm1048, %v1047, %v996
        %vm1050 = vcmask 392192
        %v1051 = vsel %vm1050, %v1049, %v1000
        %vm1052 = vcmask 523264
        %v1053 = vsel %vm1052, %v1051, %v1004
        %vm1054 = vcmask 654336
        %v1055 = vsel %vm1054, %v1053, %v1008
        %vm1056 = vcmask 785408
        %v1057 = vsel %vm1056, %v1055, %v1012
        %vm1058 = vcmask 916480
        %v1059 = vsel %vm1058, %v1057, %v1016
        %v1060 = vsel %vm1046, %v962, %v1020
        %v1061 = vsel %vm1048, %v1060, %v1024
        %v1062 = vsel %vm1050, %v1061, %v1028
        %v1063 = vsel %vm1052, %v1062, %v1032
        %v1064 = vsel %vm1054, %v1063, %v1036
        %v1065 = vsel %vm1056, %v1064, %v1040
        %v1066 = vsel %vm1058, %v1065, %v1044
        %1067 = vst [vmem:[#allocation4] sm:$0xf] %v1059
        %1068 = vst [vmem:[#allocation4 + $0x8] sm:$0xf] %v1066
        %v1069 = vld [vmem:[#allocation3] sm:$0xff]
        %v1070 = vld [vmem:[#allocation3 + $0x8] sm:$0xff]
        %v1071 = vld [vmem:[#allocation3 + $0x18] sm:$0xff]
        %v1072 = vld [vmem:[#allocation3 + $0x20] sm:$0xff]
        %v1073 = vld [vmem:[#allocation3 + $0x30] sm:$0xff]
        %v1074 = vld [vmem:[#allocation3 + $0x38] sm:$0xff]
        %v1075 = vld [vmem:[#allocation3 + $0x48] sm:$0xff]
        %v1076 = vld [vmem:[#allocation3 + $0x50] sm:$0xff]
        %1085 = vrot.lane.b32.xlu0 %v1069, 127
        %v1086 = vpop.permute.xlu0 %1085
        %1087 = vrot.lane.b32.xlu0 %v1070, 127
        %v1088 = vpop.permute.xlu0 %1087
        %1089 = vrot.lane.b32.xlu0 %v1071, 127
        %v1090 = vpop.permute.xlu0 %1089
        %1091 = vrot.lane.b32.xlu0 %v1072, 127
        %v1092 = vpop.permute.xlu0 %1091
        %1093 = vrot.lane.b32.xlu0 %v1073, 127
        %v1094 = vpop.permute.xlu0 %1093
        %1095 = vrot.lane.b32.xlu0 %v1074, 127
        %v1096 = vpop.permute.xlu0 %1095
        %1097 = vrot.lane.b32.xlu0 %v1075, 127
        %v1098 = vpop.permute.xlu0 %1097
        %1099 = vrot.lane.b32.xlu0 %v1076, 127
        %v1100 = vpop.permute.xlu0 %1099
        %v1109 = vcombine.low %v1086, %v1094
        %v1110 = vcombine.high %v1086, %v1094
        %v1112 = vunpack.c.l.s4 1983009808
        %v1113 = vunpack.c.0.s8 %v1112
        %v1114 = vlaneseq
        %v1115 = vshrl.u32 %v1114, 7
        %v1116 = vsub.s32 %v1113, %v1115
        %v1117 = vrot.slane %v1109, %v1116
        %v1119 = vunpack.c.l.s4 1983009808
        %v1120 = vunpack.c.0.s8 %v1119
        %v1121 = vlaneseq
        %v1122 = vshrl.u32 %v1121, 7
        %v1123 = vsub.s32 %v1120, %v1122
        %v1124 = vrot.slane %v1110, %v1123
        %v1125 = vcombine.low %v1090, %v1098
        %v1126 = vcombine.high %v1090, %v1098
        %v1128 = vunpack.c.l.s4 1983009808
        %v1129 = vunpack.c.0.s8 %v1128
        %v1130 = vlaneseq
        %v1131 = vshrl.u32 %v1130, 7
        %v1132 = vsub.s32 %v1129, %v1131
        %v1133 = vrot.slane %v1125, %v1132
        %v1135 = vunpack.c.l.s4 1983009808
        %v1136 = vunpack.c.0.s8 %v1135
        %v1137 = vlaneseq
        %v1138 = vshrl.u32 %v1137, 7
        %v1139 = vsub.s32 %v1136, %v1138
        %v1140 = vrot.slane %v1126, %v1139
        %v1141 = vcombine.low %v1117, %v1133
        %v1142 = vcombine.high %v1117, %v1133
        %v1144 = vunpack.c.l.s4 1934713408
        %v1145 = vunpack.c.0.s8 %v1144
        %v1146 = vlaneseq
        %v1147 = vshrl.u32 %v1146, 7
        %v1148 = vsub.s32 %v1145, %v1147
        %v1149 = vrot.slane %v1141, %v1148
        %v1151 = vunpack.c.l.s4 1934713408
        %v1152 = vunpack.c.0.s8 %v1151
        %v1153 = vlaneseq
        %v1154 = vshrl.u32 %v1153, 7
        %v1155 = vsub.s32 %v1152, %v1154
        %v1156 = vrot.slane %v1142, %v1155
        %v1157 = vcombine.low %v1124, %v1140
        %v1158 = vcombine.high %v1124, %v1140
        %v1160 = vunpack.c.l.s4 1934713408
        %v1161 = vunpack.c.0.s8 %v1160
        %v1162 = vlaneseq
        %v1163 = vshrl.u32 %v1162, 7
        %v1164 = vsub.s32 %v1161, %v1163
        %v1165 = vrot.slane %v1157, %v1164
        %v1167 = vunpack.c.l.s4 1934713408
        %v1168 = vunpack.c.0.s8 %v1167
        %v1169 = vlaneseq
        %v1170 = vshrl.u32 %v1169, 7
        %v1171 = vsub.s32 %v1168, %v1170
        %v1172 = vrot.slane %v1158, %v1171
        %v1173 = vcombine.high %v1149, 0.0
        %v1174 = vcombine.high %v1156, 0.0
        %v1175 = vcombine.high %v1165, 0.0
        %v1176 = vcombine.high %v1172, 0.0
        %v1177 = vcombine.low %v1088, %v1096
        %v1178 = vcombine.high %v1088, %v1096
        %v1180 = vunpack.c.l.s4 1983009808
        %v1181 = vunpack.c.0.s8 %v1180
        %v1182 = vlaneseq
        %v1183 = vshrl.u32 %v1182, 7
        %v1184 = vsub.s32 %v1181, %v1183
        %v1185 = vrot.slane %v1177, %v1184
        %v1187 = vunpack.c.l.s4 1983009808
        %v1188 = vunpack.c.0.s8 %v1187
        %v1189 = vlaneseq
        %v1190 = vshrl.u32 %v1189, 7
        %v1191 = vsub.s32 %v1188, %v1190
        %v1192 = vrot.slane %v1178, %v1191
        %v1193 = vcombine.low %v1092, %v1100
        %v1194 = vcombine.high %v1092, %v1100
        %v1196 = vunpack.c.l.s4 1983009808
        %v1197 = vunpack.c.0.s8 %v1196
        %v1198 = vlaneseq
        %v1199 = vshrl.u32 %v1198, 7
        %v1200 = vsub.s32 %v1197, %v1199
        %v1201 = vrot.slane %v1193, %v1200
        %v1203 = vunpack.c.l.s4 1983009808
        %v1204 = vunpack.c.0.s8 %v1203
        %v1205 = vlaneseq
        %v1206 = vshrl.u32 %v1205, 7
        %v1207 = vsub.s32 %v1204, %v1206
        %v1208 = vrot.slane %v1194, %v1207
        %v1209 = vcombine.low %v1185, %v1201
        %v1210 = vcombine.high %v1185, %v1201
        %v1212 = vunpack.c.l.s4 1934713408
        %v1213 = vunpack.c.0.s8 %v1212
        %v1214 = vlaneseq
        %v1215 = vshrl.u32 %v1214, 7
        %v1216 = vsub.s32 %v1213, %v1215
        %v1217 = vrot.slane %v1209, %v1216
        %v1219 = vunpack.c.l.s4 1934713408
        %v1220 = vunpack.c.0.s8 %v1219
        %v1221 = vlaneseq
        %v1222 = vshrl.u32 %v1221, 7
        %v1223 = vsub.s32 %v1220, %v1222
        %v1224 = vrot.slane %v1210, %v1223
        %v1225 = vcombine.low %v1192, %v1208
        %v1226 = vcombine.high %v1192, %v1208
        %v1228 = vunpack.c.l.s4 1934713408
        %v1229 = vunpack.c.0.s8 %v1228
        %v1230 = vlaneseq
        %v1231 = vshrl.u32 %v1230, 7
        %v1232 = vsub.s32 %v1229, %v1231
        %v1233 = vrot.slane %v1225, %v1232
        %v1235 = vunpack.c.l.s4 1934713408
        %v1236 = vunpack.c.0.s8 %v1235
        %v1237 = vlaneseq
        %v1238 = vshrl.u32 %v1237, 7
        %v1239 = vsub.s32 %v1236, %v1238
        %v1240 = vrot.slane %v1226, %v1239
        %v1241 = vcombine.high %v1217, 0.0
        %v1242 = vcombine.high %v1224, 0.0
        %v1243 = vcombine.high %v1233, 0.0
        %v1244 = vcombine.high %v1240, 0.0
        %1246 = vrot.lane.b32.xlu0 %v1173, 16
        %v1247 = vpop.permute.xlu0 %1246
        %1250 = vrot.lane.b32.xlu0 %v1156, 32
        %v1251 = vpop.permute.xlu0 %1250
        %1254 = vrot.lane.b32.xlu0 %v1174, 48
        %v1255 = vpop.permute.xlu0 %1254
        %1258 = vrot.lane.b32.xlu0 %v1165, 64
        %v1259 = vpop.permute.xlu0 %1258
        %1262 = vrot.lane.b32.xlu0 %v1175, 80
        %v1263 = vpop.permute.xlu0 %1262
        %1266 = vrot.lane.b32.xlu0 %v1172, 96
        %v1267 = vpop.permute.xlu0 %1266
        %1270 = vrot.lane.b32.xlu0 %v1176, 112
        %v1271 = vpop.permute.xlu0 %1270
        %1274 = vrot.lane.b32.xlu0 %v1241, 16
        %v1275 = vpop.permute.xlu0 %1274
        %1278 = vrot.lane.b32.xlu0 %v1224, 32
        %v1279 = vpop.permute.xlu0 %1278
        %1282 = vrot.lane.b32.xlu0 %v1242, 48
        %v1283 = vpop.permute.xlu0 %1282
        %1286 = vrot.lane.b32.xlu0 %v1233, 64
        %v1287 = vpop.permute.xlu0 %1286
        %1290 = vrot.lane.b32.xlu0 %v1243, 80
        %v1291 = vpop.permute.xlu0 %1290
        %1294 = vrot.lane.b32.xlu0 %v1240, 96
        %v1295 = vpop.permute.xlu0 %1294
        %1298 = vrot.lane.b32.xlu0 %v1244, 112
        %v1299 = vpop.permute.xlu0 %1298
        %v1301 = vsel %vm1046, %v1149, %v1247
        %v1302 = vsel %vm1048, %v1301, %v1251
        %v1303 = vsel %vm1050, %v1302, %v1255
        %v1304 = vsel %vm1052, %v1303, %v1259
        %v1305 = vsel %vm1054, %v1304, %v1263
        %v1306 = vsel %vm1056, %v1305, %v1267
        %v1307 = vsel %vm1058, %v1306, %v1271
        %v1308 = vsel %vm1046, %v1217, %v1275
        %v1309 = vsel %vm1048, %v1308, %v1279
        %v1310 = vsel %vm1050, %v1309, %v1283
        %v1311 = vsel %vm1052, %v1310, %v1287
        %v1312 = vsel %vm1054, %v1311, %v1291
        %v1313 = vsel %vm1056, %v1312, %v1295
        %v1314 = vsel %vm1058, %v1313, %v1299
        %v1317 = vrot.slane %v1307, 4
        %v1318 = vrot.slane %v1314, 4
        %1321 = vst [vmem:[#allocation4] sm:$0xf0] %v1317
        %1322 = vst [vmem:[#allocation4 + $0x8] sm:$0xf0] %v1318
        %v1323 = vld [vmem:[#allocation3] sm:$0xff]
        %v1324 = vld [vmem:[#allocation3 + $0x8] sm:$0xff]
        %v1325 = vld [vmem:[#allocation3 + $0x18] sm:$0xff]
        %v1326 = vld [vmem:[#allocation3 + $0x20] sm:$0xff]
        %v1327 = vld [vmem:[#allocation3 + $0x30] sm:$0xff]
        %v1328 = vld [vmem:[#allocation3 + $0x38] sm:$0xff]
        %v1329 = vld [vmem:[#allocation3 + $0x48] sm:$0xff]
        %v1330 = vld [vmem:[#allocation3 + $0x50] sm:$0xff]
        %1339 = vrot.lane.b32.xlu0 %v1323, 126
        %v1340 = vpop.permute.xlu0 %1339
        %1341 = vrot.lane.b32.xlu0 %v1324, 126
        %v1342 = vpop.permute.xlu0 %1341
        %1343 = vrot.lane.b32.xlu0 %v1325, 126
        %v1344 = vpop.permute.xlu0 %1343
        %1345 = vrot.lane.b32.xlu0 %v1326, 126
        %v1346 = vpop.permute.xlu0 %1345
        %1347 = vrot.lane.b32.xlu0 %v1327, 126
        %v1348 = vpop.permute.xlu0 %1347
        %1349 = vrot.lane.b32.xlu0 %v1328, 126
        %v1350 = vpop.permute.xlu0 %1349
        %1351 = vrot.lane.b32.xlu0 %v1329, 126
        %v1352 = vpop.permute.xlu0 %1351
        %1353 = vrot.lane.b32.xlu0 %v1330, 126
        %v1354 = vpop.permute.xlu0 %1353
        %v1363 = vcombine.low %v1340, %v1348
        %v1364 = vcombine.high %v1340, %v1348
        %v1366 = vunpack.c.l.s4 1983009808
        %v1367 = vunpack.c.0.s8 %v1366
        %v1368 = vlaneseq
        %v1369 = vshrl.u32 %v1368, 7
        %v1370 = vsub.s32 %v1367, %v1369
        %v1371 = vrot.slane %v1363, %v1370
        %v1373 = vunpack.c.l.s4 1983009808
        %v1374 = vunpack.c.0.s8 %v1373
        %v1375 = vlaneseq
        %v1376 = vshrl.u32 %v1375, 7
        %v1377 = vsub.s32 %v1374, %v1376
        %v1378 = vrot.slane %v1364, %v1377
        %v1379 = vcombine.low %v1344, %v1352
        %v1380 = vcombine.high %v1344, %v1352
        %v1382 = vunpack.c.l.s4 1983009808
        %v1383 = vunpack.c.0.s8 %v1382
        %v1384 = vlaneseq
        %v1385 = vshrl.u32 %v1384, 7
        %v1386 = vsub.s32 %v1383, %v1385
        %v1387 = vrot.slane %v1379, %v1386
        %v1389 = vunpack.c.l.s4 1983009808
        %v1390 = vunpack.c.0.s8 %v1389
        %v1391 = vlaneseq
        %v1392 = vshrl.u32 %v1391, 7
        %v1393 = vsub.s32 %v1390, %v1392
        %v1394 = vrot.slane %v1380, %v1393
        %v1395 = vcombine.low %v1371, %v1387
        %v1396 = vcombine.high %v1371, %v1387
        %v1398 = vunpack.c.l.s4 1934713408
        %v1399 = vunpack.c.0.s8 %v1398
        %v1400 = vlaneseq
        %v1401 = vshrl.u32 %v1400, 7
        %v1402 = vsub.s32 %v1399, %v1401
        %v1403 = vrot.slane %v1395, %v1402
        %v1405 = vunpack.c.l.s4 1934713408
        %v1406 = vunpack.c.0.s8 %v1405
        %v1407 = vlaneseq
        %v1408 = vshrl.u32 %v1407, 7
        %v1409 = vsub.s32 %v1406, %v1408
        %v1410 = vrot.slane %v1396, %v1409
        %v1411 = vcombine.low %v1378, %v1394
        %v1412 = vcombine.high %v1378, %v1394
        %v1414 = vunpack.c.l.s4 1934713408
        %v1415 = vunpack.c.0.s8 %v1414
        %v1416 = vlaneseq
        %v1417 = vshrl.u32 %v1416, 7
        %v1418 = vsub.s32 %v1415, %v1417
        %v1419 = vrot.slane %v1411, %v1418
        %v1421 = vunpack.c.l.s4 1934713408
        %v1422 = vunpack.c.0.s8 %v1421
        %v1423 = vlaneseq
        %v1424 = vshrl.u32 %v1423, 7
        %v1425 = vsub.s32 %v1422, %v1424
        %v1426 = vrot.slane %v1412, %v1425
        %v1427 = vcombine.high %v1403, 0.0
        %v1428 = vcombine.high %v1410, 0.0
        %v1429 = vcombine.high %v1419, 0.0
        %v1430 = vcombine.high %v1426, 0.0
        %v1431 = vcombine.low %v1342, %v1350
        %v1432 = vcombine.high %v1342, %v1350
        %v1434 = vunpack.c.l.s4 1983009808
        %v1435 = vunpack.c.0.s8 %v1434
        %v1436 = vlaneseq
        %v1437 = vshrl.u32 %v1436, 7
        %v1438 = vsub.s32 %v1435, %v1437
        %v1439 = vrot.slane %v1431, %v1438
        %v1441 = vunpack.c.l.s4 1983009808
        %v1442 = vunpack.c.0.s8 %v1441
        %v1443 = vlaneseq
        %v1444 = vshrl.u32 %v1443, 7
        %v1445 = vsub.s32 %v1442, %v1444
        %v1446 = vrot.slane %v1432, %v1445
        %v1447 = vcombine.low %v1346, %v1354
        %v1448 = vcombine.high %v1346, %v1354
        %v1450 = vunpack.c.l.s4 1983009808
        %v1451 = vunpack.c.0.s8 %v1450
        %v1452 = vlaneseq
        %v1453 = vshrl.u32 %v1452, 7
        %v1454 = vsub.s32 %v1451, %v1453
        %v1455 = vrot.slane %v1447, %v1454
        %v1457 = vunpack.c.l.s4 1983009808
        %v1458 = vunpack.c.0.s8 %v1457
        %v1459 = vlaneseq
        %v1460 = vshrl.u32 %v1459, 7
        %v1461 = vsub.s32 %v1458, %v1460
        %v1462 = vrot.slane %v1448, %v1461
        %v1463 = vcombine.low %v1439, %v1455
        %v1464 = vcombine.high %v1439, %v1455
        %v1466 = vunpack.c.l.s4 1934713408
        %v1467 = vunpack.c.0.s8 %v1466
        %v1468 = vlaneseq
        %v1469 = vshrl.u32 %v1468, 7
        %v1470 = vsub.s32 %v1467, %v1469
        %v1471 = vrot.slane %v1463, %v1470
        %v1473 = vunpack.c.l.s4 1934713408
        %v1474 = vunpack.c.0.s8 %v1473
        %v1475 = vlaneseq
        %v1476 = vshrl.u32 %v1475, 7
        %v1477 = vsub.s32 %v1474, %v1476
        %v1478 = vrot.slane %v1464, %v1477
        %v1479 = vcombine.low %v1446, %v1462
        %v1480 = vcombine.high %v1446, %v1462
        %v1482 = vunpack.c.l.s4 1934713408
        %v1483 = vunpack.c.0.s8 %v1482
        %v1484 = vlaneseq
        %v1485 = vshrl.u32 %v1484, 7
        %v1486 = vsub.s32 %v1483, %v1485
        %v1487 = vrot.slane %v1479, %v1486
        %v1489 = vunpack.c.l.s4 1934713408
        %v1490 = vunpack.c.0.s8 %v1489
        %v1491 = vlaneseq
        %v1492 = vshrl.u32 %v1491, 7
        %v1493 = vsub.s32 %v1490, %v1492
        %v1494 = vrot.slane %v1480, %v1493
        %v1495 = vcombine.high %v1471, 0.0
        %v1496 = vcombine.high %v1478, 0.0
        %v1497 = vcombine.high %v1487, 0.0
        %v1498 = vcombine.high %v1494, 0.0
        %1500 = vrot.lane.b32.xlu0 %v1427, 16
        %v1501 = vpop.permute.xlu0 %1500
        %1504 = vrot.lane.b32.xlu0 %v1410, 32
        %v1505 = vpop.permute.xlu0 %1504
        %1508 = vrot.lane.b32.xlu0 %v1428, 48
        %v1509 = vpop.permute.xlu0 %1508
        %1512 = vrot.lane.b32.xlu0 %v1419, 64
        %v1513 = vpop.permute.xlu0 %1512
        %1516 = vrot.lane.b32.xlu0 %v1429, 80
        %v1517 = vpop.permute.xlu0 %1516
        %1520 = vrot.lane.b32.xlu0 %v1426, 96
        %v1521 = vpop.permute.xlu0 %1520
        %1524 = vrot.lane.b32.xlu0 %v1430, 112
        %v1525 = vpop.permute.xlu0 %1524
        %1528 = vrot.lane.b32.xlu0 %v1495, 16
        %v1529 = vpop.permute.xlu0 %1528
        %1532 = vrot.lane.b32.xlu0 %v1478, 32
        %v1533 = vpop.permute.xlu0 %1532
        %1536 = vrot.lane.b32.xlu0 %v1496, 48
        %v1537 = vpop.permute.xlu0 %1536
        %1540 = vrot.lane.b32.xlu0 %v1487, 64
        %v1541 = vpop.permute.xlu0 %1540
        %1544 = vrot.lane.b32.xlu0 %v1497, 80
        %v1545 = vpop.permute.xlu0 %1544
        %1548 = vrot.lane.b32.xlu0 %v1494, 96
        %v1549 = vpop.permute.xlu0 %1548
        %1552 = vrot.lane.b32.xlu0 %v1498, 112
        %v1553 = vpop.permute.xlu0 %1552
        %v1555 = vsel %vm1046, %v1403, %v1501
        %v1556 = vsel %vm1048, %v1555, %v1505
        %v1557 = vsel %vm1050, %v1556, %v1509
        %v1558 = vsel %vm1052, %v1557, %v1513
        %v1559 = vsel %vm1054, %v1558, %v1517
        %v1560 = vsel %vm1056, %v1559, %v1521
        %v1561 = vsel %vm1058, %v1560, %v1525
        %v1562 = vsel %vm1046, %v1471, %v1529
        %v1563 = vsel %vm1048, %v1562, %v1533
        %v1564 = vsel %vm1050, %v1563, %v1537
        %v1565 = vsel %vm1052, %v1564, %v1541
        %v1566 = vsel %vm1054, %v1565, %v1545
        %v1567 = vsel %vm1056, %v1566, %v1549
        %v1568 = vsel %vm1058, %v1567, %v1553
        %1569 = vst [vmem:[#allocation4 + $0x10] sm:$0xf] %v1561
        %1570 = vst [vmem:[#allocation4 + $0x18] sm:$0xf] %v1568
        %v1571 = vld [vmem:[#allocation3 + $0x1] sm:$0xff]
        %v1572 = vld [vmem:[#allocation3 + $0x9] sm:$0xff]
        %v1573 = vld [vmem:[#allocation3 + $0x19] sm:$0xff]
        %v1574 = vld [vmem:[#allocation3 + $0x21] sm:$0xff]
        %v1575 = vld [vmem:[#allocation3 + $0x31] sm:$0xff]
        %v1576 = vld [vmem:[#allocation3 + $0x39] sm:$0xff]
        %v1577 = vld [vmem:[#allocation3 + $0x49] sm:$0xff]
        %v1578 = vld [vmem:[#allocation3 + $0x51] sm:$0xff]
        %v1579 = vcombine.low %v1571, %v1575
        %v1580 = vcombine.high %v1571, %v1575
        %v1582 = vunpack.c.l.s4 1983009808
        %v1583 = vunpack.c.0.s8 %v1582
        %v1584 = vlaneseq
        %v1585 = vshrl.u32 %v1584, 7
        %v1586 = vsub.s32 %v1583, %v1585
        %v1587 = vrot.slane %v1579, %v1586
        %v1589 = vunpack.c.l.s4 1983009808
        %v1590 = vunpack.c.0.s8 %v1589
        %v1591 = vlaneseq
        %v1592 = vshrl.u32 %v1591, 7
        %v1593 = vsub.s32 %v1590, %v1592
        %v1594 = vrot.slane %v1580, %v1593
        %v1595 = vcombine.low %v1573, %v1577
        %v1596 = vcombine.high %v1573, %v1577
        %v1598 = vunpack.c.l.s4 1983009808
        %v1599 = vunpack.c.0.s8 %v1598
        %v1600 = vlaneseq
        %v1601 = vshrl.u32 %v1600, 7
        %v1602 = vsub.s32 %v1599, %v1601
        %v1603 = vrot.slane %v1595, %v1602
        %v1605 = vunpack.c.l.s4 1983009808
        %v1606 = vunpack.c.0.s8 %v1605
        %v1607 = vlaneseq
        %v1608 = vshrl.u32 %v1607, 7
        %v1609 = vsub.s32 %v1606, %v1608
        %v1610 = vrot.slane %v1596, %v1609
        %v1611 = vcombine.low %v1587, %v1603
        %v1612 = vcombine.high %v1587, %v1603
        %v1614 = vunpack.c.l.s4 1934713408
        %v1615 = vunpack.c.0.s8 %v1614
        %v1616 = vlaneseq
        %v1617 = vshrl.u32 %v1616, 7
        %v1618 = vsub.s32 %v1615, %v1617
        %v1619 = vrot.slane %v1611, %v1618
        %v1621 = vunpack.c.l.s4 1934713408
        %v1622 = vunpack.c.0.s8 %v1621
        %v1623 = vlaneseq
        %v1624 = vshrl.u32 %v1623, 7
        %v1625 = vsub.s32 %v1622, %v1624
        %v1626 = vrot.slane %v1612, %v1625
        %v1627 = vcombine.low %v1594, %v1610
        %v1628 = vcombine.high %v1594, %v1610
        %v1630 = vunpack.c.l.s4 1934713408
        %v1631 = vunpack.c.0.s8 %v1630
        %v1632 = vlaneseq
        %v1633 = vshrl.u32 %v1632, 7
        %v1634 = vsub.s32 %v1631, %v1633
        %v1635 = vrot.slane %v1627, %v1634
        %v1637 = vunpack.c.l.s4 1934713408
        %v1638 = vunpack.c.0.s8 %v1637
        %v1639 = vlaneseq
        %v1640 = vshrl.u32 %v1639, 7
        %v1641 = vsub.s32 %v1638, %v1640
        %v1642 = vrot.slane %v1628, %v1641
        %v1643 = vcombine.high %v1619, 0.0
        %v1644 = vcombine.high %v1626, 0.0
        %v1645 = vcombine.high %v1635, 0.0
        %v1646 = vcombine.high %v1642, 0.0
        %v1647 = vcombine.low %v1572, %v1576
        %v1648 = vcombine.high %v1572, %v1576
        %v1650 = vunpack.c.l.s4 1983009808
        %v1651 = vunpack.c.0.s8 %v1650
        %v1652 = vlaneseq
        %v1653 = vshrl.u32 %v1652, 7
        %v1654 = vsub.s32 %v1651, %v1653
        %v1655 = vrot.slane %v1647, %v1654
        %v1657 = vunpack.c.l.s4 1983009808
        %v1658 = vunpack.c.0.s8 %v1657
        %v1659 = vlaneseq
        %v1660 = vshrl.u32 %v1659, 7
        %v1661 = vsub.s32 %v1658, %v1660
        %v1662 = vrot.slane %v1648, %v1661
        %v1663 = vcombine.low %v1574, %v1578
        %v1664 = vcombine.high %v1574, %v1578
        %v1666 = vunpack.c.l.s4 1983009808
        %v1667 = vunpack.c.0.s8 %v1666
        %v1668 = vlaneseq
        %v1669 = vshrl.u32 %v1668, 7
        %v1670 = vsub.s32 %v1667, %v1669
        %v1671 = vrot.slane %v1663, %v1670
        %v1673 = vunpack.c.l.s4 1983009808
        %v1674 = vunpack.c.0.s8 %v1673
        %v1675 = vlaneseq
        %v1676 = vshrl.u32 %v1675, 7
        %v1677 = vsub.s32 %v1674, %v1676
        %v1678 = vrot.slane %v1664, %v1677
        %v1679 = vcombine.low %v1655, %v1671
        %v1680 = vcombine.high %v1655, %v1671
        %v1682 = vunpack.c.l.s4 1934713408
        %v1683 = vunpack.c.0.s8 %v1682
        %v1684 = vlaneseq
        %v1685 = vshrl.u32 %v1684, 7
        %v1686 = vsub.s32 %v1683, %v1685
        %v1687 = vrot.slane %v1679, %v1686
        %v1689 = vunpack.c.l.s4 1934713408
        %v1690 = vunpack.c.0.s8 %v1689
        %v1691 = vlaneseq
        %v1692 = vshrl.u32 %v1691, 7
        %v1693 = vsub.s32 %v1690, %v1692
        %v1694 = vrot.slane %v1680, %v1693
        %v1695 = vcombine.low %v1662, %v1678
        %v1696 = vcombine.high %v1662, %v1678
        %v1698 = vunpack.c.l.s4 1934713408
        %v1699 = vunpack.c.0.s8 %v1698
        %v1700 = vlaneseq
        %v1701 = vshrl.u32 %v1700, 7
        %v1702 = vsub.s32 %v1699, %v1701
        %v1703 = vrot.slane %v1695, %v1702
        %v1705 = vunpack.c.l.s4 1934713408
        %v1706 = vunpack.c.0.s8 %v1705
        %v1707 = vlaneseq
        %v1708 = vshrl.u32 %v1707, 7
        %v1709 = vsub.s32 %v1706, %v1708
        %v1710 = vrot.slane %v1696, %v1709
        %v1711 = vcombine.high %v1687, 0.0
        %v1712 = vcombine.high %v1694, 0.0
        %v1713 = vcombine.high %v1703, 0.0
        %v1714 = vcombine.high %v1710, 0.0
        %1716 = vrot.lane.b32.xlu0 %v1643, 16
        %v1717 = vpop.permute.xlu0 %1716
        %1720 = vrot.lane.b32.xlu0 %v1626, 32
        %v1721 = vpop.permute.xlu0 %1720
        %1724 = vrot.lane.b32.xlu0 %v1644, 48
        %v1725 = vpop.permute.xlu0 %1724
        %1728 = vrot.lane.b32.xlu0 %v1635, 64
        %v1729 = vpop.permute.xlu0 %1728
        %1732 = vrot.lane.b32.xlu0 %v1645, 80
        %v1733 = vpop.permute.xlu0 %1732
        %1736 = vrot.lane.b32.xlu0 %v1642, 96
        %v1737 = vpop.permute.xlu0 %1736
        %1740 = vrot.lane.b32.xlu0 %v1646, 112
        %v1741 = vpop.permute.xlu0 %1740
        %1744 = vrot.lane.b32.xlu0 %v1711, 16
        %v1745 = vpop.permute.xlu0 %1744
        %1748 = vrot.lane.b32.xlu0 %v1694, 32
        %v1749 = vpop.permute.xlu0 %1748
        %1752 = vrot.lane.b32.xlu0 %v1712, 48
        %v1753 = vpop.permute.xlu0 %1752
        %1756 = vrot.lane.b32.xlu0 %v1703, 64
        %v1757 = vpop.permute.xlu0 %1756
        %1760 = vrot.lane.b32.xlu0 %v1713, 80
        %v1761 = vpop.permute.xlu0 %1760
        %1764 = vrot.lane.b32.xlu0 %v1710, 96
        %v1765 = vpop.permute.xlu0 %1764
        %1768 = vrot.lane.b32.xlu0 %v1714, 112
        %v1769 = vpop.permute.xlu0 %1768
        %v1771 = vsel %vm1046, %v1619, %v1717
        %v1772 = vsel %vm1048, %v1771, %v1721
        %v1773 = vsel %vm1050, %v1772, %v1725
        %v1774 = vsel %vm1052, %v1773, %v1729
        %v1775 = vsel %vm1054, %v1774, %v1733
        %v1776 = vsel %vm1056, %v1775, %v1737
        %v1777 = vsel %vm1058, %v1776, %v1741
        %v1778 = vsel %vm1046, %v1687, %v1745
        %v1779 = vsel %vm1048, %v1778, %v1749
        %v1780 = vsel %vm1050, %v1779, %v1753
        %v1781 = vsel %vm1052, %v1780, %v1757
        %v1782 = vsel %vm1054, %v1781, %v1761
        %v1783 = vsel %vm1056, %v1782, %v1765
        %v1784 = vsel %vm1058, %v1783, %v1769
        %v1787 = vrot.slane %v1777, 4
        %v1788 = vrot.slane %v1784, 4
        %1791 = vst [vmem:[#allocation4 + $0x10] sm:$0xf0] %v1787
        %1792 = vst [vmem:[#allocation4 + $0x18] sm:$0xf0] %v1788
        %v1793 = vld [vmem:[#allocation3 + $0x1] sm:$0xff]
        %v1794 = vld [vmem:[#allocation3 + $0x9] sm:$0xff]
        %v1795 = vld [vmem:[#allocation3 + $0x19] sm:$0xff]
        %v1796 = vld [vmem:[#allocation3 + $0x21] sm:$0xff]
        %v1797 = vld [vmem:[#allocation3 + $0x31] sm:$0xff]
        %v1798 = vld [vmem:[#allocation3 + $0x39] sm:$0xff]
        %v1799 = vld [vmem:[#allocation3 + $0x49] sm:$0xff]
        %v1800 = vld [vmem:[#allocation3 + $0x51] sm:$0xff]
        %1809 = vrot.lane.b32.xlu0 %v1793, 127
        %v1810 = vpop.permute.xlu0 %1809
        %1811 = vrot.lane.b32.xlu0 %v1794, 127
        %v1812 = vpop.permute.xlu0 %1811
        %1813 = vrot.lane.b32.xlu0 %v1795, 127
        %v1814 = vpop.permute.xlu0 %1813
        %1815 = vrot.lane.b32.xlu0 %v1796, 127
        %v1816 = vpop.permute.xlu0 %1815
        %1817 = vrot.lane.b32.xlu0 %v1797, 127
        %v1818 = vpop.permute.xlu0 %1817
        %1819 = vrot.lane.b32.xlu0 %v1798, 127
        %v1820 = vpop.permute.xlu0 %1819
        %1821 = vrot.lane.b32.xlu0 %v1799, 127
        %v1822 = vpop.permute.xlu0 %1821
        %1823 = vrot.lane.b32.xlu0 %v1800, 127
        %v1824 = vpop.permute.xlu0 %1823
        %v1833 = vcombine.low %v1810, %v1818
        %v1834 = vcombine.high %v1810, %v1818
        %v1836 = vunpack.c.l.s4 1983009808
        %v1837 = vunpack.c.0.s8 %v1836
        %v1838 = vlaneseq
        %v1839 = vshrl.u32 %v1838, 7
        %v1840 = vsub.s32 %v1837, %v1839
        %v1841 = vrot.slane %v1833, %v1840
        %v1843 = vunpack.c.l.s4 1983009808
        %v1844 = vunpack.c.0.s8 %v1843
        %v1845 = vlaneseq
        %v1846 = vshrl.u32 %v1845, 7
        %v1847 = vsub.s32 %v1844, %v1846
        %v1848 = vrot.slane %v1834, %v1847
        %v1849 = vcombine.low %v1814, %v1822
        %v1850 = vcombine.high %v1814, %v1822
        %v1852 = vunpack.c.l.s4 1983009808
        %v1853 = vunpack.c.0.s8 %v1852
        %v1854 = vlaneseq
        %v1855 = vshrl.u32 %v1854, 7
        %v1856 = vsub.s32 %v1853, %v1855
        %v1857 = vrot.slane %v1849, %v1856
        %v1859 = vunpack.c.l.s4 1983009808
        %v1860 = vunpack.c.0.s8 %v1859
        %v1861 = vlaneseq
        %v1862 = vshrl.u32 %v1861, 7
        %v1863 = vsub.s32 %v1860, %v1862
        %v1864 = vrot.slane %v1850, %v1863
        %v1865 = vcombine.low %v1841, %v1857
        %v1866 = vcombine.high %v1841, %v1857
        %v1868 = vunpack.c.l.s4 1934713408
        %v1869 = vunpack.c.0.s8 %v1868
        %v1870 = vlaneseq
        %v1871 = vshrl.u32 %v1870, 7
        %v1872 = vsub.s32 %v1869, %v1871
        %v1873 = vrot.slane %v1865, %v1872
        %v1875 = vunpack.c.l.s4 1934713408
        %v1876 = vunpack.c.0.s8 %v1875
        %v1877 = vlaneseq
        %v1878 = vshrl.u32 %v1877, 7
        %v1879 = vsub.s32 %v1876, %v1878
        %v1880 = vrot.slane %v1866, %v1879
        %v1881 = vcombine.low %v1848, %v1864
        %v1882 = vcombine.high %v1848, %v1864
        %v1884 = vunpack.c.l.s4 1934713408
        %v1885 = vunpack.c.0.s8 %v1884
        %v1886 = vlaneseq
        %v1887 = vshrl.u32 %v1886, 7
        %v1888 = vsub.s32 %v1885, %v1887
        %v1889 = vrot.slane %v1881, %v1888
        %v1891 = vunpack.c.l.s4 1934713408
        %v1892 = vunpack.c.0.s8 %v1891
        %v1893 = vlaneseq
        %v1894 = vshrl.u32 %v1893, 7
        %v1895 = vsub.s32 %v1892, %v1894
        %v1896 = vrot.slane %v1882, %v1895
        %v1897 = vcombine.high %v1873, 0.0
        %v1898 = vcombine.high %v1880, 0.0
        %v1899 = vcombine.high %v1889, 0.0
        %v1900 = vcombine.high %v1896, 0.0
        %v1901 = vcombine.low %v1812, %v1820
        %v1902 = vcombine.high %v1812, %v1820
        %v1904 = vunpack.c.l.s4 1983009808
        %v1905 = vunpack.c.0.s8 %v1904
        %v1906 = vlaneseq
        %v1907 = vshrl.u32 %v1906, 7
        %v1908 = vsub.s32 %v1905, %v1907
        %v1909 = vrot.slane %v1901, %v1908
        %v1911 = vunpack.c.l.s4 1983009808
        %v1912 = vunpack.c.0.s8 %v1911
        %v1913 = vlaneseq
        %v1914 = vshrl.u32 %v1913, 7
        %v1915 = vsub.s32 %v1912, %v1914
        %v1916 = vrot.slane %v1902, %v1915
        %v1917 = vcombine.low %v1816, %v1824
        %v1918 = vcombine.high %v1816, %v1824
        %v1920 = vunpack.c.l.s4 1983009808
        %v1921 = vunpack.c.0.s8 %v1920
        %v1922 = vlaneseq
        %v1923 = vshrl.u32 %v1922, 7
        %v1924 = vsub.s32 %v1921, %v1923
        %v1925 = vrot.slane %v1917, %v1924
        %v1927 = vunpack.c.l.s4 1983009808
        %v1928 = vunpack.c.0.s8 %v1927
        %v1929 = vlaneseq
        %v1930 = vshrl.u32 %v1929, 7
        %v1931 = vsub.s32 %v1928, %v1930
        %v1932 = vrot.slane %v1918, %v1931
        %v1933 = vcombine.low %v1909, %v1925
        %v1934 = vcombine.high %v1909, %v1925
        %v1936 = vunpack.c.l.s4 1934713408
        %v1937 = vunpack.c.0.s8 %v1936
        %v1938 = vlaneseq
        %v1939 = vshrl.u32 %v1938, 7
        %v1940 = vsub.s32 %v1937, %v1939
        %v1941 = vrot.slane %v1933, %v1940
        %v1943 = vunpack.c.l.s4 1934713408
        %v1944 = vunpack.c.0.s8 %v1943
        %v1945 = vlaneseq
        %v1946 = vshrl.u32 %v1945, 7
        %v1947 = vsub.s32 %v1944, %v1946
        %v1948 = vrot.slane %v1934, %v1947
        %v1949 = vcombine.low %v1916, %v1932
        %v1950 = vcombine.high %v1916, %v1932
        %v1952 = vunpack.c.l.s4 1934713408
        %v1953 = vunpack.c.0.s8 %v1952
        %v1954 = vlaneseq
        %v1955 = vshrl.u32 %v1954, 7
        %v1956 = vsub.s32 %v1953, %v1955
        %v1957 = vrot.slane %v1949, %v1956
        %v1959 = vunpack.c.l.s4 1934713408
        %v1960 = vunpack.c.0.s8 %v1959
        %v1961 = vlaneseq
        %v1962 = vshrl.u32 %v1961, 7
        %v1963 = vsub.s32 %v1960, %v1962
        %v1964 = vrot.slane %v1950, %v1963
        %v1965 = vcombine.high %v1941, 0.0
        %v1966 = vcombine.high %v1948, 0.0
        %v1967 = vcombine.high %v1957, 0.0
        %v1968 = vcombine.high %v1964, 0.0
        %1970 = vrot.lane.b32.xlu0 %v1897, 16
        %v1971 = vpop.permute.xlu0 %1970
        %1974 = vrot.lane.b32.xlu0 %v1880, 32
        %v1975 = vpop.permute.xlu0 %1974
        %1978 = vrot.lane.b32.xlu0 %v1898, 48
        %v1979 = vpop.permute.xlu0 %1978
        %1982 = vrot.lane.b32.xlu0 %v1889, 64
        %v1983 = vpop.permute.xlu0 %1982
        %1986 = vrot.lane.b32.xlu0 %v1899, 80
        %v1987 = vpop.permute.xlu0 %1986
        %1990 = vrot.lane.b32.xlu0 %v1896, 96
        %v1991 = vpop.permute.xlu0 %1990
        %1994 = vrot.lane.b32.xlu0 %v1900, 112
        %v1995 = vpop.permute.xlu0 %1994
        %1998 = vrot.lane.b32.xlu0 %v1965, 16
        %v1999 = vpop.permute.xlu0 %1998
        %2002 = vrot.lane.b32.xlu0 %v1948, 32
        %v2003 = vpop.permute.xlu0 %2002
        %2006 = vrot.lane.b32.xlu0 %v1966, 48
        %v2007 = vpop.permute.xlu0 %2006
        %2010 = vrot.lane.b32.xlu0 %v1957, 64
        %v2011 = vpop.permute.xlu0 %2010
        %2014 = vrot.lane.b32.xlu0 %v1967, 80
        %v2015 = vpop.permute.xlu0 %2014
        %2018 = vrot.lane.b32.xlu0 %v1964, 96
        %v2019 = vpop.permute.xlu0 %2018
        %2022 = vrot.lane.b32.xlu0 %v1968, 112
        %v2023 = vpop.permute.xlu0 %2022
        %v2025 = vsel %vm1046, %v1873, %v1971
        %v2026 = vsel %vm1048, %v2025, %v1975
        %v2027 = vsel %vm1050, %v2026, %v1979
        %v2028 = vsel %vm1052, %v2027, %v1983
        %v2029 = vsel %vm1054, %v2028, %v1987
        %v2030 = vsel %vm1056, %v2029, %v1991
        %v2031 = vsel %vm1058, %v2030, %v1995
        %v2032 = vsel %vm1046, %v1941, %v1999
        %v2033 = vsel %vm1048, %v2032, %v2003
        %v2034 = vsel %vm1050, %v2033, %v2007
        %v2035 = vsel %vm1052, %v2034, %v2011
        %v2036 = vsel %vm1054, %v2035, %v2015
        %v2037 = vsel %vm1056, %v2036, %v2019
        %v2038 = vsel %vm1058, %v2037, %v2023
        %2039 = vst [vmem:[#allocation4 + $0x20] sm:$0xf] %v2031
        %2040 = vst [vmem:[#allocation4 + $0x28] sm:$0xf] %v2038
        %v2041 = vld [vmem:[#allocation3 + $0x1] sm:$0xff]
        %v2042 = vld [vmem:[#allocation3 + $0x9] sm:$0xff]
        %v2043 = vld [vmem:[#allocation3 + $0x19] sm:$0xff]
        %v2044 = vld [vmem:[#allocation3 + $0x21] sm:$0xff]
        %v2045 = vld [vmem:[#allocation3 + $0x31] sm:$0xff]
        %v2046 = vld [vmem:[#allocation3 + $0x39] sm:$0xff]
        %v2047 = vld [vmem:[#allocation3 + $0x49] sm:$0xff]
        %v2048 = vld [vmem:[#allocation3 + $0x51] sm:$0xff]
        %2057 = vrot.lane.b32.xlu0 %v2041, 126
        %v2058 = vpop.permute.xlu0 %2057
        %2059 = vrot.lane.b32.xlu0 %v2042, 126
        %v2060 = vpop.permute.xlu0 %2059
        %2061 = vrot.lane.b32.xlu0 %v2043, 126
        %v2062 = vpop.permute.xlu0 %2061
        %2063 = vrot.lane.b32.xlu0 %v2044, 126
        %v2064 = vpop.permute.xlu0 %2063
        %2065 = vrot.lane.b32.xlu0 %v2045, 126
        %v2066 = vpop.permute.xlu0 %2065
        %2067 = vrot.lane.b32.xlu0 %v2046, 126
        %v2068 = vpop.permute.xlu0 %2067
        %2069 = vrot.lane.b32.xlu0 %v2047, 126
        %v2070 = vpop.permute.xlu0 %2069
        %2071 = vrot.lane.b32.xlu0 %v2048, 126
        %v2072 = vpop.permute.xlu0 %2071
        %v2081 = vcombine.low %v2058, %v2066
        %v2082 = vcombine.high %v2058, %v2066
        %v2084 = vunpack.c.l.s4 1983009808
        %v2085 = vunpack.c.0.s8 %v2084
        %v2086 = vlaneseq
        %v2087 = vshrl.u32 %v2086, 7
        %v2088 = vsub.s32 %v2085, %v2087
        %v2089 = vrot.slane %v2081, %v2088
        %v2091 = vunpack.c.l.s4 1983009808
        %v2092 = vunpack.c.0.s8 %v2091
        %v2093 = vlaneseq
        %v2094 = vshrl.u32 %v2093, 7
        %v2095 = vsub.s32 %v2092, %v2094
        %v2096 = vrot.slane %v2082, %v2095
        %v2097 = vcombine.low %v2062, %v2070
        %v2098 = vcombine.high %v2062, %v2070
        %v2100 = vunpack.c.l.s4 1983009808
        %v2101 = vunpack.c.0.s8 %v2100
        %v2102 = vlaneseq
        %v2103 = vshrl.u32 %v2102, 7
        %v2104 = vsub.s32 %v2101, %v2103
        %v2105 = vrot.slane %v2097, %v2104
        %v2107 = vunpack.c.l.s4 1983009808
        %v2108 = vunpack.c.0.s8 %v2107
        %v2109 = vlaneseq
        %v2110 = vshrl.u32 %v2109, 7
        %v2111 = vsub.s32 %v2108, %v2110
        %v2112 = vrot.slane %v2098, %v2111
        %v2113 = vcombine.low %v2089, %v2105
        %v2114 = vcombine.high %v2089, %v2105
        %v2116 = vunpack.c.l.s4 1934713408
        %v2117 = vunpack.c.0.s8 %v2116
        %v2118 = vlaneseq
        %v2119 = vshrl.u32 %v2118, 7
        %v2120 = vsub.s32 %v2117, %v2119
        %v2121 = vrot.slane %v2113, %v2120
        %v2123 = vunpack.c.l.s4 1934713408
        %v2124 = vunpack.c.0.s8 %v2123
        %v2125 = vlaneseq
        %v2126 = vshrl.u32 %v2125, 7
        %v2127 = vsub.s32 %v2124, %v2126
        %v2128 = vrot.slane %v2114, %v2127
        %v2129 = vcombine.low %v2096, %v2112
        %v2130 = vcombine.high %v2096, %v2112
        %v2132 = vunpack.c.l.s4 1934713408
        %v2133 = vunpack.c.0.s8 %v2132
        %v2134 = vlaneseq
        %v2135 = vshrl.u32 %v2134, 7
        %v2136 = vsub.s32 %v2133, %v2135
        %v2137 = vrot.slane %v2129, %v2136
        %v2139 = vunpack.c.l.s4 1934713408
        %v2140 = vunpack.c.0.s8 %v2139
        %v2141 = vlaneseq
        %v2142 = vshrl.u32 %v2141, 7
        %v2143 = vsub.s32 %v2140, %v2142
        %v2144 = vrot.slane %v2130, %v2143
        %v2145 = vcombine.high %v2121, 0.0
        %v2146 = vcombine.high %v2128, 0.0
        %v2147 = vcombine.high %v2137, 0.0
        %v2148 = vcombine.high %v2144, 0.0
        %v2149 = vcombine.low %v2060, %v2068
        %v2150 = vcombine.high %v2060, %v2068
        %v2152 = vunpack.c.l.s4 1983009808
        %v2153 = vunpack.c.0.s8 %v2152
        %v2154 = vlaneseq
        %v2155 = vshrl.u32 %v2154, 7
        %v2156 = vsub.s32 %v2153, %v2155
        %v2157 = vrot.slane %v2149, %v2156
        %v2159 = vunpack.c.l.s4 1983009808
        %v2160 = vunpack.c.0.s8 %v2159
        %v2161 = vlaneseq
        %v2162 = vshrl.u32 %v2161, 7
        %v2163 = vsub.s32 %v2160, %v2162
        %v2164 = vrot.slane %v2150, %v2163
        %v2165 = vcombine.low %v2064, %v2072
        %v2166 = vcombine.high %v2064, %v2072
        %v2168 = vunpack.c.l.s4 1983009808
        %v2169 = vunpack.c.0.s8 %v2168
        %v2170 = vlaneseq
        %v2171 = vshrl.u32 %v2170, 7
        %v2172 = vsub.s32 %v2169, %v2171
        %v2173 = vrot.slane %v2165, %v2172
        %v2175 = vunpack.c.l.s4 1983009808
        %v2176 = vunpack.c.0.s8 %v2175
        %v2177 = vlaneseq
        %v2178 = vshrl.u32 %v2177, 7
        %v2179 = vsub.s32 %v2176, %v2178
        %v2180 = vrot.slane %v2166, %v2179
        %v2181 = vcombine.low %v2157, %v2173
        %v2182 = vcombine.high %v2157, %v2173
        %v2184 = vunpack.c.l.s4 1934713408
        %v2185 = vunpack.c.0.s8 %v2184
        %v2186 = vlaneseq
        %v2187 = vshrl.u32 %v2186, 7
        %v2188 = vsub.s32 %v2185, %v2187
        %v2189 = vrot.slane %v2181, %v2188
        %v2191 = vunpack.c.l.s4 1934713408
        %v2192 = vunpack.c.0.s8 %v2191
        %v2193 = vlaneseq
        %v2194 = vshrl.u32 %v2193, 7
        %v2195 = vsub.s32 %v2192, %v2194
        %v2196 = vrot.slane %v2182, %v2195
        %v2197 = vcombine.low %v2164, %v2180
        %v2198 = vcombine.high %v2164, %v2180
        %v2200 = vunpack.c.l.s4 1934713408
        %v2201 = vunpack.c.0.s8 %v2200
        %v2202 = vlaneseq
        %v2203 = vshrl.u32 %v2202, 7
        %v2204 = vsub.s32 %v2201, %v2203
        %v2205 = vrot.slane %v2197, %v2204
        %v2207 = vunpack.c.l.s4 1934713408
        %v2208 = vunpack.c.0.s8 %v2207
        %v2209 = vlaneseq
        %v2210 = vshrl.u32 %v2209, 7
        %v2211 = vsub.s32 %v2208, %v2210
        %v2212 = vrot.slane %v2198, %v2211
        %v2213 = vcombine.high %v2189, 0.0
        %v2214 = vcombine.high %v2196, 0.0
        %v2215 = vcombine.high %v2205, 0.0
        %v2216 = vcombine.high %v2212, 0.0
        %2218 = vrot.lane.b32.xlu0 %v2145, 16
        %v2219 = vpop.permute.xlu0 %2218
        %2222 = vrot.lane.b32.xlu0 %v2128, 32
        %v2223 = vpop.permute.xlu0 %2222
        %2226 = vrot.lane.b32.xlu0 %v2146, 48
        %v2227 = vpop.permute.xlu0 %2226
        %2230 = vrot.lane.b32.xlu0 %v2137, 64
        %v2231 = vpop.permute.xlu0 %2230
        %2234 = vrot.lane.b32.xlu0 %v2147, 80
        %v2235 = vpop.permute.xlu0 %2234
        %2238 = vrot.lane.b32.xlu0 %v2144, 96
        %v2239 = vpop.permute.xlu0 %2238
        %2242 = vrot.lane.b32.xlu0 %v2148, 112
        %v2243 = vpop.permute.xlu0 %2242
        %2246 = vrot.lane.b32.xlu0 %v2213, 16
        %v2247 = vpop.permute.xlu0 %2246
        %2250 = vrot.lane.b32.xlu0 %v2196, 32
        %v2251 = vpop.permute.xlu0 %2250
        %2254 = vrot.lane.b32.xlu0 %v2214, 48
        %v2255 = vpop.permute.xlu0 %2254
        %2258 = vrot.lane.b32.xlu0 %v2205, 64
        %v2259 = vpop.permute.xlu0 %2258
        %2262 = vrot.lane.b32.xlu0 %v2215, 80
        %v2263 = vpop.permute.xlu0 %2262
        %2266 = vrot.lane.b32.xlu0 %v2212, 96
        %v2267 = vpop.permute.xlu0 %2266
        %2270 = vrot.lane.b32.xlu0 %v2216, 112
        %v2271 = vpop.permute.xlu0 %2270
        %v2273 = vsel %vm1046, %v2121, %v2219
        %v2274 = vsel %vm1048, %v2273, %v2223
        %v2275 = vsel %vm1050, %v2274, %v2227
        %v2276 = vsel %vm1052, %v2275, %v2231
        %v2277 = vsel %vm1054, %v2276, %v2235
        %v2278 = vsel %vm1056, %v2277, %v2239
        %v2279 = vsel %vm1058, %v2278, %v2243
        %v2280 = vsel %vm1046, %v2189, %v2247
        %v2281 = vsel %vm1048, %v2280, %v2251
        %v2282 = vsel %vm1050, %v2281, %v2255
        %v2283 = vsel %vm1052, %v2282, %v2259
        %v2284 = vsel %vm1054, %v2283, %v2263
        %v2285 = vsel %vm1056, %v2284, %v2267
        %v2286 = vsel %vm1058, %v2285, %v2271
        %v2289 = vrot.slane %v2279, 4
        %v2290 = vrot.slane %v2286, 4
        %2293 = vst [vmem:[#allocation4 + $0x20] sm:$0xf0] %v2289
        %2294 = vst [vmem:[#allocation4 + $0x28] sm:$0xf0] %v2290
        %v2295 = vld [vmem:[#allocation3 + $0x2] sm:$0xff]
        %v2296 = vld [vmem:[#allocation3 + $0xa] sm:$0xff]
        %v2297 = vld [vmem:[#allocation3 + $0x1a] sm:$0xff]
        %v2298 = vld [vmem:[#allocation3 + $0x22] sm:$0xff]
        %v2299 = vld [vmem:[#allocation3 + $0x32] sm:$0xff]
        %v2300 = vld [vmem:[#allocation3 + $0x3a] sm:$0xff]
        %v2301 = vld [vmem:[#allocation3 + $0x4a] sm:$0xff]
        %v2302 = vld [vmem:[#allocation3 + $0x52] sm:$0xff]
        %v2303 = vcombine.low %v2295, %v2299
        %v2304 = vcombine.high %v2295, %v2299
        %v2306 = vunpack.c.l.s4 1983009808
        %v2307 = vunpack.c.0.s8 %v2306
        %v2308 = vlaneseq
        %v2309 = vshrl.u32 %v2308, 7
        %v2310 = vsub.s32 %v2307, %v2309
        %v2311 = vrot.slane %v2303, %v2310
        %v2313 = vunpack.c.l.s4 1983009808
        %v2314 = vunpack.c.0.s8 %v2313
        %v2315 = vlaneseq
        %v2316 = vshrl.u32 %v2315, 7
        %v2317 = vsub.s32 %v2314, %v2316
        %v2318 = vrot.slane %v2304, %v2317
        %v2319 = vcombine.low %v2297, %v2301
        %v2320 = vcombine.high %v2297, %v2301
        %v2322 = vunpack.c.l.s4 1983009808
        %v2323 = vunpack.c.0.s8 %v2322
        %v2324 = vlaneseq
        %v2325 = vshrl.u32 %v2324, 7
        %v2326 = vsub.s32 %v2323, %v2325
        %v2327 = vrot.slane %v2319, %v2326
        %v2329 = vunpack.c.l.s4 1983009808
        %v2330 = vunpack.c.0.s8 %v2329
        %v2331 = vlaneseq
        %v2332 = vshrl.u32 %v2331, 7
        %v2333 = vsub.s32 %v2330, %v2332
        %v2334 = vrot.slane %v2320, %v2333
        %v2335 = vcombine.low %v2311, %v2327
        %v2336 = vcombine.high %v2311, %v2327
        %v2338 = vunpack.c.l.s4 1934713408
        %v2339 = vunpack.c.0.s8 %v2338
        %v2340 = vlaneseq
        %v2341 = vshrl.u32 %v2340, 7
        %v2342 = vsub.s32 %v2339, %v2341
        %v2343 = vrot.slane %v2335, %v2342
        %v2345 = vunpack.c.l.s4 1934713408
        %v2346 = vunpack.c.0.s8 %v2345
        %v2347 = vlaneseq
        %v2348 = vshrl.u32 %v2347, 7
        %v2349 = vsub.s32 %v2346, %v2348
        %v2350 = vrot.slane %v2336, %v2349
        %v2351 = vcombine.low %v2318, %v2334
        %v2352 = vcombine.high %v2318, %v2334
        %v2354 = vunpack.c.l.s4 1934713408
        %v2355 = vunpack.c.0.s8 %v2354
        %v2356 = vlaneseq
        %v2357 = vshrl.u32 %v2356, 7
        %v2358 = vsub.s32 %v2355, %v2357
        %v2359 = vrot.slane %v2351, %v2358
        %v2361 = vunpack.c.l.s4 1934713408
        %v2362 = vunpack.c.0.s8 %v2361
        %v2363 = vlaneseq
        %v2364 = vshrl.u32 %v2363, 7
        %v2365 = vsub.s32 %v2362, %v2364
        %v2366 = vrot.slane %v2352, %v2365
        %v2367 = vcombine.high %v2343, 0.0
        %v2368 = vcombine.high %v2350, 0.0
        %v2369 = vcombine.high %v2359, 0.0
        %v2370 = vcombine.high %v2366, 0.0
        %v2371 = vcombine.low %v2296, %v2300
        %v2372 = vcombine.high %v2296, %v2300
        %v2374 = vunpack.c.l.s4 1983009808
        %v2375 = vunpack.c.0.s8 %v2374
        %v2376 = vlaneseq
        %v2377 = vshrl.u32 %v2376, 7
        %v2378 = vsub.s32 %v2375, %v2377
        %v2379 = vrot.slane %v2371, %v2378
        %v2381 = vunpack.c.l.s4 1983009808
        %v2382 = vunpack.c.0.s8 %v2381
        %v2383 = vlaneseq
        %v2384 = vshrl.u32 %v2383, 7
        %v2385 = vsub.s32 %v2382, %v2384
        %v2386 = vrot.slane %v2372, %v2385
        %v2387 = vcombine.low %v2298, %v2302
        %v2388 = vcombine.high %v2298, %v2302
        %v2390 = vunpack.c.l.s4 1983009808
        %v2391 = vunpack.c.0.s8 %v2390
        %v2392 = vlaneseq
        %v2393 = vshrl.u32 %v2392, 7
        %v2394 = vsub.s32 %v2391, %v2393
        %v2395 = vrot.slane %v2387, %v2394
        %v2397 = vunpack.c.l.s4 1983009808
        %v2398 = vunpack.c.0.s8 %v2397
        %v2399 = vlaneseq
        %v2400 = vshrl.u32 %v2399, 7
        %v2401 = vsub.s32 %v2398, %v2400
        %v2402 = vrot.slane %v2388, %v2401
        %v2403 = vcombine.low %v2379, %v2395
        %v2404 = vcombine.high %v2379, %v2395
        %v2406 = vunpack.c.l.s4 1934713408
        %v2407 = vunpack.c.0.s8 %v2406
        %v2408 = vlaneseq
        %v2409 = vshrl.u32 %v2408, 7
        %v2410 = vsub.s32 %v2407, %v2409
        %v2411 = vrot.slane %v2403, %v2410
        %v2413 = vunpack.c.l.s4 1934713408
        %v2414 = vunpack.c.0.s8 %v2413
        %v2415 = vlaneseq
        %v2416 = vshrl.u32 %v2415, 7
        %v2417 = vsub.s32 %v2414, %v2416
        %v2418 = vrot.slane %v2404, %v2417
        %v2419 = vcombine.low %v2386, %v2402
        %v2420 = vcombine.high %v2386, %v2402
        %v2422 = vunpack.c.l.s4 1934713408
        %v2423 = vunpack.c.0.s8 %v2422
        %v2424 = vlaneseq
        %v2425 = vshrl.u32 %v2424, 7
        %v2426 = vsub.s32 %v2423, %v2425
        %v2427 = vrot.slane %v2419, %v2426
        %v2429 = vunpack.c.l.s4 1934713408
        %v2430 = vunpack.c.0.s8 %v2429
        %v2431 = vlaneseq
        %v2432 = vshrl.u32 %v2431, 7
        %v2433 = vsub.s32 %v2430, %v2432
        %v2434 = vrot.slane %v2420, %v2433
        %v2435 = vcombine.high %v2411, 0.0
        %v2436 = vcombine.high %v2418, 0.0
        %v2437 = vcombine.high %v2427, 0.0
        %v2438 = vcombine.high %v2434, 0.0
        %2440 = vrot.lane.b32.xlu0 %v2367, 16
        %v2441 = vpop.permute.xlu0 %2440
        %2444 = vrot.lane.b32.xlu0 %v2350, 32
        %v2445 = vpop.permute.xlu0 %2444
        %2448 = vrot.lane.b32.xlu0 %v2368, 48
        %v2449 = vpop.permute.xlu0 %2448
        %2452 = vrot.lane.b32.xlu0 %v2359, 64
        %v2453 = vpop.permute.xlu0 %2452
        %2456 = vrot.lane.b32.xlu0 %v2369, 80
        %v2457 = vpop.permute.xlu0 %2456
        %2460 = vrot.lane.b32.xlu0 %v2366, 96
        %v2461 = vpop.permute.xlu0 %2460
        %2464 = vrot.lane.b32.xlu0 %v2370, 112
        %v2465 = vpop.permute.xlu0 %2464
        %2468 = vrot.lane.b32.xlu0 %v2435, 16
        %v2469 = vpop.permute.xlu0 %2468
        %2472 = vrot.lane.b32.xlu0 %v2418, 32
        %v2473 = vpop.permute.xlu0 %2472
        %2476 = vrot.lane.b32.xlu0 %v2436, 48
        %v2477 = vpop.permute.xlu0 %2476
        %2480 = vrot.lane.b32.xlu0 %v2427, 64
        %v2481 = vpop.permute.xlu0 %2480
        %2484 = vrot.lane.b32.xlu0 %v2437, 80
        %v2485 = vpop.permute.xlu0 %2484
        %2488 = vrot.lane.b32.xlu0 %v2434, 96
        %v2489 = vpop.permute.xlu0 %2488
        %2492 = vrot.lane.b32.xlu0 %v2438, 112
        %v2493 = vpop.permute.xlu0 %2492
        %v2495 = vsel %vm1046, %v2343, %v2441
        %v2496 = vsel %vm1048, %v2495, %v2445
        %v2497 = vsel %vm1050, %v2496, %v2449
        %v2498 = vsel %vm1052, %v2497, %v2453
        %v2499 = vsel %vm1054, %v2498, %v2457
        %v2500 = vsel %vm1056, %v2499, %v2461
        %v2501 = vsel %vm1058, %v2500, %v2465
        %v2502 = vsel %vm1046, %v2411, %v2469
        %v2503 = vsel %vm1048, %v2502, %v2473
        %v2504 = vsel %vm1050, %v2503, %v2477
        %v2505 = vsel %vm1052, %v2504, %v2481
        %v2506 = vsel %vm1054, %v2505, %v2485
        %v2507 = vsel %vm1056, %v2506, %v2489
        %v2508 = vsel %vm1058, %v2507, %v2493
        %2509 = vst [vmem:[#allocation4 + $0x30] sm:$0xf] %v2501
        %2510 = vst [vmem:[#allocation4 + $0x38] sm:$0xf] %v2508
        %v2511 = vld [vmem:[#allocation3 + $0x2] sm:$0xff]
        %v2512 = vld [vmem:[#allocation3 + $0xa] sm:$0xff]
        %v2513 = vld [vmem:[#allocation3 + $0x1a] sm:$0xff]
        %v2514 = vld [vmem:[#allocation3 + $0x22] sm:$0xff]
        %v2515 = vld [vmem:[#allocation3 + $0x32] sm:$0xff]
        %v2516 = vld [vmem:[#allocation3 + $0x3a] sm:$0xff]
        %v2517 = vld [vmem:[#allocation3 + $0x4a] sm:$0xff]
        %v2518 = vld [vmem:[#allocation3 + $0x52] sm:$0xff]
        %2527 = vrot.lane.b32.xlu0 %v2511, 127
        %v2528 = vpop.permute.xlu0 %2527
        %2529 = vrot.lane.b32.xlu0 %v2512, 127
        %v2530 = vpop.permute.xlu0 %2529
        %2531 = vrot.lane.b32.xlu0 %v2513, 127
        %v2532 = vpop.permute.xlu0 %2531
        %2533 = vrot.lane.b32.xlu0 %v2514, 127
        %v2534 = vpop.permute.xlu0 %2533
        %2535 = vrot.lane.b32.xlu0 %v2515, 127
        %v2536 = vpop.permute.xlu0 %2535
        %2537 = vrot.lane.b32.xlu0 %v2516, 127
        %v2538 = vpop.permute.xlu0 %2537
        %2539 = vrot.lane.b32.xlu0 %v2517, 127
        %v2540 = vpop.permute.xlu0 %2539
        %2541 = vrot.lane.b32.xlu0 %v2518, 127
        %v2542 = vpop.permute.xlu0 %2541
        %v2551 = vcombine.low %v2528, %v2536
        %v2552 = vcombine.high %v2528, %v2536
        %v2554 = vunpack.c.l.s4 1983009808
        %v2555 = vunpack.c.0.s8 %v2554
        %v2556 = vlaneseq
        %v2557 = vshrl.u32 %v2556, 7
        %v2558 = vsub.s32 %v2555, %v2557
        %v2559 = vrot.slane %v2551, %v2558
        %v2561 = vunpack.c.l.s4 1983009808
        %v2562 = vunpack.c.0.s8 %v2561
        %v2563 = vlaneseq
        %v2564 = vshrl.u32 %v2563, 7
        %v2565 = vsub.s32 %v2562, %v2564
        %v2566 = vrot.slane %v2552, %v2565
        %v2567 = vcombine.low %v2532, %v2540
        %v2568 = vcombine.high %v2532, %v2540
        %v2570 = vunpack.c.l.s4 1983009808
        %v2571 = vunpack.c.0.s8 %v2570
        %v2572 = vlaneseq
        %v2573 = vshrl.u32 %v2572, 7
        %v2574 = vsub.s32 %v2571, %v2573
        %v2575 = vrot.slane %v2567, %v2574
        %v2577 = vunpack.c.l.s4 1983009808
        %v2578 = vunpack.c.0.s8 %v2577
        %v2579 = vlaneseq
        %v2580 = vshrl.u32 %v2579, 7
        %v2581 = vsub.s32 %v2578, %v2580
        %v2582 = vrot.slane %v2568, %v2581
        %v2583 = vcombine.low %v2559, %v2575
        %v2584 = vcombine.high %v2559, %v2575
        %v2586 = vunpack.c.l.s4 1934713408
        %v2587 = vunpack.c.0.s8 %v2586
        %v2588 = vlaneseq
        %v2589 = vshrl.u32 %v2588, 7
        %v2590 = vsub.s32 %v2587, %v2589
        %v2591 = vrot.slane %v2583, %v2590
        %v2593 = vunpack.c.l.s4 1934713408
        %v2594 = vunpack.c.0.s8 %v2593
        %v2595 = vlaneseq
        %v2596 = vshrl.u32 %v2595, 7
        %v2597 = vsub.s32 %v2594, %v2596
        %v2598 = vrot.slane %v2584, %v2597
        %v2599 = vcombine.low %v2566, %v2582
        %v2600 = vcombine.high %v2566, %v2582
        %v2602 = vunpack.c.l.s4 1934713408
        %v2603 = vunpack.c.0.s8 %v2602
        %v2604 = vlaneseq
        %v2605 = vshrl.u32 %v2604, 7
        %v2606 = vsub.s32 %v2603, %v2605
        %v2607 = vrot.slane %v2599, %v2606
        %v2609 = vunpack.c.l.s4 1934713408
        %v2610 = vunpack.c.0.s8 %v2609
        %v2611 = vlaneseq
        %v2612 = vshrl.u32 %v2611, 7
        %v2613 = vsub.s32 %v2610, %v2612
        %v2614 = vrot.slane %v2600, %v2613
        %v2615 = vcombine.high %v2591, 0.0
        %v2616 = vcombine.high %v2598, 0.0
        %v2617 = vcombine.high %v2607, 0.0
        %v2618 = vcombine.high %v2614, 0.0
        %v2619 = vcombine.low %v2530, %v2538
        %v2620 = vcombine.high %v2530, %v2538
        %v2622 = vunpack.c.l.s4 1983009808
        %v2623 = vunpack.c.0.s8 %v2622
        %v2624 = vlaneseq
        %v2625 = vshrl.u32 %v2624, 7
        %v2626 = vsub.s32 %v2623, %v2625
        %v2627 = vrot.slane %v2619, %v2626
        %v2629 = vunpack.c.l.s4 1983009808
        %v2630 = vunpack.c.0.s8 %v2629
        %v2631 = vlaneseq
        %v2632 = vshrl.u32 %v2631, 7
        %v2633 = vsub.s32 %v2630, %v2632
        %v2634 = vrot.slane %v2620, %v2633
        %v2635 = vcombine.low %v2534, %v2542
        %v2636 = vcombine.high %v2534, %v2542
        %v2638 = vunpack.c.l.s4 1983009808
        %v2639 = vunpack.c.0.s8 %v2638
        %v2640 = vlaneseq
        %v2641 = vshrl.u32 %v2640, 7
        %v2642 = vsub.s32 %v2639, %v2641
        %v2643 = vrot.slane %v2635, %v2642
        %v2645 = vunpack.c.l.s4 1983009808
        %v2646 = vunpack.c.0.s8 %v2645
        %v2647 = vlaneseq
        %v2648 = vshrl.u32 %v2647, 7
        %v2649 = vsub.s32 %v2646, %v2648
        %v2650 = vrot.slane %v2636, %v2649
        %v2651 = vcombine.low %v2627, %v2643
        %v2652 = vcombine.high %v2627, %v2643
        %v2654 = vunpack.c.l.s4 1934713408
        %v2655 = vunpack.c.0.s8 %v2654
        %v2656 = vlaneseq
        %v2657 = vshrl.u32 %v2656, 7
        %v2658 = vsub.s32 %v2655, %v2657
        %v2659 = vrot.slane %v2651, %v2658
        %v2661 = vunpack.c.l.s4 1934713408
        %v2662 = vunpack.c.0.s8 %v2661
        %v2663 = vlaneseq
        %v2664 = vshrl.u32 %v2663, 7
        %v2665 = vsub.s32 %v2662, %v2664
        %v2666 = vrot.slane %v2652, %v2665
        %v2667 = vcombine.low %v2634, %v2650
        %v2668 = vcombine.high %v2634, %v2650
        %v2670 = vunpack.c.l.s4 1934713408
        %v2671 = vunpack.c.0.s8 %v2670
        %v2672 = vlaneseq
        %v2673 = vshrl.u32 %v2672, 7
        %v2674 = vsub.s32 %v2671, %v2673
        %v2675 = vrot.slane %v2667, %v2674
        %v2677 = vunpack.c.l.s4 1934713408
        %v2678 = vunpack.c.0.s8 %v2677
        %v2679 = vlaneseq
        %v2680 = vshrl.u32 %v2679, 7
        %v2681 = vsub.s32 %v2678, %v2680
        %v2682 = vrot.slane %v2668, %v2681
        %v2683 = vcombine.high %v2659, 0.0
        %v2684 = vcombine.high %v2666, 0.0
        %v2685 = vcombine.high %v2675, 0.0
        %v2686 = vcombine.high %v2682, 0.0
        %2688 = vrot.lane.b32.xlu0 %v2615, 16
        %v2689 = vpop.permute.xlu0 %2688
        %2692 = vrot.lane.b32.xlu0 %v2598, 32
        %v2693 = vpop.permute.xlu0 %2692
        %2696 = vrot.lane.b32.xlu0 %v2616, 48
        %v2697 = vpop.permute.xlu0 %2696
        %2700 = vrot.lane.b32.xlu0 %v2607, 64
        %v2701 = vpop.permute.xlu0 %2700
        %2704 = vrot.lane.b32.xlu0 %v2617, 80
        %v2705 = vpop.permute.xlu0 %2704
        %2708 = vrot.lane.b32.xlu0 %v2614, 96
        %v2709 = vpop.permute.xlu0 %2708
        %2712 = vrot.lane.b32.xlu0 %v2618, 112
        %v2713 = vpop.permute.xlu0 %2712
        %2716 = vrot.lane.b32.xlu0 %v2683, 16
        %v2717 = vpop.permute.xlu0 %2716
        %2720 = vrot.lane.b32.xlu0 %v2666, 32
        %v2721 = vpop.permute.xlu0 %2720
        %2724 = vrot.lane.b32.xlu0 %v2684, 48
        %v2725 = vpop.permute.xlu0 %2724
        %2728 = vrot.lane.b32.xlu0 %v2675, 64
        %v2729 = vpop.permute.xlu0 %2728
        %2732 = vrot.lane.b32.xlu0 %v2685, 80
        %v2733 = vpop.permute.xlu0 %2732
        %2736 = vrot.lane.b32.xlu0 %v2682, 96
        %v2737 = vpop.permute.xlu0 %2736
        %2740 = vrot.lane.b32.xlu0 %v2686, 112
        %v2741 = vpop.permute.xlu0 %2740
        %v2743 = vsel %vm1046, %v2591, %v2689
        %v2744 = vsel %vm1048, %v2743, %v2693
        %v2745 = vsel %vm1050, %v2744, %v2697
        %v2746 = vsel %vm1052, %v2745, %v2701
        %v2747 = vsel %vm1054, %v2746, %v2705
        %v2748 = vsel %vm1056, %v2747, %v2709
        %v2749 = vsel %vm1058, %v2748, %v2713
        %v2750 = vsel %vm1046, %v2659, %v2717
        %v2751 = vsel %vm1048, %v2750, %v2721
        %v2752 = vsel %vm1050, %v2751, %v2725
        %v2753 = vsel %vm1052, %v2752, %v2729
        %v2754 = vsel %vm1054, %v2753, %v2733
        %v2755 = vsel %vm1056, %v2754, %v2737
        %v2756 = vsel %vm1058, %v2755, %v2741
        %v2759 = vrot.slane %v2749, 4
        %v2760 = vrot.slane %v2756, 4
        %2763 = vst [vmem:[#allocation4 + $0x30] sm:$0xf0] %v2759
        %2764 = vst [vmem:[#allocation4 + $0x38] sm:$0xf0] %v2760
        %v2765 = vld [vmem:[#allocation3 + $0x2] sm:$0xff]
        %v2766 = vld [vmem:[#allocation3 + $0xa] sm:$0xff]
        %v2767 = vld [vmem:[#allocation3 + $0x1a] sm:$0xff]
        %v2768 = vld [vmem:[#allocation3 + $0x22] sm:$0xff]
        %v2769 = vld [vmem:[#allocation3 + $0x32] sm:$0xff]
        %v2770 = vld [vmem:[#allocation3 + $0x3a] sm:$0xff]
        %v2771 = vld [vmem:[#allocation3 + $0x4a] sm:$0xff]
        %v2772 = vld [vmem:[#allocation3 + $0x52] sm:$0xff]
        %2781 = vrot.lane.b32.xlu0 %v2765, 126
        %v2782 = vpop.permute.xlu0 %2781
        %2783 = vrot.lane.b32.xlu0 %v2766, 126
        %v2784 = vpop.permute.xlu0 %2783
        %2785 = vrot.lane.b32.xlu0 %v2767, 126
        %v2786 = vpop.permute.xlu0 %2785
        %2787 = vrot.lane.b32.xlu0 %v2768, 126
        %v2788 = vpop.permute.xlu0 %2787
        %2789 = vrot.lane.b32.xlu0 %v2769, 126
        %v2790 = vpop.permute.xlu0 %2789
        %2791 = vrot.lane.b32.xlu0 %v2770, 126
        %v2792 = vpop.permute.xlu0 %2791
        %2793 = vrot.lane.b32.xlu0 %v2771, 126
        %v2794 = vpop.permute.xlu0 %2793
        %2795 = vrot.lane.b32.xlu0 %v2772, 126
        %v2796 = vpop.permute.xlu0 %2795
        %v2805 = vcombine.low %v2782, %v2790
        %v2806 = vcombine.high %v2782, %v2790
        %v2808 = vunpack.c.l.s4 1983009808
        %v2809 = vunpack.c.0.s8 %v2808
        %v2810 = vlaneseq
        %v2811 = vshrl.u32 %v2810, 7
        %v2812 = vsub.s32 %v2809, %v2811
        %v2813 = vrot.slane %v2805, %v2812
        %v2815 = vunpack.c.l.s4 1983009808
        %v2816 = vunpack.c.0.s8 %v2815
        %v2817 = vlaneseq
        %v2818 = vshrl.u32 %v2817, 7
        %v2819 = vsub.s32 %v2816, %v2818
        %v2820 = vrot.slane %v2806, %v2819
        %v2821 = vcombine.low %v2786, %v2794
        %v2822 = vcombine.high %v2786, %v2794
        %v2824 = vunpack.c.l.s4 1983009808
        %v2825 = vunpack.c.0.s8 %v2824
        %v2826 = vlaneseq
        %v2827 = vshrl.u32 %v2826, 7
        %v2828 = vsub.s32 %v2825, %v2827
        %v2829 = vrot.slane %v2821, %v2828
        %v2831 = vunpack.c.l.s4 1983009808
        %v2832 = vunpack.c.0.s8 %v2831
        %v2833 = vlaneseq
        %v2834 = vshrl.u32 %v2833, 7
        %v2835 = vsub.s32 %v2832, %v2834
        %v2836 = vrot.slane %v2822, %v2835
        %v2837 = vcombine.low %v2813, %v2829
        %v2838 = vcombine.high %v2813, %v2829
        %v2840 = vunpack.c.l.s4 1934713408
        %v2841 = vunpack.c.0.s8 %v2840
        %v2842 = vlaneseq
        %v2843 = vshrl.u32 %v2842, 7
        %v2844 = vsub.s32 %v2841, %v2843
        %v2845 = vrot.slane %v2837, %v2844
        %v2847 = vunpack.c.l.s4 1934713408
        %v2848 = vunpack.c.0.s8 %v2847
        %v2849 = vlaneseq
        %v2850 = vshrl.u32 %v2849, 7
        %v2851 = vsub.s32 %v2848, %v2850
        %v2852 = vrot.slane %v2838, %v2851
        %v2853 = vcombine.low %v2820, %v2836
        %v2854 = vcombine.high %v2820, %v2836
        %v2856 = vunpack.c.l.s4 1934713408
        %v2857 = vunpack.c.0.s8 %v2856
        %v2858 = vlaneseq
        %v2859 = vshrl.u32 %v2858, 7
        %v2860 = vsub.s32 %v2857, %v2859
        %v2861 = vrot.slane %v2853, %v2860
        %v2863 = vunpack.c.l.s4 1934713408
        %v2864 = vunpack.c.0.s8 %v2863
        %v2865 = vlaneseq
        %v2866 = vshrl.u32 %v2865, 7
        %v2867 = vsub.s32 %v2864, %v2866
        %v2868 = vrot.slane %v2854, %v2867
        %v2869 = vcombine.high %v2845, 0.0
        %v2870 = vcombine.high %v2852, 0.0
        %v2871 = vcombine.high %v2861, 0.0
        %v2872 = vcombine.high %v2868, 0.0
        %v2873 = vcombine.low %v2784, %v2792
        %v2874 = vcombine.high %v2784, %v2792
        %v2876 = vunpack.c.l.s4 1983009808
        %v2877 = vunpack.c.0.s8 %v2876
        %v2878 = vlaneseq
        %v2879 = vshrl.u32 %v2878, 7
        %v2880 = vsub.s32 %v2877, %v2879
        %v2881 = vrot.slane %v2873, %v2880
        %v2883 = vunpack.c.l.s4 1983009808
        %v2884 = vunpack.c.0.s8 %v2883
        %v2885 = vlaneseq
        %v2886 = vshrl.u32 %v2885, 7
        %v2887 = vsub.s32 %v2884, %v2886
        %v2888 = vrot.slane %v2874, %v2887
        %v2889 = vcombine.low %v2788, %v2796
        %v2890 = vcombine.high %v2788, %v2796
        %v2892 = vunpack.c.l.s4 1983009808
        %v2893 = vunpack.c.0.s8 %v2892
        %v2894 = vlaneseq
        %v2895 = vshrl.u32 %v2894, 7
        %v2896 = vsub.s32 %v2893, %v2895
        %v2897 = vrot.slane %v2889, %v2896
        %v2899 = vunpack.c.l.s4 1983009808
        %v2900 = vunpack.c.0.s8 %v2899
        %v2901 = vlaneseq
        %v2902 = vshrl.u32 %v2901, 7
        %v2903 = vsub.s32 %v2900, %v2902
        %v2904 = vrot.slane %v2890, %v2903
        %v2905 = vcombine.low %v2881, %v2897
        %v2906 = vcombine.high %v2881, %v2897
        %v2908 = vunpack.c.l.s4 1934713408
        %v2909 = vunpack.c.0.s8 %v2908
        %v2910 = vlaneseq
        %v2911 = vshrl.u32 %v2910, 7
        %v2912 = vsub.s32 %v2909, %v2911
        %v2913 = vrot.slane %v2905, %v2912
        %v2915 = vunpack.c.l.s4 1934713408
        %v2916 = vunpack.c.0.s8 %v2915
        %v2917 = vlaneseq
        %v2918 = vshrl.u32 %v2917, 7
        %v2919 = vsub.s32 %v2916, %v2918
        %v2920 = vrot.slane %v2906, %v2919
        %v2921 = vcombine.low %v2888, %v2904
        %v2922 = vcombine.high %v2888, %v2904
        %v2924 = vunpack.c.l.s4 1934713408
        %v2925 = vunpack.c.0.s8 %v2924
        %v2926 = vlaneseq
        %v2927 = vshrl.u32 %v2926, 7
        %v2928 = vsub.s32 %v2925, %v2927
        %v2929 = vrot.slane %v2921, %v2928
        %v2931 = vunpack.c.l.s4 1934713408
        %v2932 = vunpack.c.0.s8 %v2931
        %v2933 = vlaneseq
        %v2934 = vshrl.u32 %v2933, 7
        %v2935 = vsub.s32 %v2932, %v2934
        %v2936 = vrot.slane %v2922, %v2935
        %v2937 = vcombine.high %v2913, 0.0
        %v2938 = vcombine.high %v2920, 0.0
        %v2939 = vcombine.high %v2929, 0.0
        %v2940 = vcombine.high %v2936, 0.0
        %2942 = vrot.lane.b32.xlu0 %v2869, 16
        %v2943 = vpop.permute.xlu0 %2942
        %2946 = vrot.lane.b32.xlu0 %v2852, 32
        %v2947 = vpop.permute.xlu0 %2946
        %2950 = vrot.lane.b32.xlu0 %v2870, 48
        %v2951 = vpop.permute.xlu0 %2950
        %2954 = vrot.lane.b32.xlu0 %v2861, 64
        %v2955 = vpop.permute.xlu0 %2954
        %2958 = vrot.lane.b32.xlu0 %v2871, 80
        %v2959 = vpop.permute.xlu0 %2958
        %2962 = vrot.lane.b32.xlu0 %v2868, 96
        %v2963 = vpop.permute.xlu0 %2962
        %2966 = vrot.lane.b32.xlu0 %v2872, 112
        %v2967 = vpop.permute.xlu0 %2966
        %2970 = vrot.lane.b32.xlu0 %v2937, 16
        %v2971 = vpop.permute.xlu0 %2970
        %2974 = vrot.lane.b32.xlu0 %v2920, 32
        %v2975 = vpop.permute.xlu0 %2974
        %2978 = vrot.lane.b32.xlu0 %v2938, 48
        %v2979 = vpop.permute.xlu0 %2978
        %2982 = vrot.lane.b32.xlu0 %v2929, 64
        %v2983 = vpop.permute.xlu0 %2982
        %2986 = vrot.lane.b32.xlu0 %v2939, 80
        %v2987 = vpop.permute.xlu0 %2986
        %2990 = vrot.lane.b32.xlu0 %v2936, 96
        %v2991 = vpop.permute.xlu0 %2990
        %2994 = vrot.lane.b32.xlu0 %v2940, 112
        %v2995 = vpop.permute.xlu0 %2994
        %v2997 = vsel %vm1046, %v2845, %v2943
        %v2998 = vsel %vm1048, %v2997, %v2947
        %v2999 = vsel %vm1050, %v2998, %v2951
        %v3000 = vsel %vm1052, %v2999, %v2955
        %v3001 = vsel %vm1054, %v3000, %v2959
        %v3002 = vsel %vm1056, %v3001, %v2963
        %v3003 = vsel %vm1058, %v3002, %v2967
        %v3004 = vsel %vm1046, %v2913, %v2971
        %v3005 = vsel %vm1048, %v3004, %v2975
        %v3006 = vsel %vm1050, %v3005, %v2979
        %v3007 = vsel %vm1052, %v3006, %v2983
        %v3008 = vsel %vm1054, %v3007, %v2987
        %v3009 = vsel %vm1056, %v3008, %v2991
        %v3010 = vsel %vm1058, %v3009, %v2995
        %3011 = vst [vmem:[#allocation4 + $0x40] sm:$0xf] %v3003
        %3012 = vst [vmem:[#allocation4 + $0x48] sm:$0xf] %v3010
        %v3013 = vld [vmem:[#allocation4] sm:$0xff]
        %v3014 = vld [vmem:[#allocation4 + $0x8] sm:$0xff]
        %v3015 = vld [vmem:[#allocation4 + $0x10] sm:$0xff]
        %v3016 = vld [vmem:[#allocation4 + $0x18] sm:$0xff]
        %v3017 = vld [vmem:[#allocation4 + $0x20] sm:$0xff]
        %v3018 = vld [vmem:[#allocation4 + $0x28] sm:$0xff]
        %v3019 = vld [vmem:[#allocation4 + $0x30] sm:$0xff]
        %v3020 = vld [vmem:[#allocation4 + $0x38] sm:$0xff]
        %v3021 = vld [vmem:[#allocation4 + $0x40] sm:$0xf]
        %v3022 = vld [vmem:[#allocation4 + $0x48] sm:$0xf]
        %3024 = vset.pattern.permute.xlu0 0
        %3025 = vperm.xlu0 %3024, %v790
        %v3026 = vpop.permute.xlu0 %3025
        %vm3028 = vcmask 293888
        %v3030 = vsel %vm3028, %v789, 0
        %v3033 = vsel %vm355, %v3021, 0
        %v3036 = vsel %vm355, %v3022, 0
        %3038 = vmatprep.subr.mxu0 %v3014
        %3039 = vmatpush1.msra.mxu0 %v3013
        %3040 = vmatprep.subr.mxu0 %v3016
        %3041 = vmatpush1.msra.mxu0 %v3015
        %3042 = vmatprep.subr.mxu0 %v3018
        %3043 = vmatpush1.msra.mxu0 %v3017
        %3044 = vmatprep.subr.mxu0 %v3020
        %3045 = vmatpush1.msra.mxu0 %v3019
        %3046 = vmatprep.subr.mxu0 %v3036
        %3047 = vmatpush1.msra.mxu0 %v3033
        %3048 = vmatprep.subr.mxu0 0.0
        %3049 = vmatpush1.msra.mxu0 0.0
        %3050 = vmatprep.subr.mxu0 0.0
        %3051 = vmatpush1.msra.mxu0 0.0
        %3052 = vmatprep.subr.mxu0 0.0
        %3053 = vmatpush1.msra.mxu0 0.0
        %3054 = vmatprep.subr.mxu0 0.0
        %3055 = vmatpush1.msra.mxu0 0.0
        %3056 = vmatprep.subr.mxu0 0.0
        %3057 = vmatpush1.msra.mxu0 0.0
        %3058 = vmatprep.subr.mxu0 0.0
        %3059 = vmatpush1.msra.mxu0 0.0
        %3060 = vmatprep.subr.mxu0 0.0
        %3061 = vmatpush1.msra.mxu0 0.0
        %3062 = vmatprep.subr.mxu0 0.0
        %3063 = vmatpush1.msra.mxu0 0.0
        %3064 = vmatprep.subr.mxu0 0.0
        %3065 = vmatpush1.msra.mxu0 0.0
        %3066 = vmatprep.subr.mxu0 0.0
        %3067 = vmatpush1.msra.mxu0 0.0
        %3068 = vmatprep.subr.mxu0 0.0
        %3069 = vmatpush1.msra.mxu0 0.0
        %3070 = vmatprep.subr.mxu0 0.0
        %3071 = vmatpush1.msra.mxu0 0.0
        %3072 = vmatprep.subr.mxu0 0.0
        %3073 = vmatpush1.msra.mxu0 0.0
        %3074 = vmatprep.subr.mxu0 0.0
        %3075 = vmatpush1.msra.mxu0 0.0
        %3076 = vmatprep.subr.mxu0 0.0
        %3077 = vmatpush1.msra.mxu0 0.0
        %3078 = vmatprep.subr.mxu0 0.0
        %3079 = vmatpush1.msra.mxu0 0.0
        %3080 = vmatprep.subr.mxu0 0.0
        %3081 = vmatpush1.msra.mxu0 0.0
        %3082 = vmatprep.subr.mxu0 0.0
        %3083 = vmatpush1.msra.mxu0 0.0
        %3084 = vmatprep.subr.mxu0 0.0
        %3085 = vmatpush1.msra.mxu0 0.0
        %3086 = vmatprep.subr.mxu0 0.0
        %3087 = vmatpush1.msra.mxu0 0.0
        %3088 = vmatprep.subr.mxu0 0.0
        %3089 = vmatpush1.msra.mxu0 0.0
        %3090 = vmatprep.subr.mxu0 0.0
        %3091 = vmatpush1.msra.mxu0 0.0
        %3092 = vmatprep.subr.mxu0 0.0
        %3093 = vmatpush1.msra.mxu0 0.0
        %3094 = vmatprep.subr.mxu0 0.0
        %3095 = vmatpush1.msra.mxu0 0.0
        %3096 = vmatprep.subr.mxu0 0.0
        %3097 = vmatpush1.msra.mxu0 0.0
        %3098 = vmatprep.subr.mxu0 0.0
        %3099 = vmatpush1.msra.mxu0 0.0
        %3100 = vmatprep.subr.mxu0 0.0
        %3101 = vmatpush1.msra.mxu0 0.0
        %3102 = vmatprep.mubr.f32.mxu0 0.0
        %3103 = vmatmul.mubr.f32.gmra.mrb[0].mxu0 %v3030
        %v3104 = vpop.f32.mrb[0].mxu0
        %v3105 = vadd.f32 %v3026, %v3104
        %v3106 = vpop.f32.mrb[0].mxu0
        %v3107 = vadd.f32 %v3026, %v3106
        %3108 = vdwg.mxu0
        %v3109 = vmax.f32 %v3105, 0.0
        %v3110 = vmax.f32 %v3107, 0.0
        %v3111 = vld [vmem:[%s5] sm:$0xff]
        %v3112 = vld [vmem:[%s6] sm:$0xff]
        %vm3113 = vcmask 162816
        %3114 = vst.msk [vmem:[#allocation5] sm:$0xff] %vm3113, 0.0
        %3115 = vst.msk [vmem:[#allocation5 + $0x8] sm:$0xff] %vm3113, 0.0
        %vm3116 = vcmask 158720
        %3117 = vst.msk [vmem:[#allocation5 + $0x10] sm:$0xf] %vm3116, 0.0
        %3118 = vst.msk [vmem:[#allocation5 + $0x18] sm:$0xff] %vm3113, 0.0
        %3119 = vst.msk [vmem:[#allocation5 + $0x20] sm:$0xff] %vm3113, 0.0
        %3120 = vst.msk [vmem:[#allocation5 + $0x28] sm:$0xf] %vm3116, 0.0
        %3121 = vst.msk [vmem:[#allocation5 + $0x30] sm:$0xff] %vm3113, 0.0
        %3122 = vst.msk [vmem:[#allocation5 + $0x38] sm:$0xff] %vm3113, 0.0
        %3123 = vst.msk [vmem:[#allocation5 + $0x40] sm:$0xf] %vm3116, 0.0
        %3124 = vst.msk [vmem:[#allocation5 + $0x48] sm:$0xff] %vm3113, 0.0
        %3125 = vst.msk [vmem:[#allocation5 + $0x50] sm:$0xff] %vm3113, 0.0
        %3126 = vst.msk [vmem:[#allocation5 + $0x58] sm:$0xf] %vm3116, 0.0
        %3135 = vrot.lane.b32.xlu0 %v717, 2
        %v3136 = vpop.permute.xlu0 %3135
        %3137 = vrot.lane.b32.xlu0 %v785, 2
        %v3138 = vpop.permute.xlu0 %3137
        %3139 = vrot.lane.b32.xlu0 %v718, 2
        %v3140 = vpop.permute.xlu0 %3139
        %3141 = vrot.lane.b32.xlu0 %v786, 2
        %v3142 = vpop.permute.xlu0 %3141
        %3143 = vrot.lane.b32.xlu0 %v719, 2
        %v3144 = vpop.permute.xlu0 %3143
        %3145 = vrot.lane.b32.xlu0 %v787, 2
        %v3146 = vpop.permute.xlu0 %3145
        %3147 = vrot.lane.b32.xlu0 %v720, 2
        %v3148 = vpop.permute.xlu0 %3147
        %3149 = vrot.lane.b32.xlu0 %v788, 2
        %v3150 = vpop.permute.xlu0 %3149
        %vm3159 = vcmask 146448
        %3160 = vst.msk [vmem:[#allocation5 + $0x2] sm:$0xff] %vm3159, %v3136
        %3161 = vst.msk [vmem:[#allocation5 + $0xa] sm:$0xff] %vm3159, %v3138
        %3162 = vst.msk [vmem:[#allocation5 + $0x1a] sm:$0xff] %vm3159, %v3140
        %3163 = vst.msk [vmem:[#allocation5 + $0x22] sm:$0xff] %vm3159, %v3142
        %3164 = vst.msk [vmem:[#allocation5 + $0x32] sm:$0xff] %vm3159, %v3144
        %3165 = vst.msk [vmem:[#allocation5 + $0x3a] sm:$0xff] %vm3159, %v3146
        %3166 = vst.msk [vmem:[#allocation5 + $0x4a] sm:$0xff] %vm3159, %v3148
        %3167 = vst.msk [vmem:[#allocation5 + $0x52] sm:$0xff] %vm3159, %v3150
        %v3168 = vld [vmem:[#allocation5] sm:$0xff]
        %v3169 = vld [vmem:[#allocation5 + $0x8] sm:$0xff]
        %v3170 = vld [vmem:[#allocation5 + $0x18] sm:$0xff]
        %v3171 = vld [vmem:[#allocation5 + $0x20] sm:$0xff]
        %v3172 = vld [vmem:[#allocation5 + $0x30] sm:$0xff]
        %v3173 = vld [vmem:[#allocation5 + $0x38] sm:$0xff]
        %v3174 = vld [vmem:[#allocation5 + $0x48] sm:$0xff]
        %v3175 = vld [vmem:[#allocation5 + $0x50] sm:$0xff]
        %v3176 = vcombine.low %v3168, %v3172
        %v3177 = vcombine.high %v3168, %v3172
        %v3179 = vunpack.c.l.s4 1983009808
        %v3180 = vunpack.c.0.s8 %v3179
        %v3181 = vlaneseq
        %v3182 = vshrl.u32 %v3181, 7
        %v3183 = vsub.s32 %v3180, %v3182
        %v3184 = vrot.slane %v3176, %v3183
        %v3186 = vunpack.c.l.s4 1983009808
        %v3187 = vunpack.c.0.s8 %v3186
        %v3188 = vlaneseq
        %v3189 = vshrl.u32 %v3188, 7
        %v3190 = vsub.s32 %v3187, %v3189
        %v3191 = vrot.slane %v3177, %v3190
        %v3192 = vcombine.low %v3170, %v3174
        %v3193 = vcombine.high %v3170, %v3174
        %v3195 = vunpack.c.l.s4 1983009808
        %v3196 = vunpack.c.0.s8 %v3195
        %v3197 = vlaneseq
        %v3198 = vshrl.u32 %v3197, 7
        %v3199 = vsub.s32 %v3196, %v3198
        %v3200 = vrot.slane %v3192, %v3199
        %v3202 = vunpack.c.l.s4 1983009808
        %v3203 = vunpack.c.0.s8 %v3202
        %v3204 = vlaneseq
        %v3205 = vshrl.u32 %v3204, 7
        %v3206 = vsub.s32 %v3203, %v3205
        %v3207 = vrot.slane %v3193, %v3206
        %v3208 = vcombine.low %v3184, %v3200
        %v3209 = vcombine.high %v3184, %v3200
        %v3211 = vunpack.c.l.s4 1934713408
        %v3212 = vunpack.c.0.s8 %v3211
        %v3213 = vlaneseq
        %v3214 = vshrl.u32 %v3213, 7
        %v3215 = vsub.s32 %v3212, %v3214
        %v3216 = vrot.slane %v3208, %v3215
        %v3218 = vunpack.c.l.s4 1934713408
        %v3219 = vunpack.c.0.s8 %v3218
        %v3220 = vlaneseq
        %v3221 = vshrl.u32 %v3220, 7
        %v3222 = vsub.s32 %v3219, %v3221
        %v3223 = vrot.slane %v3209, %v3222
        %v3224 = vcombine.low %v3191, %v3207
        %v3225 = vcombine.high %v3191, %v3207
        %v3227 = vunpack.c.l.s4 1934713408
        %v3228 = vunpack.c.0.s8 %v3227
        %v3229 = vlaneseq
        %v3230 = vshrl.u32 %v3229, 7
        %v3231 = vsub.s32 %v3228, %v3230
        %v3232 = vrot.slane %v3224, %v3231
        %v3234 = vunpack.c.l.s4 1934713408
        %v3235 = vunpack.c.0.s8 %v3234
        %v3236 = vlaneseq
        %v3237 = vshrl.u32 %v3236, 7
        %v3238 = vsub.s32 %v3235, %v3237
        %v3239 = vrot.slane %v3225, %v3238
        %v3240 = vcombine.high %v3216, 0.0
        %v3241 = vcombine.high %v3223, 0.0
        %v3242 = vcombine.high %v3232, 0.0
        %v3243 = vcombine.high %v3239, 0.0
        %v3244 = vcombine.low %v3169, %v3173
        %v3245 = vcombine.high %v3169, %v3173
        %v3247 = vunpack.c.l.s4 1983009808
        %v3248 = vunpack.c.0.s8 %v3247
        %v3249 = vlaneseq
        %v3250 = vshrl.u32 %v3249, 7
        %v3251 = vsub.s32 %v3248, %v3250
        %v3252 = vrot.slane %v3244, %v3251
        %v3254 = vunpack.c.l.s4 1983009808
        %v3255 = vunpack.c.0.s8 %v3254
        %v3256 = vlaneseq
        %v3257 = vshrl.u32 %v3256, 7
        %v3258 = vsub.s32 %v3255, %v3257
        %v3259 = vrot.slane %v3245, %v3258
        %v3260 = vcombine.low %v3171, %v3175
        %v3261 = vcombine.high %v3171, %v3175
        %v3263 = vunpack.c.l.s4 1983009808
        %v3264 = vunpack.c.0.s8 %v3263
        %v3265 = vlaneseq
        %v3266 = vshrl.u32 %v3265, 7
        %v3267 = vsub.s32 %v3264, %v3266
        %v3268 = vrot.slane %v3260, %v3267
        %v3270 = vunpack.c.l.s4 1983009808
        %v3271 = vunpack.c.0.s8 %v3270
        %v3272 = vlaneseq
        %v3273 = vshrl.u32 %v3272, 7
        %v3274 = vsub.s32 %v3271, %v3273
        %v3275 = vrot.slane %v3261, %v3274
        %v3276 = vcombine.low %v3252, %v3268
        %v3277 = vcombine.high %v3252, %v3268
        %v3279 = vunpack.c.l.s4 1934713408
        %v3280 = vunpack.c.0.s8 %v3279
        %v3281 = vlaneseq
        %v3282 = vshrl.u32 %v3281, 7
        %v3283 = vsub.s32 %v3280, %v3282
        %v3284 = vrot.slane %v3276, %v3283
        %v3286 = vunpack.c.l.s4 1934713408
        %v3287 = vunpack.c.0.s8 %v3286
        %v3288 = vlaneseq
        %v3289 = vshrl.u32 %v3288, 7
        %v3290 = vsub.s32 %v3287, %v3289
        %v3291 = vrot.slane %v3277, %v3290
        %v3292 = vcombine.low %v3259, %v3275
        %v3293 = vcombine.high %v3259, %v3275
        %v3295 = vunpack.c.l.s4 1934713408
        %v3296 = vunpack.c.0.s8 %v3295
        %v3297 = vlaneseq
        %v3298 = vshrl.u32 %v3297, 7
        %v3299 = vsub.s32 %v3296, %v3298
        %v3300 = vrot.slane %v3292, %v3299
        %v3302 = vunpack.c.l.s4 1934713408
        %v3303 = vunpack.c.0.s8 %v3302
        %v3304 = vlaneseq
        %v3305 = vshrl.u32 %v3304, 7
        %v3306 = vsub.s32 %v3303, %v3305
        %v3307 = vrot.slane %v3293, %v3306
        %v3308 = vcombine.high %v3284, 0.0
        %v3309 = vcombine.high %v3291, 0.0
        %v3310 = vcombine.high %v3300, 0.0
        %v3311 = vcombine.high %v3307, 0.0
        %3313 = vrot.lane.b32.xlu0 %v3240, 16
        %v3314 = vpop.permute.xlu0 %3313
        %3317 = vrot.lane.b32.xlu0 %v3223, 32
        %v3318 = vpop.permute.xlu0 %3317
        %3321 = vrot.lane.b32.xlu0 %v3241, 48
        %v3322 = vpop.permute.xlu0 %3321
        %3325 = vrot.lane.b32.xlu0 %v3232, 64
        %v3326 = vpop.permute.xlu0 %3325
        %3329 = vrot.lane.b32.xlu0 %v3242, 80
        %v3330 = vpop.permute.xlu0 %3329
        %3333 = vrot.lane.b32.xlu0 %v3239, 96
        %v3334 = vpop.permute.xlu0 %3333
        %3337 = vrot.lane.b32.xlu0 %v3243, 112
        %v3338 = vpop.permute.xlu0 %3337
        %3341 = vrot.lane.b32.xlu0 %v3308, 16
        %v3342 = vpop.permute.xlu0 %3341
        %3345 = vrot.lane.b32.xlu0 %v3291, 32
        %v3346 = vpop.permute.xlu0 %3345
        %3349 = vrot.lane.b32.xlu0 %v3309, 48
        %v3350 = vpop.permute.xlu0 %3349
        %3353 = vrot.lane.b32.xlu0 %v3300, 64
        %v3354 = vpop.permute.xlu0 %3353
        %3357 = vrot.lane.b32.xlu0 %v3310, 80
        %v3358 = vpop.permute.xlu0 %3357
        %3361 = vrot.lane.b32.xlu0 %v3307, 96
        %v3362 = vpop.permute.xlu0 %3361
        %3365 = vrot.lane.b32.xlu0 %v3311, 112
        %v3366 = vpop.permute.xlu0 %3365
        %v3368 = vsel %vm1046, %v3216, %v3314
        %v3369 = vsel %vm1048, %v3368, %v3318
        %v3370 = vsel %vm1050, %v3369, %v3322
        %v3371 = vsel %vm1052, %v3370, %v3326
        %v3372 = vsel %vm1054, %v3371, %v3330
        %v3373 = vsel %vm1056, %v3372, %v3334
        %v3374 = vsel %vm1058, %v3373, %v3338
        %v3375 = vsel %vm1046, %v3284, %v3342
        %v3376 = vsel %vm1048, %v3375, %v3346
        %v3377 = vsel %vm1050, %v3376, %v3350
        %v3378 = vsel %vm1052, %v3377, %v3354
        %v3379 = vsel %vm1054, %v3378, %v3358
        %v3380 = vsel %vm1056, %v3379, %v3362
        %v3381 = vsel %vm1058, %v3380, %v3366
        %3382 = vst [vmem:[#allocation6] sm:$0xf] %v3374
        %3383 = vst [vmem:[#allocation6 + $0x8] sm:$0xf] %v3381
        %v3384 = vld [vmem:[#allocation5] sm:$0xff]
        %v3385 = vld [vmem:[#allocation5 + $0x8] sm:$0xff]
        %v3386 = vld [vmem:[#allocation5 + $0x18] sm:$0xff]
        %v3387 = vld [vmem:[#allocation5 + $0x20] sm:$0xff]
        %v3388 = vld [vmem:[#allocation5 + $0x30] sm:$0xff]
        %v3389 = vld [vmem:[#allocation5 + $0x38] sm:$0xff]
        %v3390 = vld [vmem:[#allocation5 + $0x48] sm:$0xff]
        %v3391 = vld [vmem:[#allocation5 + $0x50] sm:$0xff]
        %3400 = vrot.lane.b32.xlu0 %v3384, 127
        %v3401 = vpop.permute.xlu0 %3400
        %3402 = vrot.lane.b32.xlu0 %v3385, 127
        %v3403 = vpop.permute.xlu0 %3402
        %3404 = vrot.lane.b32.xlu0 %v3386, 127
        %v3405 = vpop.permute.xlu0 %3404
        %3406 = vrot.lane.b32.xlu0 %v3387, 127
        %v3407 = vpop.permute.xlu0 %3406
        %3408 = vrot.lane.b32.xlu0 %v3388, 127
        %v3409 = vpop.permute.xlu0 %3408
        %3410 = vrot.lane.b32.xlu0 %v3389, 127
        %v3411 = vpop.permute.xlu0 %3410
        %3412 = vrot.lane.b32.xlu0 %v3390, 127
        %v3413 = vpop.permute.xlu0 %3412
        %3414 = vrot.lane.b32.xlu0 %v3391, 127
        %v3415 = vpop.permute.xlu0 %3414
        %v3424 = vcombine.low %v3401, %v3409
        %v3425 = vcombine.high %v3401, %v3409
        %v3427 = vunpack.c.l.s4 1983009808
        %v3428 = vunpack.c.0.s8 %v3427
        %v3429 = vlaneseq
        %v3430 = vshrl.u32 %v3429, 7
        %v3431 = vsub.s32 %v3428, %v3430
        %v3432 = vrot.slane %v3424, %v3431
        %v3434 = vunpack.c.l.s4 1983009808
        %v3435 = vunpack.c.0.s8 %v3434
        %v3436 = vlaneseq
        %v3437 = vshrl.u32 %v3436, 7
        %v3438 = vsub.s32 %v3435, %v3437
        %v3439 = vrot.slane %v3425, %v3438
        %v3440 = vcombine.low %v3405, %v3413
        %v3441 = vcombine.high %v3405, %v3413
        %v3443 = vunpack.c.l.s4 1983009808
        %v3444 = vunpack.c.0.s8 %v3443
        %v3445 = vlaneseq
        %v3446 = vshrl.u32 %v3445, 7
        %v3447 = vsub.s32 %v3444, %v3446
        %v3448 = vrot.slane %v3440, %v3447
        %v3450 = vunpack.c.l.s4 1983009808
        %v3451 = vunpack.c.0.s8 %v3450
        %v3452 = vlaneseq
        %v3453 = vshrl.u32 %v3452, 7
        %v3454 = vsub.s32 %v3451, %v3453
        %v3455 = vrot.slane %v3441, %v3454
        %v3456 = vcombine.low %v3432, %v3448
        %v3457 = vcombine.high %v3432, %v3448
        %v3459 = vunpack.c.l.s4 1934713408
        %v3460 = vunpack.c.0.s8 %v3459
        %v3461 = vlaneseq
        %v3462 = vshrl.u32 %v3461, 7
        %v3463 = vsub.s32 %v3460, %v3462
        %v3464 = vrot.slane %v3456, %v3463
        %v3466 = vunpack.c.l.s4 1934713408
        %v3467 = vunpack.c.0.s8 %v3466
        %v3468 = vlaneseq
        %v3469 = vshrl.u32 %v3468, 7
        %v3470 = vsub.s32 %v3467, %v3469
        %v3471 = vrot.slane %v3457, %v3470
        %v3472 = vcombine.low %v3439, %v3455
        %v3473 = vcombine.high %v3439, %v3455
        %v3475 = vunpack.c.l.s4 1934713408
        %v3476 = vunpack.c.0.s8 %v3475
        %v3477 = vlaneseq
        %v3478 = vshrl.u32 %v3477, 7
        %v3479 = vsub.s32 %v3476, %v3478
        %v3480 = vrot.slane %v3472, %v3479
        %v3482 = vunpack.c.l.s4 1934713408
        %v3483 = vunpack.c.0.s8 %v3482
        %v3484 = vlaneseq
        %v3485 = vshrl.u32 %v3484, 7
        %v3486 = vsub.s32 %v3483, %v3485
        %v3487 = vrot.slane %v3473, %v3486
        %v3488 = vcombine.high %v3464, 0.0
        %v3489 = vcombine.high %v3471, 0.0
        %v3490 = vcombine.high %v3480, 0.0
        %v3491 = vcombine.high %v3487, 0.0
        %v3492 = vcombine.low %v3403, %v3411
        %v3493 = vcombine.high %v3403, %v3411
        %v3495 = vunpack.c.l.s4 1983009808
        %v3496 = vunpack.c.0.s8 %v3495
        %v3497 = vlaneseq
        %v3498 = vshrl.u32 %v3497, 7
        %v3499 = vsub.s32 %v3496, %v3498
        %v3500 = vrot.slane %v3492, %v3499
        %v3502 = vunpack.c.l.s4 1983009808
        %v3503 = vunpack.c.0.s8 %v3502
        %v3504 = vlaneseq
        %v3505 = vshrl.u32 %v3504, 7
        %v3506 = vsub.s32 %v3503, %v3505
        %v3507 = vrot.slane %v3493, %v3506
        %v3508 = vcombine.low %v3407, %v3415
        %v3509 = vcombine.high %v3407, %v3415
        %v3511 = vunpack.c.l.s4 1983009808
        %v3512 = vunpack.c.0.s8 %v3511
        %v3513 = vlaneseq
        %v3514 = vshrl.u32 %v3513, 7
        %v3515 = vsub.s32 %v3512, %v3514
        %v3516 = vrot.slane %v3508, %v3515
        %v3518 = vunpack.c.l.s4 1983009808
        %v3519 = vunpack.c.0.s8 %v3518
        %v3520 = vlaneseq
        %v3521 = vshrl.u32 %v3520, 7
        %v3522 = vsub.s32 %v3519, %v3521
        %v3523 = vrot.slane %v3509, %v3522
        %v3524 = vcombine.low %v3500, %v3516
        %v3525 = vcombine.high %v3500, %v3516
        %v3527 = vunpack.c.l.s4 1934713408
        %v3528 = vunpack.c.0.s8 %v3527
        %v3529 = vlaneseq
        %v3530 = vshrl.u32 %v3529, 7
        %v3531 = vsub.s32 %v3528, %v3530
        %v3532 = vrot.slane %v3524, %v3531
        %v3534 = vunpack.c.l.s4 1934713408
        %v3535 = vunpack.c.0.s8 %v3534
        %v3536 = vlaneseq
        %v3537 = vshrl.u32 %v3536, 7
        %v3538 = vsub.s32 %v3535, %v3537
        %v3539 = vrot.slane %v3525, %v3538
        %v3540 = vcombine.low %v3507, %v3523
        %v3541 = vcombine.high %v3507, %v3523
        %v3543 = vunpack.c.l.s4 1934713408
        %v3544 = vunpack.c.0.s8 %v3543
        %v3545 = vlaneseq
        %v3546 = vshrl.u32 %v3545, 7
        %v3547 = vsub.s32 %v3544, %v3546
        %v3548 = vrot.slane %v3540, %v3547
        %v3550 = vunpack.c.l.s4 1934713408
        %v3551 = vunpack.c.0.s8 %v3550
        %v3552 = vlaneseq
        %v3553 = vshrl.u32 %v3552, 7
        %v3554 = vsub.s32 %v3551, %v3553
        %v3555 = vrot.slane %v3541, %v3554
        %v3556 = vcombine.high %v3532, 0.0
        %v3557 = vcombine.high %v3539, 0.0
        %v3558 = vcombine.high %v3548, 0.0
        %v3559 = vcombine.high %v3555, 0.0
        %3561 = vrot.lane.b32.xlu0 %v3488, 16
        %v3562 = vpop.permute.xlu0 %3561
        %3565 = vrot.lane.b32.xlu0 %v3471, 32
        %v3566 = vpop.permute.xlu0 %3565
        %3569 = vrot.lane.b32.xlu0 %v3489, 48
        %v3570 = vpop.permute.xlu0 %3569
        %3573 = vrot.lane.b32.xlu0 %v3480, 64
        %v3574 = vpop.permute.xlu0 %3573
        %3577 = vrot.lane.b32.xlu0 %v3490, 80
        %v3578 = vpop.permute.xlu0 %3577
        %3581 = vrot.lane.b32.xlu0 %v3487, 96
        %v3582 = vpop.permute.xlu0 %3581
        %3585 = vrot.lane.b32.xlu0 %v3491, 112
        %v3586 = vpop.permute.xlu0 %3585
        %3589 = vrot.lane.b32.xlu0 %v3556, 16
        %v3590 = vpop.permute.xlu0 %3589
        %3593 = vrot.lane.b32.xlu0 %v3539, 32
        %v3594 = vpop.permute.xlu0 %3593
        %3597 = vrot.lane.b32.xlu0 %v3557, 48
        %v3598 = vpop.permute.xlu0 %3597
        %3601 = vrot.lane.b32.xlu0 %v3548, 64
        %v3602 = vpop.permute.xlu0 %3601
        %3605 = vrot.lane.b32.xlu0 %v3558, 80
        %v3606 = vpop.permute.xlu0 %3605
        %3609 = vrot.lane.b32.xlu0 %v3555, 96
        %v3610 = vpop.permute.xlu0 %3609
        %3613 = vrot.lane.b32.xlu0 %v3559, 112
        %v3614 = vpop.permute.xlu0 %3613
        %v3616 = vsel %vm1046, %v3464, %v3562
        %v3617 = vsel %vm1048, %v3616, %v3566
        %v3618 = vsel %vm1050, %v3617, %v3570
        %v3619 = vsel %vm1052, %v3618, %v3574
        %v3620 = vsel %vm1054, %v3619, %v3578
        %v3621 = vsel %vm1056, %v3620, %v3582
        %v3622 = vsel %vm1058, %v3621, %v3586
        %v3623 = vsel %vm1046, %v3532, %v3590
        %v3624 = vsel %vm1048, %v3623, %v3594
        %v3625 = vsel %vm1050, %v3624, %v3598
        %v3626 = vsel %vm1052, %v3625, %v3602
        %v3627 = vsel %vm1054, %v3626, %v3606
        %v3628 = vsel %vm1056, %v3627, %v3610
        %v3629 = vsel %vm1058, %v3628, %v3614
        %v3632 = vrot.slane %v3622, 4
        %v3633 = vrot.slane %v3629, 4
        %3636 = vst [vmem:[#allocation6] sm:$0xf0] %v3632
        %3637 = vst [vmem:[#allocation6 + $0x8] sm:$0xf0] %v3633
        %v3638 = vld [vmem:[#allocation5] sm:$0xff]
        %v3639 = vld [vmem:[#allocation5 + $0x8] sm:$0xff]
        %v3640 = vld [vmem:[#allocation5 + $0x18] sm:$0xff]
        %v3641 = vld [vmem:[#allocation5 + $0x20] sm:$0xff]
        %v3642 = vld [vmem:[#allocation5 + $0x30] sm:$0xff]
        %v3643 = vld [vmem:[#allocation5 + $0x38] sm:$0xff]
        %v3644 = vld [vmem:[#allocation5 + $0x48] sm:$0xff]
        %v3645 = vld [vmem:[#allocation5 + $0x50] sm:$0xff]
        %3654 = vrot.lane.b32.xlu0 %v3638, 126
        %v3655 = vpop.permute.xlu0 %3654
        %3656 = vrot.lane.b32.xlu0 %v3639, 126
        %v3657 = vpop.permute.xlu0 %3656
        %3658 = vrot.lane.b32.xlu0 %v3640, 126
        %v3659 = vpop.permute.xlu0 %3658
        %3660 = vrot.lane.b32.xlu0 %v3641, 126
        %v3661 = vpop.permute.xlu0 %3660
        %3662 = vrot.lane.b32.xlu0 %v3642, 126
        %v3663 = vpop.permute.xlu0 %3662
        %3664 = vrot.lane.b32.xlu0 %v3643, 126
        %v3665 = vpop.permute.xlu0 %3664
        %3666 = vrot.lane.b32.xlu0 %v3644, 126
        %v3667 = vpop.permute.xlu0 %3666
        %3668 = vrot.lane.b32.xlu0 %v3645, 126
        %v3669 = vpop.permute.xlu0 %3668
        %v3678 = vcombine.low %v3655, %v3663
        %v3679 = vcombine.high %v3655, %v3663
        %v3681 = vunpack.c.l.s4 1983009808
        %v3682 = vunpack.c.0.s8 %v3681
        %v3683 = vlaneseq
        %v3684 = vshrl.u32 %v3683, 7
        %v3685 = vsub.s32 %v3682, %v3684
        %v3686 = vrot.slane %v3678, %v3685
        %v3688 = vunpack.c.l.s4 1983009808
        %v3689 = vunpack.c.0.s8 %v3688
        %v3690 = vlaneseq
        %v3691 = vshrl.u32 %v3690, 7
        %v3692 = vsub.s32 %v3689, %v3691
        %v3693 = vrot.slane %v3679, %v3692
        %v3694 = vcombine.low %v3659, %v3667
        %v3695 = vcombine.high %v3659, %v3667
        %v3697 = vunpack.c.l.s4 1983009808
        %v3698 = vunpack.c.0.s8 %v3697
        %v3699 = vlaneseq
        %v3700 = vshrl.u32 %v3699, 7
        %v3701 = vsub.s32 %v3698, %v3700
        %v3702 = vrot.slane %v3694, %v3701
        %v3704 = vunpack.c.l.s4 1983009808
        %v3705 = vunpack.c.0.s8 %v3704
        %v3706 = vlaneseq
        %v3707 = vshrl.u32 %v3706, 7
        %v3708 = vsub.s32 %v3705, %v3707
        %v3709 = vrot.slane %v3695, %v3708
        %v3710 = vcombine.low %v3686, %v3702
        %v3711 = vcombine.high %v3686, %v3702
        %v3713 = vunpack.c.l.s4 1934713408
        %v3714 = vunpack.c.0.s8 %v3713
        %v3715 = vlaneseq
        %v3716 = vshrl.u32 %v3715, 7
        %v3717 = vsub.s32 %v3714, %v3716
        %v3718 = vrot.slane %v3710, %v3717
        %v3720 = vunpack.c.l.s4 1934713408
        %v3721 = vunpack.c.0.s8 %v3720
        %v3722 = vlaneseq
        %v3723 = vshrl.u32 %v3722, 7
        %v3724 = vsub.s32 %v3721, %v3723
        %v3725 = vrot.slane %v3711, %v3724
        %v3726 = vcombine.low %v3693, %v3709
        %v3727 = vcombine.high %v3693, %v3709
        %v3729 = vunpack.c.l.s4 1934713408
        %v3730 = vunpack.c.0.s8 %v3729
        %v3731 = vlaneseq
        %v3732 = vshrl.u32 %v3731, 7
        %v3733 = vsub.s32 %v3730, %v3732
        %v3734 = vrot.slane %v3726, %v3733
        %v3736 = vunpack.c.l.s4 1934713408
        %v3737 = vunpack.c.0.s8 %v3736
        %v3738 = vlaneseq
        %v3739 = vshrl.u32 %v3738, 7
        %v3740 = vsub.s32 %v3737, %v3739
        %v3741 = vrot.slane %v3727, %v3740
        %v3742 = vcombine.high %v3718, 0.0
        %v3743 = vcombine.high %v3725, 0.0
        %v3744 = vcombine.high %v3734, 0.0
        %v3745 = vcombine.high %v3741, 0.0
        %v3746 = vcombine.low %v3657, %v3665
        %v3747 = vcombine.high %v3657, %v3665
        %v3749 = vunpack.c.l.s4 1983009808
        %v3750 = vunpack.c.0.s8 %v3749
        %v3751 = vlaneseq
        %v3752 = vshrl.u32 %v3751, 7
        %v3753 = vsub.s32 %v3750, %v3752
        %v3754 = vrot.slane %v3746, %v3753
        %v3756 = vunpack.c.l.s4 1983009808
        %v3757 = vunpack.c.0.s8 %v3756
        %v3758 = vlaneseq
        %v3759 = vshrl.u32 %v3758, 7
        %v3760 = vsub.s32 %v3757, %v3759
        %v3761 = vrot.slane %v3747, %v3760
        %v3762 = vcombine.low %v3661, %v3669
        %v3763 = vcombine.high %v3661, %v3669
        %v3765 = vunpack.c.l.s4 1983009808
        %v3766 = vunpack.c.0.s8 %v3765
        %v3767 = vlaneseq
        %v3768 = vshrl.u32 %v3767, 7
        %v3769 = vsub.s32 %v3766, %v3768
        %v3770 = vrot.slane %v3762, %v3769
        %v3772 = vunpack.c.l.s4 1983009808
        %v3773 = vunpack.c.0.s8 %v3772
        %v3774 = vlaneseq
        %v3775 = vshrl.u32 %v3774, 7
        %v3776 = vsub.s32 %v3773, %v3775
        %v3777 = vrot.slane %v3763, %v3776
        %v3778 = vcombine.low %v3754, %v3770
        %v3779 = vcombine.high %v3754, %v3770
        %v3781 = vunpack.c.l.s4 1934713408
        %v3782 = vunpack.c.0.s8 %v3781
        %v3783 = vlaneseq
        %v3784 = vshrl.u32 %v3783, 7
        %v3785 = vsub.s32 %v3782, %v3784
        %v3786 = vrot.slane %v3778, %v3785
        %v3788 = vunpack.c.l.s4 1934713408
        %v3789 = vunpack.c.0.s8 %v3788
        %v3790 = vlaneseq
        %v3791 = vshrl.u32 %v3790, 7
        %v3792 = vsub.s32 %v3789, %v3791
        %v3793 = vrot.slane %v3779, %v3792
        %v3794 = vcombine.low %v3761, %v3777
        %v3795 = vcombine.high %v3761, %v3777
        %v3797 = vunpack.c.l.s4 1934713408
        %v3798 = vunpack.c.0.s8 %v3797
        %v3799 = vlaneseq
        %v3800 = vshrl.u32 %v3799, 7
        %v3801 = vsub.s32 %v3798, %v3800
        %v3802 = vrot.slane %v3794, %v3801
        %v3804 = vunpack.c.l.s4 1934713408
        %v3805 = vunpack.c.0.s8 %v3804
        %v3806 = vlaneseq
        %v3807 = vshrl.u32 %v3806, 7
        %v3808 = vsub.s32 %v3805, %v3807
        %v3809 = vrot.slane %v3795, %v3808
        %v3810 = vcombine.high %v3786, 0.0
        %v3811 = vcombine.high %v3793, 0.0
        %v3812 = vcombine.high %v3802, 0.0
        %v3813 = vcombine.high %v3809, 0.0
        %3815 = vrot.lane.b32.xlu0 %v3742, 16
        %v3816 = vpop.permute.xlu0 %3815
        %3819 = vrot.lane.b32.xlu0 %v3725, 32
        %v3820 = vpop.permute.xlu0 %3819
        %3823 = vrot.lane.b32.xlu0 %v3743, 48
        %v3824 = vpop.permute.xlu0 %3823
        %3827 = vrot.lane.b32.xlu0 %v3734, 64
        %v3828 = vpop.permute.xlu0 %3827
        %3831 = vrot.lane.b32.xlu0 %v3744, 80
        %v3832 = vpop.permute.xlu0 %3831
        %3835 = vrot.lane.b32.xlu0 %v3741, 96
        %v3836 = vpop.permute.xlu0 %3835
        %3839 = vrot.lane.b32.xlu0 %v3745, 112
        %v3840 = vpop.permute.xlu0 %3839
        %3843 = vrot.lane.b32.xlu0 %v3810, 16
        %v3844 = vpop.permute.xlu0 %3843
        %3847 = vrot.lane.b32.xlu0 %v3793, 32
        %v3848 = vpop.permute.xlu0 %3847
        %3851 = vrot.lane.b32.xlu0 %v3811, 48
        %v3852 = vpop.permute.xlu0 %3851
        %3855 = vrot.lane.b32.xlu0 %v3802, 64
        %v3856 = vpop.permute.xlu0 %3855
        %3859 = vrot.lane.b32.xlu0 %v3812, 80
        %v3860 = vpop.permute.xlu0 %3859
        %3863 = vrot.lane.b32.xlu0 %v3809, 96
        %v3864 = vpop.permute.xlu0 %3863
        %3867 = vrot.lane.b32.xlu0 %v3813, 112
        %v3868 = vpop.permute.xlu0 %3867
        %v3870 = vsel %vm1046, %v3718, %v3816
        %v3871 = vsel %vm1048, %v3870, %v3820
        %v3872 = vsel %vm1050, %v3871, %v3824
        %v3873 = vsel %vm1052, %v3872, %v3828
        %v3874 = vsel %vm1054, %v3873, %v3832
        %v3875 = vsel %vm1056, %v3874, %v3836
        %v3876 = vsel %vm1058, %v3875, %v3840
        %v3877 = vsel %vm1046, %v3786, %v3844
        %v3878 = vsel %vm1048, %v3877, %v3848
        %v3879 = vsel %vm1050, %v3878, %v3852
        %v3880 = vsel %vm1052, %v3879, %v3856
        %v3881 = vsel %vm1054, %v3880, %v3860
        %v3882 = vsel %vm1056, %v3881, %v3864
        %v3883 = vsel %vm1058, %v3882, %v3868
        %3884 = vst [vmem:[#allocation6 + $0x10] sm:$0xf] %v3876
        %3885 = vst [vmem:[#allocation6 + $0x18] sm:$0xf] %v3883
        %v3886 = vld [vmem:[#allocation5] sm:$0xff]
        %v3887 = vld [vmem:[#allocation5 + $0x8] sm:$0xff]
        %v3888 = vld [vmem:[#allocation5 + $0x18] sm:$0xff]
        %v3889 = vld [vmem:[#allocation5 + $0x20] sm:$0xff]
        %v3890 = vld [vmem:[#allocation5 + $0x30] sm:$0xff]
        %v3891 = vld [vmem:[#allocation5 + $0x38] sm:$0xff]
        %v3892 = vld [vmem:[#allocation5 + $0x48] sm:$0xff]
        %v3893 = vld [vmem:[#allocation5 + $0x50] sm:$0xff]
        %3902 = vrot.lane.b32.xlu0 %v3886, 125
        %v3903 = vpop.permute.xlu0 %3902
        %3904 = vrot.lane.b32.xlu0 %v3887, 125
        %v3905 = vpop.permute.xlu0 %3904
        %3906 = vrot.lane.b32.xlu0 %v3888, 125
        %v3907 = vpop.permute.xlu0 %3906
        %3908 = vrot.lane.b32.xlu0 %v3889, 125
        %v3909 = vpop.permute.xlu0 %3908
        %3910 = vrot.lane.b32.xlu0 %v3890, 125
        %v3911 = vpop.permute.xlu0 %3910
        %3912 = vrot.lane.b32.xlu0 %v3891, 125
        %v3913 = vpop.permute.xlu0 %3912
        %3914 = vrot.lane.b32.xlu0 %v3892, 125
        %v3915 = vpop.permute.xlu0 %3914
        %3916 = vrot.lane.b32.xlu0 %v3893, 125
        %v3917 = vpop.permute.xlu0 %3916
        %v3926 = vcombine.low %v3903, %v3911
        %v3927 = vcombine.high %v3903, %v3911
        %v3929 = vunpack.c.l.s4 1983009808
        %v3930 = vunpack.c.0.s8 %v3929
        %v3931 = vlaneseq
        %v3932 = vshrl.u32 %v3931, 7
        %v3933 = vsub.s32 %v3930, %v3932
        %v3934 = vrot.slane %v3926, %v3933
        %v3936 = vunpack.c.l.s4 1983009808
        %v3937 = vunpack.c.0.s8 %v3936
        %v3938 = vlaneseq
        %v3939 = vshrl.u32 %v3938, 7
        %v3940 = vsub.s32 %v3937, %v3939
        %v3941 = vrot.slane %v3927, %v3940
        %v3942 = vcombine.low %v3907, %v3915
        %v3943 = vcombine.high %v3907, %v3915
        %v3945 = vunpack.c.l.s4 1983009808
        %v3946 = vunpack.c.0.s8 %v3945
        %v3947 = vlaneseq
        %v3948 = vshrl.u32 %v3947, 7
        %v3949 = vsub.s32 %v3946, %v3948
        %v3950 = vrot.slane %v3942, %v3949
        %v3952 = vunpack.c.l.s4 1983009808
        %v3953 = vunpack.c.0.s8 %v3952
        %v3954 = vlaneseq
        %v3955 = vshrl.u32 %v3954, 7
        %v3956 = vsub.s32 %v3953, %v3955
        %v3957 = vrot.slane %v3943, %v3956
        %v3958 = vcombine.low %v3934, %v3950
        %v3959 = vcombine.high %v3934, %v3950
        %v3961 = vunpack.c.l.s4 1934713408
        %v3962 = vunpack.c.0.s8 %v3961
        %v3963 = vlaneseq
        %v3964 = vshrl.u32 %v3963, 7
        %v3965 = vsub.s32 %v3962, %v3964
        %v3966 = vrot.slane %v3958, %v3965
        %v3968 = vunpack.c.l.s4 1934713408
        %v3969 = vunpack.c.0.s8 %v3968
        %v3970 = vlaneseq
        %v3971 = vshrl.u32 %v3970, 7
        %v3972 = vsub.s32 %v3969, %v3971
        %v3973 = vrot.slane %v3959, %v3972
        %v3974 = vcombine.low %v3941, %v3957
        %v3975 = vcombine.high %v3941, %v3957
        %v3977 = vunpack.c.l.s4 1934713408
        %v3978 = vunpack.c.0.s8 %v3977
        %v3979 = vlaneseq
        %v3980 = vshrl.u32 %v3979, 7
        %v3981 = vsub.s32 %v3978, %v3980
        %v3982 = vrot.slane %v3974, %v3981
        %v3984 = vunpack.c.l.s4 1934713408
        %v3985 = vunpack.c.0.s8 %v3984
        %v3986 = vlaneseq
        %v3987 = vshrl.u32 %v3986, 7
        %v3988 = vsub.s32 %v3985, %v3987
        %v3989 = vrot.slane %v3975, %v3988
        %v3990 = vcombine.high %v3966, 0.0
        %v3991 = vcombine.high %v3973, 0.0
        %v3992 = vcombine.high %v3982, 0.0
        %v3993 = vcombine.high %v3989, 0.0
        %v3994 = vcombine.low %v3905, %v3913
        %v3995 = vcombine.high %v3905, %v3913
        %v3997 = vunpack.c.l.s4 1983009808
        %v3998 = vunpack.c.0.s8 %v3997
        %v3999 = vlaneseq
        %v4000 = vshrl.u32 %v3999, 7
        %v4001 = vsub.s32 %v3998, %v4000
        %v4002 = vrot.slane %v3994, %v4001
        %v4004 = vunpack.c.l.s4 1983009808
        %v4005 = vunpack.c.0.s8 %v4004
        %v4006 = vlaneseq
        %v4007 = vshrl.u32 %v4006, 7
        %v4008 = vsub.s32 %v4005, %v4007
        %v4009 = vrot.slane %v3995, %v4008
        %v4010 = vcombine.low %v3909, %v3917
        %v4011 = vcombine.high %v3909, %v3917
        %v4013 = vunpack.c.l.s4 1983009808
        %v4014 = vunpack.c.0.s8 %v4013
        %v4015 = vlaneseq
        %v4016 = vshrl.u32 %v4015, 7
        %v4017 = vsub.s32 %v4014, %v4016
        %v4018 = vrot.slane %v4010, %v4017
        %v4020 = vunpack.c.l.s4 1983009808
        %v4021 = vunpack.c.0.s8 %v4020
        %v4022 = vlaneseq
        %v4023 = vshrl.u32 %v4022, 7
        %v4024 = vsub.s32 %v4021, %v4023
        %v4025 = vrot.slane %v4011, %v4024
        %v4026 = vcombine.low %v4002, %v4018
        %v4027 = vcombine.high %v4002, %v4018
        %v4029 = vunpack.c.l.s4 1934713408
        %v4030 = vunpack.c.0.s8 %v4029
        %v4031 = vlaneseq
        %v4032 = vshrl.u32 %v4031, 7
        %v4033 = vsub.s32 %v4030, %v4032
        %v4034 = vrot.slane %v4026, %v4033
        %v4036 = vunpack.c.l.s4 1934713408
        %v4037 = vunpack.c.0.s8 %v4036
        %v4038 = vlaneseq
        %v4039 = vshrl.u32 %v4038, 7
        %v4040 = vsub.s32 %v4037, %v4039
        %v4041 = vrot.slane %v4027, %v4040
        %v4042 = vcombine.low %v4009, %v4025
        %v4043 = vcombine.high %v4009, %v4025
        %v4045 = vunpack.c.l.s4 1934713408
        %v4046 = vunpack.c.0.s8 %v4045
        %v4047 = vlaneseq
        %v4048 = vshrl.u32 %v4047, 7
        %v4049 = vsub.s32 %v4046, %v4048
        %v4050 = vrot.slane %v4042, %v4049
        %v4052 = vunpack.c.l.s4 1934713408
        %v4053 = vunpack.c.0.s8 %v4052
        %v4054 = vlaneseq
        %v4055 = vshrl.u32 %v4054, 7
        %v4056 = vsub.s32 %v4053, %v4055
        %v4057 = vrot.slane %v4043, %v4056
        %v4058 = vcombine.high %v4034, 0.0
        %v4059 = vcombine.high %v4041, 0.0
        %v4060 = vcombine.high %v4050, 0.0
        %v4061 = vcombine.high %v4057, 0.0
        %4063 = vrot.lane.b32.xlu0 %v3990, 16
        %v4064 = vpop.permute.xlu0 %4063
        %4067 = vrot.lane.b32.xlu0 %v3973, 32
        %v4068 = vpop.permute.xlu0 %4067
        %4071 = vrot.lane.b32.xlu0 %v3991, 48
        %v4072 = vpop.permute.xlu0 %4071
        %4075 = vrot.lane.b32.xlu0 %v3982, 64
        %v4076 = vpop.permute.xlu0 %4075
        %4079 = vrot.lane.b32.xlu0 %v3992, 80
        %v4080 = vpop.permute.xlu0 %4079
        %4083 = vrot.lane.b32.xlu0 %v3989, 96
        %v4084 = vpop.permute.xlu0 %4083
        %4087 = vrot.lane.b32.xlu0 %v3993, 112
        %v4088 = vpop.permute.xlu0 %4087
        %4091 = vrot.lane.b32.xlu0 %v4058, 16
        %v4092 = vpop.permute.xlu0 %4091
        %4095 = vrot.lane.b32.xlu0 %v4041, 32
        %v4096 = vpop.permute.xlu0 %4095
        %4099 = vrot.lane.b32.xlu0 %v4059, 48
        %v4100 = vpop.permute.xlu0 %4099
        %4103 = vrot.lane.b32.xlu0 %v4050, 64
        %v4104 = vpop.permute.xlu0 %4103
        %4107 = vrot.lane.b32.xlu0 %v4060, 80
        %v4108 = vpop.permute.xlu0 %4107
        %4111 = vrot.lane.b32.xlu0 %v4057, 96
        %v4112 = vpop.permute.xlu0 %4111
        %4115 = vrot.lane.b32.xlu0 %v4061, 112
        %v4116 = vpop.permute.xlu0 %4115
        %v4118 = vsel %vm1046, %v3966, %v4064
        %v4119 = vsel %vm1048, %v4118, %v4068
        %v4120 = vsel %vm1050, %v4119, %v4072
        %v4121 = vsel %vm1052, %v4120, %v4076
        %v4122 = vsel %vm1054, %v4121, %v4080
        %v4123 = vsel %vm1056, %v4122, %v4084
        %v4124 = vsel %vm1058, %v4123, %v4088
        %v4125 = vsel %vm1046, %v4034, %v4092
        %v4126 = vsel %vm1048, %v4125, %v4096
        %v4127 = vsel %vm1050, %v4126, %v4100
        %v4128 = vsel %vm1052, %v4127, %v4104
        %v4129 = vsel %vm1054, %v4128, %v4108
        %v4130 = vsel %vm1056, %v4129, %v4112
        %v4131 = vsel %vm1058, %v4130, %v4116
        %v4134 = vrot.slane %v4124, 4
        %v4135 = vrot.slane %v4131, 4
        %4138 = vst [vmem:[#allocation6 + $0x10] sm:$0xf0] %v4134
        %4139 = vst [vmem:[#allocation6 + $0x18] sm:$0xf0] %v4135
        %v4140 = vld [vmem:[#allocation5] sm:$0xff]
        %v4141 = vld [vmem:[#allocation5 + $0x8] sm:$0xff]
        %v4142 = vld [vmem:[#allocation5 + $0x18] sm:$0xff]
        %v4143 = vld [vmem:[#allocation5 + $0x20] sm:$0xff]
        %v4144 = vld [vmem:[#allocation5 + $0x30] sm:$0xff]
        %v4145 = vld [vmem:[#allocation5 + $0x38] sm:$0xff]
        %v4146 = vld [vmem:[#allocation5 + $0x48] sm:$0xff]
        %v4147 = vld [vmem:[#allocation5 + $0x50] sm:$0xff]
        %4156 = vrot.lane.b32.xlu0 %v4140, 124
        %v4157 = vpop.permute.xlu0 %4156
        %4158 = vrot.lane.b32.xlu0 %v4141, 124
        %v4159 = vpop.permute.xlu0 %4158
        %4160 = vrot.lane.b32.xlu0 %v4142, 124
        %v4161 = vpop.permute.xlu0 %4160
        %4162 = vrot.lane.b32.xlu0 %v4143, 124
        %v4163 = vpop.permute.xlu0 %4162
        %4164 = vrot.lane.b32.xlu0 %v4144, 124
        %v4165 = vpop.permute.xlu0 %4164
        %4166 = vrot.lane.b32.xlu0 %v4145, 124
        %v4167 = vpop.permute.xlu0 %4166
        %4168 = vrot.lane.b32.xlu0 %v4146, 124
        %v4169 = vpop.permute.xlu0 %4168
        %4170 = vrot.lane.b32.xlu0 %v4147, 124
        %v4171 = vpop.permute.xlu0 %4170
        %v4180 = vcombine.low %v4157, %v4165
        %v4181 = vcombine.high %v4157, %v4165
        %v4183 = vunpack.c.l.s4 1983009808
        %v4184 = vunpack.c.0.s8 %v4183
        %v4185 = vlaneseq
        %v4186 = vshrl.u32 %v4185, 7
        %v4187 = vsub.s32 %v4184, %v4186
        %v4188 = vrot.slane %v4180, %v4187
        %v4190 = vunpack.c.l.s4 1983009808
        %v4191 = vunpack.c.0.s8 %v4190
        %v4192 = vlaneseq
        %v4193 = vshrl.u32 %v4192, 7
        %v4194 = vsub.s32 %v4191, %v4193
        %v4195 = vrot.slane %v4181, %v4194
        %v4196 = vcombine.low %v4161, %v4169
        %v4197 = vcombine.high %v4161, %v4169
        %v4199 = vunpack.c.l.s4 1983009808
        %v4200 = vunpack.c.0.s8 %v4199
        %v4201 = vlaneseq
        %v4202 = vshrl.u32 %v4201, 7
        %v4203 = vsub.s32 %v4200, %v4202
        %v4204 = vrot.slane %v4196, %v4203
        %v4206 = vunpack.c.l.s4 1983009808
        %v4207 = vunpack.c.0.s8 %v4206
        %v4208 = vlaneseq
        %v4209 = vshrl.u32 %v4208, 7
        %v4210 = vsub.s32 %v4207, %v4209
        %v4211 = vrot.slane %v4197, %v4210
        %v4212 = vcombine.low %v4188, %v4204
        %v4213 = vcombine.high %v4188, %v4204
        %v4215 = vunpack.c.l.s4 1934713408
        %v4216 = vunpack.c.0.s8 %v4215
        %v4217 = vlaneseq
        %v4218 = vshrl.u32 %v4217, 7
        %v4219 = vsub.s32 %v4216, %v4218
        %v4220 = vrot.slane %v4212, %v4219
        %v4222 = vunpack.c.l.s4 1934713408
        %v4223 = vunpack.c.0.s8 %v4222
        %v4224 = vlaneseq
        %v4225 = vshrl.u32 %v4224, 7
        %v4226 = vsub.s32 %v4223, %v4225
        %v4227 = vrot.slane %v4213, %v4226
        %v4228 = vcombine.low %v4195, %v4211
        %v4229 = vcombine.high %v4195, %v4211
        %v4231 = vunpack.c.l.s4 1934713408
        %v4232 = vunpack.c.0.s8 %v4231
        %v4233 = vlaneseq
        %v4234 = vshrl.u32 %v4233, 7
        %v4235 = vsub.s32 %v4232, %v4234
        %v4236 = vrot.slane %v4228, %v4235
        %v4238 = vunpack.c.l.s4 1934713408
        %v4239 = vunpack.c.0.s8 %v4238
        %v4240 = vlaneseq
        %v4241 = vshrl.u32 %v4240, 7
        %v4242 = vsub.s32 %v4239, %v4241
        %v4243 = vrot.slane %v4229, %v4242
        %v4244 = vcombine.high %v4220, 0.0
        %v4245 = vcombine.high %v4227, 0.0
        %v4246 = vcombine.high %v4236, 0.0
        %v4247 = vcombine.high %v4243, 0.0
        %v4248 = vcombine.low %v4159, %v4167
        %v4249 = vcombine.high %v4159, %v4167
        %v4251 = vunpack.c.l.s4 1983009808
        %v4252 = vunpack.c.0.s8 %v4251
        %v4253 = vlaneseq
        %v4254 = vshrl.u32 %v4253, 7
        %v4255 = vsub.s32 %v4252, %v4254
        %v4256 = vrot.slane %v4248, %v4255
        %v4258 = vunpack.c.l.s4 1983009808
        %v4259 = vunpack.c.0.s8 %v4258
        %v4260 = vlaneseq
        %v4261 = vshrl.u32 %v4260, 7
        %v4262 = vsub.s32 %v4259, %v4261
        %v4263 = vrot.slane %v4249, %v4262
        %v4264 = vcombine.low %v4163, %v4171
        %v4265 = vcombine.high %v4163, %v4171
        %v4267 = vunpack.c.l.s4 1983009808
        %v4268 = vunpack.c.0.s8 %v4267
        %v4269 = vlaneseq
        %v4270 = vshrl.u32 %v4269, 7
        %v4271 = vsub.s32 %v4268, %v4270
        %v4272 = vrot.slane %v4264, %v4271
        %v4274 = vunpack.c.l.s4 1983009808
        %v4275 = vunpack.c.0.s8 %v4274
        %v4276 = vlaneseq
        %v4277 = vshrl.u32 %v4276, 7
        %v4278 = vsub.s32 %v4275, %v4277
        %v4279 = vrot.slane %v4265, %v4278
        %v4280 = vcombine.low %v4256, %v4272
        %v4281 = vcombine.high %v4256, %v4272
        %v4283 = vunpack.c.l.s4 1934713408
        %v4284 = vunpack.c.0.s8 %v4283
        %v4285 = vlaneseq
        %v4286 = vshrl.u32 %v4285, 7
        %v4287 = vsub.s32 %v4284, %v4286
        %v4288 = vrot.slane %v4280, %v4287
        %v4290 = vunpack.c.l.s4 1934713408
        %v4291 = vunpack.c.0.s8 %v4290
        %v4292 = vlaneseq
        %v4293 = vshrl.u32 %v4292, 7
        %v4294 = vsub.s32 %v4291, %v4293
        %v4295 = vrot.slane %v4281, %v4294
        %v4296 = vcombine.low %v4263, %v4279
        %v4297 = vcombine.high %v4263, %v4279
        %v4299 = vunpack.c.l.s4 1934713408
        %v4300 = vunpack.c.0.s8 %v4299
        %v4301 = vlaneseq
        %v4302 = vshrl.u32 %v4301, 7
        %v4303 = vsub.s32 %v4300, %v4302
        %v4304 = vrot.slane %v4296, %v4303
        %v4306 = vunpack.c.l.s4 1934713408
        %v4307 = vunpack.c.0.s8 %v4306
        %v4308 = vlaneseq
        %v4309 = vshrl.u32 %v4308, 7
        %v4310 = vsub.s32 %v4307, %v4309
        %v4311 = vrot.slane %v4297, %v4310
        %v4312 = vcombine.high %v4288, 0.0
        %v4313 = vcombine.high %v4295, 0.0
        %v4314 = vcombine.high %v4304, 0.0
        %v4315 = vcombine.high %v4311, 0.0
        %4317 = vrot.lane.b32.xlu0 %v4244, 16
        %v4318 = vpop.permute.xlu0 %4317
        %4321 = vrot.lane.b32.xlu0 %v4227, 32
        %v4322 = vpop.permute.xlu0 %4321
        %4325 = vrot.lane.b32.xlu0 %v4245, 48
        %v4326 = vpop.permute.xlu0 %4325
        %4329 = vrot.lane.b32.xlu0 %v4236, 64
        %v4330 = vpop.permute.xlu0 %4329
        %4333 = vrot.lane.b32.xlu0 %v4246, 80
        %v4334 = vpop.permute.xlu0 %4333
        %4337 = vrot.lane.b32.xlu0 %v4243, 96
        %v4338 = vpop.permute.xlu0 %4337
        %4341 = vrot.lane.b32.xlu0 %v4247, 112
        %v4342 = vpop.permute.xlu0 %4341
        %4345 = vrot.lane.b32.xlu0 %v4312, 16
        %v4346 = vpop.permute.xlu0 %4345
        %4349 = vrot.lane.b32.xlu0 %v4295, 32
        %v4350 = vpop.permute.xlu0 %4349
        %4353 = vrot.lane.b32.xlu0 %v4313, 48
        %v4354 = vpop.permute.xlu0 %4353
        %4357 = vrot.lane.b32.xlu0 %v4304, 64
        %v4358 = vpop.permute.xlu0 %4357
        %4361 = vrot.lane.b32.xlu0 %v4314, 80
        %v4362 = vpop.permute.xlu0 %4361
        %4365 = vrot.lane.b32.xlu0 %v4311, 96
        %v4366 = vpop.permute.xlu0 %4365
        %4369 = vrot.lane.b32.xlu0 %v4315, 112
        %v4370 = vpop.permute.xlu0 %4369
        %v4372 = vsel %vm1046, %v4220, %v4318
        %v4373 = vsel %vm1048, %v4372, %v4322
        %v4374 = vsel %vm1050, %v4373, %v4326
        %v4375 = vsel %vm1052, %v4374, %v4330
        %v4376 = vsel %vm1054, %v4375, %v4334
        %v4377 = vsel %vm1056, %v4376, %v4338
        %v4378 = vsel %vm1058, %v4377, %v4342
        %v4379 = vsel %vm1046, %v4288, %v4346
        %v4380 = vsel %vm1048, %v4379, %v4350
        %v4381 = vsel %vm1050, %v4380, %v4354
        %v4382 = vsel %vm1052, %v4381, %v4358
        %v4383 = vsel %vm1054, %v4382, %v4362
        %v4384 = vsel %vm1056, %v4383, %v4366
        %v4385 = vsel %vm1058, %v4384, %v4370
        %4386 = vst [vmem:[#allocation6 + $0x20] sm:$0xf] %v4378
        %4387 = vst [vmem:[#allocation6 + $0x28] sm:$0xf] %v4385
        %v4388 = vld [vmem:[#allocation5 + $0x1] sm:$0xff]
        %v4389 = vld [vmem:[#allocation5 + $0x9] sm:$0xff]
        %v4390 = vld [vmem:[#allocation5 + $0x19] sm:$0xff]
        %v4391 = vld [vmem:[#allocation5 + $0x21] sm:$0xff]
        %v4392 = vld [vmem:[#allocation5 + $0x31] sm:$0xff]
        %v4393 = vld [vmem:[#allocation5 + $0x39] sm:$0xff]
        %v4394 = vld [vmem:[#allocation5 + $0x49] sm:$0xff]
        %v4395 = vld [vmem:[#allocation5 + $0x51] sm:$0xff]
        %v4396 = vcombine.low %v4388, %v4392
        %v4397 = vcombine.high %v4388, %v4392
        %v4399 = vunpack.c.l.s4 1983009808
        %v4400 = vunpack.c.0.s8 %v4399
        %v4401 = vlaneseq
        %v4402 = vshrl.u32 %v4401, 7
        %v4403 = vsub.s32 %v4400, %v4402
        %v4404 = vrot.slane %v4396, %v4403
        %v4406 = vunpack.c.l.s4 1983009808
        %v4407 = vunpack.c.0.s8 %v4406
        %v4408 = vlaneseq
        %v4409 = vshrl.u32 %v4408, 7
        %v4410 = vsub.s32 %v4407, %v4409
        %v4411 = vrot.slane %v4397, %v4410
        %v4412 = vcombine.low %v4390, %v4394
        %v4413 = vcombine.high %v4390, %v4394
        %v4415 = vunpack.c.l.s4 1983009808
        %v4416 = vunpack.c.0.s8 %v4415
        %v4417 = vlaneseq
        %v4418 = vshrl.u32 %v4417, 7
        %v4419 = vsub.s32 %v4416, %v4418
        %v4420 = vrot.slane %v4412, %v4419
        %v4422 = vunpack.c.l.s4 1983009808
        %v4423 = vunpack.c.0.s8 %v4422
        %v4424 = vlaneseq
        %v4425 = vshrl.u32 %v4424, 7
        %v4426 = vsub.s32 %v4423, %v4425
        %v4427 = vrot.slane %v4413, %v4426
        %v4428 = vcombine.low %v4404, %v4420
        %v4429 = vcombine.high %v4404, %v4420
        %v4431 = vunpack.c.l.s4 1934713408
        %v4432 = vunpack.c.0.s8 %v4431
        %v4433 = vlaneseq
        %v4434 = vshrl.u32 %v4433, 7
        %v4435 = vsub.s32 %v4432, %v4434
        %v4436 = vrot.slane %v4428, %v4435
        %v4438 = vunpack.c.l.s4 1934713408
        %v4439 = vunpack.c.0.s8 %v4438
        %v4440 = vlaneseq
        %v4441 = vshrl.u32 %v4440, 7
        %v4442 = vsub.s32 %v4439, %v4441
        %v4443 = vrot.slane %v4429, %v4442
        %v4444 = vcombine.low %v4411, %v4427
        %v4445 = vcombine.high %v4411, %v4427
        %v4447 = vunpack.c.l.s4 1934713408
        %v4448 = vunpack.c.0.s8 %v4447
        %v4449 = vlaneseq
        %v4450 = vshrl.u32 %v4449, 7
        %v4451 = vsub.s32 %v4448, %v4450
        %v4452 = vrot.slane %v4444, %v4451
        %v4454 = vunpack.c.l.s4 1934713408
        %v4455 = vunpack.c.0.s8 %v4454
        %v4456 = vlaneseq
        %v4457 = vshrl.u32 %v4456, 7
        %v4458 = vsub.s32 %v4455, %v4457
        %v4459 = vrot.slane %v4445, %v4458
        %v4460 = vcombine.high %v4436, 0.0
        %v4461 = vcombine.high %v4443, 0.0
        %v4462 = vcombine.high %v4452, 0.0
        %v4463 = vcombine.high %v4459, 0.0
        %v4464 = vcombine.low %v4389, %v4393
        %v4465 = vcombine.high %v4389, %v4393
        %v4467 = vunpack.c.l.s4 1983009808
        %v4468 = vunpack.c.0.s8 %v4467
        %v4469 = vlaneseq
        %v4470 = vshrl.u32 %v4469, 7
        %v4471 = vsub.s32 %v4468, %v4470
        %v4472 = vrot.slane %v4464, %v4471
        %v4474 = vunpack.c.l.s4 1983009808
        %v4475 = vunpack.c.0.s8 %v4474
        %v4476 = vlaneseq
        %v4477 = vshrl.u32 %v4476, 7
        %v4478 = vsub.s32 %v4475, %v4477
        %v4479 = vrot.slane %v4465, %v4478
        %v4480 = vcombine.low %v4391, %v4395
        %v4481 = vcombine.high %v4391, %v4395
        %v4483 = vunpack.c.l.s4 1983009808
        %v4484 = vunpack.c.0.s8 %v4483
        %v4485 = vlaneseq
        %v4486 = vshrl.u32 %v4485, 7
        %v4487 = vsub.s32 %v4484, %v4486
        %v4488 = vrot.slane %v4480, %v4487
        %v4490 = vunpack.c.l.s4 1983009808
        %v4491 = vunpack.c.0.s8 %v4490
        %v4492 = vlaneseq
        %v4493 = vshrl.u32 %v4492, 7
        %v4494 = vsub.s32 %v4491, %v4493
        %v4495 = vrot.slane %v4481, %v4494
        %v4496 = vcombine.low %v4472, %v4488
        %v4497 = vcombine.high %v4472, %v4488
        %v4499 = vunpack.c.l.s4 1934713408
        %v4500 = vunpack.c.0.s8 %v4499
        %v4501 = vlaneseq
        %v4502 = vshrl.u32 %v4501, 7
        %v4503 = vsub.s32 %v4500, %v4502
        %v4504 = vrot.slane %v4496, %v4503
        %v4506 = vunpack.c.l.s4 1934713408
        %v4507 = vunpack.c.0.s8 %v4506
        %v4508 = vlaneseq
        %v4509 = vshrl.u32 %v4508, 7
        %v4510 = vsub.s32 %v4507, %v4509
        %v4511 = vrot.slane %v4497, %v4510
        %v4512 = vcombine.low %v4479, %v4495
        %v4513 = vcombine.high %v4479, %v4495
        %v4515 = vunpack.c.l.s4 1934713408
        %v4516 = vunpack.c.0.s8 %v4515
        %v4517 = vlaneseq
        %v4518 = vshrl.u32 %v4517, 7
        %v4519 = vsub.s32 %v4516, %v4518
        %v4520 = vrot.slane %v4512, %v4519
        %v4522 = vunpack.c.l.s4 1934713408
        %v4523 = vunpack.c.0.s8 %v4522
        %v4524 = vlaneseq
        %v4525 = vshrl.u32 %v4524, 7
        %v4526 = vsub.s32 %v4523, %v4525
        %v4527 = vrot.slane %v4513, %v4526
        %v4528 = vcombine.high %v4504, 0.0
        %v4529 = vcombine.high %v4511, 0.0
        %v4530 = vcombine.high %v4520, 0.0
        %v4531 = vcombine.high %v4527, 0.0
        %4533 = vrot.lane.b32.xlu0 %v4460, 16
        %v4534 = vpop.permute.xlu0 %4533
        %4537 = vrot.lane.b32.xlu0 %v4443, 32
        %v4538 = vpop.permute.xlu0 %4537
        %4541 = vrot.lane.b32.xlu0 %v4461, 48
        %v4542 = vpop.permute.xlu0 %4541
        %4545 = vrot.lane.b32.xlu0 %v4452, 64
        %v4546 = vpop.permute.xlu0 %4545
        %4549 = vrot.lane.b32.xlu0 %v4462, 80
        %v4550 = vpop.permute.xlu0 %4549
        %4553 = vrot.lane.b32.xlu0 %v4459, 96
        %v4554 = vpop.permute.xlu0 %4553
        %4557 = vrot.lane.b32.xlu0 %v4463, 112
        %v4558 = vpop.permute.xlu0 %4557
        %4561 = vrot.lane.b32.xlu0 %v4528, 16
        %v4562 = vpop.permute.xlu0 %4561
        %4565 = vrot.lane.b32.xlu0 %v4511, 32
        %v4566 = vpop.permute.xlu0 %4565
        %4569 = vrot.lane.b32.xlu0 %v4529, 48
        %v4570 = vpop.permute.xlu0 %4569
        %4573 = vrot.lane.b32.xlu0 %v4520, 64
        %v4574 = vpop.permute.xlu0 %4573
        %4577 = vrot.lane.b32.xlu0 %v4530, 80
        %v4578 = vpop.permute.xlu0 %4577
        %4581 = vrot.lane.b32.xlu0 %v4527, 96
        %v4582 = vpop.permute.xlu0 %4581
        %4585 = vrot.lane.b32.xlu0 %v4531, 112
        %v4586 = vpop.permute.xlu0 %4585
        %v4588 = vsel %vm1046, %v4436, %v4534
        %v4589 = vsel %vm1048, %v4588, %v4538
        %v4590 = vsel %vm1050, %v4589, %v4542
        %v4591 = vsel %vm1052, %v4590, %v4546
        %v4592 = vsel %vm1054, %v4591, %v4550
        %v4593 = vsel %vm1056, %v4592, %v4554
        %v4594 = vsel %vm1058, %v4593, %v4558
        %v4595 = vsel %vm1046, %v4504, %v4562
        %v4596 = vsel %vm1048, %v4595, %v4566
        %v4597 = vsel %vm1050, %v4596, %v4570
        %v4598 = vsel %vm1052, %v4597, %v4574
        %v4599 = vsel %vm1054, %v4598, %v4578
        %v4600 = vsel %vm1056, %v4599, %v4582
        %v4601 = vsel %vm1058, %v4600, %v4586
        %v4604 = vrot.slane %v4594, 4
        %v4605 = vrot.slane %v4601, 4
        %4608 = vst [vmem:[#allocation6 + $0x20] sm:$0xf0] %v4604
        %4609 = vst [vmem:[#allocation6 + $0x28] sm:$0xf0] %v4605
        %v4610 = vld [vmem:[#allocation5 + $0x1] sm:$0xff]
        %v4611 = vld [vmem:[#allocation5 + $0x9] sm:$0xff]
        %v4612 = vld [vmem:[#allocation5 + $0x19] sm:$0xff]
        %v4613 = vld [vmem:[#allocation5 + $0x21] sm:$0xff]
        %v4614 = vld [vmem:[#allocation5 + $0x31] sm:$0xff]
        %v4615 = vld [vmem:[#allocation5 + $0x39] sm:$0xff]
        %v4616 = vld [vmem:[#allocation5 + $0x49] sm:$0xff]
        %v4617 = vld [vmem:[#allocation5 + $0x51] sm:$0xff]
        %4626 = vrot.lane.b32.xlu0 %v4610, 127
        %v4627 = vpop.permute.xlu0 %4626
        %4628 = vrot.lane.b32.xlu0 %v4611, 127
        %v4629 = vpop.permute.xlu0 %4628
        %4630 = vrot.lane.b32.xlu0 %v4612, 127
        %v4631 = vpop.permute.xlu0 %4630
        %4632 = vrot.lane.b32.xlu0 %v4613, 127
        %v4633 = vpop.permute.xlu0 %4632
        %4634 = vrot.lane.b32.xlu0 %v4614, 127
        %v4635 = vpop.permute.xlu0 %4634
        %4636 = vrot.lane.b32.xlu0 %v4615, 127
        %v4637 = vpop.permute.xlu0 %4636
        %4638 = vrot.lane.b32.xlu0 %v4616, 127
        %v4639 = vpop.permute.xlu0 %4638
        %4640 = vrot.lane.b32.xlu0 %v4617, 127
        %v4641 = vpop.permute.xlu0 %4640
        %v4650 = vcombine.low %v4627, %v4635
        %v4651 = vcombine.high %v4627, %v4635
        %v4653 = vunpack.c.l.s4 1983009808
        %v4654 = vunpack.c.0.s8 %v4653
        %v4655 = vlaneseq
        %v4656 = vshrl.u32 %v4655, 7
        %v4657 = vsub.s32 %v4654, %v4656
        %v4658 = vrot.slane %v4650, %v4657
        %v4660 = vunpack.c.l.s4 1983009808
        %v4661 = vunpack.c.0.s8 %v4660
        %v4662 = vlaneseq
        %v4663 = vshrl.u32 %v4662, 7
        %v4664 = vsub.s32 %v4661, %v4663
        %v4665 = vrot.slane %v4651, %v4664
        %v4666 = vcombine.low %v4631, %v4639
        %v4667 = vcombine.high %v4631, %v4639
        %v4669 = vunpack.c.l.s4 1983009808
        %v4670 = vunpack.c.0.s8 %v4669
        %v4671 = vlaneseq
        %v4672 = vshrl.u32 %v4671, 7
        %v4673 = vsub.s32 %v4670, %v4672
        %v4674 = vrot.slane %v4666, %v4673
        %v4676 = vunpack.c.l.s4 1983009808
        %v4677 = vunpack.c.0.s8 %v4676
        %v4678 = vlaneseq
        %v4679 = vshrl.u32 %v4678, 7
        %v4680 = vsub.s32 %v4677, %v4679
        %v4681 = vrot.slane %v4667, %v4680
        %v4682 = vcombine.low %v4658, %v4674
        %v4683 = vcombine.high %v4658, %v4674
        %v4685 = vunpack.c.l.s4 1934713408
        %v4686 = vunpack.c.0.s8 %v4685
        %v4687 = vlaneseq
        %v4688 = vshrl.u32 %v4687, 7
        %v4689 = vsub.s32 %v4686, %v4688
        %v4690 = vrot.slane %v4682, %v4689
        %v4692 = vunpack.c.l.s4 1934713408
        %v4693 = vunpack.c.0.s8 %v4692
        %v4694 = vlaneseq
        %v4695 = vshrl.u32 %v4694, 7
        %v4696 = vsub.s32 %v4693, %v4695
        %v4697 = vrot.slane %v4683, %v4696
        %v4698 = vcombine.low %v4665, %v4681
        %v4699 = vcombine.high %v4665, %v4681
        %v4701 = vunpack.c.l.s4 1934713408
        %v4702 = vunpack.c.0.s8 %v4701
        %v4703 = vlaneseq
        %v4704 = vshrl.u32 %v4703, 7
        %v4705 = vsub.s32 %v4702, %v4704
        %v4706 = vrot.slane %v4698, %v4705
        %v4708 = vunpack.c.l.s4 1934713408
        %v4709 = vunpack.c.0.s8 %v4708
        %v4710 = vlaneseq
        %v4711 = vshrl.u32 %v4710, 7
        %v4712 = vsub.s32 %v4709, %v4711
        %v4713 = vrot.slane %v4699, %v4712
        %v4714 = vcombine.high %v4690, 0.0
        %v4715 = vcombine.high %v4697, 0.0
        %v4716 = vcombine.high %v4706, 0.0
        %v4717 = vcombine.high %v4713, 0.0
        %v4718 = vcombine.low %v4629, %v4637
        %v4719 = vcombine.high %v4629, %v4637
        %v4721 = vunpack.c.l.s4 1983009808
        %v4722 = vunpack.c.0.s8 %v4721
        %v4723 = vlaneseq
        %v4724 = vshrl.u32 %v4723, 7
        %v4725 = vsub.s32 %v4722, %v4724
        %v4726 = vrot.slane %v4718, %v4725
        %v4728 = vunpack.c.l.s4 1983009808
        %v4729 = vunpack.c.0.s8 %v4728
        %v4730 = vlaneseq
        %v4731 = vshrl.u32 %v4730, 7
        %v4732 = vsub.s32 %v4729, %v4731
        %v4733 = vrot.slane %v4719, %v4732
        %v4734 = vcombine.low %v4633, %v4641
        %v4735 = vcombine.high %v4633, %v4641
        %v4737 = vunpack.c.l.s4 1983009808
        %v4738 = vunpack.c.0.s8 %v4737
        %v4739 = vlaneseq
        %v4740 = vshrl.u32 %v4739, 7
        %v4741 = vsub.s32 %v4738, %v4740
        %v4742 = vrot.slane %v4734, %v4741
        %v4744 = vunpack.c.l.s4 1983009808
        %v4745 = vunpack.c.0.s8 %v4744
        %v4746 = vlaneseq
        %v4747 = vshrl.u32 %v4746, 7
        %v4748 = vsub.s32 %v4745, %v4747
        %v4749 = vrot.slane %v4735, %v4748
        %v4750 = vcombine.low %v4726, %v4742
        %v4751 = vcombine.high %v4726, %v4742
        %v4753 = vunpack.c.l.s4 1934713408
        %v4754 = vunpack.c.0.s8 %v4753
        %v4755 = vlaneseq
        %v4756 = vshrl.u32 %v4755, 7
        %v4757 = vsub.s32 %v4754, %v4756
        %v4758 = vrot.slane %v4750, %v4757
        %v4760 = vunpack.c.l.s4 1934713408
        %v4761 = vunpack.c.0.s8 %v4760
        %v4762 = vlaneseq
        %v4763 = vshrl.u32 %v4762, 7
        %v4764 = vsub.s32 %v4761, %v4763
        %v4765 = vrot.slane %v4751, %v4764
        %v4766 = vcombine.low %v4733, %v4749
        %v4767 = vcombine.high %v4733, %v4749
        %v4769 = vunpack.c.l.s4 1934713408
        %v4770 = vunpack.c.0.s8 %v4769
        %v4771 = vlaneseq
        %v4772 = vshrl.u32 %v4771, 7
        %v4773 = vsub.s32 %v4770, %v4772
        %v4774 = vrot.slane %v4766, %v4773
        %v4776 = vunpack.c.l.s4 1934713408
        %v4777 = vunpack.c.0.s8 %v4776
        %v4778 = vlaneseq
        %v4779 = vshrl.u32 %v4778, 7
        %v4780 = vsub.s32 %v4777, %v4779
        %v4781 = vrot.slane %v4767, %v4780
        %v4782 = vcombine.high %v4758, 0.0
        %v4783 = vcombine.high %v4765, 0.0
        %v4784 = vcombine.high %v4774, 0.0
        %v4785 = vcombine.high %v4781, 0.0
        %4787 = vrot.lane.b32.xlu0 %v4714, 16
        %v4788 = vpop.permute.xlu0 %4787
        %4791 = vrot.lane.b32.xlu0 %v4697, 32
        %v4792 = vpop.permute.xlu0 %4791
        %4795 = vrot.lane.b32.xlu0 %v4715, 48
        %v4796 = vpop.permute.xlu0 %4795
        %4799 = vrot.lane.b32.xlu0 %v4706, 64
        %v4800 = vpop.permute.xlu0 %4799
        %4803 = vrot.lane.b32.xlu0 %v4716, 80
        %v4804 = vpop.permute.xlu0 %4803
        %4807 = vrot.lane.b32.xlu0 %v4713, 96
        %v4808 = vpop.permute.xlu0 %4807
        %4811 = vrot.lane.b32.xlu0 %v4717, 112
        %v4812 = vpop.permute.xlu0 %4811
        %4815 = vrot.lane.b32.xlu0 %v4782, 16
        %v4816 = vpop.permute.xlu0 %4815
        %4819 = vrot.lane.b32.xlu0 %v4765, 32
        %v4820 = vpop.permute.xlu0 %4819
        %4823 = vrot.lane.b32.xlu0 %v4783, 48
        %v4824 = vpop.permute.xlu0 %4823
        %4827 = vrot.lane.b32.xlu0 %v4774, 64
        %v4828 = vpop.permute.xlu0 %4827
        %4831 = vrot.lane.b32.xlu0 %v4784, 80
        %v4832 = vpop.permute.xlu0 %4831
        %4835 = vrot.lane.b32.xlu0 %v4781, 96
        %v4836 = vpop.permute.xlu0 %4835
        %4839 = vrot.lane.b32.xlu0 %v4785, 112
        %v4840 = vpop.permute.xlu0 %4839
        %v4842 = vsel %vm1046, %v4690, %v4788
        %v4843 = vsel %vm1048, %v4842, %v4792
        %v4844 = vsel %vm1050, %v4843, %v4796
        %v4845 = vsel %vm1052, %v4844, %v4800
        %v4846 = vsel %vm1054, %v4845, %v4804
        %v4847 = vsel %vm1056, %v4846, %v4808
        %v4848 = vsel %vm1058, %v4847, %v4812
        %v4849 = vsel %vm1046, %v4758, %v4816
        %v4850 = vsel %vm1048, %v4849, %v4820
        %v4851 = vsel %vm1050, %v4850, %v4824
        %v4852 = vsel %vm1052, %v4851, %v4828
        %v4853 = vsel %vm1054, %v4852, %v4832
        %v4854 = vsel %vm1056, %v4853, %v4836
        %v4855 = vsel %vm1058, %v4854, %v4840
        %4856 = vst [vmem:[#allocation6 + $0x30] sm:$0xf] %v4848
        %4857 = vst [vmem:[#allocation6 + $0x38] sm:$0xf] %v4855
        %v4858 = vld [vmem:[#allocation5 + $0x1] sm:$0xff]
        %v4859 = vld [vmem:[#allocation5 + $0x9] sm:$0xff]
        %v4860 = vld [vmem:[#allocation5 + $0x19] sm:$0xff]
        %v4861 = vld [vmem:[#allocation5 + $0x21] sm:$0xff]
        %v4862 = vld [vmem:[#allocation5 + $0x31] sm:$0xff]
        %v4863 = vld [vmem:[#allocation5 + $0x39] sm:$0xff]
        %v4864 = vld [vmem:[#allocation5 + $0x49] sm:$0xff]
        %v4865 = vld [vmem:[#allocation5 + $0x51] sm:$0xff]
        %4874 = vrot.lane.b32.xlu0 %v4858, 126
        %v4875 = vpop.permute.xlu0 %4874
        %4876 = vrot.lane.b32.xlu0 %v4859, 126
        %v4877 = vpop.permute.xlu0 %4876
        %4878 = vrot.lane.b32.xlu0 %v4860, 126
        %v4879 = vpop.permute.xlu0 %4878
        %4880 = vrot.lane.b32.xlu0 %v4861, 126
        %v4881 = vpop.permute.xlu0 %4880
        %4882 = vrot.lane.b32.xlu0 %v4862, 126
        %v4883 = vpop.permute.xlu0 %4882
        %4884 = vrot.lane.b32.xlu0 %v4863, 126
        %v4885 = vpop.permute.xlu0 %4884
        %4886 = vrot.lane.b32.xlu0 %v4864, 126
        %v4887 = vpop.permute.xlu0 %4886
        %4888 = vrot.lane.b32.xlu0 %v4865, 126
        %v4889 = vpop.permute.xlu0 %4888
        %v4898 = vcombine.low %v4875, %v4883
        %v4899 = vcombine.high %v4875, %v4883
        %v4901 = vunpack.c.l.s4 1983009808
        %v4902 = vunpack.c.0.s8 %v4901
        %v4903 = vlaneseq
        %v4904 = vshrl.u32 %v4903, 7
        %v4905 = vsub.s32 %v4902, %v4904
        %v4906 = vrot.slane %v4898, %v4905
        %v4908 = vunpack.c.l.s4 1983009808
        %v4909 = vunpack.c.0.s8 %v4908
        %v4910 = vlaneseq
        %v4911 = vshrl.u32 %v4910, 7
        %v4912 = vsub.s32 %v4909, %v4911
        %v4913 = vrot.slane %v4899, %v4912
        %v4914 = vcombine.low %v4879, %v4887
        %v4915 = vcombine.high %v4879, %v4887
        %v4917 = vunpack.c.l.s4 1983009808
        %v4918 = vunpack.c.0.s8 %v4917
        %v4919 = vlaneseq
        %v4920 = vshrl.u32 %v4919, 7
        %v4921 = vsub.s32 %v4918, %v4920
        %v4922 = vrot.slane %v4914, %v4921
        %v4924 = vunpack.c.l.s4 1983009808
        %v4925 = vunpack.c.0.s8 %v4924
        %v4926 = vlaneseq
        %v4927 = vshrl.u32 %v4926, 7
        %v4928 = vsub.s32 %v4925, %v4927
        %v4929 = vrot.slane %v4915, %v4928
        %v4930 = vcombine.low %v4906, %v4922
        %v4931 = vcombine.high %v4906, %v4922
        %v4933 = vunpack.c.l.s4 1934713408
        %v4934 = vunpack.c.0.s8 %v4933
        %v4935 = vlaneseq
        %v4936 = vshrl.u32 %v4935, 7
        %v4937 = vsub.s32 %v4934, %v4936
        %v4938 = vrot.slane %v4930, %v4937
        %v4940 = vunpack.c.l.s4 1934713408
        %v4941 = vunpack.c.0.s8 %v4940
        %v4942 = vlaneseq
        %v4943 = vshrl.u32 %v4942, 7
        %v4944 = vsub.s32 %v4941, %v4943
        %v4945 = vrot.slane %v4931, %v4944
        %v4946 = vcombine.low %v4913, %v4929
        %v4947 = vcombine.high %v4913, %v4929
        %v4949 = vunpack.c.l.s4 1934713408
        %v4950 = vunpack.c.0.s8 %v4949
        %v4951 = vlaneseq
        %v4952 = vshrl.u32 %v4951, 7
        %v4953 = vsub.s32 %v4950, %v4952
        %v4954 = vrot.slane %v4946, %v4953
        %v4956 = vunpack.c.l.s4 1934713408
        %v4957 = vunpack.c.0.s8 %v4956
        %v4958 = vlaneseq
        %v4959 = vshrl.u32 %v4958, 7
        %v4960 = vsub.s32 %v4957, %v4959
        %v4961 = vrot.slane %v4947, %v4960
        %v4962 = vcombine.high %v4938, 0.0
        %v4963 = vcombine.high %v4945, 0.0
        %v4964 = vcombine.high %v4954, 0.0
        %v4965 = vcombine.high %v4961, 0.0
        %v4966 = vcombine.low %v4877, %v4885
        %v4967 = vcombine.high %v4877, %v4885
        %v4969 = vunpack.c.l.s4 1983009808
        %v4970 = vunpack.c.0.s8 %v4969
        %v4971 = vlaneseq
        %v4972 = vshrl.u32 %v4971, 7
        %v4973 = vsub.s32 %v4970, %v4972
        %v4974 = vrot.slane %v4966, %v4973
        %v4976 = vunpack.c.l.s4 1983009808
        %v4977 = vunpack.c.0.s8 %v4976
        %v4978 = vlaneseq
        %v4979 = vshrl.u32 %v4978, 7
        %v4980 = vsub.s32 %v4977, %v4979
        %v4981 = vrot.slane %v4967, %v4980
        %v4982 = vcombine.low %v4881, %v4889
        %v4983 = vcombine.high %v4881, %v4889
        %v4985 = vunpack.c.l.s4 1983009808
        %v4986 = vunpack.c.0.s8 %v4985
        %v4987 = vlaneseq
        %v4988 = vshrl.u32 %v4987, 7
        %v4989 = vsub.s32 %v4986, %v4988
        %v4990 = vrot.slane %v4982, %v4989
        %v4992 = vunpack.c.l.s4 1983009808
        %v4993 = vunpack.c.0.s8 %v4992
        %v4994 = vlaneseq
        %v4995 = vshrl.u32 %v4994, 7
        %v4996 = vsub.s32 %v4993, %v4995
        %v4997 = vrot.slane %v4983, %v4996
        %v4998 = vcombine.low %v4974, %v4990
        %v4999 = vcombine.high %v4974, %v4990
        %v5001 = vunpack.c.l.s4 1934713408
        %v5002 = vunpack.c.0.s8 %v5001
        %v5003 = vlaneseq
        %v5004 = vshrl.u32 %v5003, 7
        %v5005 = vsub.s32 %v5002, %v5004
        %v5006 = vrot.slane %v4998, %v5005
        %v5008 = vunpack.c.l.s4 1934713408
        %v5009 = vunpack.c.0.s8 %v5008
        %v5010 = vlaneseq
        %v5011 = vshrl.u32 %v5010, 7
        %v5012 = vsub.s32 %v5009, %v5011
        %v5013 = vrot.slane %v4999, %v5012
        %v5014 = vcombine.low %v4981, %v4997
        %v5015 = vcombine.high %v4981, %v4997
        %v5017 = vunpack.c.l.s4 1934713408
        %v5018 = vunpack.c.0.s8 %v5017
        %v5019 = vlaneseq
        %v5020 = vshrl.u32 %v5019, 7
        %v5021 = vsub.s32 %v5018, %v5020
        %v5022 = vrot.slane %v5014, %v5021
        %v5024 = vunpack.c.l.s4 1934713408
        %v5025 = vunpack.c.0.s8 %v5024
        %v5026 = vlaneseq
        %v5027 = vshrl.u32 %v5026, 7
        %v5028 = vsub.s32 %v5025, %v5027
        %v5029 = vrot.slane %v5015, %v5028
        %v5030 = vcombine.high %v5006, 0.0
        %v5031 = vcombine.high %v5013, 0.0
        %v5032 = vcombine.high %v5022, 0.0
        %v5033 = vcombine.high %v5029, 0.0
        %5035 = vrot.lane.b32.xlu0 %v4962, 16
        %v5036 = vpop.permute.xlu0 %5035
        %5039 = vrot.lane.b32.xlu0 %v4945, 32
        %v5040 = vpop.permute.xlu0 %5039
        %5043 = vrot.lane.b32.xlu0 %v4963, 48
        %v5044 = vpop.permute.xlu0 %5043
        %5047 = vrot.lane.b32.xlu0 %v4954, 64
        %v5048 = vpop.permute.xlu0 %5047
        %5051 = vrot.lane.b32.xlu0 %v4964, 80
        %v5052 = vpop.permute.xlu0 %5051
        %5055 = vrot.lane.b32.xlu0 %v4961, 96
        %v5056 = vpop.permute.xlu0 %5055
        %5059 = vrot.lane.b32.xlu0 %v4965, 112
        %v5060 = vpop.permute.xlu0 %5059
        %5063 = vrot.lane.b32.xlu0 %v5030, 16
        %v5064 = vpop.permute.xlu0 %5063
        %5067 = vrot.lane.b32.xlu0 %v5013, 32
        %v5068 = vpop.permute.xlu0 %5067
        %5071 = vrot.lane.b32.xlu0 %v5031, 48
        %v5072 = vpop.permute.xlu0 %5071
        %5075 = vrot.lane.b32.xlu0 %v5022, 64
        %v5076 = vpop.permute.xlu0 %5075
        %5079 = vrot.lane.b32.xlu0 %v5032, 80
        %v5080 = vpop.permute.xlu0 %5079
        %5083 = vrot.lane.b32.xlu0 %v5029, 96
        %v5084 = vpop.permute.xlu0 %5083
        %5087 = vrot.lane.b32.xlu0 %v5033, 112
        %v5088 = vpop.permute.xlu0 %5087
        %v5090 = vsel %vm1046, %v4938, %v5036
        %v5091 = vsel %vm1048, %v5090, %v5040
        %v5092 = vsel %vm1050, %v5091, %v5044
        %v5093 = vsel %vm1052, %v5092, %v5048
        %v5094 = vsel %vm1054, %v5093, %v5052
        %v5095 = vsel %vm1056, %v5094, %v5056
        %v5096 = vsel %vm1058, %v5095, %v5060
        %v5097 = vsel %vm1046, %v5006, %v5064
        %v5098 = vsel %vm1048, %v5097, %v5068
        %v5099 = vsel %vm1050, %v5098, %v5072
        %v5100 = vsel %vm1052, %v5099, %v5076
        %v5101 = vsel %vm1054, %v5100, %v5080
        %v5102 = vsel %vm1056, %v5101, %v5084
        %v5103 = vsel %vm1058, %v5102, %v5088
        %v5106 = vrot.slane %v5096, 4
        %v5107 = vrot.slane %v5103, 4
        %5110 = vst [vmem:[#allocation6 + $0x30] sm:$0xf0] %v5106
        %5111 = vst [vmem:[#allocation6 + $0x38] sm:$0xf0] %v5107
        %v5112 = vld [vmem:[#allocation5 + $0x1] sm:$0xff]
        %v5113 = vld [vmem:[#allocation5 + $0x9] sm:$0xff]
        %v5114 = vld [vmem:[#allocation5 + $0x19] sm:$0xff]
        %v5115 = vld [vmem:[#allocation5 + $0x21] sm:$0xff]
        %v5116 = vld [vmem:[#allocation5 + $0x31] sm:$0xff]
        %v5117 = vld [vmem:[#allocation5 + $0x39] sm:$0xff]
        %v5118 = vld [vmem:[#allocation5 + $0x49] sm:$0xff]
        %v5119 = vld [vmem:[#allocation5 + $0x51] sm:$0xff]
        %5128 = vrot.lane.b32.xlu0 %v5112, 125
        %v5129 = vpop.permute.xlu0 %5128
        %5130 = vrot.lane.b32.xlu0 %v5113, 125
        %v5131 = vpop.permute.xlu0 %5130
        %5132 = vrot.lane.b32.xlu0 %v5114, 125
        %v5133 = vpop.permute.xlu0 %5132
        %5134 = vrot.lane.b32.xlu0 %v5115, 125
        %v5135 = vpop.permute.xlu0 %5134
        %5136 = vrot.lane.b32.xlu0 %v5116, 125
        %v5137 = vpop.permute.xlu0 %5136
        %5138 = vrot.lane.b32.xlu0 %v5117, 125
        %v5139 = vpop.permute.xlu0 %5138
        %5140 = vrot.lane.b32.xlu0 %v5118, 125
        %v5141 = vpop.permute.xlu0 %5140
        %5142 = vrot.lane.b32.xlu0 %v5119, 125
        %v5143 = vpop.permute.xlu0 %5142
        %v5152 = vcombine.low %v5129, %v5137
        %v5153 = vcombine.high %v5129, %v5137
        %v5155 = vunpack.c.l.s4 1983009808
        %v5156 = vunpack.c.0.s8 %v5155
        %v5157 = vlaneseq
        %v5158 = vshrl.u32 %v5157, 7
        %v5159 = vsub.s32 %v5156, %v5158
        %v5160 = vrot.slane %v5152, %v5159
        %v5162 = vunpack.c.l.s4 1983009808
        %v5163 = vunpack.c.0.s8 %v5162
        %v5164 = vlaneseq
        %v5165 = vshrl.u32 %v5164, 7
        %v5166 = vsub.s32 %v5163, %v5165
        %v5167 = vrot.slane %v5153, %v5166
        %v5168 = vcombine.low %v5133, %v5141
        %v5169 = vcombine.high %v5133, %v5141
        %v5171 = vunpack.c.l.s4 1983009808
        %v5172 = vunpack.c.0.s8 %v5171
        %v5173 = vlaneseq
        %v5174 = vshrl.u32 %v5173, 7
        %v5175 = vsub.s32 %v5172, %v5174
        %v5176 = vrot.slane %v5168, %v5175
        %v5178 = vunpack.c.l.s4 1983009808
        %v5179 = vunpack.c.0.s8 %v5178
        %v5180 = vlaneseq
        %v5181 = vshrl.u32 %v5180, 7
        %v5182 = vsub.s32 %v5179, %v5181
        %v5183 = vrot.slane %v5169, %v5182
        %v5184 = vcombine.low %v5160, %v5176
        %v5185 = vcombine.high %v5160, %v5176
        %v5187 = vunpack.c.l.s4 1934713408
        %v5188 = vunpack.c.0.s8 %v5187
        %v5189 = vlaneseq
        %v5190 = vshrl.u32 %v5189, 7
        %v5191 = vsub.s32 %v5188, %v5190
        %v5192 = vrot.slane %v5184, %v5191
        %v5194 = vunpack.c.l.s4 1934713408
        %v5195 = vunpack.c.0.s8 %v5194
        %v5196 = vlaneseq
        %v5197 = vshrl.u32 %v5196, 7
        %v5198 = vsub.s32 %v5195, %v5197
        %v5199 = vrot.slane %v5185, %v5198
        %v5200 = vcombine.low %v5167, %v5183
        %v5201 = vcombine.high %v5167, %v5183
        %v5203 = vunpack.c.l.s4 1934713408
        %v5204 = vunpack.c.0.s8 %v5203
        %v5205 = vlaneseq
        %v5206 = vshrl.u32 %v5205, 7
        %v5207 = vsub.s32 %v5204, %v5206
        %v5208 = vrot.slane %v5200, %v5207
        %v5210 = vunpack.c.l.s4 1934713408
        %v5211 = vunpack.c.0.s8 %v5210
        %v5212 = vlaneseq
        %v5213 = vshrl.u32 %v5212, 7
        %v5214 = vsub.s32 %v5211, %v5213
        %v5215 = vrot.slane %v5201, %v5214
        %v5216 = vcombine.high %v5192, 0.0
        %v5217 = vcombine.high %v5199, 0.0
        %v5218 = vcombine.high %v5208, 0.0
        %v5219 = vcombine.high %v5215, 0.0
        %v5220 = vcombine.low %v5131, %v5139
        %v5221 = vcombine.high %v5131, %v5139
        %v5223 = vunpack.c.l.s4 1983009808
        %v5224 = vunpack.c.0.s8 %v5223
        %v5225 = vlaneseq
        %v5226 = vshrl.u32 %v5225, 7
        %v5227 = vsub.s32 %v5224, %v5226
        %v5228 = vrot.slane %v5220, %v5227
        %v5230 = vunpack.c.l.s4 1983009808
        %v5231 = vunpack.c.0.s8 %v5230
        %v5232 = vlaneseq
        %v5233 = vshrl.u32 %v5232, 7
        %v5234 = vsub.s32 %v5231, %v5233
        %v5235 = vrot.slane %v5221, %v5234
        %v5236 = vcombine.low %v5135, %v5143
        %v5237 = vcombine.high %v5135, %v5143
        %v5239 = vunpack.c.l.s4 1983009808
        %v5240 = vunpack.c.0.s8 %v5239
        %v5241 = vlaneseq
        %v5242 = vshrl.u32 %v5241, 7
        %v5243 = vsub.s32 %v5240, %v5242
        %v5244 = vrot.slane %v5236, %v5243
        %v5246 = vunpack.c.l.s4 1983009808
        %v5247 = vunpack.c.0.s8 %v5246
        %v5248 = vlaneseq
        %v5249 = vshrl.u32 %v5248, 7
        %v5250 = vsub.s32 %v5247, %v5249
        %v5251 = vrot.slane %v5237, %v5250
        %v5252 = vcombine.low %v5228, %v5244
        %v5253 = vcombine.high %v5228, %v5244
        %v5255 = vunpack.c.l.s4 1934713408
        %v5256 = vunpack.c.0.s8 %v5255
        %v5257 = vlaneseq
        %v5258 = vshrl.u32 %v5257, 7
        %v5259 = vsub.s32 %v5256, %v5258
        %v5260 = vrot.slane %v5252, %v5259
        %v5262 = vunpack.c.l.s4 1934713408
        %v5263 = vunpack.c.0.s8 %v5262
        %v5264 = vlaneseq
        %v5265 = vshrl.u32 %v5264, 7
        %v5266 = vsub.s32 %v5263, %v5265
        %v5267 = vrot.slane %v5253, %v5266
        %v5268 = vcombine.low %v5235, %v5251
        %v5269 = vcombine.high %v5235, %v5251
        %v5271 = vunpack.c.l.s4 1934713408
        %v5272 = vunpack.c.0.s8 %v5271
        %v5273 = vlaneseq
        %v5274 = vshrl.u32 %v5273, 7
        %v5275 = vsub.s32 %v5272, %v5274
        %v5276 = vrot.slane %v5268, %v5275
        %v5278 = vunpack.c.l.s4 1934713408
        %v5279 = vunpack.c.0.s8 %v5278
        %v5280 = vlaneseq
        %v5281 = vshrl.u32 %v5280, 7
        %v5282 = vsub.s32 %v5279, %v5281
        %v5283 = vrot.slane %v5269, %v5282
        %v5284 = vcombine.high %v5260, 0.0
        %v5285 = vcombine.high %v5267, 0.0
        %v5286 = vcombine.high %v5276, 0.0
        %v5287 = vcombine.high %v5283, 0.0
        %5289 = vrot.lane.b32.xlu0 %v5216, 16
        %v5290 = vpop.permute.xlu0 %5289
        %5293 = vrot.lane.b32.xlu0 %v5199, 32
        %v5294 = vpop.permute.xlu0 %5293
        %5297 = vrot.lane.b32.xlu0 %v5217, 48
        %v5298 = vpop.permute.xlu0 %5297
        %5301 = vrot.lane.b32.xlu0 %v5208, 64
        %v5302 = vpop.permute.xlu0 %5301
        %5305 = vrot.lane.b32.xlu0 %v5218, 80
        %v5306 = vpop.permute.xlu0 %5305
        %5309 = vrot.lane.b32.xlu0 %v5215, 96
        %v5310 = vpop.permute.xlu0 %5309
        %5313 = vrot.lane.b32.xlu0 %v5219, 112
        %v5314 = vpop.permute.xlu0 %5313
        %5317 = vrot.lane.b32.xlu0 %v5284, 16
        %v5318 = vpop.permute.xlu0 %5317
        %5321 = vrot.lane.b32.xlu0 %v5267, 32
        %v5322 = vpop.permute.xlu0 %5321
        %5325 = vrot.lane.b32.xlu0 %v5285, 48
        %v5326 = vpop.permute.xlu0 %5325
        %5329 = vrot.lane.b32.xlu0 %v5276, 64
        %v5330 = vpop.permute.xlu0 %5329
        %5333 = vrot.lane.b32.xlu0 %v5286, 80
        %v5334 = vpop.permute.xlu0 %5333
        %5337 = vrot.lane.b32.xlu0 %v5283, 96
        %v5338 = vpop.permute.xlu0 %5337
        %5341 = vrot.lane.b32.xlu0 %v5287, 112
        %v5342 = vpop.permute.xlu0 %5341
        %v5344 = vsel %vm1046, %v5192, %v5290
        %v5345 = vsel %vm1048, %v5344, %v5294
        %v5346 = vsel %vm1050, %v5345, %v5298
        %v5347 = vsel %vm1052, %v5346, %v5302
        %v5348 = vsel %vm1054, %v5347, %v5306
        %v5349 = vsel %vm1056, %v5348, %v5310
        %v5350 = vsel %vm1058, %v5349, %v5314
        %v5351 = vsel %vm1046, %v5260, %v5318
        %v5352 = vsel %vm1048, %v5351, %v5322
        %v5353 = vsel %vm1050, %v5352, %v5326
        %v5354 = vsel %vm1052, %v5353, %v5330
        %v5355 = vsel %vm1054, %v5354, %v5334
        %v5356 = vsel %vm1056, %v5355, %v5338
        %v5357 = vsel %vm1058, %v5356, %v5342
        %5358 = vst [vmem:[#allocation6 + $0x40] sm:$0xf] %v5350
        %5359 = vst [vmem:[#allocation6 + $0x48] sm:$0xf] %v5357
        %v5360 = vld [vmem:[#allocation5 + $0x1] sm:$0xff]
        %v5361 = vld [vmem:[#allocation5 + $0x9] sm:$0xff]
        %v5362 = vld [vmem:[#allocation5 + $0x19] sm:$0xff]
        %v5363 = vld [vmem:[#allocation5 + $0x21] sm:$0xff]
        %v5364 = vld [vmem:[#allocation5 + $0x31] sm:$0xff]
        %v5365 = vld [vmem:[#allocation5 + $0x39] sm:$0xff]
        %v5366 = vld [vmem:[#allocation5 + $0x49] sm:$0xff]
        %v5367 = vld [vmem:[#allocation5 + $0x51] sm:$0xff]
        %5376 = vrot.lane.b32.xlu0 %v5360, 124
        %v5377 = vpop.permute.xlu0 %5376
        %5378 = vrot.lane.b32.xlu0 %v5361, 124
        %v5379 = vpop.permute.xlu0 %5378
        %5380 = vrot.lane.b32.xlu0 %v5362, 124
        %v5381 = vpop.permute.xlu0 %5380
        %5382 = vrot.lane.b32.xlu0 %v5363, 124
        %v5383 = vpop.permute.xlu0 %5382
        %5384 = vrot.lane.b32.xlu0 %v5364, 124
        %v5385 = vpop.permute.xlu0 %5384
        %5386 = vrot.lane.b32.xlu0 %v5365, 124
        %v5387 = vpop.permute.xlu0 %5386
        %5388 = vrot.lane.b32.xlu0 %v5366, 124
        %v5389 = vpop.permute.xlu0 %5388
        %5390 = vrot.lane.b32.xlu0 %v5367, 124
        %v5391 = vpop.permute.xlu0 %5390
        %v5400 = vcombine.low %v5377, %v5385
        %v5401 = vcombine.high %v5377, %v5385
        %v5403 = vunpack.c.l.s4 1983009808
        %v5404 = vunpack.c.0.s8 %v5403
        %v5405 = vlaneseq
        %v5406 = vshrl.u32 %v5405, 7
        %v5407 = vsub.s32 %v5404, %v5406
        %v5408 = vrot.slane %v5400, %v5407
        %v5410 = vunpack.c.l.s4 1983009808
        %v5411 = vunpack.c.0.s8 %v5410
        %v5412 = vlaneseq
        %v5413 = vshrl.u32 %v5412, 7
        %v5414 = vsub.s32 %v5411, %v5413
        %v5415 = vrot.slane %v5401, %v5414
        %v5416 = vcombine.low %v5381, %v5389
        %v5417 = vcombine.high %v5381, %v5389
        %v5419 = vunpack.c.l.s4 1983009808
        %v5420 = vunpack.c.0.s8 %v5419
        %v5421 = vlaneseq
        %v5422 = vshrl.u32 %v5421, 7
        %v5423 = vsub.s32 %v5420, %v5422
        %v5424 = vrot.slane %v5416, %v5423
        %v5426 = vunpack.c.l.s4 1983009808
        %v5427 = vunpack.c.0.s8 %v5426
        %v5428 = vlaneseq
        %v5429 = vshrl.u32 %v5428, 7
        %v5430 = vsub.s32 %v5427, %v5429
        %v5431 = vrot.slane %v5417, %v5430
        %v5432 = vcombine.low %v5408, %v5424
        %v5433 = vcombine.high %v5408, %v5424
        %v5435 = vunpack.c.l.s4 1934713408
        %v5436 = vunpack.c.0.s8 %v5435
        %v5437 = vlaneseq
        %v5438 = vshrl.u32 %v5437, 7
        %v5439 = vsub.s32 %v5436, %v5438
        %v5440 = vrot.slane %v5432, %v5439
        %v5442 = vunpack.c.l.s4 1934713408
        %v5443 = vunpack.c.0.s8 %v5442
        %v5444 = vlaneseq
        %v5445 = vshrl.u32 %v5444, 7
        %v5446 = vsub.s32 %v5443, %v5445
        %v5447 = vrot.slane %v5433, %v5446
        %v5448 = vcombine.low %v5415, %v5431
        %v5449 = vcombine.high %v5415, %v5431
        %v5451 = vunpack.c.l.s4 1934713408
        %v5452 = vunpack.c.0.s8 %v5451
        %v5453 = vlaneseq
        %v5454 = vshrl.u32 %v5453, 7
        %v5455 = vsub.s32 %v5452, %v5454
        %v5456 = vrot.slane %v5448, %v5455
        %v5458 = vunpack.c.l.s4 1934713408
        %v5459 = vunpack.c.0.s8 %v5458
        %v5460 = vlaneseq
        %v5461 = vshrl.u32 %v5460, 7
        %v5462 = vsub.s32 %v5459, %v5461
        %v5463 = vrot.slane %v5449, %v5462
        %v5464 = vcombine.high %v5440, 0.0
        %v5465 = vcombine.high %v5447, 0.0
        %v5466 = vcombine.high %v5456, 0.0
        %v5467 = vcombine.high %v5463, 0.0
        %v5468 = vcombine.low %v5379, %v5387
        %v5469 = vcombine.high %v5379, %v5387
        %v5471 = vunpack.c.l.s4 1983009808
        %v5472 = vunpack.c.0.s8 %v5471
        %v5473 = vlaneseq
        %v5474 = vshrl.u32 %v5473, 7
        %v5475 = vsub.s32 %v5472, %v5474
        %v5476 = vrot.slane %v5468, %v5475
        %v5478 = vunpack.c.l.s4 1983009808
        %v5479 = vunpack.c.0.s8 %v5478
        %v5480 = vlaneseq
        %v5481 = vshrl.u32 %v5480, 7
        %v5482 = vsub.s32 %v5479, %v5481
        %v5483 = vrot.slane %v5469, %v5482
        %v5484 = vcombine.low %v5383, %v5391
        %v5485 = vcombine.high %v5383, %v5391
        %v5487 = vunpack.c.l.s4 1983009808
        %v5488 = vunpack.c.0.s8 %v5487
        %v5489 = vlaneseq
        %v5490 = vshrl.u32 %v5489, 7
        %v5491 = vsub.s32 %v5488, %v5490
        %v5492 = vrot.slane %v5484, %v5491
        %v5494 = vunpack.c.l.s4 1983009808
        %v5495 = vunpack.c.0.s8 %v5494
        %v5496 = vlaneseq
        %v5497 = vshrl.u32 %v5496, 7
        %v5498 = vsub.s32 %v5495, %v5497
        %v5499 = vrot.slane %v5485, %v5498
        %v5500 = vcombine.low %v5476, %v5492
        %v5501 = vcombine.high %v5476, %v5492
        %v5503 = vunpack.c.l.s4 1934713408
        %v5504 = vunpack.c.0.s8 %v5503
        %v5505 = vlaneseq
        %v5506 = vshrl.u32 %v5505, 7
        %v5507 = vsub.s32 %v5504, %v5506
        %v5508 = vrot.slane %v5500, %v5507
        %v5510 = vunpack.c.l.s4 1934713408
        %v5511 = vunpack.c.0.s8 %v5510
        %v5512 = vlaneseq
        %v5513 = vshrl.u32 %v5512, 7
        %v5514 = vsub.s32 %v5511, %v5513
        %v5515 = vrot.slane %v5501, %v5514
        %v5516 = vcombine.low %v5483, %v5499
        %v5517 = vcombine.high %v5483, %v5499
        %v5519 = vunpack.c.l.s4 1934713408
        %v5520 = vunpack.c.0.s8 %v5519
        %v5521 = vlaneseq
        %v5522 = vshrl.u32 %v5521, 7
        %v5523 = vsub.s32 %v5520, %v5522
        %v5524 = vrot.slane %v5516, %v5523
        %v5526 = vunpack.c.l.s4 1934713408
        %v5527 = vunpack.c.0.s8 %v5526
        %v5528 = vlaneseq
        %v5529 = vshrl.u32 %v5528, 7
        %v5530 = vsub.s32 %v5527, %v5529
        %v5531 = vrot.slane %v5517, %v5530
        %v5532 = vcombine.high %v5508, 0.0
        %v5533 = vcombine.high %v5515, 0.0
        %v5534 = vcombine.high %v5524, 0.0
        %v5535 = vcombine.high %v5531, 0.0
        %5537 = vrot.lane.b32.xlu0 %v5464, 16
        %v5538 = vpop.permute.xlu0 %5537
        %5541 = vrot.lane.b32.xlu0 %v5447, 32
        %v5542 = vpop.permute.xlu0 %5541
        %5545 = vrot.lane.b32.xlu0 %v5465, 48
        %v5546 = vpop.permute.xlu0 %5545
        %5549 = vrot.lane.b32.xlu0 %v5456, 64
        %v5550 = vpop.permute.xlu0 %5549
        %5553 = vrot.lane.b32.xlu0 %v5466, 80
        %v5554 = vpop.permute.xlu0 %5553
        %5557 = vrot.lane.b32.xlu0 %v5463, 96
        %v5558 = vpop.permute.xlu0 %5557
        %5561 = vrot.lane.b32.xlu0 %v5467, 112
        %v5562 = vpop.permute.xlu0 %5561
        %5565 = vrot.lane.b32.xlu0 %v5532, 16
        %v5566 = vpop.permute.xlu0 %5565
        %5569 = vrot.lane.b32.xlu0 %v5515, 32
        %v5570 = vpop.permute.xlu0 %5569
        %5573 = vrot.lane.b32.xlu0 %v5533, 48
        %v5574 = vpop.permute.xlu0 %5573
        %5577 = vrot.lane.b32.xlu0 %v5524, 64
        %v5578 = vpop.permute.xlu0 %5577
        %5581 = vrot.lane.b32.xlu0 %v5534, 80
        %v5582 = vpop.permute.xlu0 %5581
        %5585 = vrot.lane.b32.xlu0 %v5531, 96
        %v5586 = vpop.permute.xlu0 %5585
        %5589 = vrot.lane.b32.xlu0 %v5535, 112
        %v5590 = vpop.permute.xlu0 %5589
        %v5592 = vsel %vm1046, %v5440, %v5538
        %v5593 = vsel %vm1048, %v5592, %v5542
        %v5594 = vsel %vm1050, %v5593, %v5546
        %v5595 = vsel %vm1052, %v5594, %v5550
        %v5596 = vsel %vm1054, %v5595, %v5554
        %v5597 = vsel %vm1056, %v5596, %v5558
        %v5598 = vsel %vm1058, %v5597, %v5562
        %v5599 = vsel %vm1046, %v5508, %v5566
        %v5600 = vsel %vm1048, %v5599, %v5570
        %v5601 = vsel %vm1050, %v5600, %v5574
        %v5602 = vsel %vm1052, %v5601, %v5578
        %v5603 = vsel %vm1054, %v5602, %v5582
        %v5604 = vsel %vm1056, %v5603, %v5586
        %v5605 = vsel %vm1058, %v5604, %v5590
        %v5608 = vrot.slane %v5598, 4
        %v5609 = vrot.slane %v5605, 4
        %5612 = vst [vmem:[#allocation6 + $0x40] sm:$0xf0] %v5608
        %5613 = vst [vmem:[#allocation6 + $0x48] sm:$0xf0] %v5609
        %v5614 = vld [vmem:[#allocation5 + $0x2] sm:$0xff]
        %v5615 = vld [vmem:[#allocation5 + $0xa] sm:$0xff]
        %v5616 = vld [vmem:[#allocation5 + $0x1a] sm:$0xff]
        %v5617 = vld [vmem:[#allocation5 + $0x22] sm:$0xff]
        %v5618 = vld [vmem:[#allocation5 + $0x32] sm:$0xff]
        %v5619 = vld [vmem:[#allocation5 + $0x3a] sm:$0xff]
        %v5620 = vld [vmem:[#allocation5 + $0x4a] sm:$0xff]
        %v5621 = vld [vmem:[#allocation5 + $0x52] sm:$0xff]
        %v5622 = vcombine.low %v5614, %v5618
        %v5623 = vcombine.high %v5614, %v5618
        %v5625 = vunpack.c.l.s4 1983009808
        %v5626 = vunpack.c.0.s8 %v5625
        %v5627 = vlaneseq
        %v5628 = vshrl.u32 %v5627, 7
        %v5629 = vsub.s32 %v5626, %v5628
        %v5630 = vrot.slane %v5622, %v5629
        %v5632 = vunpack.c.l.s4 1983009808
        %v5633 = vunpack.c.0.s8 %v5632
        %v5634 = vlaneseq
        %v5635 = vshrl.u32 %v5634, 7
        %v5636 = vsub.s32 %v5633, %v5635
        %v5637 = vrot.slane %v5623, %v5636
        %v5638 = vcombine.low %v5616, %v5620
        %v5639 = vcombine.high %v5616, %v5620
        %v5641 = vunpack.c.l.s4 1983009808
        %v5642 = vunpack.c.0.s8 %v5641
        %v5643 = vlaneseq
        %v5644 = vshrl.u32 %v5643, 7
        %v5645 = vsub.s32 %v5642, %v5644
        %v5646 = vrot.slane %v5638, %v5645
        %v5648 = vunpack.c.l.s4 1983009808
        %v5649 = vunpack.c.0.s8 %v5648
        %v5650 = vlaneseq
        %v5651 = vshrl.u32 %v5650, 7
        %v5652 = vsub.s32 %v5649, %v5651
        %v5653 = vrot.slane %v5639, %v5652
        %v5654 = vcombine.low %v5630, %v5646
        %v5655 = vcombine.high %v5630, %v5646
        %v5657 = vunpack.c.l.s4 1934713408
        %v5658 = vunpack.c.0.s8 %v5657
        %v5659 = vlaneseq
        %v5660 = vshrl.u32 %v5659, 7
        %v5661 = vsub.s32 %v5658, %v5660
        %v5662 = vrot.slane %v5654, %v5661
        %v5664 = vunpack.c.l.s4 1934713408
        %v5665 = vunpack.c.0.s8 %v5664
        %v5666 = vlaneseq
        %v5667 = vshrl.u32 %v5666, 7
        %v5668 = vsub.s32 %v5665, %v5667
        %v5669 = vrot.slane %v5655, %v5668
        %v5670 = vcombine.low %v5637, %v5653
        %v5671 = vcombine.high %v5637, %v5653
        %v5673 = vunpack.c.l.s4 1934713408
        %v5674 = vunpack.c.0.s8 %v5673
        %v5675 = vlaneseq
        %v5676 = vshrl.u32 %v5675, 7
        %v5677 = vsub.s32 %v5674, %v5676
        %v5678 = vrot.slane %v5670, %v5677
        %v5680 = vunpack.c.l.s4 1934713408
        %v5681 = vunpack.c.0.s8 %v5680
        %v5682 = vlaneseq
        %v5683 = vshrl.u32 %v5682, 7
        %v5684 = vsub.s32 %v5681, %v5683
        %v5685 = vrot.slane %v5671, %v5684
        %v5686 = vcombine.high %v5662, 0.0
        %v5687 = vcombine.high %v5669, 0.0
        %v5688 = vcombine.high %v5678, 0.0
        %v5689 = vcombine.high %v5685, 0.0
        %v5690 = vcombine.low %v5615, %v5619
        %v5691 = vcombine.high %v5615, %v5619
        %v5693 = vunpack.c.l.s4 1983009808
        %v5694 = vunpack.c.0.s8 %v5693
        %v5695 = vlaneseq
        %v5696 = vshrl.u32 %v5695, 7
        %v5697 = vsub.s32 %v5694, %v5696
        %v5698 = vrot.slane %v5690, %v5697
        %v5700 = vunpack.c.l.s4 1983009808
        %v5701 = vunpack.c.0.s8 %v5700
        %v5702 = vlaneseq
        %v5703 = vshrl.u32 %v5702, 7
        %v5704 = vsub.s32 %v5701, %v5703
        %v5705 = vrot.slane %v5691, %v5704
        %v5706 = vcombine.low %v5617, %v5621
        %v5707 = vcombine.high %v5617, %v5621
        %v5709 = vunpack.c.l.s4 1983009808
        %v5710 = vunpack.c.0.s8 %v5709
        %v5711 = vlaneseq
        %v5712 = vshrl.u32 %v5711, 7
        %v5713 = vsub.s32 %v5710, %v5712
        %v5714 = vrot.slane %v5706, %v5713
        %v5716 = vunpack.c.l.s4 1983009808
        %v5717 = vunpack.c.0.s8 %v5716
        %v5718 = vlaneseq
        %v5719 = vshrl.u32 %v5718, 7
        %v5720 = vsub.s32 %v5717, %v5719
        %v5721 = vrot.slane %v5707, %v5720
        %v5722 = vcombine.low %v5698, %v5714
        %v5723 = vcombine.high %v5698, %v5714
        %v5725 = vunpack.c.l.s4 1934713408
        %v5726 = vunpack.c.0.s8 %v5725
        %v5727 = vlaneseq
        %v5728 = vshrl.u32 %v5727, 7
        %v5729 = vsub.s32 %v5726, %v5728
        %v5730 = vrot.slane %v5722, %v5729
        %v5732 = vunpack.c.l.s4 1934713408
        %v5733 = vunpack.c.0.s8 %v5732
        %v5734 = vlaneseq
        %v5735 = vshrl.u32 %v5734, 7
        %v5736 = vsub.s32 %v5733, %v5735
        %v5737 = vrot.slane %v5723, %v5736
        %v5738 = vcombine.low %v5705, %v5721
        %v5739 = vcombine.high %v5705, %v5721
        %v5741 = vunpack.c.l.s4 1934713408
        %v5742 = vunpack.c.0.s8 %v5741
        %v5743 = vlaneseq
        %v5744 = vshrl.u32 %v5743, 7
        %v5745 = vsub.s32 %v5742, %v5744
        %v5746 = vrot.slane %v5738, %v5745
        %v5748 = vunpack.c.l.s4 1934713408
        %v5749 = vunpack.c.0.s8 %v5748
        %v5750 = vlaneseq
        %v5751 = vshrl.u32 %v5750, 7
        %v5752 = vsub.s32 %v5749, %v5751
        %v5753 = vrot.slane %v5739, %v5752
        %v5754 = vcombine.high %v5730, 0.0
        %v5755 = vcombine.high %v5737, 0.0
        %v5756 = vcombine.high %v5746, 0.0
        %v5757 = vcombine.high %v5753, 0.0
        %5759 = vrot.lane.b32.xlu0 %v5686, 16
        %v5760 = vpop.permute.xlu0 %5759
        %5763 = vrot.lane.b32.xlu0 %v5669, 32
        %v5764 = vpop.permute.xlu0 %5763
        %5767 = vrot.lane.b32.xlu0 %v5687, 48
        %v5768 = vpop.permute.xlu0 %5767
        %5771 = vrot.lane.b32.xlu0 %v5678, 64
        %v5772 = vpop.permute.xlu0 %5771
        %5775 = vrot.lane.b32.xlu0 %v5688, 80
        %v5776 = vpop.permute.xlu0 %5775
        %5779 = vrot.lane.b32.xlu0 %v5685, 96
        %v5780 = vpop.permute.xlu0 %5779
        %5783 = vrot.lane.b32.xlu0 %v5689, 112
        %v5784 = vpop.permute.xlu0 %5783
        %5787 = vrot.lane.b32.xlu0 %v5754, 16
        %v5788 = vpop.permute.xlu0 %5787
        %5791 = vrot.lane.b32.xlu0 %v5737, 32
        %v5792 = vpop.permute.xlu0 %5791
        %5795 = vrot.lane.b32.xlu0 %v5755, 48
        %v5796 = vpop.permute.xlu0 %5795
        %5799 = vrot.lane.b32.xlu0 %v5746, 64
        %v5800 = vpop.permute.xlu0 %5799
        %5803 = vrot.lane.b32.xlu0 %v5756, 80
        %v5804 = vpop.permute.xlu0 %5803
        %5807 = vrot.lane.b32.xlu0 %v5753, 96
        %v5808 = vpop.permute.xlu0 %5807
        %5811 = vrot.lane.b32.xlu0 %v5757, 112
        %v5812 = vpop.permute.xlu0 %5811
        %v5814 = vsel %vm1046, %v5662, %v5760
        %v5815 = vsel %vm1048, %v5814, %v5764
        %v5816 = vsel %vm1050, %v5815, %v5768
        %v5817 = vsel %vm1052, %v5816, %v5772
        %v5818 = vsel %vm1054, %v5817, %v5776
        %v5819 = vsel %vm1056, %v5818, %v5780
        %v5820 = vsel %vm1058, %v5819, %v5784
        %v5821 = vsel %vm1046, %v5730, %v5788
        %v5822 = vsel %vm1048, %v5821, %v5792
        %v5823 = vsel %vm1050, %v5822, %v5796
        %v5824 = vsel %vm1052, %v5823, %v5800
        %v5825 = vsel %vm1054, %v5824, %v5804
        %v5826 = vsel %vm1056, %v5825, %v5808
        %v5827 = vsel %vm1058, %v5826, %v5812
        %5828 = vst [vmem:[#allocation6 + $0x50] sm:$0xf] %v5820
        %5829 = vst [vmem:[#allocation6 + $0x58] sm:$0xf] %v5827
        %v5830 = vld [vmem:[#allocation5 + $0x2] sm:$0xff]
        %v5831 = vld [vmem:[#allocation5 + $0xa] sm:$0xff]
        %v5832 = vld [vmem:[#allocation5 + $0x1a] sm:$0xff]
        %v5833 = vld [vmem:[#allocation5 + $0x22] sm:$0xff]
        %v5834 = vld [vmem:[#allocation5 + $0x32] sm:$0xff]
        %v5835 = vld [vmem:[#allocation5 + $0x3a] sm:$0xff]
        %v5836 = vld [vmem:[#allocation5 + $0x4a] sm:$0xff]
        %v5837 = vld [vmem:[#allocation5 + $0x52] sm:$0xff]
        %5846 = vrot.lane.b32.xlu0 %v5830, 127
        %v5847 = vpop.permute.xlu0 %5846
        %5848 = vrot.lane.b32.xlu0 %v5831, 127
        %v5849 = vpop.permute.xlu0 %5848
        %5850 = vrot.lane.b32.xlu0 %v5832, 127
        %v5851 = vpop.permute.xlu0 %5850
        %5852 = vrot.lane.b32.xlu0 %v5833, 127
        %v5853 = vpop.permute.xlu0 %5852
        %5854 = vrot.lane.b32.xlu0 %v5834, 127
        %v5855 = vpop.permute.xlu0 %5854
        %5856 = vrot.lane.b32.xlu0 %v5835, 127
        %v5857 = vpop.permute.xlu0 %5856
        %5858 = vrot.lane.b32.xlu0 %v5836, 127
        %v5859 = vpop.permute.xlu0 %5858
        %5860 = vrot.lane.b32.xlu0 %v5837, 127
        %v5861 = vpop.permute.xlu0 %5860
        %v5870 = vcombine.low %v5847, %v5855
        %v5871 = vcombine.high %v5847, %v5855
        %v5873 = vunpack.c.l.s4 1983009808
        %v5874 = vunpack.c.0.s8 %v5873
        %v5875 = vlaneseq
        %v5876 = vshrl.u32 %v5875, 7
        %v5877 = vsub.s32 %v5874, %v5876
        %v5878 = vrot.slane %v5870, %v5877
        %v5880 = vunpack.c.l.s4 1983009808
        %v5881 = vunpack.c.0.s8 %v5880
        %v5882 = vlaneseq
        %v5883 = vshrl.u32 %v5882, 7
        %v5884 = vsub.s32 %v5881, %v5883
        %v5885 = vrot.slane %v5871, %v5884
        %v5886 = vcombine.low %v5851, %v5859
        %v5887 = vcombine.high %v5851, %v5859
        %v5889 = vunpack.c.l.s4 1983009808
        %v5890 = vunpack.c.0.s8 %v5889
        %v5891 = vlaneseq
        %v5892 = vshrl.u32 %v5891, 7
        %v5893 = vsub.s32 %v5890, %v5892
        %v5894 = vrot.slane %v5886, %v5893
        %v5896 = vunpack.c.l.s4 1983009808
        %v5897 = vunpack.c.0.s8 %v5896
        %v5898 = vlaneseq
        %v5899 = vshrl.u32 %v5898, 7
        %v5900 = vsub.s32 %v5897, %v5899
        %v5901 = vrot.slane %v5887, %v5900
        %v5902 = vcombine.low %v5878, %v5894
        %v5903 = vcombine.high %v5878, %v5894
        %v5905 = vunpack.c.l.s4 1934713408
        %v5906 = vunpack.c.0.s8 %v5905
        %v5907 = vlaneseq
        %v5908 = vshrl.u32 %v5907, 7
        %v5909 = vsub.s32 %v5906, %v5908
        %v5910 = vrot.slane %v5902, %v5909
        %v5912 = vunpack.c.l.s4 1934713408
        %v5913 = vunpack.c.0.s8 %v5912
        %v5914 = vlaneseq
        %v5915 = vshrl.u32 %v5914, 7
        %v5916 = vsub.s32 %v5913, %v5915
        %v5917 = vrot.slane %v5903, %v5916
        %v5918 = vcombine.low %v5885, %v5901
        %v5919 = vcombine.high %v5885, %v5901
        %v5921 = vunpack.c.l.s4 1934713408
        %v5922 = vunpack.c.0.s8 %v5921
        %v5923 = vlaneseq
        %v5924 = vshrl.u32 %v5923, 7
        %v5925 = vsub.s32 %v5922, %v5924
        %v5926 = vrot.slane %v5918, %v5925
        %v5928 = vunpack.c.l.s4 1934713408
        %v5929 = vunpack.c.0.s8 %v5928
        %v5930 = vlaneseq
        %v5931 = vshrl.u32 %v5930, 7
        %v5932 = vsub.s32 %v5929, %v5931
        %v5933 = vrot.slane %v5919, %v5932
        %v5934 = vcombine.high %v5910, 0.0
        %v5935 = vcombine.high %v5917, 0.0
        %v5936 = vcombine.high %v5926, 0.0
        %v5937 = vcombine.high %v5933, 0.0
        %v5938 = vcombine.low %v5849, %v5857
        %v5939 = vcombine.high %v5849, %v5857
        %v5941 = vunpack.c.l.s4 1983009808
        %v5942 = vunpack.c.0.s8 %v5941
        %v5943 = vlaneseq
        %v5944 = vshrl.u32 %v5943, 7
        %v5945 = vsub.s32 %v5942, %v5944
        %v5946 = vrot.slane %v5938, %v5945
        %v5948 = vunpack.c.l.s4 1983009808
        %v5949 = vunpack.c.0.s8 %v5948
        %v5950 = vlaneseq
        %v5951 = vshrl.u32 %v5950, 7
        %v5952 = vsub.s32 %v5949, %v5951
        %v5953 = vrot.slane %v5939, %v5952
        %v5954 = vcombine.low %v5853, %v5861
        %v5955 = vcombine.high %v5853, %v5861
        %v5957 = vunpack.c.l.s4 1983009808
        %v5958 = vunpack.c.0.s8 %v5957
        %v5959 = vlaneseq
        %v5960 = vshrl.u32 %v5959, 7
        %v5961 = vsub.s32 %v5958, %v5960
        %v5962 = vrot.slane %v5954, %v5961
        %v5964 = vunpack.c.l.s4 1983009808
        %v5965 = vunpack.c.0.s8 %v5964
        %v5966 = vlaneseq
        %v5967 = vshrl.u32 %v5966, 7
        %v5968 = vsub.s32 %v5965, %v5967
        %v5969 = vrot.slane %v5955, %v5968
        %v5970 = vcombine.low %v5946, %v5962
        %v5971 = vcombine.high %v5946, %v5962
        %v5973 = vunpack.c.l.s4 1934713408
        %v5974 = vunpack.c.0.s8 %v5973
        %v5975 = vlaneseq
        %v5976 = vshrl.u32 %v5975, 7
        %v5977 = vsub.s32 %v5974, %v5976
        %v5978 = vrot.slane %v5970, %v5977
        %v5980 = vunpack.c.l.s4 1934713408
        %v5981 = vunpack.c.0.s8 %v5980
        %v5982 = vlaneseq
        %v5983 = vshrl.u32 %v5982, 7
        %v5984 = vsub.s32 %v5981, %v5983
        %v5985 = vrot.slane %v5971, %v5984
        %v5986 = vcombine.low %v5953, %v5969
        %v5987 = vcombine.high %v5953, %v5969
        %v5989 = vunpack.c.l.s4 1934713408
        %v5990 = vunpack.c.0.s8 %v5989
        %v5991 = vlaneseq
        %v5992 = vshrl.u32 %v5991, 7
        %v5993 = vsub.s32 %v5990, %v5992
        %v5994 = vrot.slane %v5986, %v5993
        %v5996 = vunpack.c.l.s4 1934713408
        %v5997 = vunpack.c.0.s8 %v5996
        %v5998 = vlaneseq
        %v5999 = vshrl.u32 %v5998, 7
        %v6000 = vsub.s32 %v5997, %v5999
        %v6001 = vrot.slane %v5987, %v6000
        %v6002 = vcombine.high %v5978, 0.0
        %v6003 = vcombine.high %v5985, 0.0
        %v6004 = vcombine.high %v5994, 0.0
        %v6005 = vcombine.high %v6001, 0.0
        %6007 = vrot.lane.b32.xlu0 %v5934, 16
        %v6008 = vpop.permute.xlu0 %6007
        %6011 = vrot.lane.b32.xlu0 %v5917, 32
        %v6012 = vpop.permute.xlu0 %6011
        %6015 = vrot.lane.b32.xlu0 %v5935, 48
        %v6016 = vpop.permute.xlu0 %6015
        %6019 = vrot.lane.b32.xlu0 %v5926, 64
        %v6020 = vpop.permute.xlu0 %6019
        %6023 = vrot.lane.b32.xlu0 %v5936, 80
        %v6024 = vpop.permute.xlu0 %6023
        %6027 = vrot.lane.b32.xlu0 %v5933, 96
        %v6028 = vpop.permute.xlu0 %6027
        %6031 = vrot.lane.b32.xlu0 %v5937, 112
        %v6032 = vpop.permute.xlu0 %6031
        %6035 = vrot.lane.b32.xlu0 %v6002, 16
        %v6036 = vpop.permute.xlu0 %6035
        %6039 = vrot.lane.b32.xlu0 %v5985, 32
        %v6040 = vpop.permute.xlu0 %6039
        %6043 = vrot.lane.b32.xlu0 %v6003, 48
        %v6044 = vpop.permute.xlu0 %6043
        %6047 = vrot.lane.b32.xlu0 %v5994, 64
        %v6048 = vpop.permute.xlu0 %6047
        %6051 = vrot.lane.b32.xlu0 %v6004, 80
        %v6052 = vpop.permute.xlu0 %6051
        %6055 = vrot.lane.b32.xlu0 %v6001, 96
        %v6056 = vpop.permute.xlu0 %6055
        %6059 = vrot.lane.b32.xlu0 %v6005, 112
        %v6060 = vpop.permute.xlu0 %6059
        %v6062 = vsel %vm1046, %v5910, %v6008
        %v6063 = vsel %vm1048, %v6062, %v6012
        %v6064 = vsel %vm1050, %v6063, %v6016
        %v6065 = vsel %vm1052, %v6064, %v6020
        %v6066 = vsel %vm1054, %v6065, %v6024
        %v6067 = vsel %vm1056, %v6066, %v6028
        %v6068 = vsel %vm1058, %v6067, %v6032
        %v6069 = vsel %vm1046, %v5978, %v6036
        %v6070 = vsel %vm1048, %v6069, %v6040
        %v6071 = vsel %vm1050, %v6070, %v6044
        %v6072 = vsel %vm1052, %v6071, %v6048
        %v6073 = vsel %vm1054, %v6072, %v6052
        %v6074 = vsel %vm1056, %v6073, %v6056
        %v6075 = vsel %vm1058, %v6074, %v6060
        %v6078 = vrot.slane %v6068, 4
        %v6079 = vrot.slane %v6075, 4
        %6082 = vst [vmem:[#allocation6 + $0x50] sm:$0xf0] %v6078
        %6083 = vst [vmem:[#allocation6 + $0x58] sm:$0xf0] %v6079
        %v6084 = vld [vmem:[#allocation5 + $0x2] sm:$0xff]
        %v6085 = vld [vmem:[#allocation5 + $0xa] sm:$0xff]
        %v6086 = vld [vmem:[#allocation5 + $0x1a] sm:$0xff]
        %v6087 = vld [vmem:[#allocation5 + $0x22] sm:$0xff]
        %v6088 = vld [vmem:[#allocation5 + $0x32] sm:$0xff]
        %v6089 = vld [vmem:[#allocation5 + $0x3a] sm:$0xff]
        %v6090 = vld [vmem:[#allocation5 + $0x4a] sm:$0xff]
        %v6091 = vld [vmem:[#allocation5 + $0x52] sm:$0xff]
        %6100 = vrot.lane.b32.xlu0 %v6084, 126
        %v6101 = vpop.permute.xlu0 %6100
        %6102 = vrot.lane.b32.xlu0 %v6085, 126
        %v6103 = vpop.permute.xlu0 %6102
        %6104 = vrot.lane.b32.xlu0 %v6086, 126
        %v6105 = vpop.permute.xlu0 %6104
        %6106 = vrot.lane.b32.xlu0 %v6087, 126
        %v6107 = vpop.permute.xlu0 %6106
        %6108 = vrot.lane.b32.xlu0 %v6088, 126
        %v6109 = vpop.permute.xlu0 %6108
        %6110 = vrot.lane.b32.xlu0 %v6089, 126
        %v6111 = vpop.permute.xlu0 %6110
        %6112 = vrot.lane.b32.xlu0 %v6090, 126
        %v6113 = vpop.permute.xlu0 %6112
        %6114 = vrot.lane.b32.xlu0 %v6091, 126
        %v6115 = vpop.permute.xlu0 %6114
        %v6124 = vcombine.low %v6101, %v6109
        %v6125 = vcombine.high %v6101, %v6109
        %v6127 = vunpack.c.l.s4 1983009808
        %v6128 = vunpack.c.0.s8 %v6127
        %v6129 = vlaneseq
        %v6130 = vshrl.u32 %v6129, 7
        %v6131 = vsub.s32 %v6128, %v6130
        %v6132 = vrot.slane %v6124, %v6131
        %v6134 = vunpack.c.l.s4 1983009808
        %v6135 = vunpack.c.0.s8 %v6134
        %v6136 = vlaneseq
        %v6137 = vshrl.u32 %v6136, 7
        %v6138 = vsub.s32 %v6135, %v6137
        %v6139 = vrot.slane %v6125, %v6138
        %v6140 = vcombine.low %v6105, %v6113
        %v6141 = vcombine.high %v6105, %v6113
        %v6143 = vunpack.c.l.s4 1983009808
        %v6144 = vunpack.c.0.s8 %v6143
        %v6145 = vlaneseq
        %v6146 = vshrl.u32 %v6145, 7
        %v6147 = vsub.s32 %v6144, %v6146
        %v6148 = vrot.slane %v6140, %v6147
        %v6150 = vunpack.c.l.s4 1983009808
        %v6151 = vunpack.c.0.s8 %v6150
        %v6152 = vlaneseq
        %v6153 = vshrl.u32 %v6152, 7
        %v6154 = vsub.s32 %v6151, %v6153
        %v6155 = vrot.slane %v6141, %v6154
        %v6156 = vcombine.low %v6132, %v6148
        %v6157 = vcombine.high %v6132, %v6148
        %v6159 = vunpack.c.l.s4 1934713408
        %v6160 = vunpack.c.0.s8 %v6159
        %v6161 = vlaneseq
        %v6162 = vshrl.u32 %v6161, 7
        %v6163 = vsub.s32 %v6160, %v6162
        %v6164 = vrot.slane %v6156, %v6163
        %v6166 = vunpack.c.l.s4 1934713408
        %v6167 = vunpack.c.0.s8 %v6166
        %v6168 = vlaneseq
        %v6169 = vshrl.u32 %v6168, 7
        %v6170 = vsub.s32 %v6167, %v6169
        %v6171 = vrot.slane %v6157, %v6170
        %v6172 = vcombine.low %v6139, %v6155
        %v6173 = vcombine.high %v6139, %v6155
        %v6175 = vunpack.c.l.s4 1934713408
        %v6176 = vunpack.c.0.s8 %v6175
        %v6177 = vlaneseq
        %v6178 = vshrl.u32 %v6177, 7
        %v6179 = vsub.s32 %v6176, %v6178
        %v6180 = vrot.slane %v6172, %v6179
        %v6182 = vunpack.c.l.s4 1934713408
        %v6183 = vunpack.c.0.s8 %v6182
        %v6184 = vlaneseq
        %v6185 = vshrl.u32 %v6184, 7
        %v6186 = vsub.s32 %v6183, %v6185
        %v6187 = vrot.slane %v6173, %v6186
        %v6188 = vcombine.high %v6164, 0.0
        %v6189 = vcombine.high %v6171, 0.0
        %v6190 = vcombine.high %v6180, 0.0
        %v6191 = vcombine.high %v6187, 0.0
        %v6192 = vcombine.low %v6103, %v6111
        %v6193 = vcombine.high %v6103, %v6111
        %v6195 = vunpack.c.l.s4 1983009808
        %v6196 = vunpack.c.0.s8 %v6195
        %v6197 = vlaneseq
        %v6198 = vshrl.u32 %v6197, 7
        %v6199 = vsub.s32 %v6196, %v6198
        %v6200 = vrot.slane %v6192, %v6199
        %v6202 = vunpack.c.l.s4 1983009808
        %v6203 = vunpack.c.0.s8 %v6202
        %v6204 = vlaneseq
        %v6205 = vshrl.u32 %v6204, 7
        %v6206 = vsub.s32 %v6203, %v6205
        %v6207 = vrot.slane %v6193, %v6206
        %v6208 = vcombine.low %v6107, %v6115
        %v6209 = vcombine.high %v6107, %v6115
        %v6211 = vunpack.c.l.s4 1983009808
        %v6212 = vunpack.c.0.s8 %v6211
        %v6213 = vlaneseq
        %v6214 = vshrl.u32 %v6213, 7
        %v6215 = vsub.s32 %v6212, %v6214
        %v6216 = vrot.slane %v6208, %v6215
        %v6218 = vunpack.c.l.s4 1983009808
        %v6219 = vunpack.c.0.s8 %v6218
        %v6220 = vlaneseq
        %v6221 = vshrl.u32 %v6220, 7
        %v6222 = vsub.s32 %v6219, %v6221
        %v6223 = vrot.slane %v6209, %v6222
        %v6224 = vcombine.low %v6200, %v6216
        %v6225 = vcombine.high %v6200, %v6216
        %v6227 = vunpack.c.l.s4 1934713408
        %v6228 = vunpack.c.0.s8 %v6227
        %v6229 = vlaneseq
        %v6230 = vshrl.u32 %v6229, 7
        %v6231 = vsub.s32 %v6228, %v6230
        %v6232 = vrot.slane %v6224, %v6231
        %v6234 = vunpack.c.l.s4 1934713408
        %v6235 = vunpack.c.0.s8 %v6234
        %v6236 = vlaneseq
        %v6237 = vshrl.u32 %v6236, 7
        %v6238 = vsub.s32 %v6235, %v6237
        %v6239 = vrot.slane %v6225, %v6238
        %v6240 = vcombine.low %v6207, %v6223
        %v6241 = vcombine.high %v6207, %v6223
        %v6243 = vunpack.c.l.s4 1934713408
        %v6244 = vunpack.c.0.s8 %v6243
        %v6245 = vlaneseq
        %v6246 = vshrl.u32 %v6245, 7
        %v6247 = vsub.s32 %v6244, %v6246
        %v6248 = vrot.slane %v6240, %v6247
        %v6250 = vunpack.c.l.s4 1934713408
        %v6251 = vunpack.c.0.s8 %v6250
        %v6252 = vlaneseq
        %v6253 = vshrl.u32 %v6252, 7
        %v6254 = vsub.s32 %v6251, %v6253
        %v6255 = vrot.slane %v6241, %v6254
        %v6256 = vcombine.high %v6232, 0.0
        %v6257 = vcombine.high %v6239, 0.0
        %v6258 = vcombine.high %v6248, 0.0
        %v6259 = vcombine.high %v6255, 0.0
        %6261 = vrot.lane.b32.xlu0 %v6188, 16
        %v6262 = vpop.permute.xlu0 %6261
        %6265 = vrot.lane.b32.xlu0 %v6171, 32
        %v6266 = vpop.permute.xlu0 %6265
        %6269 = vrot.lane.b32.xlu0 %v6189, 48
        %v6270 = vpop.permute.xlu0 %6269
        %6273 = vrot.lane.b32.xlu0 %v6180, 64
        %v6274 = vpop.permute.xlu0 %6273
        %6277 = vrot.lane.b32.xlu0 %v6190, 80
        %v6278 = vpop.permute.xlu0 %6277
        %6281 = vrot.lane.b32.xlu0 %v6187, 96
        %v6282 = vpop.permute.xlu0 %6281
        %6285 = vrot.lane.b32.xlu0 %v6191, 112
        %v6286 = vpop.permute.xlu0 %6285
        %6289 = vrot.lane.b32.xlu0 %v6256, 16
        %v6290 = vpop.permute.xlu0 %6289
        %6293 = vrot.lane.b32.xlu0 %v6239, 32
        %v6294 = vpop.permute.xlu0 %6293
        %6297 = vrot.lane.b32.xlu0 %v6257, 48
        %v6298 = vpop.permute.xlu0 %6297
        %6301 = vrot.lane.b32.xlu0 %v6248, 64
        %v6302 = vpop.permute.xlu0 %6301
        %6305 = vrot.lane.b32.xlu0 %v6258, 80
        %v6306 = vpop.permute.xlu0 %6305
        %6309 = vrot.lane.b32.xlu0 %v6255, 96
        %v6310 = vpop.permute.xlu0 %6309
        %6313 = vrot.lane.b32.xlu0 %v6259, 112
        %v6314 = vpop.permute.xlu0 %6313
        %v6316 = vsel %vm1046, %v6164, %v6262
        %v6317 = vsel %vm1048, %v6316, %v6266
        %v6318 = vsel %vm1050, %v6317, %v6270
        %v6319 = vsel %vm1052, %v6318, %v6274
        %v6320 = vsel %vm1054, %v6319, %v6278
        %v6321 = vsel %vm1056, %v6320, %v6282
        %v6322 = vsel %vm1058, %v6321, %v6286
        %v6323 = vsel %vm1046, %v6232, %v6290
        %v6324 = vsel %vm1048, %v6323, %v6294
        %v6325 = vsel %vm1050, %v6324, %v6298
        %v6326 = vsel %vm1052, %v6325, %v6302
        %v6327 = vsel %vm1054, %v6326, %v6306
        %v6328 = vsel %vm1056, %v6327, %v6310
        %v6329 = vsel %vm1058, %v6328, %v6314
        %6330 = vst [vmem:[#allocation6 + $0x60] sm:$0xf] %v6322
        %6331 = vst [vmem:[#allocation6 + $0x68] sm:$0xf] %v6329
        %v6332 = vld [vmem:[#allocation5 + $0x2] sm:$0xff]
        %v6333 = vld [vmem:[#allocation5 + $0xa] sm:$0xff]
        %v6334 = vld [vmem:[#allocation5 + $0x1a] sm:$0xff]
        %v6335 = vld [vmem:[#allocation5 + $0x22] sm:$0xff]
        %v6336 = vld [vmem:[#allocation5 + $0x32] sm:$0xff]
        %v6337 = vld [vmem:[#allocation5 + $0x3a] sm:$0xff]
        %v6338 = vld [vmem:[#allocation5 + $0x4a] sm:$0xff]
        %v6339 = vld [vmem:[#allocation5 + $0x52] sm:$0xff]
        %6348 = vrot.lane.b32.xlu0 %v6332, 125
        %v6349 = vpop.permute.xlu0 %6348
        %6350 = vrot.lane.b32.xlu0 %v6333, 125
        %v6351 = vpop.permute.xlu0 %6350
        %6352 = vrot.lane.b32.xlu0 %v6334, 125
        %v6353 = vpop.permute.xlu0 %6352
        %6354 = vrot.lane.b32.xlu0 %v6335, 125
        %v6355 = vpop.permute.xlu0 %6354
        %6356 = vrot.lane.b32.xlu0 %v6336, 125
        %v6357 = vpop.permute.xlu0 %6356
        %6358 = vrot.lane.b32.xlu0 %v6337, 125
        %v6359 = vpop.permute.xlu0 %6358
        %6360 = vrot.lane.b32.xlu0 %v6338, 125
        %v6361 = vpop.permute.xlu0 %6360
        %6362 = vrot.lane.b32.xlu0 %v6339, 125
        %v6363 = vpop.permute.xlu0 %6362
        %v6372 = vcombine.low %v6349, %v6357
        %v6373 = vcombine.high %v6349, %v6357
        %v6375 = vunpack.c.l.s4 1983009808
        %v6376 = vunpack.c.0.s8 %v6375
        %v6377 = vlaneseq
        %v6378 = vshrl.u32 %v6377, 7
        %v6379 = vsub.s32 %v6376, %v6378
        %v6380 = vrot.slane %v6372, %v6379
        %v6382 = vunpack.c.l.s4 1983009808
        %v6383 = vunpack.c.0.s8 %v6382
        %v6384 = vlaneseq
        %v6385 = vshrl.u32 %v6384, 7
        %v6386 = vsub.s32 %v6383, %v6385
        %v6387 = vrot.slane %v6373, %v6386
        %v6388 = vcombine.low %v6353, %v6361
        %v6389 = vcombine.high %v6353, %v6361
        %v6391 = vunpack.c.l.s4 1983009808
        %v6392 = vunpack.c.0.s8 %v6391
        %v6393 = vlaneseq
        %v6394 = vshrl.u32 %v6393, 7
        %v6395 = vsub.s32 %v6392, %v6394
        %v6396 = vrot.slane %v6388, %v6395
        %v6398 = vunpack.c.l.s4 1983009808
        %v6399 = vunpack.c.0.s8 %v6398
        %v6400 = vlaneseq
        %v6401 = vshrl.u32 %v6400, 7
        %v6402 = vsub.s32 %v6399, %v6401
        %v6403 = vrot.slane %v6389, %v6402
        %v6404 = vcombine.low %v6380, %v6396
        %v6405 = vcombine.high %v6380, %v6396
        %v6407 = vunpack.c.l.s4 1934713408
        %v6408 = vunpack.c.0.s8 %v6407
        %v6409 = vlaneseq
        %v6410 = vshrl.u32 %v6409, 7
        %v6411 = vsub.s32 %v6408, %v6410
        %v6412 = vrot.slane %v6404, %v6411
        %v6414 = vunpack.c.l.s4 1934713408
        %v6415 = vunpack.c.0.s8 %v6414
        %v6416 = vlaneseq
        %v6417 = vshrl.u32 %v6416, 7
        %v6418 = vsub.s32 %v6415, %v6417
        %v6419 = vrot.slane %v6405, %v6418
        %v6420 = vcombine.low %v6387, %v6403
        %v6421 = vcombine.high %v6387, %v6403
        %v6423 = vunpack.c.l.s4 1934713408
        %v6424 = vunpack.c.0.s8 %v6423
        %v6425 = vlaneseq
        %v6426 = vshrl.u32 %v6425, 7
        %v6427 = vsub.s32 %v6424, %v6426
        %v6428 = vrot.slane %v6420, %v6427
        %v6430 = vunpack.c.l.s4 1934713408
        %v6431 = vunpack.c.0.s8 %v6430
        %v6432 = vlaneseq
        %v6433 = vshrl.u32 %v6432, 7
        %v6434 = vsub.s32 %v6431, %v6433
        %v6435 = vrot.slane %v6421, %v6434
        %v6436 = vcombine.high %v6412, 0.0
        %v6437 = vcombine.high %v6419, 0.0
        %v6438 = vcombine.high %v6428, 0.0
        %v6439 = vcombine.high %v6435, 0.0
        %v6440 = vcombine.low %v6351, %v6359
        %v6441 = vcombine.high %v6351, %v6359
        %v6443 = vunpack.c.l.s4 1983009808
        %v6444 = vunpack.c.0.s8 %v6443
        %v6445 = vlaneseq
        %v6446 = vshrl.u32 %v6445, 7
        %v6447 = vsub.s32 %v6444, %v6446
        %v6448 = vrot.slane %v6440, %v6447
        %v6450 = vunpack.c.l.s4 1983009808
        %v6451 = vunpack.c.0.s8 %v6450
        %v6452 = vlaneseq
        %v6453 = vshrl.u32 %v6452, 7
        %v6454 = vsub.s32 %v6451, %v6453
        %v6455 = vrot.slane %v6441, %v6454
        %v6456 = vcombine.low %v6355, %v6363
        %v6457 = vcombine.high %v6355, %v6363
        %v6459 = vunpack.c.l.s4 1983009808
        %v6460 = vunpack.c.0.s8 %v6459
        %v6461 = vlaneseq
        %v6462 = vshrl.u32 %v6461, 7
        %v6463 = vsub.s32 %v6460, %v6462
        %v6464 = vrot.slane %v6456, %v6463
        %v6466 = vunpack.c.l.s4 1983009808
        %v6467 = vunpack.c.0.s8 %v6466
        %v6468 = vlaneseq
        %v6469 = vshrl.u32 %v6468, 7
        %v6470 = vsub.s32 %v6467, %v6469
        %v6471 = vrot.slane %v6457, %v6470
        %v6472 = vcombine.low %v6448, %v6464
        %v6473 = vcombine.high %v6448, %v6464
        %v6475 = vunpack.c.l.s4 1934713408
        %v6476 = vunpack.c.0.s8 %v6475
        %v6477 = vlaneseq
        %v6478 = vshrl.u32 %v6477, 7
        %v6479 = vsub.s32 %v6476, %v6478
        %v6480 = vrot.slane %v6472, %v6479
        %v6482 = vunpack.c.l.s4 1934713408
        %v6483 = vunpack.c.0.s8 %v6482
        %v6484 = vlaneseq
        %v6485 = vshrl.u32 %v6484, 7
        %v6486 = vsub.s32 %v6483, %v6485
        %v6487 = vrot.slane %v6473, %v6486
        %v6488 = vcombine.low %v6455, %v6471
        %v6489 = vcombine.high %v6455, %v6471
        %v6491 = vunpack.c.l.s4 1934713408
        %v6492 = vunpack.c.0.s8 %v6491
        %v6493 = vlaneseq
        %v6494 = vshrl.u32 %v6493, 7
        %v6495 = vsub.s32 %v6492, %v6494
        %v6496 = vrot.slane %v6488, %v6495
        %v6498 = vunpack.c.l.s4 1934713408
        %v6499 = vunpack.c.0.s8 %v6498
        %v6500 = vlaneseq
        %v6501 = vshrl.u32 %v6500, 7
        %v6502 = vsub.s32 %v6499, %v6501
        %v6503 = vrot.slane %v6489, %v6502
        %v6504 = vcombine.high %v6480, 0.0
        %v6505 = vcombine.high %v6487, 0.0
        %v6506 = vcombine.high %v6496, 0.0
        %v6507 = vcombine.high %v6503, 0.0
        %6509 = vrot.lane.b32.xlu0 %v6436, 16
        %v6510 = vpop.permute.xlu0 %6509
        %6513 = vrot.lane.b32.xlu0 %v6419, 32
        %v6514 = vpop.permute.xlu0 %6513
        %6517 = vrot.lane.b32.xlu0 %v6437, 48
        %v6518 = vpop.permute.xlu0 %6517
        %6521 = vrot.lane.b32.xlu0 %v6428, 64
        %v6522 = vpop.permute.xlu0 %6521
        %6525 = vrot.lane.b32.xlu0 %v6438, 80
        %v6526 = vpop.permute.xlu0 %6525
        %6529 = vrot.lane.b32.xlu0 %v6435, 96
        %v6530 = vpop.permute.xlu0 %6529
        %6533 = vrot.lane.b32.xlu0 %v6439, 112
        %v6534 = vpop.permute.xlu0 %6533
        %6537 = vrot.lane.b32.xlu0 %v6504, 16
        %v6538 = vpop.permute.xlu0 %6537
        %6541 = vrot.lane.b32.xlu0 %v6487, 32
        %v6542 = vpop.permute.xlu0 %6541
        %6545 = vrot.lane.b32.xlu0 %v6505, 48
        %v6546 = vpop.permute.xlu0 %6545
        %6549 = vrot.lane.b32.xlu0 %v6496, 64
        %v6550 = vpop.permute.xlu0 %6549
        %6553 = vrot.lane.b32.xlu0 %v6506, 80
        %v6554 = vpop.permute.xlu0 %6553
        %6557 = vrot.lane.b32.xlu0 %v6503, 96
        %v6558 = vpop.permute.xlu0 %6557
        %6561 = vrot.lane.b32.xlu0 %v6507, 112
        %v6562 = vpop.permute.xlu0 %6561
        %v6564 = vsel %vm1046, %v6412, %v6510
        %v6565 = vsel %vm1048, %v6564, %v6514
        %v6566 = vsel %vm1050, %v6565, %v6518
        %v6567 = vsel %vm1052, %v6566, %v6522
        %v6568 = vsel %vm1054, %v6567, %v6526
        %v6569 = vsel %vm1056, %v6568, %v6530
        %v6570 = vsel %vm1058, %v6569, %v6534
        %v6571 = vsel %vm1046, %v6480, %v6538
        %v6572 = vsel %vm1048, %v6571, %v6542
        %v6573 = vsel %vm1050, %v6572, %v6546
        %v6574 = vsel %vm1052, %v6573, %v6550
        %v6575 = vsel %vm1054, %v6574, %v6554
        %v6576 = vsel %vm1056, %v6575, %v6558
        %v6577 = vsel %vm1058, %v6576, %v6562
        %v6580 = vrot.slane %v6570, 4
        %v6581 = vrot.slane %v6577, 4
        %6584 = vst [vmem:[#allocation6 + $0x60] sm:$0xf0] %v6580
        %6585 = vst [vmem:[#allocation6 + $0x68] sm:$0xf0] %v6581
        %v6586 = vld [vmem:[#allocation5 + $0x2] sm:$0xff]
        %v6587 = vld [vmem:[#allocation5 + $0xa] sm:$0xff]
        %v6588 = vld [vmem:[#allocation5 + $0x1a] sm:$0xff]
        %v6589 = vld [vmem:[#allocation5 + $0x22] sm:$0xff]
        %v6590 = vld [vmem:[#allocation5 + $0x32] sm:$0xff]
        %v6591 = vld [vmem:[#allocation5 + $0x3a] sm:$0xff]
        %v6592 = vld [vmem:[#allocation5 + $0x4a] sm:$0xff]
        %v6593 = vld [vmem:[#allocation5 + $0x52] sm:$0xff]
        %6602 = vrot.lane.b32.xlu0 %v6586, 124
        %v6603 = vpop.permute.xlu0 %6602
        %6604 = vrot.lane.b32.xlu0 %v6587, 124
        %v6605 = vpop.permute.xlu0 %6604
        %6606 = vrot.lane.b32.xlu0 %v6588, 124
        %v6607 = vpop.permute.xlu0 %6606
        %6608 = vrot.lane.b32.xlu0 %v6589, 124
        %v6609 = vpop.permute.xlu0 %6608
        %6610 = vrot.lane.b32.xlu0 %v6590, 124
        %v6611 = vpop.permute.xlu0 %6610
        %6612 = vrot.lane.b32.xlu0 %v6591, 124
        %v6613 = vpop.permute.xlu0 %6612
        %6614 = vrot.lane.b32.xlu0 %v6592, 124
        %v6615 = vpop.permute.xlu0 %6614
        %6616 = vrot.lane.b32.xlu0 %v6593, 124
        %v6617 = vpop.permute.xlu0 %6616
        %v6626 = vcombine.low %v6603, %v6611
        %v6627 = vcombine.high %v6603, %v6611
        %v6629 = vunpack.c.l.s4 1983009808
        %v6630 = vunpack.c.0.s8 %v6629
        %v6631 = vlaneseq
        %v6632 = vshrl.u32 %v6631, 7
        %v6633 = vsub.s32 %v6630, %v6632
        %v6634 = vrot.slane %v6626, %v6633
        %v6636 = vunpack.c.l.s4 1983009808
        %v6637 = vunpack.c.0.s8 %v6636
        %v6638 = vlaneseq
        %v6639 = vshrl.u32 %v6638, 7
        %v6640 = vsub.s32 %v6637, %v6639
        %v6641 = vrot.slane %v6627, %v6640
        %v6642 = vcombine.low %v6607, %v6615
        %v6643 = vcombine.high %v6607, %v6615
        %v6645 = vunpack.c.l.s4 1983009808
        %v6646 = vunpack.c.0.s8 %v6645
        %v6647 = vlaneseq
        %v6648 = vshrl.u32 %v6647, 7
        %v6649 = vsub.s32 %v6646, %v6648
        %v6650 = vrot.slane %v6642, %v6649
        %v6652 = vunpack.c.l.s4 1983009808
        %v6653 = vunpack.c.0.s8 %v6652
        %v6654 = vlaneseq
        %v6655 = vshrl.u32 %v6654, 7
        %v6656 = vsub.s32 %v6653, %v6655
        %v6657 = vrot.slane %v6643, %v6656
        %v6658 = vcombine.low %v6634, %v6650
        %v6659 = vcombine.high %v6634, %v6650
        %v6661 = vunpack.c.l.s4 1934713408
        %v6662 = vunpack.c.0.s8 %v6661
        %v6663 = vlaneseq
        %v6664 = vshrl.u32 %v6663, 7
        %v6665 = vsub.s32 %v6662, %v6664
        %v6666 = vrot.slane %v6658, %v6665
        %v6668 = vunpack.c.l.s4 1934713408
        %v6669 = vunpack.c.0.s8 %v6668
        %v6670 = vlaneseq
        %v6671 = vshrl.u32 %v6670, 7
        %v6672 = vsub.s32 %v6669, %v6671
        %v6673 = vrot.slane %v6659, %v6672
        %v6674 = vcombine.low %v6641, %v6657
        %v6675 = vcombine.high %v6641, %v6657
        %v6677 = vunpack.c.l.s4 1934713408
        %v6678 = vunpack.c.0.s8 %v6677
        %v6679 = vlaneseq
        %v6680 = vshrl.u32 %v6679, 7
        %v6681 = vsub.s32 %v6678, %v6680
        %v6682 = vrot.slane %v6674, %v6681
        %v6684 = vunpack.c.l.s4 1934713408
        %v6685 = vunpack.c.0.s8 %v6684
        %v6686 = vlaneseq
        %v6687 = vshrl.u32 %v6686, 7
        %v6688 = vsub.s32 %v6685, %v6687
        %v6689 = vrot.slane %v6675, %v6688
        %v6690 = vcombine.high %v6666, 0.0
        %v6691 = vcombine.high %v6673, 0.0
        %v6692 = vcombine.high %v6682, 0.0
        %v6693 = vcombine.high %v6689, 0.0
        %v6694 = vcombine.low %v6605, %v6613
        %v6695 = vcombine.high %v6605, %v6613
        %v6697 = vunpack.c.l.s4 1983009808
        %v6698 = vunpack.c.0.s8 %v6697
        %v6699 = vlaneseq
        %v6700 = vshrl.u32 %v6699, 7
        %v6701 = vsub.s32 %v6698, %v6700
        %v6702 = vrot.slane %v6694, %v6701
        %v6704 = vunpack.c.l.s4 1983009808
        %v6705 = vunpack.c.0.s8 %v6704
        %v6706 = vlaneseq
        %v6707 = vshrl.u32 %v6706, 7
        %v6708 = vsub.s32 %v6705, %v6707
        %v6709 = vrot.slane %v6695, %v6708
        %v6710 = vcombine.low %v6609, %v6617
        %v6711 = vcombine.high %v6609, %v6617
        %v6713 = vunpack.c.l.s4 1983009808
        %v6714 = vunpack.c.0.s8 %v6713
        %v6715 = vlaneseq
        %v6716 = vshrl.u32 %v6715, 7
        %v6717 = vsub.s32 %v6714, %v6716
        %v6718 = vrot.slane %v6710, %v6717
        %v6720 = vunpack.c.l.s4 1983009808
        %v6721 = vunpack.c.0.s8 %v6720
        %v6722 = vlaneseq
        %v6723 = vshrl.u32 %v6722, 7
        %v6724 = vsub.s32 %v6721, %v6723
        %v6725 = vrot.slane %v6711, %v6724
        %v6726 = vcombine.low %v6702, %v6718
        %v6727 = vcombine.high %v6702, %v6718
        %v6729 = vunpack.c.l.s4 1934713408
        %v6730 = vunpack.c.0.s8 %v6729
        %v6731 = vlaneseq
        %v6732 = vshrl.u32 %v6731, 7
        %v6733 = vsub.s32 %v6730, %v6732
        %v6734 = vrot.slane %v6726, %v6733
        %v6736 = vunpack.c.l.s4 1934713408
        %v6737 = vunpack.c.0.s8 %v6736
        %v6738 = vlaneseq
        %v6739 = vshrl.u32 %v6738, 7
        %v6740 = vsub.s32 %v6737, %v6739
        %v6741 = vrot.slane %v6727, %v6740
        %v6742 = vcombine.low %v6709, %v6725
        %v6743 = vcombine.high %v6709, %v6725
        %v6745 = vunpack.c.l.s4 1934713408
        %v6746 = vunpack.c.0.s8 %v6745
        %v6747 = vlaneseq
        %v6748 = vshrl.u32 %v6747, 7
        %v6749 = vsub.s32 %v6746, %v6748
        %v6750 = vrot.slane %v6742, %v6749
        %v6752 = vunpack.c.l.s4 1934713408
        %v6753 = vunpack.c.0.s8 %v6752
        %v6754 = vlaneseq
        %v6755 = vshrl.u32 %v6754, 7
        %v6756 = vsub.s32 %v6753, %v6755
        %v6757 = vrot.slane %v6743, %v6756
        %v6758 = vcombine.high %v6734, 0.0
        %v6759 = vcombine.high %v6741, 0.0
        %v6760 = vcombine.high %v6750, 0.0
        %v6761 = vcombine.high %v6757, 0.0
        %6763 = vrot.lane.b32.xlu0 %v6690, 16
        %v6764 = vpop.permute.xlu0 %6763
        %6767 = vrot.lane.b32.xlu0 %v6673, 32
        %v6768 = vpop.permute.xlu0 %6767
        %6771 = vrot.lane.b32.xlu0 %v6691, 48
        %v6772 = vpop.permute.xlu0 %6771
        %6775 = vrot.lane.b32.xlu0 %v6682, 64
        %v6776 = vpop.permute.xlu0 %6775
        %6779 = vrot.lane.b32.xlu0 %v6692, 80
        %v6780 = vpop.permute.xlu0 %6779
        %6783 = vrot.lane.b32.xlu0 %v6689, 96
        %v6784 = vpop.permute.xlu0 %6783
        %6787 = vrot.lane.b32.xlu0 %v6693, 112
        %v6788 = vpop.permute.xlu0 %6787
        %6791 = vrot.lane.b32.xlu0 %v6758, 16
        %v6792 = vpop.permute.xlu0 %6791
        %6795 = vrot.lane.b32.xlu0 %v6741, 32
        %v6796 = vpop.permute.xlu0 %6795
        %6799 = vrot.lane.b32.xlu0 %v6759, 48
        %v6800 = vpop.permute.xlu0 %6799
        %6803 = vrot.lane.b32.xlu0 %v6750, 64
        %v6804 = vpop.permute.xlu0 %6803
        %6807 = vrot.lane.b32.xlu0 %v6760, 80
        %v6808 = vpop.permute.xlu0 %6807
        %6811 = vrot.lane.b32.xlu0 %v6757, 96
        %v6812 = vpop.permute.xlu0 %6811
        %6815 = vrot.lane.b32.xlu0 %v6761, 112
        %v6816 = vpop.permute.xlu0 %6815
        %v6818 = vsel %vm1046, %v6666, %v6764
        %v6819 = vsel %vm1048, %v6818, %v6768
        %v6820 = vsel %vm1050, %v6819, %v6772
        %v6821 = vsel %vm1052, %v6820, %v6776
        %v6822 = vsel %vm1054, %v6821, %v6780
        %v6823 = vsel %vm1056, %v6822, %v6784
        %v6824 = vsel %vm1058, %v6823, %v6788
        %v6825 = vsel %vm1046, %v6734, %v6792
        %v6826 = vsel %vm1048, %v6825, %v6796
        %v6827 = vsel %vm1050, %v6826, %v6800
        %v6828 = vsel %vm1052, %v6827, %v6804
        %v6829 = vsel %vm1054, %v6828, %v6808
        %v6830 = vsel %vm1056, %v6829, %v6812
        %v6831 = vsel %vm1058, %v6830, %v6816
        %6832 = vst [vmem:[#allocation6 + $0x70] sm:$0xf] %v6824
        %6833 = vst [vmem:[#allocation6 + $0x78] sm:$0xf] %v6831
        %v6834 = vld [vmem:[#allocation5 + $0x3] sm:$0xff]
        %v6835 = vld [vmem:[#allocation5 + $0xb] sm:$0xff]
        %v6836 = vld [vmem:[#allocation5 + $0x1b] sm:$0xff]
        %v6837 = vld [vmem:[#allocation5 + $0x23] sm:$0xff]
        %v6838 = vld [vmem:[#allocation5 + $0x33] sm:$0xff]
        %v6839 = vld [vmem:[#allocation5 + $0x3b] sm:$0xff]
        %v6840 = vld [vmem:[#allocation5 + $0x4b] sm:$0xff]
        %v6841 = vld [vmem:[#allocation5 + $0x53] sm:$0xff]
        %v6842 = vcombine.low %v6834, %v6838
        %v6843 = vcombine.high %v6834, %v6838
        %v6845 = vunpack.c.l.s4 1983009808
        %v6846 = vunpack.c.0.s8 %v6845
        %v6847 = vlaneseq
        %v6848 = vshrl.u32 %v6847, 7
        %v6849 = vsub.s32 %v6846, %v6848
        %v6850 = vrot.slane %v6842, %v6849
        %v6852 = vunpack.c.l.s4 1983009808
        %v6853 = vunpack.c.0.s8 %v6852
        %v6854 = vlaneseq
        %v6855 = vshrl.u32 %v6854, 7
        %v6856 = vsub.s32 %v6853, %v6855
        %v6857 = vrot.slane %v6843, %v6856
        %v6858 = vcombine.low %v6836, %v6840
        %v6859 = vcombine.high %v6836, %v6840
        %v6861 = vunpack.c.l.s4 1983009808
        %v6862 = vunpack.c.0.s8 %v6861
        %v6863 = vlaneseq
        %v6864 = vshrl.u32 %v6863, 7
        %v6865 = vsub.s32 %v6862, %v6864
        %v6866 = vrot.slane %v6858, %v6865
        %v6868 = vunpack.c.l.s4 1983009808
        %v6869 = vunpack.c.0.s8 %v6868
        %v6870 = vlaneseq
        %v6871 = vshrl.u32 %v6870, 7
        %v6872 = vsub.s32 %v6869, %v6871
        %v6873 = vrot.slane %v6859, %v6872
        %v6874 = vcombine.low %v6850, %v6866
        %v6875 = vcombine.high %v6850, %v6866
        %v6877 = vunpack.c.l.s4 1934713408
        %v6878 = vunpack.c.0.s8 %v6877
        %v6879 = vlaneseq
        %v6880 = vshrl.u32 %v6879, 7
        %v6881 = vsub.s32 %v6878, %v6880
        %v6882 = vrot.slane %v6874, %v6881
        %v6884 = vunpack.c.l.s4 1934713408
        %v6885 = vunpack.c.0.s8 %v6884
        %v6886 = vlaneseq
        %v6887 = vshrl.u32 %v6886, 7
        %v6888 = vsub.s32 %v6885, %v6887
        %v6889 = vrot.slane %v6875, %v6888
        %v6890 = vcombine.low %v6857, %v6873
        %v6891 = vcombine.high %v6857, %v6873
        %v6893 = vunpack.c.l.s4 1934713408
        %v6894 = vunpack.c.0.s8 %v6893
        %v6895 = vlaneseq
        %v6896 = vshrl.u32 %v6895, 7
        %v6897 = vsub.s32 %v6894, %v6896
        %v6898 = vrot.slane %v6890, %v6897
        %v6900 = vunpack.c.l.s4 1934713408
        %v6901 = vunpack.c.0.s8 %v6900
        %v6902 = vlaneseq
        %v6903 = vshrl.u32 %v6902, 7
        %v6904 = vsub.s32 %v6901, %v6903
        %v6905 = vrot.slane %v6891, %v6904
        %v6906 = vcombine.high %v6882, 0.0
        %v6907 = vcombine.high %v6889, 0.0
        %v6908 = vcombine.high %v6898, 0.0
        %v6909 = vcombine.high %v6905, 0.0
        %v6910 = vcombine.low %v6835, %v6839
        %v6911 = vcombine.high %v6835, %v6839
        %v6913 = vunpack.c.l.s4 1983009808
        %v6914 = vunpack.c.0.s8 %v6913
        %v6915 = vlaneseq
        %v6916 = vshrl.u32 %v6915, 7
        %v6917 = vsub.s32 %v6914, %v6916
        %v6918 = vrot.slane %v6910, %v6917
        %v6920 = vunpack.c.l.s4 1983009808
        %v6921 = vunpack.c.0.s8 %v6920
        %v6922 = vlaneseq
        %v6923 = vshrl.u32 %v6922, 7
        %v6924 = vsub.s32 %v6921, %v6923
        %v6925 = vrot.slane %v6911, %v6924
        %v6926 = vcombine.low %v6837, %v6841
        %v6927 = vcombine.high %v6837, %v6841
        %v6929 = vunpack.c.l.s4 1983009808
        %v6930 = vunpack.c.0.s8 %v6929
        %v6931 = vlaneseq
        %v6932 = vshrl.u32 %v6931, 7
        %v6933 = vsub.s32 %v6930, %v6932
        %v6934 = vrot.slane %v6926, %v6933
        %v6936 = vunpack.c.l.s4 1983009808
        %v6937 = vunpack.c.0.s8 %v6936
        %v6938 = vlaneseq
        %v6939 = vshrl.u32 %v6938, 7
        %v6940 = vsub.s32 %v6937, %v6939
        %v6941 = vrot.slane %v6927, %v6940
        %v6942 = vcombine.low %v6918, %v6934
        %v6943 = vcombine.high %v6918, %v6934
        %v6945 = vunpack.c.l.s4 1934713408
        %v6946 = vunpack.c.0.s8 %v6945
        %v6947 = vlaneseq
        %v6948 = vshrl.u32 %v6947, 7
        %v6949 = vsub.s32 %v6946, %v6948
        %v6950 = vrot.slane %v6942, %v6949
        %v6952 = vunpack.c.l.s4 1934713408
        %v6953 = vunpack.c.0.s8 %v6952
        %v6954 = vlaneseq
        %v6955 = vshrl.u32 %v6954, 7
        %v6956 = vsub.s32 %v6953, %v6955
        %v6957 = vrot.slane %v6943, %v6956
        %v6958 = vcombine.low %v6925, %v6941
        %v6959 = vcombine.high %v6925, %v6941
        %v6961 = vunpack.c.l.s4 1934713408
        %v6962 = vunpack.c.0.s8 %v6961
        %v6963 = vlaneseq
        %v6964 = vshrl.u32 %v6963, 7
        %v6965 = vsub.s32 %v6962, %v6964
        %v6966 = vrot.slane %v6958, %v6965
        %v6968 = vunpack.c.l.s4 1934713408
        %v6969 = vunpack.c.0.s8 %v6968
        %v6970 = vlaneseq
        %v6971 = vshrl.u32 %v6970, 7
        %v6972 = vsub.s32 %v6969, %v6971
        %v6973 = vrot.slane %v6959, %v6972
        %v6974 = vcombine.high %v6950, 0.0
        %v6975 = vcombine.high %v6957, 0.0
        %v6976 = vcombine.high %v6966, 0.0
        %v6977 = vcombine.high %v6973, 0.0
        %6979 = vrot.lane.b32.xlu0 %v6906, 16
        %v6980 = vpop.permute.xlu0 %6979
        %6983 = vrot.lane.b32.xlu0 %v6889, 32
        %v6984 = vpop.permute.xlu0 %6983
        %6987 = vrot.lane.b32.xlu0 %v6907, 48
        %v6988 = vpop.permute.xlu0 %6987
        %6991 = vrot.lane.b32.xlu0 %v6898, 64
        %v6992 = vpop.permute.xlu0 %6991
        %6995 = vrot.lane.b32.xlu0 %v6908, 80
        %v6996 = vpop.permute.xlu0 %6995
        %6999 = vrot.lane.b32.xlu0 %v6905, 96
        %v7000 = vpop.permute.xlu0 %6999
        %7003 = vrot.lane.b32.xlu0 %v6909, 112
        %v7004 = vpop.permute.xlu0 %7003
        %7007 = vrot.lane.b32.xlu0 %v6974, 16
        %v7008 = vpop.permute.xlu0 %7007
        %7011 = vrot.lane.b32.xlu0 %v6957, 32
        %v7012 = vpop.permute.xlu0 %7011
        %7015 = vrot.lane.b32.xlu0 %v6975, 48
        %v7016 = vpop.permute.xlu0 %7015
        %7019 = vrot.lane.b32.xlu0 %v6966, 64
        %v7020 = vpop.permute.xlu0 %7019
        %7023 = vrot.lane.b32.xlu0 %v6976, 80
        %v7024 = vpop.permute.xlu0 %7023
        %7027 = vrot.lane.b32.xlu0 %v6973, 96
        %v7028 = vpop.permute.xlu0 %7027
        %7031 = vrot.lane.b32.xlu0 %v6977, 112
        %v7032 = vpop.permute.xlu0 %7031
        %v7034 = vsel %vm1046, %v6882, %v6980
        %v7035 = vsel %vm1048, %v7034, %v6984
        %v7036 = vsel %vm1050, %v7035, %v6988
        %v7037 = vsel %vm1052, %v7036, %v6992
        %v7038 = vsel %vm1054, %v7037, %v6996
        %v7039 = vsel %vm1056, %v7038, %v7000
        %v7040 = vsel %vm1058, %v7039, %v7004
        %v7041 = vsel %vm1046, %v6950, %v7008
        %v7042 = vsel %vm1048, %v7041, %v7012
        %v7043 = vsel %vm1050, %v7042, %v7016
        %v7044 = vsel %vm1052, %v7043, %v7020
        %v7045 = vsel %vm1054, %v7044, %v7024
        %v7046 = vsel %vm1056, %v7045, %v7028
        %v7047 = vsel %vm1058, %v7046, %v7032
        %v7050 = vrot.slane %v7040, 4
        %v7051 = vrot.slane %v7047, 4
        %7054 = vst [vmem:[#allocation6 + $0x70] sm:$0xf0] %v7050
        %7055 = vst [vmem:[#allocation6 + $0x78] sm:$0xf0] %v7051
        %v7056 = vld [vmem:[#allocation5 + $0x3] sm:$0xff]
        %v7057 = vld [vmem:[#allocation5 + $0xb] sm:$0xff]
        %v7058 = vld [vmem:[#allocation5 + $0x1b] sm:$0xff]
        %v7059 = vld [vmem:[#allocation5 + $0x23] sm:$0xff]
        %v7060 = vld [vmem:[#allocation5 + $0x33] sm:$0xff]
        %v7061 = vld [vmem:[#allocation5 + $0x3b] sm:$0xff]
        %v7062 = vld [vmem:[#allocation5 + $0x4b] sm:$0xff]
        %v7063 = vld [vmem:[#allocation5 + $0x53] sm:$0xff]
        %7072 = vrot.lane.b32.xlu0 %v7056, 127
        %v7073 = vpop.permute.xlu0 %7072
        %7074 = vrot.lane.b32.xlu0 %v7057, 127
        %v7075 = vpop.permute.xlu0 %7074
        %7076 = vrot.lane.b32.xlu0 %v7058, 127
        %v7077 = vpop.permute.xlu0 %7076
        %7078 = vrot.lane.b32.xlu0 %v7059, 127
        %v7079 = vpop.permute.xlu0 %7078
        %7080 = vrot.lane.b32.xlu0 %v7060, 127
        %v7081 = vpop.permute.xlu0 %7080
        %7082 = vrot.lane.b32.xlu0 %v7061, 127
        %v7083 = vpop.permute.xlu0 %7082
        %7084 = vrot.lane.b32.xlu0 %v7062, 127
        %v7085 = vpop.permute.xlu0 %7084
        %7086 = vrot.lane.b32.xlu0 %v7063, 127
        %v7087 = vpop.permute.xlu0 %7086
        %v7096 = vcombine.low %v7073, %v7081
        %v7097 = vcombine.high %v7073, %v7081
        %v7099 = vunpack.c.l.s4 1983009808
        %v7100 = vunpack.c.0.s8 %v7099
        %v7101 = vlaneseq
        %v7102 = vshrl.u32 %v7101, 7
        %v7103 = vsub.s32 %v7100, %v7102
        %v7104 = vrot.slane %v7096, %v7103
        %v7106 = vunpack.c.l.s4 1983009808
        %v7107 = vunpack.c.0.s8 %v7106
        %v7108 = vlaneseq
        %v7109 = vshrl.u32 %v7108, 7
        %v7110 = vsub.s32 %v7107, %v7109
        %v7111 = vrot.slane %v7097, %v7110
        %v7112 = vcombine.low %v7077, %v7085
        %v7113 = vcombine.high %v7077, %v7085
        %v7115 = vunpack.c.l.s4 1983009808
        %v7116 = vunpack.c.0.s8 %v7115
        %v7117 = vlaneseq
        %v7118 = vshrl.u32 %v7117, 7
        %v7119 = vsub.s32 %v7116, %v7118
        %v7120 = vrot.slane %v7112, %v7119
        %v7122 = vunpack.c.l.s4 1983009808
        %v7123 = vunpack.c.0.s8 %v7122
        %v7124 = vlaneseq
        %v7125 = vshrl.u32 %v7124, 7
        %v7126 = vsub.s32 %v7123, %v7125
        %v7127 = vrot.slane %v7113, %v7126
        %v7128 = vcombine.low %v7104, %v7120
        %v7129 = vcombine.high %v7104, %v7120
        %v7131 = vunpack.c.l.s4 1934713408
        %v7132 = vunpack.c.0.s8 %v7131
        %v7133 = vlaneseq
        %v7134 = vshrl.u32 %v7133, 7
        %v7135 = vsub.s32 %v7132, %v7134
        %v7136 = vrot.slane %v7128, %v7135
        %v7138 = vunpack.c.l.s4 1934713408
        %v7139 = vunpack.c.0.s8 %v7138
        %v7140 = vlaneseq
        %v7141 = vshrl.u32 %v7140, 7
        %v7142 = vsub.s32 %v7139, %v7141
        %v7143 = vrot.slane %v7129, %v7142
        %v7144 = vcombine.low %v7111, %v7127
        %v7145 = vcombine.high %v7111, %v7127
        %v7147 = vunpack.c.l.s4 1934713408
        %v7148 = vunpack.c.0.s8 %v7147
        %v7149 = vlaneseq
        %v7150 = vshrl.u32 %v7149, 7
        %v7151 = vsub.s32 %v7148, %v7150
        %v7152 = vrot.slane %v7144, %v7151
        %v7154 = vunpack.c.l.s4 1934713408
        %v7155 = vunpack.c.0.s8 %v7154
        %v7156 = vlaneseq
        %v7157 = vshrl.u32 %v7156, 7
        %v7158 = vsub.s32 %v7155, %v7157
        %v7159 = vrot.slane %v7145, %v7158
        %v7160 = vcombine.high %v7136, 0.0
        %v7161 = vcombine.high %v7143, 0.0
        %v7162 = vcombine.high %v7152, 0.0
        %v7163 = vcombine.high %v7159, 0.0
        %v7164 = vcombine.low %v7075, %v7083
        %v7165 = vcombine.high %v7075, %v7083
        %v7167 = vunpack.c.l.s4 1983009808
        %v7168 = vunpack.c.0.s8 %v7167
        %v7169 = vlaneseq
        %v7170 = vshrl.u32 %v7169, 7
        %v7171 = vsub.s32 %v7168, %v7170
        %v7172 = vrot.slane %v7164, %v7171
        %v7174 = vunpack.c.l.s4 1983009808
        %v7175 = vunpack.c.0.s8 %v7174
        %v7176 = vlaneseq
        %v7177 = vshrl.u32 %v7176, 7
        %v7178 = vsub.s32 %v7175, %v7177
        %v7179 = vrot.slane %v7165, %v7178
        %v7180 = vcombine.low %v7079, %v7087
        %v7181 = vcombine.high %v7079, %v7087
        %v7183 = vunpack.c.l.s4 1983009808
        %v7184 = vunpack.c.0.s8 %v7183
        %v7185 = vlaneseq
        %v7186 = vshrl.u32 %v7185, 7
        %v7187 = vsub.s32 %v7184, %v7186
        %v7188 = vrot.slane %v7180, %v7187
        %v7190 = vunpack.c.l.s4 1983009808
        %v7191 = vunpack.c.0.s8 %v7190
        %v7192 = vlaneseq
        %v7193 = vshrl.u32 %v7192, 7
        %v7194 = vsub.s32 %v7191, %v7193
        %v7195 = vrot.slane %v7181, %v7194
        %v7196 = vcombine.low %v7172, %v7188
        %v7197 = vcombine.high %v7172, %v7188
        %v7199 = vunpack.c.l.s4 1934713408
        %v7200 = vunpack.c.0.s8 %v7199
        %v7201 = vlaneseq
        %v7202 = vshrl.u32 %v7201, 7
        %v7203 = vsub.s32 %v7200, %v7202
        %v7204 = vrot.slane %v7196, %v7203
        %v7206 = vunpack.c.l.s4 1934713408
        %v7207 = vunpack.c.0.s8 %v7206
        %v7208 = vlaneseq
        %v7209 = vshrl.u32 %v7208, 7
        %v7210 = vsub.s32 %v7207, %v7209
        %v7211 = vrot.slane %v7197, %v7210
        %v7212 = vcombine.low %v7179, %v7195
        %v7213 = vcombine.high %v7179, %v7195
        %v7215 = vunpack.c.l.s4 1934713408
        %v7216 = vunpack.c.0.s8 %v7215
        %v7217 = vlaneseq
        %v7218 = vshrl.u32 %v7217, 7
        %v7219 = vsub.s32 %v7216, %v7218
        %v7220 = vrot.slane %v7212, %v7219
        %v7222 = vunpack.c.l.s4 1934713408
        %v7223 = vunpack.c.0.s8 %v7222
        %v7224 = vlaneseq
        %v7225 = vshrl.u32 %v7224, 7
        %v7226 = vsub.s32 %v7223, %v7225
        %v7227 = vrot.slane %v7213, %v7226
        %v7228 = vcombine.high %v7204, 0.0
        %v7229 = vcombine.high %v7211, 0.0
        %v7230 = vcombine.high %v7220, 0.0
        %v7231 = vcombine.high %v7227, 0.0
        %7233 = vrot.lane.b32.xlu0 %v7160, 16
        %v7234 = vpop.permute.xlu0 %7233
        %7237 = vrot.lane.b32.xlu0 %v7143, 32
        %v7238 = vpop.permute.xlu0 %7237
        %7241 = vrot.lane.b32.xlu0 %v7161, 48
        %v7242 = vpop.permute.xlu0 %7241
        %7245 = vrot.lane.b32.xlu0 %v7152, 64
        %v7246 = vpop.permute.xlu0 %7245
        %7249 = vrot.lane.b32.xlu0 %v7162, 80
        %v7250 = vpop.permute.xlu0 %7249
        %7253 = vrot.lane.b32.xlu0 %v7159, 96
        %v7254 = vpop.permute.xlu0 %7253
        %7257 = vrot.lane.b32.xlu0 %v7163, 112
        %v7258 = vpop.permute.xlu0 %7257
        %7261 = vrot.lane.b32.xlu0 %v7228, 16
        %v7262 = vpop.permute.xlu0 %7261
        %7265 = vrot.lane.b32.xlu0 %v7211, 32
        %v7266 = vpop.permute.xlu0 %7265
        %7269 = vrot.lane.b32.xlu0 %v7229, 48
        %v7270 = vpop.permute.xlu0 %7269
        %7273 = vrot.lane.b32.xlu0 %v7220, 64
        %v7274 = vpop.permute.xlu0 %7273
        %7277 = vrot.lane.b32.xlu0 %v7230, 80
        %v7278 = vpop.permute.xlu0 %7277
        %7281 = vrot.lane.b32.xlu0 %v7227, 96
        %v7282 = vpop.permute.xlu0 %7281
        %7285 = vrot.lane.b32.xlu0 %v7231, 112
        %v7286 = vpop.permute.xlu0 %7285
        %v7288 = vsel %vm1046, %v7136, %v7234
        %v7289 = vsel %vm1048, %v7288, %v7238
        %v7290 = vsel %vm1050, %v7289, %v7242
        %v7291 = vsel %vm1052, %v7290, %v7246
        %v7292 = vsel %vm1054, %v7291, %v7250
        %v7293 = vsel %vm1056, %v7292, %v7254
        %v7294 = vsel %vm1058, %v7293, %v7258
        %v7295 = vsel %vm1046, %v7204, %v7262
        %v7296 = vsel %vm1048, %v7295, %v7266
        %v7297 = vsel %vm1050, %v7296, %v7270
        %v7298 = vsel %vm1052, %v7297, %v7274
        %v7299 = vsel %vm1054, %v7298, %v7278
        %v7300 = vsel %vm1056, %v7299, %v7282
        %v7301 = vsel %vm1058, %v7300, %v7286
        %7302 = vst [vmem:[#allocation6 + $0x80] sm:$0xf] %v7294
        %7303 = vst [vmem:[#allocation6 + $0x88] sm:$0xf] %v7301
        %v7304 = vld [vmem:[#allocation5 + $0x3] sm:$0xff]
        %v7305 = vld [vmem:[#allocation5 + $0xb] sm:$0xff]
        %v7306 = vld [vmem:[#allocation5 + $0x1b] sm:$0xff]
        %v7307 = vld [vmem:[#allocation5 + $0x23] sm:$0xff]
        %v7308 = vld [vmem:[#allocation5 + $0x33] sm:$0xff]
        %v7309 = vld [vmem:[#allocation5 + $0x3b] sm:$0xff]
        %v7310 = vld [vmem:[#allocation5 + $0x4b] sm:$0xff]
        %v7311 = vld [vmem:[#allocation5 + $0x53] sm:$0xff]
        %7320 = vrot.lane.b32.xlu0 %v7304, 126
        %v7321 = vpop.permute.xlu0 %7320
        %7322 = vrot.lane.b32.xlu0 %v7305, 126
        %v7323 = vpop.permute.xlu0 %7322
        %7324 = vrot.lane.b32.xlu0 %v7306, 126
        %v7325 = vpop.permute.xlu0 %7324
        %7326 = vrot.lane.b32.xlu0 %v7307, 126
        %v7327 = vpop.permute.xlu0 %7326
        %7328 = vrot.lane.b32.xlu0 %v7308, 126
        %v7329 = vpop.permute.xlu0 %7328
        %7330 = vrot.lane.b32.xlu0 %v7309, 126
        %v7331 = vpop.permute.xlu0 %7330
        %7332 = vrot.lane.b32.xlu0 %v7310, 126
        %v7333 = vpop.permute.xlu0 %7332
        %7334 = vrot.lane.b32.xlu0 %v7311, 126
        %v7335 = vpop.permute.xlu0 %7334
        %v7344 = vcombine.low %v7321, %v7329
        %v7345 = vcombine.high %v7321, %v7329
        %v7347 = vunpack.c.l.s4 1983009808
        %v7348 = vunpack.c.0.s8 %v7347
        %v7349 = vlaneseq
        %v7350 = vshrl.u32 %v7349, 7
        %v7351 = vsub.s32 %v7348, %v7350
        %v7352 = vrot.slane %v7344, %v7351
        %v7354 = vunpack.c.l.s4 1983009808
        %v7355 = vunpack.c.0.s8 %v7354
        %v7356 = vlaneseq
        %v7357 = vshrl.u32 %v7356, 7
        %v7358 = vsub.s32 %v7355, %v7357
        %v7359 = vrot.slane %v7345, %v7358
        %v7360 = vcombine.low %v7325, %v7333
        %v7361 = vcombine.high %v7325, %v7333
        %v7363 = vunpack.c.l.s4 1983009808
        %v7364 = vunpack.c.0.s8 %v7363
        %v7365 = vlaneseq
        %v7366 = vshrl.u32 %v7365, 7
        %v7367 = vsub.s32 %v7364, %v7366
        %v7368 = vrot.slane %v7360, %v7367
        %v7370 = vunpack.c.l.s4 1983009808
        %v7371 = vunpack.c.0.s8 %v7370
        %v7372 = vlaneseq
        %v7373 = vshrl.u32 %v7372, 7
        %v7374 = vsub.s32 %v7371, %v7373
        %v7375 = vrot.slane %v7361, %v7374
        %v7376 = vcombine.low %v7352, %v7368
        %v7377 = vcombine.high %v7352, %v7368
        %v7379 = vunpack.c.l.s4 1934713408
        %v7380 = vunpack.c.0.s8 %v7379
        %v7381 = vlaneseq
        %v7382 = vshrl.u32 %v7381, 7
        %v7383 = vsub.s32 %v7380, %v7382
        %v7384 = vrot.slane %v7376, %v7383
        %v7386 = vunpack.c.l.s4 1934713408
        %v7387 = vunpack.c.0.s8 %v7386
        %v7388 = vlaneseq
        %v7389 = vshrl.u32 %v7388, 7
        %v7390 = vsub.s32 %v7387, %v7389
        %v7391 = vrot.slane %v7377, %v7390
        %v7392 = vcombine.low %v7359, %v7375
        %v7393 = vcombine.high %v7359, %v7375
        %v7395 = vunpack.c.l.s4 1934713408
        %v7396 = vunpack.c.0.s8 %v7395
        %v7397 = vlaneseq
        %v7398 = vshrl.u32 %v7397, 7
        %v7399 = vsub.s32 %v7396, %v7398
        %v7400 = vrot.slane %v7392, %v7399
        %v7402 = vunpack.c.l.s4 1934713408
        %v7403 = vunpack.c.0.s8 %v7402
        %v7404 = vlaneseq
        %v7405 = vshrl.u32 %v7404, 7
        %v7406 = vsub.s32 %v7403, %v7405
        %v7407 = vrot.slane %v7393, %v7406
        %v7408 = vcombine.high %v7384, 0.0
        %v7409 = vcombine.high %v7391, 0.0
        %v7410 = vcombine.high %v7400, 0.0
        %v7411 = vcombine.high %v7407, 0.0
        %v7412 = vcombine.low %v7323, %v7331
        %v7413 = vcombine.high %v7323, %v7331
        %v7415 = vunpack.c.l.s4 1983009808
        %v7416 = vunpack.c.0.s8 %v7415
        %v7417 = vlaneseq
        %v7418 = vshrl.u32 %v7417, 7
        %v7419 = vsub.s32 %v7416, %v7418
        %v7420 = vrot.slane %v7412, %v7419
        %v7422 = vunpack.c.l.s4 1983009808
        %v7423 = vunpack.c.0.s8 %v7422
        %v7424 = vlaneseq
        %v7425 = vshrl.u32 %v7424, 7
        %v7426 = vsub.s32 %v7423, %v7425
        %v7427 = vrot.slane %v7413, %v7426
        %v7428 = vcombine.low %v7327, %v7335
        %v7429 = vcombine.high %v7327, %v7335
        %v7431 = vunpack.c.l.s4 1983009808
        %v7432 = vunpack.c.0.s8 %v7431
        %v7433 = vlaneseq
        %v7434 = vshrl.u32 %v7433, 7
        %v7435 = vsub.s32 %v7432, %v7434
        %v7436 = vrot.slane %v7428, %v7435
        %v7438 = vunpack.c.l.s4 1983009808
        %v7439 = vunpack.c.0.s8 %v7438
        %v7440 = vlaneseq
        %v7441 = vshrl.u32 %v7440, 7
        %v7442 = vsub.s32 %v7439, %v7441
        %v7443 = vrot.slane %v7429, %v7442
        %v7444 = vcombine.low %v7420, %v7436
        %v7445 = vcombine.high %v7420, %v7436
        %v7447 = vunpack.c.l.s4 1934713408
        %v7448 = vunpack.c.0.s8 %v7447
        %v7449 = vlaneseq
        %v7450 = vshrl.u32 %v7449, 7
        %v7451 = vsub.s32 %v7448, %v7450
        %v7452 = vrot.slane %v7444, %v7451
        %v7454 = vunpack.c.l.s4 1934713408
        %v7455 = vunpack.c.0.s8 %v7454
        %v7456 = vlaneseq
        %v7457 = vshrl.u32 %v7456, 7
        %v7458 = vsub.s32 %v7455, %v7457
        %v7459 = vrot.slane %v7445, %v7458
        %v7460 = vcombine.low %v7427, %v7443
        %v7461 = vcombine.high %v7427, %v7443
        %v7463 = vunpack.c.l.s4 1934713408
        %v7464 = vunpack.c.0.s8 %v7463
        %v7465 = vlaneseq
        %v7466 = vshrl.u32 %v7465, 7
        %v7467 = vsub.s32 %v7464, %v7466
        %v7468 = vrot.slane %v7460, %v7467
        %v7470 = vunpack.c.l.s4 1934713408
        %v7471 = vunpack.c.0.s8 %v7470
        %v7472 = vlaneseq
        %v7473 = vshrl.u32 %v7472, 7
        %v7474 = vsub.s32 %v7471, %v7473
        %v7475 = vrot.slane %v7461, %v7474
        %v7476 = vcombine.high %v7452, 0.0
        %v7477 = vcombine.high %v7459, 0.0
        %v7478 = vcombine.high %v7468, 0.0
        %v7479 = vcombine.high %v7475, 0.0
        %7481 = vrot.lane.b32.xlu0 %v7408, 16
        %v7482 = vpop.permute.xlu0 %7481
        %7485 = vrot.lane.b32.xlu0 %v7391, 32
        %v7486 = vpop.permute.xlu0 %7485
        %7489 = vrot.lane.b32.xlu0 %v7409, 48
        %v7490 = vpop.permute.xlu0 %7489
        %7493 = vrot.lane.b32.xlu0 %v7400, 64
        %v7494 = vpop.permute.xlu0 %7493
        %7497 = vrot.lane.b32.xlu0 %v7410, 80
        %v7498 = vpop.permute.xlu0 %7497
        %7501 = vrot.lane.b32.xlu0 %v7407, 96
        %v7502 = vpop.permute.xlu0 %7501
        %7505 = vrot.lane.b32.xlu0 %v7411, 112
        %v7506 = vpop.permute.xlu0 %7505
        %7509 = vrot.lane.b32.xlu0 %v7476, 16
        %v7510 = vpop.permute.xlu0 %7509
        %7513 = vrot.lane.b32.xlu0 %v7459, 32
        %v7514 = vpop.permute.xlu0 %7513
        %7517 = vrot.lane.b32.xlu0 %v7477, 48
        %v7518 = vpop.permute.xlu0 %7517
        %7521 = vrot.lane.b32.xlu0 %v7468, 64
        %v7522 = vpop.permute.xlu0 %7521
        %7525 = vrot.lane.b32.xlu0 %v7478, 80
        %v7526 = vpop.permute.xlu0 %7525
        %7529 = vrot.lane.b32.xlu0 %v7475, 96
        %v7530 = vpop.permute.xlu0 %7529
        %7533 = vrot.lane.b32.xlu0 %v7479, 112
        %v7534 = vpop.permute.xlu0 %7533
        %v7536 = vsel %vm1046, %v7384, %v7482
        %v7537 = vsel %vm1048, %v7536, %v7486
        %v7538 = vsel %vm1050, %v7537, %v7490
        %v7539 = vsel %vm1052, %v7538, %v7494
        %v7540 = vsel %vm1054, %v7539, %v7498
        %v7541 = vsel %vm1056, %v7540, %v7502
        %v7542 = vsel %vm1058, %v7541, %v7506
        %v7543 = vsel %vm1046, %v7452, %v7510
        %v7544 = vsel %vm1048, %v7543, %v7514
        %v7545 = vsel %vm1050, %v7544, %v7518
        %v7546 = vsel %vm1052, %v7545, %v7522
        %v7547 = vsel %vm1054, %v7546, %v7526
        %v7548 = vsel %vm1056, %v7547, %v7530
        %v7549 = vsel %vm1058, %v7548, %v7534
        %v7552 = vrot.slane %v7542, 4
        %v7553 = vrot.slane %v7549, 4
        %7556 = vst [vmem:[#allocation6 + $0x80] sm:$0xf0] %v7552
        %7557 = vst [vmem:[#allocation6 + $0x88] sm:$0xf0] %v7553
        %v7558 = vld [vmem:[#allocation5 + $0x3] sm:$0xff]
        %v7559 = vld [vmem:[#allocation5 + $0xb] sm:$0xff]
        %v7560 = vld [vmem:[#allocation5 + $0x1b] sm:$0xff]
        %v7561 = vld [vmem:[#allocation5 + $0x23] sm:$0xff]
        %v7562 = vld [vmem:[#allocation5 + $0x33] sm:$0xff]
        %v7563 = vld [vmem:[#allocation5 + $0x3b] sm:$0xff]
        %v7564 = vld [vmem:[#allocation5 + $0x4b] sm:$0xff]
        %v7565 = vld [vmem:[#allocation5 + $0x53] sm:$0xff]
        %7574 = vrot.lane.b32.xlu0 %v7558, 125
        %v7575 = vpop.permute.xlu0 %7574
        %7576 = vrot.lane.b32.xlu0 %v7559, 125
        %v7577 = vpop.permute.xlu0 %7576
        %7578 = vrot.lane.b32.xlu0 %v7560, 125
        %v7579 = vpop.permute.xlu0 %7578
        %7580 = vrot.lane.b32.xlu0 %v7561, 125
        %v7581 = vpop.permute.xlu0 %7580
        %7582 = vrot.lane.b32.xlu0 %v7562, 125
        %v7583 = vpop.permute.xlu0 %7582
        %7584 = vrot.lane.b32.xlu0 %v7563, 125
        %v7585 = vpop.permute.xlu0 %7584
        %7586 = vrot.lane.b32.xlu0 %v7564, 125
        %v7587 = vpop.permute.xlu0 %7586
        %7588 = vrot.lane.b32.xlu0 %v7565, 125
        %v7589 = vpop.permute.xlu0 %7588
        %v7598 = vcombine.low %v7575, %v7583
        %v7599 = vcombine.high %v7575, %v7583
        %v7601 = vunpack.c.l.s4 1983009808
        %v7602 = vunpack.c.0.s8 %v7601
        %v7603 = vlaneseq
        %v7604 = vshrl.u32 %v7603, 7
        %v7605 = vsub.s32 %v7602, %v7604
        %v7606 = vrot.slane %v7598, %v7605
        %v7608 = vunpack.c.l.s4 1983009808
        %v7609 = vunpack.c.0.s8 %v7608
        %v7610 = vlaneseq
        %v7611 = vshrl.u32 %v7610, 7
        %v7612 = vsub.s32 %v7609, %v7611
        %v7613 = vrot.slane %v7599, %v7612
        %v7614 = vcombine.low %v7579, %v7587
        %v7615 = vcombine.high %v7579, %v7587
        %v7617 = vunpack.c.l.s4 1983009808
        %v7618 = vunpack.c.0.s8 %v7617
        %v7619 = vlaneseq
        %v7620 = vshrl.u32 %v7619, 7
        %v7621 = vsub.s32 %v7618, %v7620
        %v7622 = vrot.slane %v7614, %v7621
        %v7624 = vunpack.c.l.s4 1983009808
        %v7625 = vunpack.c.0.s8 %v7624
        %v7626 = vlaneseq
        %v7627 = vshrl.u32 %v7626, 7
        %v7628 = vsub.s32 %v7625, %v7627
        %v7629 = vrot.slane %v7615, %v7628
        %v7630 = vcombine.low %v7606, %v7622
        %v7631 = vcombine.high %v7606, %v7622
        %v7633 = vunpack.c.l.s4 1934713408
        %v7634 = vunpack.c.0.s8 %v7633
        %v7635 = vlaneseq
        %v7636 = vshrl.u32 %v7635, 7
        %v7637 = vsub.s32 %v7634, %v7636
        %v7638 = vrot.slane %v7630, %v7637
        %v7640 = vunpack.c.l.s4 1934713408
        %v7641 = vunpack.c.0.s8 %v7640
        %v7642 = vlaneseq
        %v7643 = vshrl.u32 %v7642, 7
        %v7644 = vsub.s32 %v7641, %v7643
        %v7645 = vrot.slane %v7631, %v7644
        %v7646 = vcombine.low %v7613, %v7629
        %v7647 = vcombine.high %v7613, %v7629
        %v7649 = vunpack.c.l.s4 1934713408
        %v7650 = vunpack.c.0.s8 %v7649
        %v7651 = vlaneseq
        %v7652 = vshrl.u32 %v7651, 7
        %v7653 = vsub.s32 %v7650, %v7652
        %v7654 = vrot.slane %v7646, %v7653
        %v7656 = vunpack.c.l.s4 1934713408
        %v7657 = vunpack.c.0.s8 %v7656
        %v7658 = vlaneseq
        %v7659 = vshrl.u32 %v7658, 7
        %v7660 = vsub.s32 %v7657, %v7659
        %v7661 = vrot.slane %v7647, %v7660
        %v7662 = vcombine.high %v7638, 0.0
        %v7663 = vcombine.high %v7645, 0.0
        %v7664 = vcombine.high %v7654, 0.0
        %v7665 = vcombine.high %v7661, 0.0
        %v7666 = vcombine.low %v7577, %v7585
        %v7667 = vcombine.high %v7577, %v7585
        %v7669 = vunpack.c.l.s4 1983009808
        %v7670 = vunpack.c.0.s8 %v7669
        %v7671 = vlaneseq
        %v7672 = vshrl.u32 %v7671, 7
        %v7673 = vsub.s32 %v7670, %v7672
        %v7674 = vrot.slane %v7666, %v7673
        %v7676 = vunpack.c.l.s4 1983009808
        %v7677 = vunpack.c.0.s8 %v7676
        %v7678 = vlaneseq
        %v7679 = vshrl.u32 %v7678, 7
        %v7680 = vsub.s32 %v7677, %v7679
        %v7681 = vrot.slane %v7667, %v7680
        %v7682 = vcombine.low %v7581, %v7589
        %v7683 = vcombine.high %v7581, %v7589
        %v7685 = vunpack.c.l.s4 1983009808
        %v7686 = vunpack.c.0.s8 %v7685
        %v7687 = vlaneseq
        %v7688 = vshrl.u32 %v7687, 7
        %v7689 = vsub.s32 %v7686, %v7688
        %v7690 = vrot.slane %v7682, %v7689
        %v7692 = vunpack.c.l.s4 1983009808
        %v7693 = vunpack.c.0.s8 %v7692
        %v7694 = vlaneseq
        %v7695 = vshrl.u32 %v7694, 7
        %v7696 = vsub.s32 %v7693, %v7695
        %v7697 = vrot.slane %v7683, %v7696
        %v7698 = vcombine.low %v7674, %v7690
        %v7699 = vcombine.high %v7674, %v7690
        %v7701 = vunpack.c.l.s4 1934713408
        %v7702 = vunpack.c.0.s8 %v7701
        %v7703 = vlaneseq
        %v7704 = vshrl.u32 %v7703, 7
        %v7705 = vsub.s32 %v7702, %v7704
        %v7706 = vrot.slane %v7698, %v7705
        %v7708 = vunpack.c.l.s4 1934713408
        %v7709 = vunpack.c.0.s8 %v7708
        %v7710 = vlaneseq
        %v7711 = vshrl.u32 %v7710, 7
        %v7712 = vsub.s32 %v7709, %v7711
        %v7713 = vrot.slane %v7699, %v7712
        %v7714 = vcombine.low %v7681, %v7697
        %v7715 = vcombine.high %v7681, %v7697
        %v7717 = vunpack.c.l.s4 1934713408
        %v7718 = vunpack.c.0.s8 %v7717
        %v7719 = vlaneseq
        %v7720 = vshrl.u32 %v7719, 7
        %v7721 = vsub.s32 %v7718, %v7720
        %v7722 = vrot.slane %v7714, %v7721
        %v7724 = vunpack.c.l.s4 1934713408
        %v7725 = vunpack.c.0.s8 %v7724
        %v7726 = vlaneseq
        %v7727 = vshrl.u32 %v7726, 7
        %v7728 = vsub.s32 %v7725, %v7727
        %v7729 = vrot.slane %v7715, %v7728
        %v7730 = vcombine.high %v7706, 0.0
        %v7731 = vcombine.high %v7713, 0.0
        %v7732 = vcombine.high %v7722, 0.0
        %v7733 = vcombine.high %v7729, 0.0
        %7735 = vrot.lane.b32.xlu0 %v7662, 16
        %v7736 = vpop.permute.xlu0 %7735
        %7739 = vrot.lane.b32.xlu0 %v7645, 32
        %v7740 = vpop.permute.xlu0 %7739
        %7743 = vrot.lane.b32.xlu0 %v7663, 48
        %v7744 = vpop.permute.xlu0 %7743
        %7747 = vrot.lane.b32.xlu0 %v7654, 64
        %v7748 = vpop.permute.xlu0 %7747
        %7751 = vrot.lane.b32.xlu0 %v7664, 80
        %v7752 = vpop.permute.xlu0 %7751
        %7755 = vrot.lane.b32.xlu0 %v7661, 96
        %v7756 = vpop.permute.xlu0 %7755
        %7759 = vrot.lane.b32.xlu0 %v7665, 112
        %v7760 = vpop.permute.xlu0 %7759
        %7763 = vrot.lane.b32.xlu0 %v7730, 16
        %v7764 = vpop.permute.xlu0 %7763
        %7767 = vrot.lane.b32.xlu0 %v7713, 32
        %v7768 = vpop.permute.xlu0 %7767
        %7771 = vrot.lane.b32.xlu0 %v7731, 48
        %v7772 = vpop.permute.xlu0 %7771
        %7775 = vrot.lane.b32.xlu0 %v7722, 64
        %v7776 = vpop.permute.xlu0 %7775
        %7779 = vrot.lane.b32.xlu0 %v7732, 80
        %v7780 = vpop.permute.xlu0 %7779
        %7783 = vrot.lane.b32.xlu0 %v7729, 96
        %v7784 = vpop.permute.xlu0 %7783
        %7787 = vrot.lane.b32.xlu0 %v7733, 112
        %v7788 = vpop.permute.xlu0 %7787
        %v7790 = vsel %vm1046, %v7638, %v7736
        %v7791 = vsel %vm1048, %v7790, %v7740
        %v7792 = vsel %vm1050, %v7791, %v7744
        %v7793 = vsel %vm1052, %v7792, %v7748
        %v7794 = vsel %vm1054, %v7793, %v7752
        %v7795 = vsel %vm1056, %v7794, %v7756
        %v7796 = vsel %vm1058, %v7795, %v7760
        %v7797 = vsel %vm1046, %v7706, %v7764
        %v7798 = vsel %vm1048, %v7797, %v7768
        %v7799 = vsel %vm1050, %v7798, %v7772
        %v7800 = vsel %vm1052, %v7799, %v7776
        %v7801 = vsel %vm1054, %v7800, %v7780
        %v7802 = vsel %vm1056, %v7801, %v7784
        %v7803 = vsel %vm1058, %v7802, %v7788
        %7804 = vst [vmem:[#allocation6 + $0x90] sm:$0xf] %v7796
        %7805 = vst [vmem:[#allocation6 + $0x98] sm:$0xf] %v7803
        %v7806 = vld [vmem:[#allocation5 + $0x3] sm:$0xff]
        %v7807 = vld [vmem:[#allocation5 + $0xb] sm:$0xff]
        %v7808 = vld [vmem:[#allocation5 + $0x1b] sm:$0xff]
        %v7809 = vld [vmem:[#allocation5 + $0x23] sm:$0xff]
        %v7810 = vld [vmem:[#allocation5 + $0x33] sm:$0xff]
        %v7811 = vld [vmem:[#allocation5 + $0x3b] sm:$0xff]
        %v7812 = vld [vmem:[#allocation5 + $0x4b] sm:$0xff]
        %v7813 = vld [vmem:[#allocation5 + $0x53] sm:$0xff]
        %7822 = vrot.lane.b32.xlu0 %v7806, 124
        %v7823 = vpop.permute.xlu0 %7822
        %7824 = vrot.lane.b32.xlu0 %v7807, 124
        %v7825 = vpop.permute.xlu0 %7824
        %7826 = vrot.lane.b32.xlu0 %v7808, 124
        %v7827 = vpop.permute.xlu0 %7826
        %7828 = vrot.lane.b32.xlu0 %v7809, 124
        %v7829 = vpop.permute.xlu0 %7828
        %7830 = vrot.lane.b32.xlu0 %v7810, 124
        %v7831 = vpop.permute.xlu0 %7830
        %7832 = vrot.lane.b32.xlu0 %v7811, 124
        %v7833 = vpop.permute.xlu0 %7832
        %7834 = vrot.lane.b32.xlu0 %v7812, 124
        %v7835 = vpop.permute.xlu0 %7834
        %7836 = vrot.lane.b32.xlu0 %v7813, 124
        %v7837 = vpop.permute.xlu0 %7836
        %v7846 = vcombine.low %v7823, %v7831
        %v7847 = vcombine.high %v7823, %v7831
        %v7849 = vunpack.c.l.s4 1983009808
        %v7850 = vunpack.c.0.s8 %v7849
        %v7851 = vlaneseq
        %v7852 = vshrl.u32 %v7851, 7
        %v7853 = vsub.s32 %v7850, %v7852
        %v7854 = vrot.slane %v7846, %v7853
        %v7856 = vunpack.c.l.s4 1983009808
        %v7857 = vunpack.c.0.s8 %v7856
        %v7858 = vlaneseq
        %v7859 = vshrl.u32 %v7858, 7
        %v7860 = vsub.s32 %v7857, %v7859
        %v7861 = vrot.slane %v7847, %v7860
        %v7862 = vcombine.low %v7827, %v7835
        %v7863 = vcombine.high %v7827, %v7835
        %v7865 = vunpack.c.l.s4 1983009808
        %v7866 = vunpack.c.0.s8 %v7865
        %v7867 = vlaneseq
        %v7868 = vshrl.u32 %v7867, 7
        %v7869 = vsub.s32 %v7866, %v7868
        %v7870 = vrot.slane %v7862, %v7869
        %v7872 = vunpack.c.l.s4 1983009808
        %v7873 = vunpack.c.0.s8 %v7872
        %v7874 = vlaneseq
        %v7875 = vshrl.u32 %v7874, 7
        %v7876 = vsub.s32 %v7873, %v7875
        %v7877 = vrot.slane %v7863, %v7876
        %v7878 = vcombine.low %v7854, %v7870
        %v7879 = vcombine.high %v7854, %v7870
        %v7881 = vunpack.c.l.s4 1934713408
        %v7882 = vunpack.c.0.s8 %v7881
        %v7883 = vlaneseq
        %v7884 = vshrl.u32 %v7883, 7
        %v7885 = vsub.s32 %v7882, %v7884
        %v7886 = vrot.slane %v7878, %v7885
        %v7888 = vunpack.c.l.s4 1934713408
        %v7889 = vunpack.c.0.s8 %v7888
        %v7890 = vlaneseq
        %v7891 = vshrl.u32 %v7890, 7
        %v7892 = vsub.s32 %v7889, %v7891
        %v7893 = vrot.slane %v7879, %v7892
        %v7894 = vcombine.low %v7861, %v7877
        %v7895 = vcombine.high %v7861, %v7877
        %v7897 = vunpack.c.l.s4 1934713408
        %v7898 = vunpack.c.0.s8 %v7897
        %v7899 = vlaneseq
        %v7900 = vshrl.u32 %v7899, 7
        %v7901 = vsub.s32 %v7898, %v7900
        %v7902 = vrot.slane %v7894, %v7901
        %v7904 = vunpack.c.l.s4 1934713408
        %v7905 = vunpack.c.0.s8 %v7904
        %v7906 = vlaneseq
        %v7907 = vshrl.u32 %v7906, 7
        %v7908 = vsub.s32 %v7905, %v7907
        %v7909 = vrot.slane %v7895, %v7908
        %v7910 = vcombine.high %v7886, 0.0
        %v7911 = vcombine.high %v7893, 0.0
        %v7912 = vcombine.high %v7902, 0.0
        %v7913 = vcombine.high %v7909, 0.0
        %v7914 = vcombine.low %v7825, %v7833
        %v7915 = vcombine.high %v7825, %v7833
        %v7917 = vunpack.c.l.s4 1983009808
        %v7918 = vunpack.c.0.s8 %v7917
        %v7919 = vlaneseq
        %v7920 = vshrl.u32 %v7919, 7
        %v7921 = vsub.s32 %v7918, %v7920
        %v7922 = vrot.slane %v7914, %v7921
        %v7924 = vunpack.c.l.s4 1983009808
        %v7925 = vunpack.c.0.s8 %v7924
        %v7926 = vlaneseq
        %v7927 = vshrl.u32 %v7926, 7
        %v7928 = vsub.s32 %v7925, %v7927
        %v7929 = vrot.slane %v7915, %v7928
        %v7930 = vcombine.low %v7829, %v7837
        %v7931 = vcombine.high %v7829, %v7837
        %v7933 = vunpack.c.l.s4 1983009808
        %v7934 = vunpack.c.0.s8 %v7933
        %v7935 = vlaneseq
        %v7936 = vshrl.u32 %v7935, 7
        %v7937 = vsub.s32 %v7934, %v7936
        %v7938 = vrot.slane %v7930, %v7937
        %v7940 = vunpack.c.l.s4 1983009808
        %v7941 = vunpack.c.0.s8 %v7940
        %v7942 = vlaneseq
        %v7943 = vshrl.u32 %v7942, 7
        %v7944 = vsub.s32 %v7941, %v7943
        %v7945 = vrot.slane %v7931, %v7944
        %v7946 = vcombine.low %v7922, %v7938
        %v7947 = vcombine.high %v7922, %v7938
        %v7949 = vunpack.c.l.s4 1934713408
        %v7950 = vunpack.c.0.s8 %v7949
        %v7951 = vlaneseq
        %v7952 = vshrl.u32 %v7951, 7
        %v7953 = vsub.s32 %v7950, %v7952
        %v7954 = vrot.slane %v7946, %v7953
        %v7956 = vunpack.c.l.s4 1934713408
        %v7957 = vunpack.c.0.s8 %v7956
        %v7958 = vlaneseq
        %v7959 = vshrl.u32 %v7958, 7
        %v7960 = vsub.s32 %v7957, %v7959
        %v7961 = vrot.slane %v7947, %v7960
        %v7962 = vcombine.low %v7929, %v7945
        %v7963 = vcombine.high %v7929, %v7945
        %v7965 = vunpack.c.l.s4 1934713408
        %v7966 = vunpack.c.0.s8 %v7965
        %v7967 = vlaneseq
        %v7968 = vshrl.u32 %v7967, 7
        %v7969 = vsub.s32 %v7966, %v7968
        %v7970 = vrot.slane %v7962, %v7969
        %v7972 = vunpack.c.l.s4 1934713408
        %v7973 = vunpack.c.0.s8 %v7972
        %v7974 = vlaneseq
        %v7975 = vshrl.u32 %v7974, 7
        %v7976 = vsub.s32 %v7973, %v7975
        %v7977 = vrot.slane %v7963, %v7976
        %v7978 = vcombine.high %v7954, 0.0
        %v7979 = vcombine.high %v7961, 0.0
        %v7980 = vcombine.high %v7970, 0.0
        %v7981 = vcombine.high %v7977, 0.0
        %7983 = vrot.lane.b32.xlu0 %v7910, 16
        %v7984 = vpop.permute.xlu0 %7983
        %7987 = vrot.lane.b32.xlu0 %v7893, 32
        %v7988 = vpop.permute.xlu0 %7987
        %7991 = vrot.lane.b32.xlu0 %v7911, 48
        %v7992 = vpop.permute.xlu0 %7991
        %7995 = vrot.lane.b32.xlu0 %v7902, 64
        %v7996 = vpop.permute.xlu0 %7995
        %7999 = vrot.lane.b32.xlu0 %v7912, 80
        %v8000 = vpop.permute.xlu0 %7999
        %8003 = vrot.lane.b32.xlu0 %v7909, 96
        %v8004 = vpop.permute.xlu0 %8003
        %8007 = vrot.lane.b32.xlu0 %v7913, 112
        %v8008 = vpop.permute.xlu0 %8007
        %8011 = vrot.lane.b32.xlu0 %v7978, 16
        %v8012 = vpop.permute.xlu0 %8011
        %8015 = vrot.lane.b32.xlu0 %v7961, 32
        %v8016 = vpop.permute.xlu0 %8015
        %8019 = vrot.lane.b32.xlu0 %v7979, 48
        %v8020 = vpop.permute.xlu0 %8019
        %8023 = vrot.lane.b32.xlu0 %v7970, 64
        %v8024 = vpop.permute.xlu0 %8023
        %8027 = vrot.lane.b32.xlu0 %v7980, 80
        %v8028 = vpop.permute.xlu0 %8027
        %8031 = vrot.lane.b32.xlu0 %v7977, 96
        %v8032 = vpop.permute.xlu0 %8031
        %8035 = vrot.lane.b32.xlu0 %v7981, 112
        %v8036 = vpop.permute.xlu0 %8035
        %v8038 = vsel %vm1046, %v7886, %v7984
        %v8039 = vsel %vm1048, %v8038, %v7988
        %v8040 = vsel %vm1050, %v8039, %v7992
        %v8041 = vsel %vm1052, %v8040, %v7996
        %v8042 = vsel %vm1054, %v8041, %v8000
        %v8043 = vsel %vm1056, %v8042, %v8004
        %v8044 = vsel %vm1058, %v8043, %v8008
        %v8045 = vsel %vm1046, %v7954, %v8012
        %v8046 = vsel %vm1048, %v8045, %v8016
        %v8047 = vsel %vm1050, %v8046, %v8020
        %v8048 = vsel %vm1052, %v8047, %v8024
        %v8049 = vsel %vm1054, %v8048, %v8028
        %v8050 = vsel %vm1056, %v8049, %v8032
        %v8051 = vsel %vm1058, %v8050, %v8036
        %v8054 = vrot.slane %v8044, 4
        %v8055 = vrot.slane %v8051, 4
        %8058 = vst [vmem:[#allocation6 + $0x90] sm:$0xf0] %v8054
        %8059 = vst [vmem:[#allocation6 + $0x98] sm:$0xf0] %v8055
        %v8060 = vld [vmem:[#allocation5 + $0x4] sm:$0xff]
        %v8061 = vld [vmem:[#allocation5 + $0xc] sm:$0xff]
        %v8062 = vld [vmem:[#allocation5 + $0x1c] sm:$0xff]
        %v8063 = vld [vmem:[#allocation5 + $0x24] sm:$0xff]
        %v8064 = vld [vmem:[#allocation5 + $0x34] sm:$0xff]
        %v8065 = vld [vmem:[#allocation5 + $0x3c] sm:$0xff]
        %v8066 = vld [vmem:[#allocation5 + $0x4c] sm:$0xff]
        %v8067 = vld [vmem:[#allocation5 + $0x54] sm:$0xff]
        %v8068 = vcombine.low %v8060, %v8064
        %v8069 = vcombine.high %v8060, %v8064
        %v8071 = vunpack.c.l.s4 1983009808
        %v8072 = vunpack.c.0.s8 %v8071
        %v8073 = vlaneseq
        %v8074 = vshrl.u32 %v8073, 7
        %v8075 = vsub.s32 %v8072, %v8074
        %v8076 = vrot.slane %v8068, %v8075
        %v8078 = vunpack.c.l.s4 1983009808
        %v8079 = vunpack.c.0.s8 %v8078
        %v8080 = vlaneseq
        %v8081 = vshrl.u32 %v8080, 7
        %v8082 = vsub.s32 %v8079, %v8081
        %v8083 = vrot.slane %v8069, %v8082
        %v8084 = vcombine.low %v8062, %v8066
        %v8085 = vcombine.high %v8062, %v8066
        %v8087 = vunpack.c.l.s4 1983009808
        %v8088 = vunpack.c.0.s8 %v8087
        %v8089 = vlaneseq
        %v8090 = vshrl.u32 %v8089, 7
        %v8091 = vsub.s32 %v8088, %v8090
        %v8092 = vrot.slane %v8084, %v8091
        %v8094 = vunpack.c.l.s4 1983009808
        %v8095 = vunpack.c.0.s8 %v8094
        %v8096 = vlaneseq
        %v8097 = vshrl.u32 %v8096, 7
        %v8098 = vsub.s32 %v8095, %v8097
        %v8099 = vrot.slane %v8085, %v8098
        %v8100 = vcombine.low %v8076, %v8092
        %v8101 = vcombine.high %v8076, %v8092
        %v8103 = vunpack.c.l.s4 1934713408
        %v8104 = vunpack.c.0.s8 %v8103
        %v8105 = vlaneseq
        %v8106 = vshrl.u32 %v8105, 7
        %v8107 = vsub.s32 %v8104, %v8106
        %v8108 = vrot.slane %v8100, %v8107
        %v8110 = vunpack.c.l.s4 1934713408
        %v8111 = vunpack.c.0.s8 %v8110
        %v8112 = vlaneseq
        %v8113 = vshrl.u32 %v8112, 7
        %v8114 = vsub.s32 %v8111, %v8113
        %v8115 = vrot.slane %v8101, %v8114
        %v8116 = vcombine.low %v8083, %v8099
        %v8117 = vcombine.high %v8083, %v8099
        %v8119 = vunpack.c.l.s4 1934713408
        %v8120 = vunpack.c.0.s8 %v8119
        %v8121 = vlaneseq
        %v8122 = vshrl.u32 %v8121, 7
        %v8123 = vsub.s32 %v8120, %v8122
        %v8124 = vrot.slane %v8116, %v8123
        %v8126 = vunpack.c.l.s4 1934713408
        %v8127 = vunpack.c.0.s8 %v8126
        %v8128 = vlaneseq
        %v8129 = vshrl.u32 %v8128, 7
        %v8130 = vsub.s32 %v8127, %v8129
        %v8131 = vrot.slane %v8117, %v8130
        %v8132 = vcombine.high %v8108, 0.0
        %v8133 = vcombine.high %v8115, 0.0
        %v8134 = vcombine.high %v8124, 0.0
        %v8135 = vcombine.high %v8131, 0.0
        %v8136 = vcombine.low %v8061, %v8065
        %v8137 = vcombine.high %v8061, %v8065
        %v8139 = vunpack.c.l.s4 1983009808
        %v8140 = vunpack.c.0.s8 %v8139
        %v8141 = vlaneseq
        %v8142 = vshrl.u32 %v8141, 7
        %v8143 = vsub.s32 %v8140, %v8142
        %v8144 = vrot.slane %v8136, %v8143
        %v8146 = vunpack.c.l.s4 1983009808
        %v8147 = vunpack.c.0.s8 %v8146
        %v8148 = vlaneseq
        %v8149 = vshrl.u32 %v8148, 7
        %v8150 = vsub.s32 %v8147, %v8149
        %v8151 = vrot.slane %v8137, %v8150
        %v8152 = vcombine.low %v8063, %v8067
        %v8153 = vcombine.high %v8063, %v8067
        %v8155 = vunpack.c.l.s4 1983009808
        %v8156 = vunpack.c.0.s8 %v8155
        %v8157 = vlaneseq
        %v8158 = vshrl.u32 %v8157, 7
        %v8159 = vsub.s32 %v8156, %v8158
        %v8160 = vrot.slane %v8152, %v8159
        %v8162 = vunpack.c.l.s4 1983009808
        %v8163 = vunpack.c.0.s8 %v8162
        %v8164 = vlaneseq
        %v8165 = vshrl.u32 %v8164, 7
        %v8166 = vsub.s32 %v8163, %v8165
        %v8167 = vrot.slane %v8153, %v8166
        %v8168 = vcombine.low %v8144, %v8160
        %v8169 = vcombine.high %v8144, %v8160
        %v8171 = vunpack.c.l.s4 1934713408
        %v8172 = vunpack.c.0.s8 %v8171
        %v8173 = vlaneseq
        %v8174 = vshrl.u32 %v8173, 7
        %v8175 = vsub.s32 %v8172, %v8174
        %v8176 = vrot.slane %v8168, %v8175
        %v8178 = vunpack.c.l.s4 1934713408
        %v8179 = vunpack.c.0.s8 %v8178
        %v8180 = vlaneseq
        %v8181 = vshrl.u32 %v8180, 7
        %v8182 = vsub.s32 %v8179, %v8181
        %v8183 = vrot.slane %v8169, %v8182
        %v8184 = vcombine.low %v8151, %v8167
        %v8185 = vcombine.high %v8151, %v8167
        %v8187 = vunpack.c.l.s4 1934713408
        %v8188 = vunpack.c.0.s8 %v8187
        %v8189 = vlaneseq
        %v8190 = vshrl.u32 %v8189, 7
        %v8191 = vsub.s32 %v8188, %v8190
        %v8192 = vrot.slane %v8184, %v8191
        %v8194 = vunpack.c.l.s4 1934713408
        %v8195 = vunpack.c.0.s8 %v8194
        %v8196 = vlaneseq
        %v8197 = vshrl.u32 %v8196, 7
        %v8198 = vsub.s32 %v8195, %v8197
        %v8199 = vrot.slane %v8185, %v8198
        %v8200 = vcombine.high %v8176, 0.0
        %v8201 = vcombine.high %v8183, 0.0
        %v8202 = vcombine.high %v8192, 0.0
        %v8203 = vcombine.high %v8199, 0.0
        %8205 = vrot.lane.b32.xlu0 %v8132, 16
        %v8206 = vpop.permute.xlu0 %8205
        %8209 = vrot.lane.b32.xlu0 %v8115, 32
        %v8210 = vpop.permute.xlu0 %8209
        %8213 = vrot.lane.b32.xlu0 %v8133, 48
        %v8214 = vpop.permute.xlu0 %8213
        %8217 = vrot.lane.b32.xlu0 %v8124, 64
        %v8218 = vpop.permute.xlu0 %8217
        %8221 = vrot.lane.b32.xlu0 %v8134, 80
        %v8222 = vpop.permute.xlu0 %8221
        %8225 = vrot.lane.b32.xlu0 %v8131, 96
        %v8226 = vpop.permute.xlu0 %8225
        %8229 = vrot.lane.b32.xlu0 %v8135, 112
        %v8230 = vpop.permute.xlu0 %8229
        %8233 = vrot.lane.b32.xlu0 %v8200, 16
        %v8234 = vpop.permute.xlu0 %8233
        %8237 = vrot.lane.b32.xlu0 %v8183, 32
        %v8238 = vpop.permute.xlu0 %8237
        %8241 = vrot.lane.b32.xlu0 %v8201, 48
        %v8242 = vpop.permute.xlu0 %8241
        %8245 = vrot.lane.b32.xlu0 %v8192, 64
        %v8246 = vpop.permute.xlu0 %8245
        %8249 = vrot.lane.b32.xlu0 %v8202, 80
        %v8250 = vpop.permute.xlu0 %8249
        %8253 = vrot.lane.b32.xlu0 %v8199, 96
        %v8254 = vpop.permute.xlu0 %8253
        %8257 = vrot.lane.b32.xlu0 %v8203, 112
        %v8258 = vpop.permute.xlu0 %8257
        %v8260 = vsel %vm1046, %v8108, %v8206
        %v8261 = vsel %vm1048, %v8260, %v8210
        %v8262 = vsel %vm1050, %v8261, %v8214
        %v8263 = vsel %vm1052, %v8262, %v8218
        %v8264 = vsel %vm1054, %v8263, %v8222
        %v8265 = vsel %vm1056, %v8264, %v8226
        %v8266 = vsel %vm1058, %v8265, %v8230
        %v8267 = vsel %vm1046, %v8176, %v8234
        %v8268 = vsel %vm1048, %v8267, %v8238
        %v8269 = vsel %vm1050, %v8268, %v8242
        %v8270 = vsel %vm1052, %v8269, %v8246
        %v8271 = vsel %vm1054, %v8270, %v8250
        %v8272 = vsel %vm1056, %v8271, %v8254
        %v8273 = vsel %vm1058, %v8272, %v8258
        %8274 = vst [vmem:[#allocation6 + $0xa0] sm:$0xf] %v8266
        %8275 = vst [vmem:[#allocation6 + $0xa8] sm:$0xf] %v8273
        %v8276 = vld [vmem:[#allocation5 + $0x4] sm:$0xff]
        %v8277 = vld [vmem:[#allocation5 + $0xc] sm:$0xff]
        %v8278 = vld [vmem:[#allocation5 + $0x1c] sm:$0xff]
        %v8279 = vld [vmem:[#allocation5 + $0x24] sm:$0xff]
        %v8280 = vld [vmem:[#allocation5 + $0x34] sm:$0xff]
        %v8281 = vld [vmem:[#allocation5 + $0x3c] sm:$0xff]
        %v8282 = vld [vmem:[#allocation5 + $0x4c] sm:$0xff]
        %v8283 = vld [vmem:[#allocation5 + $0x54] sm:$0xff]
        %8292 = vrot.lane.b32.xlu0 %v8276, 127
        %v8293 = vpop.permute.xlu0 %8292
        %8294 = vrot.lane.b32.xlu0 %v8277, 127
        %v8295 = vpop.permute.xlu0 %8294
        %8296 = vrot.lane.b32.xlu0 %v8278, 127
        %v8297 = vpop.permute.xlu0 %8296
        %8298 = vrot.lane.b32.xlu0 %v8279, 127
        %v8299 = vpop.permute.xlu0 %8298
        %8300 = vrot.lane.b32.xlu0 %v8280, 127
        %v8301 = vpop.permute.xlu0 %8300
        %8302 = vrot.lane.b32.xlu0 %v8281, 127
        %v8303 = vpop.permute.xlu0 %8302
        %8304 = vrot.lane.b32.xlu0 %v8282, 127
        %v8305 = vpop.permute.xlu0 %8304
        %8306 = vrot.lane.b32.xlu0 %v8283, 127
        %v8307 = vpop.permute.xlu0 %8306
        %v8316 = vcombine.low %v8293, %v8301
        %v8317 = vcombine.high %v8293, %v8301
        %v8319 = vunpack.c.l.s4 1983009808
        %v8320 = vunpack.c.0.s8 %v8319
        %v8321 = vlaneseq
        %v8322 = vshrl.u32 %v8321, 7
        %v8323 = vsub.s32 %v8320, %v8322
        %v8324 = vrot.slane %v8316, %v8323
        %v8326 = vunpack.c.l.s4 1983009808
        %v8327 = vunpack.c.0.s8 %v8326
        %v8328 = vlaneseq
        %v8329 = vshrl.u32 %v8328, 7
        %v8330 = vsub.s32 %v8327, %v8329
        %v8331 = vrot.slane %v8317, %v8330
        %v8332 = vcombine.low %v8297, %v8305
        %v8333 = vcombine.high %v8297, %v8305
        %v8335 = vunpack.c.l.s4 1983009808
        %v8336 = vunpack.c.0.s8 %v8335
        %v8337 = vlaneseq
        %v8338 = vshrl.u32 %v8337, 7
        %v8339 = vsub.s32 %v8336, %v8338
        %v8340 = vrot.slane %v8332, %v8339
        %v8342 = vunpack.c.l.s4 1983009808
        %v8343 = vunpack.c.0.s8 %v8342
        %v8344 = vlaneseq
        %v8345 = vshrl.u32 %v8344, 7
        %v8346 = vsub.s32 %v8343, %v8345
        %v8347 = vrot.slane %v8333, %v8346
        %v8348 = vcombine.low %v8324, %v8340
        %v8349 = vcombine.high %v8324, %v8340
        %v8351 = vunpack.c.l.s4 1934713408
        %v8352 = vunpack.c.0.s8 %v8351
        %v8353 = vlaneseq
        %v8354 = vshrl.u32 %v8353, 7
        %v8355 = vsub.s32 %v8352, %v8354
        %v8356 = vrot.slane %v8348, %v8355
        %v8358 = vunpack.c.l.s4 1934713408
        %v8359 = vunpack.c.0.s8 %v8358
        %v8360 = vlaneseq
        %v8361 = vshrl.u32 %v8360, 7
        %v8362 = vsub.s32 %v8359, %v8361
        %v8363 = vrot.slane %v8349, %v8362
        %v8364 = vcombine.low %v8331, %v8347
        %v8365 = vcombine.high %v8331, %v8347
        %v8367 = vunpack.c.l.s4 1934713408
        %v8368 = vunpack.c.0.s8 %v8367
        %v8369 = vlaneseq
        %v8370 = vshrl.u32 %v8369, 7
        %v8371 = vsub.s32 %v8368, %v8370
        %v8372 = vrot.slane %v8364, %v8371
        %v8374 = vunpack.c.l.s4 1934713408
        %v8375 = vunpack.c.0.s8 %v8374
        %v8376 = vlaneseq
        %v8377 = vshrl.u32 %v8376, 7
        %v8378 = vsub.s32 %v8375, %v8377
        %v8379 = vrot.slane %v8365, %v8378
        %v8380 = vcombine.high %v8356, 0.0
        %v8381 = vcombine.high %v8363, 0.0
        %v8382 = vcombine.high %v8372, 0.0
        %v8383 = vcombine.high %v8379, 0.0
        %v8384 = vcombine.low %v8295, %v8303
        %v8385 = vcombine.high %v8295, %v8303
        %v8387 = vunpack.c.l.s4 1983009808
        %v8388 = vunpack.c.0.s8 %v8387
        %v8389 = vlaneseq
        %v8390 = vshrl.u32 %v8389, 7
        %v8391 = vsub.s32 %v8388, %v8390
        %v8392 = vrot.slane %v8384, %v8391
        %v8394 = vunpack.c.l.s4 1983009808
        %v8395 = vunpack.c.0.s8 %v8394
        %v8396 = vlaneseq
        %v8397 = vshrl.u32 %v8396, 7
        %v8398 = vsub.s32 %v8395, %v8397
        %v8399 = vrot.slane %v8385, %v8398
        %v8400 = vcombine.low %v8299, %v8307
        %v8401 = vcombine.high %v8299, %v8307
        %v8403 = vunpack.c.l.s4 1983009808
        %v8404 = vunpack.c.0.s8 %v8403
        %v8405 = vlaneseq
        %v8406 = vshrl.u32 %v8405, 7
        %v8407 = vsub.s32 %v8404, %v8406
        %v8408 = vrot.slane %v8400, %v8407
        %v8410 = vunpack.c.l.s4 1983009808
        %v8411 = vunpack.c.0.s8 %v8410
        %v8412 = vlaneseq
        %v8413 = vshrl.u32 %v8412, 7
        %v8414 = vsub.s32 %v8411, %v8413
        %v8415 = vrot.slane %v8401, %v8414
        %v8416 = vcombine.low %v8392, %v8408
        %v8417 = vcombine.high %v8392, %v8408
        %v8419 = vunpack.c.l.s4 1934713408
        %v8420 = vunpack.c.0.s8 %v8419
        %v8421 = vlaneseq
        %v8422 = vshrl.u32 %v8421, 7
        %v8423 = vsub.s32 %v8420, %v8422
        %v8424 = vrot.slane %v8416, %v8423
        %v8426 = vunpack.c.l.s4 1934713408
        %v8427 = vunpack.c.0.s8 %v8426
        %v8428 = vlaneseq
        %v8429 = vshrl.u32 %v8428, 7
        %v8430 = vsub.s32 %v8427, %v8429
        %v8431 = vrot.slane %v8417, %v8430
        %v8432 = vcombine.low %v8399, %v8415
        %v8433 = vcombine.high %v8399, %v8415
        %v8435 = vunpack.c.l.s4 1934713408
        %v8436 = vunpack.c.0.s8 %v8435
        %v8437 = vlaneseq
        %v8438 = vshrl.u32 %v8437, 7
        %v8439 = vsub.s32 %v8436, %v8438
        %v8440 = vrot.slane %v8432, %v8439
        %v8442 = vunpack.c.l.s4 1934713408
        %v8443 = vunpack.c.0.s8 %v8442
        %v8444 = vlaneseq
        %v8445 = vshrl.u32 %v8444, 7
        %v8446 = vsub.s32 %v8443, %v8445
        %v8447 = vrot.slane %v8433, %v8446
        %v8448 = vcombine.high %v8424, 0.0
        %v8449 = vcombine.high %v8431, 0.0
        %v8450 = vcombine.high %v8440, 0.0
        %v8451 = vcombine.high %v8447, 0.0
        %8453 = vrot.lane.b32.xlu0 %v8380, 16
        %v8454 = vpop.permute.xlu0 %8453
        %8457 = vrot.lane.b32.xlu0 %v8363, 32
        %v8458 = vpop.permute.xlu0 %8457
        %8461 = vrot.lane.b32.xlu0 %v8381, 48
        %v8462 = vpop.permute.xlu0 %8461
        %8465 = vrot.lane.b32.xlu0 %v8372, 64
        %v8466 = vpop.permute.xlu0 %8465
        %8469 = vrot.lane.b32.xlu0 %v8382, 80
        %v8470 = vpop.permute.xlu0 %8469
        %8473 = vrot.lane.b32.xlu0 %v8379, 96
        %v8474 = vpop.permute.xlu0 %8473
        %8477 = vrot.lane.b32.xlu0 %v8383, 112
        %v8478 = vpop.permute.xlu0 %8477
        %8481 = vrot.lane.b32.xlu0 %v8448, 16
        %v8482 = vpop.permute.xlu0 %8481
        %8485 = vrot.lane.b32.xlu0 %v8431, 32
        %v8486 = vpop.permute.xlu0 %8485
        %8489 = vrot.lane.b32.xlu0 %v8449, 48
        %v8490 = vpop.permute.xlu0 %8489
        %8493 = vrot.lane.b32.xlu0 %v8440, 64
        %v8494 = vpop.permute.xlu0 %8493
        %8497 = vrot.lane.b32.xlu0 %v8450, 80
        %v8498 = vpop.permute.xlu0 %8497
        %8501 = vrot.lane.b32.xlu0 %v8447, 96
        %v8502 = vpop.permute.xlu0 %8501
        %8505 = vrot.lane.b32.xlu0 %v8451, 112
        %v8506 = vpop.permute.xlu0 %8505
        %v8508 = vsel %vm1046, %v8356, %v8454
        %v8509 = vsel %vm1048, %v8508, %v8458
        %v8510 = vsel %vm1050, %v8509, %v8462
        %v8511 = vsel %vm1052, %v8510, %v8466
        %v8512 = vsel %vm1054, %v8511, %v8470
        %v8513 = vsel %vm1056, %v8512, %v8474
        %v8514 = vsel %vm1058, %v8513, %v8478
        %v8515 = vsel %vm1046, %v8424, %v8482
        %v8516 = vsel %vm1048, %v8515, %v8486
        %v8517 = vsel %vm1050, %v8516, %v8490
        %v8518 = vsel %vm1052, %v8517, %v8494
        %v8519 = vsel %vm1054, %v8518, %v8498
        %v8520 = vsel %vm1056, %v8519, %v8502
        %v8521 = vsel %vm1058, %v8520, %v8506
        %v8524 = vrot.slane %v8514, 4
        %v8525 = vrot.slane %v8521, 4
        %8528 = vst [vmem:[#allocation6 + $0xa0] sm:$0xf0] %v8524
        %8529 = vst [vmem:[#allocation6 + $0xa8] sm:$0xf0] %v8525
        %v8530 = vld [vmem:[#allocation5 + $0x4] sm:$0xff]
        %v8531 = vld [vmem:[#allocation5 + $0xc] sm:$0xff]
        %v8532 = vld [vmem:[#allocation5 + $0x1c] sm:$0xff]
        %v8533 = vld [vmem:[#allocation5 + $0x24] sm:$0xff]
        %v8534 = vld [vmem:[#allocation5 + $0x34] sm:$0xff]
        %v8535 = vld [vmem:[#allocation5 + $0x3c] sm:$0xff]
        %v8536 = vld [vmem:[#allocation5 + $0x4c] sm:$0xff]
        %v8537 = vld [vmem:[#allocation5 + $0x54] sm:$0xff]
        %8546 = vrot.lane.b32.xlu0 %v8530, 126
        %v8547 = vpop.permute.xlu0 %8546
        %8548 = vrot.lane.b32.xlu0 %v8531, 126
        %v8549 = vpop.permute.xlu0 %8548
        %8550 = vrot.lane.b32.xlu0 %v8532, 126
        %v8551 = vpop.permute.xlu0 %8550
        %8552 = vrot.lane.b32.xlu0 %v8533, 126
        %v8553 = vpop.permute.xlu0 %8552
        %8554 = vrot.lane.b32.xlu0 %v8534, 126
        %v8555 = vpop.permute.xlu0 %8554
        %8556 = vrot.lane.b32.xlu0 %v8535, 126
        %v8557 = vpop.permute.xlu0 %8556
        %8558 = vrot.lane.b32.xlu0 %v8536, 126
        %v8559 = vpop.permute.xlu0 %8558
        %8560 = vrot.lane.b32.xlu0 %v8537, 126
        %v8561 = vpop.permute.xlu0 %8560
        %v8570 = vcombine.low %v8547, %v8555
        %v8571 = vcombine.high %v8547, %v8555
        %v8573 = vunpack.c.l.s4 1983009808
        %v8574 = vunpack.c.0.s8 %v8573
        %v8575 = vlaneseq
        %v8576 = vshrl.u32 %v8575, 7
        %v8577 = vsub.s32 %v8574, %v8576
        %v8578 = vrot.slane %v8570, %v8577
        %v8580 = vunpack.c.l.s4 1983009808
        %v8581 = vunpack.c.0.s8 %v8580
        %v8582 = vlaneseq
        %v8583 = vshrl.u32 %v8582, 7
        %v8584 = vsub.s32 %v8581, %v8583
        %v8585 = vrot.slane %v8571, %v8584
        %v8586 = vcombine.low %v8551, %v8559
        %v8587 = vcombine.high %v8551, %v8559
        %v8589 = vunpack.c.l.s4 1983009808
        %v8590 = vunpack.c.0.s8 %v8589
        %v8591 = vlaneseq
        %v8592 = vshrl.u32 %v8591, 7
        %v8593 = vsub.s32 %v8590, %v8592
        %v8594 = vrot.slane %v8586, %v8593
        %v8596 = vunpack.c.l.s4 1983009808
        %v8597 = vunpack.c.0.s8 %v8596
        %v8598 = vlaneseq
        %v8599 = vshrl.u32 %v8598, 7
        %v8600 = vsub.s32 %v8597, %v8599
        %v8601 = vrot.slane %v8587, %v8600
        %v8602 = vcombine.low %v8578, %v8594
        %v8603 = vcombine.high %v8578, %v8594
        %v8605 = vunpack.c.l.s4 1934713408
        %v8606 = vunpack.c.0.s8 %v8605
        %v8607 = vlaneseq
        %v8608 = vshrl.u32 %v8607, 7
        %v8609 = vsub.s32 %v8606, %v8608
        %v8610 = vrot.slane %v8602, %v8609
        %v8612 = vunpack.c.l.s4 1934713408
        %v8613 = vunpack.c.0.s8 %v8612
        %v8614 = vlaneseq
        %v8615 = vshrl.u32 %v8614, 7
        %v8616 = vsub.s32 %v8613, %v8615
        %v8617 = vrot.slane %v8603, %v8616
        %v8618 = vcombine.low %v8585, %v8601
        %v8619 = vcombine.high %v8585, %v8601
        %v8621 = vunpack.c.l.s4 1934713408
        %v8622 = vunpack.c.0.s8 %v8621
        %v8623 = vlaneseq
        %v8624 = vshrl.u32 %v8623, 7
        %v8625 = vsub.s32 %v8622, %v8624
        %v8626 = vrot.slane %v8618, %v8625
        %v8628 = vunpack.c.l.s4 1934713408
        %v8629 = vunpack.c.0.s8 %v8628
        %v8630 = vlaneseq
        %v8631 = vshrl.u32 %v8630, 7
        %v8632 = vsub.s32 %v8629, %v8631
        %v8633 = vrot.slane %v8619, %v8632
        %v8634 = vcombine.high %v8610, 0.0
        %v8635 = vcombine.high %v8617, 0.0
        %v8636 = vcombine.high %v8626, 0.0
        %v8637 = vcombine.high %v8633, 0.0
        %v8638 = vcombine.low %v8549, %v8557
        %v8639 = vcombine.high %v8549, %v8557
        %v8641 = vunpack.c.l.s4 1983009808
        %v8642 = vunpack.c.0.s8 %v8641
        %v8643 = vlaneseq
        %v8644 = vshrl.u32 %v8643, 7
        %v8645 = vsub.s32 %v8642, %v8644
        %v8646 = vrot.slane %v8638, %v8645
        %v8648 = vunpack.c.l.s4 1983009808
        %v8649 = vunpack.c.0.s8 %v8648
        %v8650 = vlaneseq
        %v8651 = vshrl.u32 %v8650, 7
        %v8652 = vsub.s32 %v8649, %v8651
        %v8653 = vrot.slane %v8639, %v8652
        %v8654 = vcombine.low %v8553, %v8561
        %v8655 = vcombine.high %v8553, %v8561
        %v8657 = vunpack.c.l.s4 1983009808
        %v8658 = vunpack.c.0.s8 %v8657
        %v8659 = vlaneseq
        %v8660 = vshrl.u32 %v8659, 7
        %v8661 = vsub.s32 %v8658, %v8660
        %v8662 = vrot.slane %v8654, %v8661
        %v8664 = vunpack.c.l.s4 1983009808
        %v8665 = vunpack.c.0.s8 %v8664
        %v8666 = vlaneseq
        %v8667 = vshrl.u32 %v8666, 7
        %v8668 = vsub.s32 %v8665, %v8667
        %v8669 = vrot.slane %v8655, %v8668
        %v8670 = vcombine.low %v8646, %v8662
        %v8671 = vcombine.high %v8646, %v8662
        %v8673 = vunpack.c.l.s4 1934713408
        %v8674 = vunpack.c.0.s8 %v8673
        %v8675 = vlaneseq
        %v8676 = vshrl.u32 %v8675, 7
        %v8677 = vsub.s32 %v8674, %v8676
        %v8678 = vrot.slane %v8670, %v8677
        %v8680 = vunpack.c.l.s4 1934713408
        %v8681 = vunpack.c.0.s8 %v8680
        %v8682 = vlaneseq
        %v8683 = vshrl.u32 %v8682, 7
        %v8684 = vsub.s32 %v8681, %v8683
        %v8685 = vrot.slane %v8671, %v8684
        %v8686 = vcombine.low %v8653, %v8669
        %v8687 = vcombine.high %v8653, %v8669
        %v8689 = vunpack.c.l.s4 1934713408
        %v8690 = vunpack.c.0.s8 %v8689
        %v8691 = vlaneseq
        %v8692 = vshrl.u32 %v8691, 7
        %v8693 = vsub.s32 %v8690, %v8692
        %v8694 = vrot.slane %v8686, %v8693
        %v8696 = vunpack.c.l.s4 1934713408
        %v8697 = vunpack.c.0.s8 %v8696
        %v8698 = vlaneseq
        %v8699 = vshrl.u32 %v8698, 7
        %v8700 = vsub.s32 %v8697, %v8699
        %v8701 = vrot.slane %v8687, %v8700
        %v8702 = vcombine.high %v8678, 0.0
        %v8703 = vcombine.high %v8685, 0.0
        %v8704 = vcombine.high %v8694, 0.0
        %v8705 = vcombine.high %v8701, 0.0
        %8707 = vrot.lane.b32.xlu0 %v8634, 16
        %v8708 = vpop.permute.xlu0 %8707
        %8711 = vrot.lane.b32.xlu0 %v8617, 32
        %v8712 = vpop.permute.xlu0 %8711
        %8715 = vrot.lane.b32.xlu0 %v8635, 48
        %v8716 = vpop.permute.xlu0 %8715
        %8719 = vrot.lane.b32.xlu0 %v8626, 64
        %v8720 = vpop.permute.xlu0 %8719
        %8723 = vrot.lane.b32.xlu0 %v8636, 80
        %v8724 = vpop.permute.xlu0 %8723
        %8727 = vrot.lane.b32.xlu0 %v8633, 96
        %v8728 = vpop.permute.xlu0 %8727
        %8731 = vrot.lane.b32.xlu0 %v8637, 112
        %v8732 = vpop.permute.xlu0 %8731
        %8735 = vrot.lane.b32.xlu0 %v8702, 16
        %v8736 = vpop.permute.xlu0 %8735
        %8739 = vrot.lane.b32.xlu0 %v8685, 32
        %v8740 = vpop.permute.xlu0 %8739
        %8743 = vrot.lane.b32.xlu0 %v8703, 48
        %v8744 = vpop.permute.xlu0 %8743
        %8747 = vrot.lane.b32.xlu0 %v8694, 64
        %v8748 = vpop.permute.xlu0 %8747
        %8751 = vrot.lane.b32.xlu0 %v8704, 80
        %v8752 = vpop.permute.xlu0 %8751
        %8755 = vrot.lane.b32.xlu0 %v8701, 96
        %v8756 = vpop.permute.xlu0 %8755
        %8759 = vrot.lane.b32.xlu0 %v8705, 112
        %v8760 = vpop.permute.xlu0 %8759
        %v8762 = vsel %vm1046, %v8610, %v8708
        %v8763 = vsel %vm1048, %v8762, %v8712
        %v8764 = vsel %vm1050, %v8763, %v8716
        %v8765 = vsel %vm1052, %v8764, %v8720
        %v8766 = vsel %vm1054, %v8765, %v8724
        %v8767 = vsel %vm1056, %v8766, %v8728
        %v8768 = vsel %vm1058, %v8767, %v8732
        %v8769 = vsel %vm1046, %v8678, %v8736
        %v8770 = vsel %vm1048, %v8769, %v8740
        %v8771 = vsel %vm1050, %v8770, %v8744
        %v8772 = vsel %vm1052, %v8771, %v8748
        %v8773 = vsel %vm1054, %v8772, %v8752
        %v8774 = vsel %vm1056, %v8773, %v8756
        %v8775 = vsel %vm1058, %v8774, %v8760
        %8776 = vst [vmem:[#allocation6 + $0xb0] sm:$0xf] %v8768
        %8777 = vst [vmem:[#allocation6 + $0xb8] sm:$0xf] %v8775
        %v8778 = vld [vmem:[#allocation5 + $0x4] sm:$0xff]
        %v8779 = vld [vmem:[#allocation5 + $0xc] sm:$0xff]
        %v8780 = vld [vmem:[#allocation5 + $0x1c] sm:$0xff]
        %v8781 = vld [vmem:[#allocation5 + $0x24] sm:$0xff]
        %v8782 = vld [vmem:[#allocation5 + $0x34] sm:$0xff]
        %v8783 = vld [vmem:[#allocation5 + $0x3c] sm:$0xff]
        %v8784 = vld [vmem:[#allocation5 + $0x4c] sm:$0xff]
        %v8785 = vld [vmem:[#allocation5 + $0x54] sm:$0xff]
        %8794 = vrot.lane.b32.xlu0 %v8778, 125
        %v8795 = vpop.permute.xlu0 %8794
        %8796 = vrot.lane.b32.xlu0 %v8779, 125
        %v8797 = vpop.permute.xlu0 %8796
        %8798 = vrot.lane.b32.xlu0 %v8780, 125
        %v8799 = vpop.permute.xlu0 %8798
        %8800 = vrot.lane.b32.xlu0 %v8781, 125
        %v8801 = vpop.permute.xlu0 %8800
        %8802 = vrot.lane.b32.xlu0 %v8782, 125
        %v8803 = vpop.permute.xlu0 %8802
        %8804 = vrot.lane.b32.xlu0 %v8783, 125
        %v8805 = vpop.permute.xlu0 %8804
        %8806 = vrot.lane.b32.xlu0 %v8784, 125
        %v8807 = vpop.permute.xlu0 %8806
        %8808 = vrot.lane.b32.xlu0 %v8785, 125
        %v8809 = vpop.permute.xlu0 %8808
        %v8818 = vcombine.low %v8795, %v8803
        %v8819 = vcombine.high %v8795, %v8803
        %v8821 = vunpack.c.l.s4 1983009808
        %v8822 = vunpack.c.0.s8 %v8821
        %v8823 = vlaneseq
        %v8824 = vshrl.u32 %v8823, 7
        %v8825 = vsub.s32 %v8822, %v8824
        %v8826 = vrot.slane %v8818, %v8825
        %v8828 = vunpack.c.l.s4 1983009808
        %v8829 = vunpack.c.0.s8 %v8828
        %v8830 = vlaneseq
        %v8831 = vshrl.u32 %v8830, 7
        %v8832 = vsub.s32 %v8829, %v8831
        %v8833 = vrot.slane %v8819, %v8832
        %v8834 = vcombine.low %v8799, %v8807
        %v8835 = vcombine.high %v8799, %v8807
        %v8837 = vunpack.c.l.s4 1983009808
        %v8838 = vunpack.c.0.s8 %v8837
        %v8839 = vlaneseq
        %v8840 = vshrl.u32 %v8839, 7
        %v8841 = vsub.s32 %v8838, %v8840
        %v8842 = vrot.slane %v8834, %v8841
        %v8844 = vunpack.c.l.s4 1983009808
        %v8845 = vunpack.c.0.s8 %v8844
        %v8846 = vlaneseq
        %v8847 = vshrl.u32 %v8846, 7
        %v8848 = vsub.s32 %v8845, %v8847
        %v8849 = vrot.slane %v8835, %v8848
        %v8850 = vcombine.low %v8826, %v8842
        %v8851 = vcombine.high %v8826, %v8842
        %v8853 = vunpack.c.l.s4 1934713408
        %v8854 = vunpack.c.0.s8 %v8853
        %v8855 = vlaneseq
        %v8856 = vshrl.u32 %v8855, 7
        %v8857 = vsub.s32 %v8854, %v8856
        %v8858 = vrot.slane %v8850, %v8857
        %v8860 = vunpack.c.l.s4 1934713408
        %v8861 = vunpack.c.0.s8 %v8860
        %v8862 = vlaneseq
        %v8863 = vshrl.u32 %v8862, 7
        %v8864 = vsub.s32 %v8861, %v8863
        %v8865 = vrot.slane %v8851, %v8864
        %v8866 = vcombine.low %v8833, %v8849
        %v8867 = vcombine.high %v8833, %v8849
        %v8869 = vunpack.c.l.s4 1934713408
        %v8870 = vunpack.c.0.s8 %v8869
        %v8871 = vlaneseq
        %v8872 = vshrl.u32 %v8871, 7
        %v8873 = vsub.s32 %v8870, %v8872
        %v8874 = vrot.slane %v8866, %v8873
        %v8876 = vunpack.c.l.s4 1934713408
        %v8877 = vunpack.c.0.s8 %v8876
        %v8878 = vlaneseq
        %v8879 = vshrl.u32 %v8878, 7
        %v8880 = vsub.s32 %v8877, %v8879
        %v8881 = vrot.slane %v8867, %v8880
        %v8882 = vcombine.high %v8858, 0.0
        %v8883 = vcombine.high %v8865, 0.0
        %v8884 = vcombine.high %v8874, 0.0
        %v8885 = vcombine.high %v8881, 0.0
        %v8886 = vcombine.low %v8797, %v8805
        %v8887 = vcombine.high %v8797, %v8805
        %v8889 = vunpack.c.l.s4 1983009808
        %v8890 = vunpack.c.0.s8 %v8889
        %v8891 = vlaneseq
        %v8892 = vshrl.u32 %v8891, 7
        %v8893 = vsub.s32 %v8890, %v8892
        %v8894 = vrot.slane %v8886, %v8893
        %v8896 = vunpack.c.l.s4 1983009808
        %v8897 = vunpack.c.0.s8 %v8896
        %v8898 = vlaneseq
        %v8899 = vshrl.u32 %v8898, 7
        %v8900 = vsub.s32 %v8897, %v8899
        %v8901 = vrot.slane %v8887, %v8900
        %v8902 = vcombine.low %v8801, %v8809
        %v8903 = vcombine.high %v8801, %v8809
        %v8905 = vunpack.c.l.s4 1983009808
        %v8906 = vunpack.c.0.s8 %v8905
        %v8907 = vlaneseq
        %v8908 = vshrl.u32 %v8907, 7
        %v8909 = vsub.s32 %v8906, %v8908
        %v8910 = vrot.slane %v8902, %v8909
        %v8912 = vunpack.c.l.s4 1983009808
        %v8913 = vunpack.c.0.s8 %v8912
        %v8914 = vlaneseq
        %v8915 = vshrl.u32 %v8914, 7
        %v8916 = vsub.s32 %v8913, %v8915
        %v8917 = vrot.slane %v8903, %v8916
        %v8918 = vcombine.low %v8894, %v8910
        %v8919 = vcombine.high %v8894, %v8910
        %v8921 = vunpack.c.l.s4 1934713408
        %v8922 = vunpack.c.0.s8 %v8921
        %v8923 = vlaneseq
        %v8924 = vshrl.u32 %v8923, 7
        %v8925 = vsub.s32 %v8922, %v8924
        %v8926 = vrot.slane %v8918, %v8925
        %v8928 = vunpack.c.l.s4 1934713408
        %v8929 = vunpack.c.0.s8 %v8928
        %v8930 = vlaneseq
        %v8931 = vshrl.u32 %v8930, 7
        %v8932 = vsub.s32 %v8929, %v8931
        %v8933 = vrot.slane %v8919, %v8932
        %v8934 = vcombine.low %v8901, %v8917
        %v8935 = vcombine.high %v8901, %v8917
        %v8937 = vunpack.c.l.s4 1934713408
        %v8938 = vunpack.c.0.s8 %v8937
        %v8939 = vlaneseq
        %v8940 = vshrl.u32 %v8939, 7
        %v8941 = vsub.s32 %v8938, %v8940
        %v8942 = vrot.slane %v8934, %v8941
        %v8944 = vunpack.c.l.s4 1934713408
        %v8945 = vunpack.c.0.s8 %v8944
        %v8946 = vlaneseq
        %v8947 = vshrl.u32 %v8946, 7
        %v8948 = vsub.s32 %v8945, %v8947
        %v8949 = vrot.slane %v8935, %v8948
        %v8950 = vcombine.high %v8926, 0.0
        %v8951 = vcombine.high %v8933, 0.0
        %v8952 = vcombine.high %v8942, 0.0
        %v8953 = vcombine.high %v8949, 0.0
        %8955 = vrot.lane.b32.xlu0 %v8882, 16
        %v8956 = vpop.permute.xlu0 %8955
        %8959 = vrot.lane.b32.xlu0 %v8865, 32
        %v8960 = vpop.permute.xlu0 %8959
        %8963 = vrot.lane.b32.xlu0 %v8883, 48
        %v8964 = vpop.permute.xlu0 %8963
        %8967 = vrot.lane.b32.xlu0 %v8874, 64
        %v8968 = vpop.permute.xlu0 %8967
        %8971 = vrot.lane.b32.xlu0 %v8884, 80
        %v8972 = vpop.permute.xlu0 %8971
        %8975 = vrot.lane.b32.xlu0 %v8881, 96
        %v8976 = vpop.permute.xlu0 %8975
        %8979 = vrot.lane.b32.xlu0 %v8885, 112
        %v8980 = vpop.permute.xlu0 %8979
        %8983 = vrot.lane.b32.xlu0 %v8950, 16
        %v8984 = vpop.permute.xlu0 %8983
        %8987 = vrot.lane.b32.xlu0 %v8933, 32
        %v8988 = vpop.permute.xlu0 %8987
        %8991 = vrot.lane.b32.xlu0 %v8951, 48
        %v8992 = vpop.permute.xlu0 %8991
        %8995 = vrot.lane.b32.xlu0 %v8942, 64
        %v8996 = vpop.permute.xlu0 %8995
        %8999 = vrot.lane.b32.xlu0 %v8952, 80
        %v9000 = vpop.permute.xlu0 %8999
        %9003 = vrot.lane.b32.xlu0 %v8949, 96
        %v9004 = vpop.permute.xlu0 %9003
        %9007 = vrot.lane.b32.xlu0 %v8953, 112
        %v9008 = vpop.permute.xlu0 %9007
        %v9010 = vsel %vm1046, %v8858, %v8956
        %v9011 = vsel %vm1048, %v9010, %v8960
        %v9012 = vsel %vm1050, %v9011, %v8964
        %v9013 = vsel %vm1052, %v9012, %v8968
        %v9014 = vsel %vm1054, %v9013, %v8972
        %v9015 = vsel %vm1056, %v9014, %v8976
        %v9016 = vsel %vm1058, %v9015, %v8980
        %v9017 = vsel %vm1046, %v8926, %v8984
        %v9018 = vsel %vm1048, %v9017, %v8988
        %v9019 = vsel %vm1050, %v9018, %v8992
        %v9020 = vsel %vm1052, %v9019, %v8996
        %v9021 = vsel %vm1054, %v9020, %v9000
        %v9022 = vsel %vm1056, %v9021, %v9004
        %v9023 = vsel %vm1058, %v9022, %v9008
        %v9026 = vrot.slane %v9016, 4
        %v9027 = vrot.slane %v9023, 4
        %9030 = vst [vmem:[#allocation6 + $0xb0] sm:$0xf0] %v9026
        %9031 = vst [vmem:[#allocation6 + $0xb8] sm:$0xf0] %v9027
        %v9032 = vld [vmem:[#allocation5 + $0x4] sm:$0xff]
        %v9033 = vld [vmem:[#allocation5 + $0xc] sm:$0xff]
        %v9034 = vld [vmem:[#allocation5 + $0x1c] sm:$0xff]
        %v9035 = vld [vmem:[#allocation5 + $0x24] sm:$0xff]
        %v9036 = vld [vmem:[#allocation5 + $0x34] sm:$0xff]
        %v9037 = vld [vmem:[#allocation5 + $0x3c] sm:$0xff]
        %v9038 = vld [vmem:[#allocation5 + $0x4c] sm:$0xff]
        %v9039 = vld [vmem:[#allocation5 + $0x54] sm:$0xff]
        %9048 = vrot.lane.b32.xlu0 %v9032, 124
        %v9049 = vpop.permute.xlu0 %9048
        %9050 = vrot.lane.b32.xlu0 %v9033, 124
        %v9051 = vpop.permute.xlu0 %9050
        %9052 = vrot.lane.b32.xlu0 %v9034, 124
        %v9053 = vpop.permute.xlu0 %9052
        %9054 = vrot.lane.b32.xlu0 %v9035, 124
        %v9055 = vpop.permute.xlu0 %9054
        %9056 = vrot.lane.b32.xlu0 %v9036, 124
        %v9057 = vpop.permute.xlu0 %9056
        %9058 = vrot.lane.b32.xlu0 %v9037, 124
        %v9059 = vpop.permute.xlu0 %9058
        %9060 = vrot.lane.b32.xlu0 %v9038, 124
        %v9061 = vpop.permute.xlu0 %9060
        %9062 = vrot.lane.b32.xlu0 %v9039, 124
        %v9063 = vpop.permute.xlu0 %9062
        %v9072 = vcombine.low %v9049, %v9057
        %v9073 = vcombine.high %v9049, %v9057
        %v9075 = vunpack.c.l.s4 1983009808
        %v9076 = vunpack.c.0.s8 %v9075
        %v9077 = vlaneseq
        %v9078 = vshrl.u32 %v9077, 7
        %v9079 = vsub.s32 %v9076, %v9078
        %v9080 = vrot.slane %v9072, %v9079
        %v9082 = vunpack.c.l.s4 1983009808
        %v9083 = vunpack.c.0.s8 %v9082
        %v9084 = vlaneseq
        %v9085 = vshrl.u32 %v9084, 7
        %v9086 = vsub.s32 %v9083, %v9085
        %v9087 = vrot.slane %v9073, %v9086
        %v9088 = vcombine.low %v9053, %v9061
        %v9089 = vcombine.high %v9053, %v9061
        %v9091 = vunpack.c.l.s4 1983009808
        %v9092 = vunpack.c.0.s8 %v9091
        %v9093 = vlaneseq
        %v9094 = vshrl.u32 %v9093, 7
        %v9095 = vsub.s32 %v9092, %v9094
        %v9096 = vrot.slane %v9088, %v9095
        %v9098 = vunpack.c.l.s4 1983009808
        %v9099 = vunpack.c.0.s8 %v9098
        %v9100 = vlaneseq
        %v9101 = vshrl.u32 %v9100, 7
        %v9102 = vsub.s32 %v9099, %v9101
        %v9103 = vrot.slane %v9089, %v9102
        %v9104 = vcombine.low %v9080, %v9096
        %v9105 = vcombine.high %v9080, %v9096
        %v9107 = vunpack.c.l.s4 1934713408
        %v9108 = vunpack.c.0.s8 %v9107
        %v9109 = vlaneseq
        %v9110 = vshrl.u32 %v9109, 7
        %v9111 = vsub.s32 %v9108, %v9110
        %v9112 = vrot.slane %v9104, %v9111
        %v9114 = vunpack.c.l.s4 1934713408
        %v9115 = vunpack.c.0.s8 %v9114
        %v9116 = vlaneseq
        %v9117 = vshrl.u32 %v9116, 7
        %v9118 = vsub.s32 %v9115, %v9117
        %v9119 = vrot.slane %v9105, %v9118
        %v9120 = vcombine.low %v9087, %v9103
        %v9121 = vcombine.high %v9087, %v9103
        %v9123 = vunpack.c.l.s4 1934713408
        %v9124 = vunpack.c.0.s8 %v9123
        %v9125 = vlaneseq
        %v9126 = vshrl.u32 %v9125, 7
        %v9127 = vsub.s32 %v9124, %v9126
        %v9128 = vrot.slane %v9120, %v9127
        %v9130 = vunpack.c.l.s4 1934713408
        %v9131 = vunpack.c.0.s8 %v9130
        %v9132 = vlaneseq
        %v9133 = vshrl.u32 %v9132, 7
        %v9134 = vsub.s32 %v9131, %v9133
        %v9135 = vrot.slane %v9121, %v9134
        %v9136 = vcombine.high %v9112, 0.0
        %v9137 = vcombine.high %v9119, 0.0
        %v9138 = vcombine.high %v9128, 0.0
        %v9139 = vcombine.high %v9135, 0.0
        %v9140 = vcombine.low %v9051, %v9059
        %v9141 = vcombine.high %v9051, %v9059
        %v9143 = vunpack.c.l.s4 1983009808
        %v9144 = vunpack.c.0.s8 %v9143
        %v9145 = vlaneseq
        %v9146 = vshrl.u32 %v9145, 7
        %v9147 = vsub.s32 %v9144, %v9146
        %v9148 = vrot.slane %v9140, %v9147
        %v9150 = vunpack.c.l.s4 1983009808
        %v9151 = vunpack.c.0.s8 %v9150
        %v9152 = vlaneseq
        %v9153 = vshrl.u32 %v9152, 7
        %v9154 = vsub.s32 %v9151, %v9153
        %v9155 = vrot.slane %v9141, %v9154
        %v9156 = vcombine.low %v9055, %v9063
        %v9157 = vcombine.high %v9055, %v9063
        %v9159 = vunpack.c.l.s4 1983009808
        %v9160 = vunpack.c.0.s8 %v9159
        %v9161 = vlaneseq
        %v9162 = vshrl.u32 %v9161, 7
        %v9163 = vsub.s32 %v9160, %v9162
        %v9164 = vrot.slane %v9156, %v9163
        %v9166 = vunpack.c.l.s4 1983009808
        %v9167 = vunpack.c.0.s8 %v9166
        %v9168 = vlaneseq
        %v9169 = vshrl.u32 %v9168, 7
        %v9170 = vsub.s32 %v9167, %v9169
        %v9171 = vrot.slane %v9157, %v9170
        %v9172 = vcombine.low %v9148, %v9164
        %v9173 = vcombine.high %v9148, %v9164
        %v9175 = vunpack.c.l.s4 1934713408
        %v9176 = vunpack.c.0.s8 %v9175
        %v9177 = vlaneseq
        %v9178 = vshrl.u32 %v9177, 7
        %v9179 = vsub.s32 %v9176, %v9178
        %v9180 = vrot.slane %v9172, %v9179
        %v9182 = vunpack.c.l.s4 1934713408
        %v9183 = vunpack.c.0.s8 %v9182
        %v9184 = vlaneseq
        %v9185 = vshrl.u32 %v9184, 7
        %v9186 = vsub.s32 %v9183, %v9185
        %v9187 = vrot.slane %v9173, %v9186
        %v9188 = vcombine.low %v9155, %v9171
        %v9189 = vcombine.high %v9155, %v9171
        %v9191 = vunpack.c.l.s4 1934713408
        %v9192 = vunpack.c.0.s8 %v9191
        %v9193 = vlaneseq
        %v9194 = vshrl.u32 %v9193, 7
        %v9195 = vsub.s32 %v9192, %v9194
        %v9196 = vrot.slane %v9188, %v9195
        %v9198 = vunpack.c.l.s4 1934713408
        %v9199 = vunpack.c.0.s8 %v9198
        %v9200 = vlaneseq
        %v9201 = vshrl.u32 %v9200, 7
        %v9202 = vsub.s32 %v9199, %v9201
        %v9203 = vrot.slane %v9189, %v9202
        %v9204 = vcombine.high %v9180, 0.0
        %v9205 = vcombine.high %v9187, 0.0
        %v9206 = vcombine.high %v9196, 0.0
        %v9207 = vcombine.high %v9203, 0.0
        %9209 = vrot.lane.b32.xlu0 %v9136, 16
        %v9210 = vpop.permute.xlu0 %9209
        %9213 = vrot.lane.b32.xlu0 %v9119, 32
        %v9214 = vpop.permute.xlu0 %9213
        %9217 = vrot.lane.b32.xlu0 %v9137, 48
        %v9218 = vpop.permute.xlu0 %9217
        %9221 = vrot.lane.b32.xlu0 %v9128, 64
        %v9222 = vpop.permute.xlu0 %9221
        %9225 = vrot.lane.b32.xlu0 %v9138, 80
        %v9226 = vpop.permute.xlu0 %9225
        %9229 = vrot.lane.b32.xlu0 %v9135, 96
        %v9230 = vpop.permute.xlu0 %9229
        %9233 = vrot.lane.b32.xlu0 %v9139, 112
        %v9234 = vpop.permute.xlu0 %9233
        %9237 = vrot.lane.b32.xlu0 %v9204, 16
        %v9238 = vpop.permute.xlu0 %9237
        %9241 = vrot.lane.b32.xlu0 %v9187, 32
        %v9242 = vpop.permute.xlu0 %9241
        %9245 = vrot.lane.b32.xlu0 %v9205, 48
        %v9246 = vpop.permute.xlu0 %9245
        %9249 = vrot.lane.b32.xlu0 %v9196, 64
        %v9250 = vpop.permute.xlu0 %9249
        %9253 = vrot.lane.b32.xlu0 %v9206, 80
        %v9254 = vpop.permute.xlu0 %9253
        %9257 = vrot.lane.b32.xlu0 %v9203, 96
        %v9258 = vpop.permute.xlu0 %9257
        %9261 = vrot.lane.b32.xlu0 %v9207, 112
        %v9262 = vpop.permute.xlu0 %9261
        %v9264 = vsel %vm1046, %v9112, %v9210
        %v9265 = vsel %vm1048, %v9264, %v9214
        %v9266 = vsel %vm1050, %v9265, %v9218
        %v9267 = vsel %vm1052, %v9266, %v9222
        %v9268 = vsel %vm1054, %v9267, %v9226
        %v9269 = vsel %vm1056, %v9268, %v9230
        %v9270 = vsel %vm1058, %v9269, %v9234
        %v9271 = vsel %vm1046, %v9180, %v9238
        %v9272 = vsel %vm1048, %v9271, %v9242
        %v9273 = vsel %vm1050, %v9272, %v9246
        %v9274 = vsel %vm1052, %v9273, %v9250
        %v9275 = vsel %vm1054, %v9274, %v9254
        %v9276 = vsel %vm1056, %v9275, %v9258
        %v9277 = vsel %vm1058, %v9276, %v9262
        %9278 = vst [vmem:[#allocation6 + $0xc0] sm:$0xf] %v9270
        %9279 = vst [vmem:[#allocation6 + $0xc8] sm:$0xf] %v9277
        %v9280 = vld [vmem:[#allocation6] sm:$0xff]
        %v9281 = vld [vmem:[#allocation6 + $0x8] sm:$0xff]
        %v9282 = vld [vmem:[#allocation6 + $0x10] sm:$0xff]
        %v9283 = vld [vmem:[#allocation6 + $0x18] sm:$0xff]
        %v9284 = vld [vmem:[#allocation6 + $0x20] sm:$0xff]
        %v9285 = vld [vmem:[#allocation6 + $0x28] sm:$0xff]
        %v9286 = vld [vmem:[#allocation6 + $0x30] sm:$0xff]
        %v9287 = vld [vmem:[#allocation6 + $0x38] sm:$0xff]
        %v9288 = vld [vmem:[#allocation6 + $0x40] sm:$0xff]
        %v9289 = vld [vmem:[#allocation6 + $0x48] sm:$0xff]
        %v9290 = vld [vmem:[#allocation6 + $0x50] sm:$0xff]
        %v9291 = vld [vmem:[#allocation6 + $0x58] sm:$0xff]
        %v9292 = vld [vmem:[#allocation6 + $0x60] sm:$0xff]
        %v9293 = vld [vmem:[#allocation6 + $0x68] sm:$0xff]
        %v9294 = vld [vmem:[#allocation6 + $0x70] sm:$0xff]
        %v9295 = vld [vmem:[#allocation6 + $0x78] sm:$0xff]
        %v9296 = vld [vmem:[#allocation6 + $0x80] sm:$0xff]
        %v9297 = vld [vmem:[#allocation6 + $0x88] sm:$0xff]
        %v9298 = vld [vmem:[#allocation6 + $0x90] sm:$0xff]
        %v9299 = vld [vmem:[#allocation6 + $0x98] sm:$0xff]
        %v9300 = vld [vmem:[#allocation6 + $0xa0] sm:$0xff]
        %v9301 = vld [vmem:[#allocation6 + $0xa8] sm:$0xff]
        %v9302 = vld [vmem:[#allocation6 + $0xb0] sm:$0xff]
        %v9303 = vld [vmem:[#allocation6 + $0xb8] sm:$0xff]
        %v9304 = vld [vmem:[#allocation6 + $0xc0] sm:$0xf]
        %v9305 = vld [vmem:[#allocation6 + $0xc8] sm:$0xf]
        %9307 = vset.pattern.permute.xlu0 0
        %9308 = vperm.xlu0 %9307, %v3112
        %v9309 = vpop.permute.xlu0 %9308
        %vm9311 = vcmask 818176
        %v9313 = vsel %vm9311, %v3111, 0
        %v9316 = vsel %vm355, %v9304, 0
        %v9319 = vsel %vm355, %v9305, 0
        %9321 = vmatprep.subr.mxu0 %v9281
        %9322 = vmatpush1.msra.mxu0 %v9280
        %9323 = vmatprep.subr.mxu0 %v9283
        %9324 = vmatpush1.msra.mxu0 %v9282
        %9325 = vmatprep.subr.mxu0 %v9285
        %9326 = vmatpush1.msra.mxu0 %v9284
        %9327 = vmatprep.subr.mxu0 %v9287
        %9328 = vmatpush1.msra.mxu0 %v9286
        %9329 = vmatprep.subr.mxu0 %v9289
        %9330 = vmatpush1.msra.mxu0 %v9288
        %9331 = vmatprep.subr.mxu0 %v9291
        %9332 = vmatpush1.msra.mxu0 %v9290
        %9333 = vmatprep.subr.mxu0 %v9293
        %9334 = vmatpush1.msra.mxu0 %v9292
        %9335 = vmatprep.subr.mxu0 %v9295
        %9336 = vmatpush1.msra.mxu0 %v9294
        %9337 = vmatprep.subr.mxu0 %v9297
        %9338 = vmatpush1.msra.mxu0 %v9296
        %9339 = vmatprep.subr.mxu0 %v9299
        %9340 = vmatpush1.msra.mxu0 %v9298
        %9341 = vmatprep.subr.mxu0 %v9301
        %9342 = vmatpush1.msra.mxu0 %v9300
        %9343 = vmatprep.subr.mxu0 %v9303
        %9344 = vmatpush1.msra.mxu0 %v9302
        %9345 = vmatprep.subr.mxu0 %v9319
        %9346 = vmatpush1.msra.mxu0 %v9316
        %9347 = vmatprep.subr.mxu0 0.0
        %9348 = vmatpush1.msra.mxu0 0.0
        %9349 = vmatprep.subr.mxu0 0.0
        %9350 = vmatpush1.msra.mxu0 0.0
        %9351 = vmatprep.subr.mxu0 0.0
        %9352 = vmatpush1.msra.mxu0 0.0
        %9353 = vmatprep.subr.mxu0 0.0
        %9354 = vmatpush1.msra.mxu0 0.0
        %9355 = vmatprep.subr.mxu0 0.0
        %9356 = vmatpush1.msra.mxu0 0.0
        %9357 = vmatprep.subr.mxu0 0.0
        %9358 = vmatpush1.msra.mxu0 0.0
        %9359 = vmatprep.subr.mxu0 0.0
        %9360 = vmatpush1.msra.mxu0 0.0
        %9361 = vmatprep.subr.mxu0 0.0
        %9362 = vmatpush1.msra.mxu0 0.0
        %9363 = vmatprep.subr.mxu0 0.0
        %9364 = vmatpush1.msra.mxu0 0.0
        %9365 = vmatprep.subr.mxu0 0.0
        %9366 = vmatpush1.msra.mxu0 0.0
        %9367 = vmatprep.subr.mxu0 0.0
        %9368 = vmatpush1.msra.mxu0 0.0
        %9369 = vmatprep.subr.mxu0 0.0
        %9370 = vmatpush1.msra.mxu0 0.0
        %9371 = vmatprep.subr.mxu0 0.0
        %9372 = vmatpush1.msra.mxu0 0.0
        %9373 = vmatprep.subr.mxu0 0.0
        %9374 = vmatpush1.msra.mxu0 0.0
        %9375 = vmatprep.subr.mxu0 0.0
        %9376 = vmatpush1.msra.mxu0 0.0
        %9377 = vmatprep.subr.mxu0 0.0
        %9378 = vmatpush1.msra.mxu0 0.0
        %9379 = vmatprep.subr.mxu0 0.0
        %9380 = vmatpush1.msra.mxu0 0.0
        %9381 = vmatprep.subr.mxu0 0.0
        %9382 = vmatpush1.msra.mxu0 0.0
        %9383 = vmatprep.subr.mxu0 0.0
        %9384 = vmatpush1.msra.mxu0 0.0
        %9385 = vmatprep.mubr.f32.mxu0 0.0
        %9386 = vmatmul.mubr.f32.gmra.mrb[0].mxu0 %v9313
        %v9387 = vpop.f32.mrb[0].mxu0
        %v9388 = vadd.f32 %v9309, %v9387
        %v9389 = vpop.f32.mrb[0].mxu0
        %v9390 = vadd.f32 %v9309, %v9389
        %9391 = vdwg.mxu0
        %v9392 = vmax.f32 %v9388, 0.0
        %v9393 = vmax.f32 %v9390, 0.0
        %v9394 = vrot.slane %v331, 4
        %9396 = vrot.lane.b32.xlu0 %v331, 112
        %v9397 = vpop.permute.xlu0 %9396
        %v9398 = vrot.slane %v9397, 4
        %9400 = vrot.lane.b32.xlu0 %v331, 96
        %v9401 = vpop.permute.xlu0 %9400
        %v9402 = vrot.slane %v9401, 4
        %9404 = vrot.lane.b32.xlu0 %v331, 80
        %v9405 = vpop.permute.xlu0 %9404
        %v9406 = vrot.slane %v9405, 4
        %9408 = vrot.lane.b32.xlu0 %v331, 64
        %v9409 = vpop.permute.xlu0 %9408
        %v9410 = vrot.slane %v9409, 4
        %9412 = vrot.lane.b32.xlu0 %v331, 48
        %v9413 = vpop.permute.xlu0 %9412
        %v9414 = vrot.slane %v9413, 4
        %9416 = vrot.lane.b32.xlu0 %v331, 32
        %v9417 = vpop.permute.xlu0 %9416
        %v9418 = vrot.slane %v9417, 4
        %9420 = vrot.lane.b32.xlu0 %v331, 16
        %v9421 = vpop.permute.xlu0 %9420
        %v9422 = vrot.slane %v9421, 4
        %v9431 = vcombine.low %v331, %v9401
        %v9433 = vunpack.c.l.s4 1983009808
        %v9434 = vunpack.c.0.s8 %v9433
        %v9435 = vlaneseq
        %v9436 = vshrl.u32 %v9435, 7
        %v9437 = vsub.s32 %v9434, %v9436
        %v9438 = vrot.slane %v9431, %v9437
        %v9439 = vcombine.low %v9397, %v9405
        %v9441 = vunpack.c.l.s4 1983009808
        %v9442 = vunpack.c.0.s8 %v9441
        %v9443 = vlaneseq
        %v9444 = vshrl.u32 %v9443, 7
        %v9445 = vsub.s32 %v9442, %v9444
        %v9446 = vrot.slane %v9439, %v9445
        %v9447 = vcombine.low %v9438, %v9446
        %v9448 = vcombine.high %v9438, %v9446
        %v9450 = vunpack.c.l.s4 1934713408
        %v9451 = vunpack.c.0.s8 %v9450
        %v9452 = vlaneseq
        %v9453 = vshrl.u32 %v9452, 7
        %v9454 = vsub.s32 %v9451, %v9453
        %v9455 = vrot.slane %v9447, %v9454
        %v9457 = vunpack.c.l.s4 1934713408
        %v9458 = vunpack.c.0.s8 %v9457
        %v9459 = vlaneseq
        %v9460 = vshrl.u32 %v9459, 7
        %v9461 = vsub.s32 %v9458, %v9460
        %v9462 = vrot.slane %v9448, %v9461
        %v9463 = vcombine.high %v9455, 0.0
        %v9464 = vcombine.high %v9462, 0.0
        %v9465 = vcombine.low %v9409, %v9417
        %v9467 = vunpack.c.l.s4 1983009808
        %v9468 = vunpack.c.0.s8 %v9467
        %v9469 = vlaneseq
        %v9470 = vshrl.u32 %v9469, 7
        %v9471 = vsub.s32 %v9468, %v9470
        %v9472 = vrot.slane %v9465, %v9471
        %v9473 = vcombine.low %v9413, %v9421
        %v9475 = vunpack.c.l.s4 1983009808
        %v9476 = vunpack.c.0.s8 %v9475
        %v9477 = vlaneseq
        %v9478 = vshrl.u32 %v9477, 7
        %v9479 = vsub.s32 %v9476, %v9478
        %v9480 = vrot.slane %v9473, %v9479
        %v9481 = vcombine.low %v9472, %v9480
        %v9482 = vcombine.high %v9472, %v9480
        %v9484 = vunpack.c.l.s4 1934713408
        %v9485 = vunpack.c.0.s8 %v9484
        %v9486 = vlaneseq
        %v9487 = vshrl.u32 %v9486, 7
        %v9488 = vsub.s32 %v9485, %v9487
        %v9489 = vrot.slane %v9481, %v9488
        %v9491 = vunpack.c.l.s4 1934713408
        %v9492 = vunpack.c.0.s8 %v9491
        %v9493 = vlaneseq
        %v9494 = vshrl.u32 %v9493, 7
        %v9495 = vsub.s32 %v9492, %v9494
        %v9496 = vrot.slane %v9482, %v9495
        %v9497 = vcombine.high %v9489, 0.0
        %v9498 = vcombine.high %v9496, 0.0
        %v9499 = vcombine.low %v9394, %v9402
        %v9501 = vunpack.c.l.s4 1983009808
        %v9502 = vunpack.c.0.s8 %v9501
        %v9503 = vlaneseq
        %v9504 = vshrl.u32 %v9503, 7
        %v9505 = vsub.s32 %v9502, %v9504
        %v9506 = vrot.slane %v9499, %v9505
        %v9507 = vcombine.low %v9398, %v9406
        %v9509 = vunpack.c.l.s4 1983009808
        %v9510 = vunpack.c.0.s8 %v9509
        %v9511 = vlaneseq
        %v9512 = vshrl.u32 %v9511, 7
        %v9513 = vsub.s32 %v9510, %v9512
        %v9514 = vrot.slane %v9507, %v9513
        %v9515 = vcombine.low %v9506, %v9514
        %v9516 = vcombine.high %v9506, %v9514
        %v9518 = vunpack.c.l.s4 1934713408
        %v9519 = vunpack.c.0.s8 %v9518
        %v9520 = vlaneseq
        %v9521 = vshrl.u32 %v9520, 7
        %v9522 = vsub.s32 %v9519, %v9521
        %v9523 = vrot.slane %v9515, %v9522
        %v9525 = vunpack.c.l.s4 1934713408
        %v9526 = vunpack.c.0.s8 %v9525
        %v9527 = vlaneseq
        %v9528 = vshrl.u32 %v9527, 7
        %v9529 = vsub.s32 %v9526, %v9528
        %v9530 = vrot.slane %v9516, %v9529
        %v9531 = vcombine.high %v9523, 0.0
        %v9532 = vcombine.high %v9530, 0.0
        %v9533 = vcombine.low %v9410, %v9418
        %v9535 = vunpack.c.l.s4 1983009808
        %v9536 = vunpack.c.0.s8 %v9535
        %v9537 = vlaneseq
        %v9538 = vshrl.u32 %v9537, 7
        %v9539 = vsub.s32 %v9536, %v9538
        %v9540 = vrot.slane %v9533, %v9539
        %v9541 = vcombine.low %v9414, %v9422
        %v9543 = vunpack.c.l.s4 1983009808
        %v9544 = vunpack.c.0.s8 %v9543
        %v9545 = vlaneseq
        %v9546 = vshrl.u32 %v9545, 7
        %v9547 = vsub.s32 %v9544, %v9546
        %v9548 = vrot.slane %v9541, %v9547
        %v9549 = vcombine.low %v9540, %v9548
        %v9550 = vcombine.high %v9540, %v9548
        %v9552 = vunpack.c.l.s4 1934713408
        %v9553 = vunpack.c.0.s8 %v9552
        %v9554 = vlaneseq
        %v9555 = vshrl.u32 %v9554, 7
        %v9556 = vsub.s32 %v9553, %v9555
        %v9557 = vrot.slane %v9549, %v9556
        %v9559 = vunpack.c.l.s4 1934713408
        %v9560 = vunpack.c.0.s8 %v9559
        %v9561 = vlaneseq
        %v9562 = vshrl.u32 %v9561, 7
        %v9563 = vsub.s32 %v9560, %v9562
        %v9564 = vrot.slane %v9550, %v9563
        %v9565 = vcombine.high %v9557, 0.0
        %v9566 = vcombine.high %v9564, 0.0
        %9567 = vst.msk [vmem:[#allocation2] sm:$0xff] %vm791, -inf
        %9568 = vst.msk [vmem:[#allocation2 + $0x8] sm:$0xff] %vm791, -inf
        %9569 = vst.msk [vmem:[#allocation2 + $0x10] sm:$0x3] %vm794, -inf
        %9570 = vst.msk [vmem:[#allocation2 + $0x18] sm:$0xff] %vm791, -inf
        %9571 = vst.msk [vmem:[#allocation2 + $0x20] sm:$0xff] %vm791, -inf
        %9572 = vst.msk [vmem:[#allocation2 + $0x28] sm:$0x3] %vm794, -inf
        %9573 = vst.msk [vmem:[#allocation2 + $0x30] sm:$0xff] %vm791, -inf
        %9574 = vst.msk [vmem:[#allocation2 + $0x38] sm:$0xff] %vm791, -inf
        %9575 = vst.msk [vmem:[#allocation2 + $0x40] sm:$0x3] %vm794, -inf
        %9576 = vst.msk [vmem:[#allocation2 + $0x48] sm:$0xff] %vm791, -inf
        %9577 = vst.msk [vmem:[#allocation2 + $0x50] sm:$0xff] %vm791, -inf
        %9578 = vst.msk [vmem:[#allocation2 + $0x58] sm:$0x3] %vm794, -inf
        %v9595 = vcombine.low %v9455, %v9489
        %v9596 = vcombine.low %v9523, %v9557
        %v9597 = vcombine.low %v9463, %v9497
        %v9598 = vcombine.low %v9531, %v9565
        %v9599 = vcombine.low %v9462, %v9496
        %v9600 = vcombine.low %v9530, %v9564
        %v9601 = vcombine.low %v9464, %v9498
        %v9602 = vcombine.low %v9532, %v9566
        %9603 = vrot.lane.b32.xlu0 %v9595, 1
        %v9604 = vpop.permute.xlu0 %9603
        %9605 = vrot.lane.b32.xlu0 %v9596, 1
        %v9606 = vpop.permute.xlu0 %9605
        %9607 = vrot.lane.b32.xlu0 %v9597, 1
        %v9608 = vpop.permute.xlu0 %9607
        %9609 = vrot.lane.b32.xlu0 %v9598, 1
        %v9610 = vpop.permute.xlu0 %9609
        %9611 = vrot.lane.b32.xlu0 %v9599, 1
        %v9612 = vpop.permute.xlu0 %9611
        %9613 = vrot.lane.b32.xlu0 %v9600, 1
        %v9614 = vpop.permute.xlu0 %9613
        %9615 = vrot.lane.b32.xlu0 %v9601, 1
        %v9616 = vpop.permute.xlu0 %9615
        %9617 = vrot.lane.b32.xlu0 %v9602, 1
        %v9618 = vpop.permute.xlu0 %9617
        %9627 = vst.msk [vmem:[#allocation2 + $0x1] sm:$0xff] %vm837, %v9604
        %9628 = vst.msk [vmem:[#allocation2 + $0x9] sm:$0xff] %vm837, %v9606
        %9629 = vst.msk [vmem:[#allocation2 + $0x19] sm:$0xff] %vm837, %v9608
        %9630 = vst.msk [vmem:[#allocation2 + $0x21] sm:$0xff] %vm837, %v9610
        %9631 = vst.msk [vmem:[#allocation2 + $0x31] sm:$0xff] %vm837, %v9612
        %9632 = vst.msk [vmem:[#allocation2 + $0x39] sm:$0xff] %vm837, %v9614
        %9633 = vst.msk [vmem:[#allocation2 + $0x49] sm:$0xff] %vm837, %v9616
        %9634 = vst.msk [vmem:[#allocation2 + $0x51] sm:$0xff] %vm837, %v9618
        %v9635 = vld [vmem:[#allocation2] sm:$0xff]
        %v9636 = vld [vmem:[#allocation2 + $0x8] sm:$0xff]
        %v9637 = vld [vmem:[#allocation2 + $0x18] sm:$0xff]
        %v9638 = vld [vmem:[#allocation2 + $0x20] sm:$0xff]
        %v9639 = vld [vmem:[#allocation2 + $0x30] sm:$0xff]
        %v9640 = vld [vmem:[#allocation2 + $0x38] sm:$0xff]
        %v9641 = vld [vmem:[#allocation2 + $0x48] sm:$0xff]
        %v9642 = vld [vmem:[#allocation2 + $0x50] sm:$0xff]
        %v9643 = vld [vmem:[#allocation2 + $0x1] sm:$0xff]
        %v9644 = vld [vmem:[#allocation2 + $0x9] sm:$0xff]
        %v9645 = vld [vmem:[#allocation2 + $0x19] sm:$0xff]
        %v9646 = vld [vmem:[#allocation2 + $0x21] sm:$0xff]
        %v9647 = vld [vmem:[#allocation2 + $0x31] sm:$0xff]
        %v9648 = vld [vmem:[#allocation2 + $0x39] sm:$0xff]
        %v9649 = vld [vmem:[#allocation2 + $0x49] sm:$0xff]
        %v9650 = vld [vmem:[#allocation2 + $0x51] sm:$0xff]
        %v9651 = vmax.f32 %v9635, %v9643
        %v9652 = vmax.f32 %v9636, %v9644
        %v9653 = vmax.f32 %v9637, %v9645
        %v9654 = vmax.f32 %v9638, %v9646
        %v9655 = vmax.f32 %v9639, %v9647
        %v9656 = vmax.f32 %v9640, %v9648
        %v9657 = vmax.f32 %v9641, %v9649
        %v9658 = vmax.f32 %v9642, %v9650
        %v9659 = vld [vmem:[#allocation2 + $0x2] sm:$0xff]
        %v9660 = vld [vmem:[#allocation2 + $0xa] sm:$0xff]
        %v9661 = vld [vmem:[#allocation2 + $0x1a] sm:$0xff]
        %v9662 = vld [vmem:[#allocation2 + $0x22] sm:$0xff]
        %v9663 = vld [vmem:[#allocation2 + $0x32] sm:$0xff]
        %v9664 = vld [vmem:[#allocation2 + $0x3a] sm:$0xff]
        %v9665 = vld [vmem:[#allocation2 + $0x4a] sm:$0xff]
        %v9666 = vld [vmem:[#allocation2 + $0x52] sm:$0xff]
        %v9667 = vmax.f32 %v9651, %v9659
        %v9668 = vmax.f32 %v9652, %v9660
        %v9669 = vmax.f32 %v9653, %v9661
        %v9670 = vmax.f32 %v9654, %v9662
        %v9671 = vmax.f32 %v9655, %v9663
        %v9672 = vmax.f32 %v9656, %v9664
        %v9673 = vmax.f32 %v9657, %v9665
        %v9674 = vmax.f32 %v9658, %v9666
        %9683 = vrot.lane.b32.xlu0 %v9667, 127
        %v9684 = vpop.permute.xlu0 %9683
        %9685 = vrot.lane.b32.xlu0 %v9668, 127
        %v9686 = vpop.permute.xlu0 %9685
        %9687 = vrot.lane.b32.xlu0 %v9669, 127
        %v9688 = vpop.permute.xlu0 %9687
        %9689 = vrot.lane.b32.xlu0 %v9670, 127
        %v9690 = vpop.permute.xlu0 %9689
        %9691 = vrot.lane.b32.xlu0 %v9671, 127
        %v9692 = vpop.permute.xlu0 %9691
        %9693 = vrot.lane.b32.xlu0 %v9672, 127
        %v9694 = vpop.permute.xlu0 %9693
        %9695 = vrot.lane.b32.xlu0 %v9673, 127
        %v9696 = vpop.permute.xlu0 %9695
        %9697 = vrot.lane.b32.xlu0 %v9674, 127
        %v9698 = vpop.permute.xlu0 %9697
        %v9707 = vmax.f32 %v9667, %v9684
        %v9708 = vmax.f32 %v9668, %v9686
        %v9709 = vmax.f32 %v9669, %v9688
        %v9710 = vmax.f32 %v9670, %v9690
        %v9711 = vmax.f32 %v9671, %v9692
        %v9712 = vmax.f32 %v9672, %v9694
        %v9713 = vmax.f32 %v9673, %v9696
        %v9714 = vmax.f32 %v9674, %v9698
        %9715 = vrot.lane.b32.xlu0 %v9667, 126
        %v9716 = vpop.permute.xlu0 %9715
        %9717 = vrot.lane.b32.xlu0 %v9668, 126
        %v9718 = vpop.permute.xlu0 %9717
        %9719 = vrot.lane.b32.xlu0 %v9669, 126
        %v9720 = vpop.permute.xlu0 %9719
        %9721 = vrot.lane.b32.xlu0 %v9670, 126
        %v9722 = vpop.permute.xlu0 %9721
        %9723 = vrot.lane.b32.xlu0 %v9671, 126
        %v9724 = vpop.permute.xlu0 %9723
        %9725 = vrot.lane.b32.xlu0 %v9672, 126
        %v9726 = vpop.permute.xlu0 %9725
        %9727 = vrot.lane.b32.xlu0 %v9673, 126
        %v9728 = vpop.permute.xlu0 %9727
        %9729 = vrot.lane.b32.xlu0 %v9674, 126
        %v9730 = vpop.permute.xlu0 %9729
        %v9739 = vmax.f32 %v9707, %v9716
        %v9740 = vmax.f32 %v9708, %v9718
        %v9741 = vmax.f32 %v9709, %v9720
        %v9742 = vmax.f32 %v9710, %v9722
        %v9743 = vmax.f32 %v9711, %v9724
        %v9744 = vmax.f32 %v9712, %v9726
        %v9745 = vmax.f32 %v9713, %v9728
        %v9746 = vmax.f32 %v9714, %v9730
        %v9747 = vld [vmem:[%s7] sm:$0xff]
        %v9748 = vcombine.low %v9739, %v9743
        %v9749 = vcombine.high %v9739, %v9743
        %v9751 = vunpack.c.l.s4 1983009808
        %v9752 = vunpack.c.0.s8 %v9751
        %v9753 = vlaneseq
        %v9754 = vshrl.u32 %v9753, 7
        %v9755 = vsub.s32 %v9752, %v9754
        %v9756 = vrot.slane %v9748, %v9755
        %v9758 = vunpack.c.l.s4 1983009808
        %v9759 = vunpack.c.0.s8 %v9758
        %v9760 = vlaneseq
        %v9761 = vshrl.u32 %v9760, 7
        %v9762 = vsub.s32 %v9759, %v9761
        %v9763 = vrot.slane %v9749, %v9762
        %v9764 = vcombine.low %v9741, %v9745
        %v9765 = vcombine.high %v9741, %v9745
        %v9767 = vunpack.c.l.s4 1983009808
        %v9768 = vunpack.c.0.s8 %v9767
        %v9769 = vlaneseq
        %v9770 = vshrl.u32 %v9769, 7
        %v9771 = vsub.s32 %v9768, %v9770
        %v9772 = vrot.slane %v9764, %v9771
        %v9774 = vunpack.c.l.s4 1983009808
        %v9775 = vunpack.c.0.s8 %v9774
        %v9776 = vlaneseq
        %v9777 = vshrl.u32 %v9776, 7
        %v9778 = vsub.s32 %v9775, %v9777
        %v9779 = vrot.slane %v9765, %v9778
        %v9780 = vcombine.low %v9756, %v9772
        %v9781 = vcombine.high %v9756, %v9772
        %v9783 = vunpack.c.l.s4 1934713408
        %v9784 = vunpack.c.0.s8 %v9783
        %v9785 = vlaneseq
        %v9786 = vshrl.u32 %v9785, 7
        %v9787 = vsub.s32 %v9784, %v9786
        %v9788 = vrot.slane %v9780, %v9787
        %v9790 = vunpack.c.l.s4 1934713408
        %v9791 = vunpack.c.0.s8 %v9790
        %v9792 = vlaneseq
        %v9793 = vshrl.u32 %v9792, 7
        %v9794 = vsub.s32 %v9791, %v9793
        %v9795 = vrot.slane %v9781, %v9794
        %v9796 = vcombine.low %v9763, %v9779
        %v9797 = vcombine.high %v9763, %v9779
        %v9799 = vunpack.c.l.s4 1934713408
        %v9800 = vunpack.c.0.s8 %v9799
        %v9801 = vlaneseq
        %v9802 = vshrl.u32 %v9801, 7
        %v9803 = vsub.s32 %v9800, %v9802
        %v9804 = vrot.slane %v9796, %v9803
        %v9806 = vunpack.c.l.s4 1934713408
        %v9807 = vunpack.c.0.s8 %v9806
        %v9808 = vlaneseq
        %v9809 = vshrl.u32 %v9808, 7
        %v9810 = vsub.s32 %v9807, %v9809
        %v9811 = vrot.slane %v9797, %v9810
        %v9812 = vcombine.high %v9788, 0.0
        %v9813 = vcombine.high %v9795, 0.0
        %v9814 = vcombine.high %v9804, 0.0
        %v9815 = vcombine.high %v9811, 0.0
        %v9816 = vcombine.low %v9740, %v9744
        %v9817 = vcombine.high %v9740, %v9744
        %v9819 = vunpack.c.l.s4 1983009808
        %v9820 = vunpack.c.0.s8 %v9819
        %v9821 = vlaneseq
        %v9822 = vshrl.u32 %v9821, 7
        %v9823 = vsub.s32 %v9820, %v9822
        %v9824 = vrot.slane %v9816, %v9823
        %v9826 = vunpack.c.l.s4 1983009808
        %v9827 = vunpack.c.0.s8 %v9826
        %v9828 = vlaneseq
        %v9829 = vshrl.u32 %v9828, 7
        %v9830 = vsub.s32 %v9827, %v9829
        %v9831 = vrot.slane %v9817, %v9830
        %v9832 = vcombine.low %v9742, %v9746
        %v9833 = vcombine.high %v9742, %v9746
        %v9835 = vunpack.c.l.s4 1983009808
        %v9836 = vunpack.c.0.s8 %v9835
        %v9837 = vlaneseq
        %v9838 = vshrl.u32 %v9837, 7
        %v9839 = vsub.s32 %v9836, %v9838
        %v9840 = vrot.slane %v9832, %v9839
        %v9842 = vunpack.c.l.s4 1983009808
        %v9843 = vunpack.c.0.s8 %v9842
        %v9844 = vlaneseq
        %v9845 = vshrl.u32 %v9844, 7
        %v9846 = vsub.s32 %v9843, %v9845
        %v9847 = vrot.slane %v9833, %v9846
        %v9848 = vcombine.low %v9824, %v9840
        %v9849 = vcombine.high %v9824, %v9840
        %v9851 = vunpack.c.l.s4 1934713408
        %v9852 = vunpack.c.0.s8 %v9851
        %v9853 = vlaneseq
        %v9854 = vshrl.u32 %v9853, 7
        %v9855 = vsub.s32 %v9852, %v9854
        %v9856 = vrot.slane %v9848, %v9855
        %v9858 = vunpack.c.l.s4 1934713408
        %v9859 = vunpack.c.0.s8 %v9858
        %v9860 = vlaneseq
        %v9861 = vshrl.u32 %v9860, 7
        %v9862 = vsub.s32 %v9859, %v9861
        %v9863 = vrot.slane %v9849, %v9862
        %v9864 = vcombine.low %v9831, %v9847
        %v9865 = vcombine.high %v9831, %v9847
        %v9867 = vunpack.c.l.s4 1934713408
        %v9868 = vunpack.c.0.s8 %v9867
        %v9869 = vlaneseq
        %v9870 = vshrl.u32 %v9869, 7
        %v9871 = vsub.s32 %v9868, %v9870
        %v9872 = vrot.slane %v9864, %v9871
        %v9874 = vunpack.c.l.s4 1934713408
        %v9875 = vunpack.c.0.s8 %v9874
        %v9876 = vlaneseq
        %v9877 = vshrl.u32 %v9876, 7
        %v9878 = vsub.s32 %v9875, %v9877
        %v9879 = vrot.slane %v9865, %v9878
        %v9880 = vcombine.high %v9856, 0.0
        %v9881 = vcombine.high %v9863, 0.0
        %v9882 = vcombine.high %v9872, 0.0
        %v9883 = vcombine.high %v9879, 0.0
        %9885 = vrot.lane.b32.xlu0 %v9812, 16
        %v9886 = vpop.permute.xlu0 %9885
        %9889 = vrot.lane.b32.xlu0 %v9795, 32
        %v9890 = vpop.permute.xlu0 %9889
        %9893 = vrot.lane.b32.xlu0 %v9813, 48
        %v9894 = vpop.permute.xlu0 %9893
        %9897 = vrot.lane.b32.xlu0 %v9804, 64
        %v9898 = vpop.permute.xlu0 %9897
        %9901 = vrot.lane.b32.xlu0 %v9814, 80
        %v9902 = vpop.permute.xlu0 %9901
        %9905 = vrot.lane.b32.xlu0 %v9811, 96
        %v9906 = vpop.permute.xlu0 %9905
        %9909 = vrot.lane.b32.xlu0 %v9815, 112
        %v9910 = vpop.permute.xlu0 %9909
        %9913 = vrot.lane.b32.xlu0 %v9880, 16
        %v9914 = vpop.permute.xlu0 %9913
        %9917 = vrot.lane.b32.xlu0 %v9863, 32
        %v9918 = vpop.permute.xlu0 %9917
        %9921 = vrot.lane.b32.xlu0 %v9881, 48
        %v9922 = vpop.permute.xlu0 %9921
        %9925 = vrot.lane.b32.xlu0 %v9872, 64
        %v9926 = vpop.permute.xlu0 %9925
        %9929 = vrot.lane.b32.xlu0 %v9882, 80
        %v9930 = vpop.permute.xlu0 %9929
        %9933 = vrot.lane.b32.xlu0 %v9879, 96
        %v9934 = vpop.permute.xlu0 %9933
        %9937 = vrot.lane.b32.xlu0 %v9883, 112
        %v9938 = vpop.permute.xlu0 %9937
        %v9940 = vsel %vm1046, %v9788, %v9886
        %v9941 = vsel %vm1048, %v9940, %v9890
        %v9942 = vsel %vm1050, %v9941, %v9894
        %v9943 = vsel %vm1052, %v9942, %v9898
        %v9944 = vsel %vm1054, %v9943, %v9902
        %v9945 = vsel %vm1056, %v9944, %v9906
        %v9946 = vsel %vm1058, %v9945, %v9910
        %v9947 = vsel %vm1046, %v9856, %v9914
        %v9948 = vsel %vm1048, %v9947, %v9918
        %v9949 = vsel %vm1050, %v9948, %v9922
        %v9950 = vsel %vm1052, %v9949, %v9926
        %v9951 = vsel %vm1054, %v9950, %v9930
        %v9952 = vsel %vm1056, %v9951, %v9934
        %v9953 = vsel %vm1058, %v9952, %v9938
        %v9954 = vld [vmem:[%s8] sm:$0xff]
        %9956 = vset.pattern.permute.xlu0 0
        %9957 = vperm.xlu0 %9956, %v9954
        %v9958 = vpop.permute.xlu0 %9957
        %v9961 = vsel %vm348, %v9747, 0
        %v9964 = vsel %vm355, %v9946, 0
        %v9967 = vsel %vm355, %v9953, 0
        %9969 = vmatprep.subr.mxu0 %v9967
        %9970 = vmatpush1.msra.mxu0 %v9964
        %9971 = vmatprep.subr.mxu0 0.0
        %9972 = vmatpush1.msra.mxu0 0.0
        %9973 = vmatprep.subr.mxu0 0.0
        %9974 = vmatpush1.msra.mxu0 0.0
        %9975 = vmatprep.subr.mxu0 0.0
        %9976 = vmatpush1.msra.mxu0 0.0
        %9977 = vmatprep.subr.mxu0 0.0
        %9978 = vmatpush1.msra.mxu0 0.0
        %9979 = vmatprep.subr.mxu0 0.0
        %9980 = vmatpush1.msra.mxu0 0.0
        %9981 = vmatprep.subr.mxu0 0.0
        %9982 = vmatpush1.msra.mxu0 0.0
        %9983 = vmatprep.subr.mxu0 0.0
        %9984 = vmatpush1.msra.mxu0 0.0
        %9985 = vmatprep.subr.mxu0 0.0
        %9986 = vmatpush1.msra.mxu0 0.0
        %9987 = vmatprep.subr.mxu0 0.0
        %9988 = vmatpush1.msra.mxu0 0.0
        %9989 = vmatprep.subr.mxu0 0.0
        %9990 = vmatpush1.msra.mxu0 0.0
        %9991 = vmatprep.subr.mxu0 0.0
        %9992 = vmatpush1.msra.mxu0 0.0
        %9993 = vmatprep.subr.mxu0 0.0
        %9994 = vmatpush1.msra.mxu0 0.0
        %9995 = vmatprep.subr.mxu0 0.0
        %9996 = vmatpush1.msra.mxu0 0.0
        %9997 = vmatprep.subr.mxu0 0.0
        %9998 = vmatpush1.msra.mxu0 0.0
        %9999 = vmatprep.subr.mxu0 0.0
        %10000 = vmatpush1.msra.mxu0 0.0
        %10001 = vmatprep.subr.mxu0 0.0
        %10002 = vmatpush1.msra.mxu0 0.0
        %10003 = vmatprep.subr.mxu0 0.0
        %10004 = vmatpush1.msra.mxu0 0.0
        %10005 = vmatprep.subr.mxu0 0.0
        %10006 = vmatpush1.msra.mxu0 0.0
        %10007 = vmatprep.subr.mxu0 0.0
        %10008 = vmatpush1.msra.mxu0 0.0
        %10009 = vmatprep.subr.mxu0 0.0
        %10010 = vmatpush1.msra.mxu0 0.0
        %10011 = vmatprep.subr.mxu0 0.0
        %10012 = vmatpush1.msra.mxu0 0.0
        %10013 = vmatprep.subr.mxu0 0.0
        %10014 = vmatpush1.msra.mxu0 0.0
        %10015 = vmatprep.subr.mxu0 0.0
        %10016 = vmatpush1.msra.mxu0 0.0
        %10017 = vmatprep.subr.mxu0 0.0
        %10018 = vmatpush1.msra.mxu0 0.0
        %10019 = vmatprep.subr.mxu0 0.0
        %10020 = vmatpush1.msra.mxu0 0.0
        %10021 = vmatprep.subr.mxu0 0.0
        %10022 = vmatpush1.msra.mxu0 0.0
        %10023 = vmatprep.subr.mxu0 0.0
        %10024 = vmatpush1.msra.mxu0 0.0
        %10025 = vmatprep.subr.mxu0 0.0
        %10026 = vmatpush1.msra.mxu0 0.0
        %10027 = vmatprep.subr.mxu0 0.0
        %10028 = vmatpush1.msra.mxu0 0.0
        %10029 = vmatprep.subr.mxu0 0.0
        %10030 = vmatpush1.msra.mxu0 0.0
        %10031 = vmatprep.subr.mxu0 0.0
        %10032 = vmatpush1.msra.mxu0 0.0
        %10033 = vmatprep.mubr.f32.mxu0 0.0
        %10034 = vmatmul.mubr.f32.gmra.mrb[0].mxu0 %v9961
        %v10035 = vpop.f32.mrb[0].mxu0
        %v10036 = vadd.f32 %v9958, %v10035
        %v10037 = vpop.f32.mrb[0].mxu0
        %v10038 = vadd.f32 %v9958, %v10037
        %10039 = vdwg.mxu0
        %v10040 = vmax.f32 %v10036, 0.0
        %v10041 = vmax.f32 %v10038, 0.0
        %10042 = vst [vmem:[%s325] sm:$0xff] %v437
        %10043 = vst [vmem:[%s325 + $0x8] sm:$0xff] %v438
        %10044 = vst [vmem:[%s325 + $0x10] sm:$0xff] %v3109
        %10045 = vst [vmem:[%s325 + $0x18] sm:$0xff] %v3110
        %10046 = vst [vmem:[%s325 + $0x20] sm:$0xff] %v9392
        %10047 = vst [vmem:[%s325 + $0x28] sm:$0xff] %v9393
        %10048 = vst [vmem:[%s325 + $0x30] sm:$0xff] %v10040
        %10049 = vst [vmem:[%s325 + $0x38] sm:$0xff] %v10041
        %s10050 = sand.u32 %s225, 1
        %s10051 = scalar_lea.sflag [#allocation8], %s10050
        %s10052 = sand.u32 %s225, 1
        %s10053 = smul.addr %s10052, 64
        %s10054 = scalar_lea.vmem [#allocation7], %s10053
        // Predicated region
        $region57: #{tpu_custom_call.1} parent=55 // pred_check
          %p10055 = pneg %p235
        $region58: #{tpu_custom_call.1} parent=55 // pred_check_branch
          %10057 = sbr.rel (%p10055) target = $region60
        $region59: #{tpu_custom_call.1} parent=55 // pred_region
          %s10059 = ssub.s32 1024, 1024
          %10060 = vsyncadd %s10051, %s10059
          %s10061 = smul.addr %s23, 8
          %s10062 = smul.addr %s10061, 128
          %s10063 = scalar_lea.hbm %s9, %s10062
          %s10064 = sshll.u32 %s10054, 4
          %s10065 = int_to_ptr.vmem [resolvable:$true] %s10064
          %10070 = dma.vmem_to_hbm [thread:$0]  %s10065, 1024, %s10063, %s10051, 256, 256, 16
        $region60: #{tpu_custom_call.1} parent=55 // pred_fallthru
          _
      $region56: #{tpu_custom_call.1} parent=5 // pred_fallthru
        _
      %p10071 = scmp.le.s32.totalorder 2, %s18
      // Predicated region
      $region61: #{tpu_custom_call.1} parent=5 // pred_check
        %p10072 = pneg %p10071
      $region62: #{tpu_custom_call.1} parent=5 // pred_check_branch
        %10074 = sbr.rel (%p10072) target = $region64
      $region63: #{tpu_custom_call.1} parent=5 // pred_region
        %s10075 = ssub.s32 %s18, 2
        // Predicated region
        $region65: #{tpu_custom_call.1} parent=63 // pred_check
          %p10076 = pneg %p241
        $region66: #{tpu_custom_call.1} parent=63 // pred_check_branch
          %10078 = sbr.rel (%p10076) target = $region68
        $region67: #{tpu_custom_call.1} parent=63 // pred_region
          %s10079 = sand.u32 %s226, 1
          %s10080 = scalar_lea.sflag [#allocation8], %s10079
          %s10081 = sand.u32 %s226, 1
          %s10082 = smul.addr %s10081, 64
          %s10083 = scalar_lea.vmem [#allocation7], %s10082
          %10084 = dma.done %s10080, 1024
        $region68: #{tpu_custom_call.1} parent=63 // pred_fallthru
          _
      $region64: #{tpu_custom_call.1} parent=5 // pred_fallthru
        _
    $region6: #{tpu_custom_call.1} parent=1 // loop_footer
      %s22 = sadd.s32 1, %s18
    $region7: #{tpu_custom_call.1} parent=1 // loop_footer_branch
      %17 = sbr.rel target = $region3
    $region8: #{tpu_custom_call.1} parent=1 // loop_exit
      _
    %10085 = vsyncpa [#allocation8], 1
    %s10086 = scalar_lea.sflag [#allocation8], 1
    %10087 = vsyncpa %s10086, 1

</llo_original>
